<compile_context>
chip_gen: v6e
topology: v6e:2x2x1
jax: 0.10.0
libtpu: 0.0.40
codegen_flags: <defaults>
</compile_context>

<pallas_src>
import jax
import jax.numpy as jnp
from jax.experimental import pallas as pl
from jax.experimental.pallas import tpu as pltpu

# ---------------- config (small, TPU-friendly) ----------------
B = 2            # batch
S = 16           # sequence length
H = 128          # hidden size (bert-base-chinese uses 768; scaled down)
N_HEADS = 4
D_HEAD = H // N_HEADS
INTER = 512      # FFN intermediate
N_LAYERS = 2
VOCAB = 128
MAX_POS = 64
N_CLASSES = 3
LN_EPS = 1e-12

# fc head: hidden -> 512 -> 256 -> 128 -> 64 -> 32 -> 16 -> 8 -> n_classes
FC_DIMS = [H, 512, 256, 128, 64, 32, 16, 8, N_CLASSES]
FC_PAD = [max(d, 128) for d in FC_DIMS]   # lane-dense padded widths


# ---------------- in-kernel helpers (f32 element-wise) ----------------
def _layernorm(x, g, b, eps=LN_EPS):
    mu = jnp.mean(x, axis=-1, keepdims=True)
    var = jnp.mean((x - mu) * (x - mu), axis=-1, keepdims=True)
    inv = jax.lax.rsqrt(var + eps)
    return (x - mu) * inv * g + b


def _gelu(y):
    # tanh-approx GELU (BERT activation)
    return 0.5 * y * (1.0 + jnp.tanh(0.7978845608028654 * (y + 0.044715 * y * y * y)))


def _mm(x_f32, w_bf16):
    # bf16 MXU matmul, f32 accumulation
    return jnp.dot(x_f32.astype(jnp.bfloat16), w_bf16,
                   preferred_element_type=jnp.float32)


# ---------------- single fully-fused kernel ----------------
def _fused_bert_kernel(x_ref, mask_ref,
                       emb_g_ref, emb_b_ref,
                       qkv_w_ref, qkv_b_ref,
                       o_w_ref, o_b_ref,
                       ln1_g_ref, ln1_b_ref,
                       i_w_ref, i_b_ref,
                       o2_w_ref, o2_b_ref,
                       ln2_g_ref, ln2_b_ref,
                       pw_ref, pb_ref,
                       *rest):
    fc_refs = rest[:-1]
    out_ref = rest[-1]

    # ---- embeddings LN (batch folded: activations live as (B*S, H)) ----
    x = x_ref[...].reshape(B * S, H)                       # f32
    mask = mask_ref[...]                                   # (B, 1, S) additive bias
    x = _layernorm(x, emb_g_ref[...], emb_b_ref[...])

    scale = 1.0 / (D_HEAD ** 0.5)
    for l in range(N_LAYERS):                              # static unroll (2 layers)
        qkv_w_l = qkv_w_ref[l]
        qkv_b_l = qkv_b_ref[l]
        o_w_l = o_w_ref[l]
        o_b_l = o_b_ref[l]

        # ---- fused QKV projection on the whole (B*S) batch ----
        qkv = _mm(x, qkv_w_l) + qkv_b_l                    # (B*S, 3H) f32
        qkv3 = qkv.reshape(B, S, 3 * H)

        # ---- per-head attention, batched over B; head-merge folded into O-proj ----
        attn = jnp.zeros((B * S, H), jnp.float32)
        for h in range(N_HEADS):
            q = qkv3[:, :, h * D_HEAD:(h + 1) * D_HEAD]                  # (B,S,Dh)
            k = qkv3[:, :, H + h * D_HEAD:H + (h + 1) * D_HEAD]
            v = qkv3[:, :, 2 * H + h * D_HEAD:2 * H + (h + 1) * D_HEAD]
            s = jnp.einsum('bqd,bkd->bqk',
                           q.astype(jnp.bfloat16), k.astype(jnp.bfloat16),
                           preferred_element_type=jnp.float32) * scale + mask
            s = s - jnp.max(s, axis=-1, keepdims=True)
            p = jnp.exp(s)
            p = p * pl.reciprocal(jnp.sum(p, axis=-1, keepdims=True), approx=True)
            ctx = jnp.einsum('bqk,bkd->bqd',
                             p.astype(jnp.bfloat16), v.astype(jnp.bfloat16),
                             preferred_element_type=jnp.float32)         # (B,S,Dh)
            # No lane concat: accumulate ctx_h @ O[h*Dh:(h+1)*Dh, :] directly.
            attn = attn + _mm(ctx.reshape(B * S, D_HEAD),
                              o_w_l[h * D_HEAD:(h + 1) * D_HEAD, :])

        # ---- O-proj bias + residual + LN ----
        x = _layernorm(x + attn + o_b_l, ln1_g_ref[l], ln1_b_ref[l])

        # ---- FFN + residual + LN ----
        ffn = _gelu(_mm(x, i_w_ref[l]) + i_b_ref[l])
        x = _layernorm(x + _mm(ffn, o2_w_ref[l]) + o2_b_ref[l],
                       ln2_g_ref[l], ln2_b_ref[l])

    # ---- epilogue: pooler (tanh on CLS row) + 8-layer FC head, in-kernel ----
    cls = x.reshape(B, S, H)[:, 0, :]                      # (B, H)
    y = jnp.tanh(_mm(cls, pw_ref[...]) + pb_ref[...])
    n_fc = len(fc_refs) // 2
    for i in range(n_fc):
        w = fc_refs[2 * i][...]
        b = fc_refs[2 * i + 1][...]
        # torch fc has ReLU after every Linear (incl. the last one)
        y = jnp.maximum(_mm(y, w) + b, 0.0)
    out_ref[...] = y                                       # (B, 128) lane-dense


def _full(shape):
    zeros = (0,) * len(shape)
    return pl.BlockSpec(shape, lambda *_: zeros)


def fused_bert_call(x_emb, mask_bias, ep, hp):
    args = [x_emb, mask_bias,
            ep["emb_ln_g"], ep["emb_ln_b"],
            ep["qkv_w"], ep["qkv_b"],
            ep["o_w"], ep["o_b"],
            ep["ln1_g"], ep["ln1_b"],
            ep["i_w"], ep["i_b"],
            ep["o2_w"], ep["o2_b"],
            ep["ln2_g"], ep["ln2_b"],
            hp["pooler_w"], hp["pooler_b"]]
    for (w, b) in hp["fc"]:
        args += [w, b]

    in_specs = [_full(a.shape) for a in args]
    out_pad = FC_PAD[-1]

    return pl.pallas_call(
        _fused_bert_kernel,
        out_shape=jax.ShapeDtypeStruct((B, out_pad), jnp.float32),
        grid=(1,),
        in_specs=in_specs,
        out_specs=_full((B, out_pad)),
        compiler_params=pltpu.CompilerParams(
            dimension_semantics=("arbitrary",)),
    )(*args)


# ---------------- parameter init (deterministic) ----------------
def init_params(key):
    scale = 0.02
    keys = iter(jax.random.split(key, 256))

    def nrm(shape, dtype=jnp.bfloat16):
        return (scale * jax.random.normal(next(keys), shape, jnp.float32)).astype(dtype)

    emb = {
        "word_emb": nrm((VOCAB, H), jnp.float32),
        "pos_emb": nrm((MAX_POS, H), jnp.float32),
        "type_emb": nrm((2, H), jnp.float32),
    }

    layers = []
    for _ in range(N_LAYERS):
        layers.append(dict(
            qkv_w=jnp.concatenate([nrm((H, H)), nrm((H, H)), nrm((H, H))], axis=1),
            qkv_b=jnp.zeros((1, 3 * H), jnp.float32),
            o_w=nrm((H, H)), o_b=jnp.zeros((1, H), jnp.float32),
            ln1_g=jnp.ones((1, H), jnp.float32), ln1_b=jnp.zeros((1, H), jnp.float32),
            i_w=nrm((H, INTER)), i_b=jnp.zeros((1, INTER), jnp.float32),
            o2_w=nrm((INTER, H)), o2_b=jnp.zeros((1, H), jnp.float32),
            ln2_g=jnp.ones((1, H), jnp.float32), ln2_b=jnp.zeros((1, H), jnp.float32),
        ))
    enc = {k: jnp.stack([ly[k] for ly in layers]) for k in layers[0]}
    enc["emb_ln_g"] = jnp.ones((1, H), jnp.float32)
    enc["emb_ln_b"] = jnp.zeros((1, H), jnp.float32)

    # FC head weights, zero-padded to lane-dense widths (>=128 lanes).
    fc = []
    for i in range(len(FC_DIMS) - 1):
        k_in, k_out = FC_DIMS[i], FC_DIMS[i + 1]
        p_in, p_out = FC_PAD[i], FC_PAD[i + 1]
        w = jnp.zeros((p_in, p_out), jnp.bfloat16).at[:k_in, :k_out].set(
            nrm((k_in, k_out)))
        b = jnp.zeros((1, p_out), jnp.float32)
        fc.append((w, b))

    head = {"pooler_w": nrm((H, H)),
            "pooler_b": jnp.zeros((1, H), jnp.float32),
            "fc": fc}

    return {"emb": emb, "enc": enc, "head": head}


# ---------------- model forward ----------------
def bert_model_forward(params, input_ids, attention_mask):
    emb, enc, head = params["emb"], params["enc"], params["head"]
    Bq, Sq = input_ids.shape

    # embeddings (gather is JAX glue; everything downstream is one Pallas call)
    we = jnp.take(emb["word_emb"], input_ids, axis=0)                 # (B,S,H)
    pe = emb["pos_emb"][:Sq][None, :, :]
    te = jnp.take(emb["type_emb"], jnp.zeros_like(input_ids), axis=0)
    x = (we + pe + te).astype(jnp.float32)

    # additive attention-mask bias, broadcast over heads/queries in-kernel
    mask_bias = ((1.0 - attention_mask.astype(jnp.float32)) * -10000.0)[:, None, :]

    logits_padded = fused_bert_call(x, mask_bias, enc, head)          # (B, 128)
    return logits_padded[:, :N_CLASSES]


if __name__ == "__main__":
    key = jax.random.PRNGKey(0)
    pkey, ikey = jax.random.split(key)
    params = init_params(pkey)

    input_ids = jax.random.randint(ikey, (B, S), 0, VOCAB, dtype=jnp.int32)
    # mask: last 4 tokens of batch element 1 are padding
    attention_mask = jnp.ones((B, S), jnp.int32).at[1, -4:].set(0)

    fwd = jax.jit(bert_model_forward)
    out = fwd(params, input_ids, attention_mask)
    out = jax.block_until_ready(out)
    assert out.shape == (B, N_CLASSES)
    assert bool(jnp.all(jnp.isfinite(out)))
    print("KERNEL_OK")
</pallas_src>

<mosaic_0001>
module attributes {stable_mosaic.version = 11 : i64} {
  func.func @_fused_bert_kernel(%arg0: i32, %arg1: memref<2x16x128xf32, #tpu.memory_space<vmem>>, %arg2: memref<2x1x16xf32, #tpu.memory_space<vmem>>, %arg3: memref<1x128xf32, #tpu.memory_space<vmem>>, %arg4: memref<1x128xf32, #tpu.memory_space<vmem>>, %arg5: memref<2x128x384xbf16, #tpu.memory_space<vmem>>, %arg6: memref<2x1x384xf32, #tpu.memory_space<vmem>>, %arg7: memref<2x128x128xbf16, #tpu.memory_space<vmem>>, %arg8: memref<2x1x128xf32, #tpu.memory_space<vmem>>, %arg9: memref<2x1x128xf32, #tpu.memory_space<vmem>>, %arg10: memref<2x1x128xf32, #tpu.memory_space<vmem>>, %arg11: memref<2x128x512xbf16, #tpu.memory_space<vmem>>, %arg12: memref<2x1x512xf32, #tpu.memory_space<vmem>>, %arg13: memref<2x512x128xbf16, #tpu.memory_space<vmem>>, %arg14: memref<2x1x128xf32, #tpu.memory_space<vmem>>, %arg15: memref<2x1x128xf32, #tpu.memory_space<vmem>>, %arg16: memref<2x1x128xf32, #tpu.memory_space<vmem>>, %arg17: memref<128x128xbf16, #tpu.memory_space<vmem>>, %arg18: memref<1x128xf32, #tpu.memory_space<vmem>>, %arg19: memref<128x512xbf16, #tpu.memory_space<vmem>>, %arg20: memref<1x512xf32, #tpu.memory_space<vmem>>, %arg21: memref<512x256xbf16, #tpu.memory_space<vmem>>, %arg22: memref<1x256xf32, #tpu.memory_space<vmem>>, %arg23: memref<256x128xbf16, #tpu.memory_space<vmem>>, %arg24: memref<1x128xf32, #tpu.memory_space<vmem>>, %arg25: memref<128x128xbf16, #tpu.memory_space<vmem>>, %arg26: memref<1x128xf32, #tpu.memory_space<vmem>>, %arg27: memref<128x128xbf16, #tpu.memory_space<vmem>>, %arg28: memref<1x128xf32, #tpu.memory_space<vmem>>, %arg29: memref<128x128xbf16, #tpu.memory_space<vmem>>, %arg30: memref<1x128xf32, #tpu.memory_space<vmem>>, %arg31: memref<128x128xbf16, #tpu.memory_space<vmem>>, %arg32: memref<1x128xf32, #tpu.memory_space<vmem>>, %arg33: memref<128x128xbf16, #tpu.memory_space<vmem>>, %arg34: memref<1x128xf32, #tpu.memory_space<vmem>>, %arg35: memref<2x128xf32, #tpu.memory_space<vmem>>) attributes {dimension_semantics = [#tpu.dimension_semantics<arbitrary>], iteration_bounds = array<i64: 1>, scalar_prefetch = 0 : i64, scratch_operands = 0 : i64, tpu.core_type = #tpu.core_type<tc>, window_params = [{pipeline_mode = #tpu.pipeline_mode<synchronous>, transform_indices = @transform_0, window_bounds = array<i64: 2, 16, 128>}, {pipeline_mode = #tpu.pipeline_mode<synchronous>, transform_indices = @transform_1, window_bounds = array<i64: 2, 1, 16>}, {pipeline_mode = #tpu.pipeline_mode<synchronous>, transform_indices = @transform_2, window_bounds = array<i64: 1, 128>}, {pipeline_mode = #tpu.pipeline_mode<synchronous>, transform_indices = @transform_3, window_bounds = array<i64: 1, 128>}, {pipeline_mode = #tpu.pipeline_mode<synchronous>, transform_indices = @transform_4, window_bounds = array<i64: 2, 128, 384>}, {pipeline_mode = #tpu.pipeline_mode<synchronous>, transform_indices = @transform_5, window_bounds = array<i64: 2, 1, 384>}, {pipeline_mode = #tpu.pipeline_mode<synchronous>, transform_indices = @transform_6, window_bounds = array<i64: 2, 128, 128>}, {pipeline_mode = #tpu.pipeline_mode<synchronous>, transform_indices = @transform_7, window_bounds = array<i64: 2, 1, 128>}, {pipeline_mode = #tpu.pipeline_mode<synchronous>, transform_indices = @transform_8, window_bounds = array<i64: 2, 1, 128>}, {pipeline_mode = #tpu.pipeline_mode<synchronous>, transform_indices = @transform_9, window_bounds = array<i64: 2, 1, 128>}, {pipeline_mode = #tpu.pipeline_mode<synchronous>, transform_indices = @transform_10, window_bounds = array<i64: 2, 128, 512>}, {pipeline_mode = #tpu.pipeline_mode<synchronous>, transform_indices = @transform_11, window_bounds = array<i64: 2, 1, 512>}, {pipeline_mode = #tpu.pipeline_mode<synchronous>, transform_indices = @transform_12, window_bounds = array<i64: 2, 512, 128>}, {pipeline_mode = #tpu.pipeline_mode<synchronous>, transform_indices = @transform_13, window_bounds = array<i64: 2, 1, 128>}, {pipeline_mode = #tpu.pipeline_mode<synchronous>, transform_indices = @transform_14, window_bounds = array<i64: 2, 1, 128>}, {pipeline_mode = #tpu.pipeline_mode<synchronous>, transform_indices = @transform_15, window_bounds = array<i64: 2, 1, 128>}, {pipeline_mode = #tpu.pipeline_mode<synchronous>, transform_indices = @transform_16, window_bounds = array<i64: 128, 128>}, {pipeline_mode = #tpu.pipeline_mode<synchronous>, transform_indices = @transform_17, window_bounds = array<i64: 1, 128>}, {pipeline_mode = #tpu.pipeline_mode<synchronous>, transform_indices = @transform_18, window_bounds = array<i64: 128, 512>}, {pipeline_mode = #tpu.pipeline_mode<synchronous>, transform_indices = @transform_19, window_bounds = array<i64: 1, 512>}, {pipeline_mode = #tpu.pipeline_mode<synchronous>, transform_indices = @transform_20, window_bounds = array<i64: 512, 256>}, {pipeline_mode = #tpu.pipeline_mode<synchronous>, transform_indices = @transform_21, window_bounds = array<i64: 1, 256>}, {pipeline_mode = #tpu.pipeline_mode<synchronous>, transform_indices = @transform_22, window_bounds = array<i64: 256, 128>}, {pipeline_mode = #tpu.pipeline_mode<synchronous>, transform_indices = @transform_23, window_bounds = array<i64: 1, 128>}, {pipeline_mode = #tpu.pipeline_mode<synchronous>, transform_indices = @transform_24, window_bounds = array<i64: 128, 128>}, {pipeline_mode = #tpu.pipeline_mode<synchronous>, transform_indices = @transform_25, window_bounds = array<i64: 1, 128>}, {pipeline_mode = #tpu.pipeline_mode<synchronous>, transform_indices = @transform_26, window_bounds = array<i64: 128, 128>}, {pipeline_mode = #tpu.pipeline_mode<synchronous>, transform_indices = @transform_27, window_bounds = array<i64: 1, 128>}, {pipeline_mode = #tpu.pipeline_mode<synchronous>, transform_indices = @transform_28, window_bounds = array<i64: 128, 128>}, {pipeline_mode = #tpu.pipeline_mode<synchronous>, transform_indices = @transform_29, window_bounds = array<i64: 1, 128>}, {pipeline_mode = #tpu.pipeline_mode<synchronous>, transform_indices = @transform_30, window_bounds = array<i64: 128, 128>}, {pipeline_mode = #tpu.pipeline_mode<synchronous>, transform_indices = @transform_31, window_bounds = array<i64: 1, 128>}, {pipeline_mode = #tpu.pipeline_mode<synchronous>, transform_indices = @transform_32, window_bounds = array<i64: 128, 128>}, {pipeline_mode = #tpu.pipeline_mode<synchronous>, transform_indices = @transform_33, window_bounds = array<i64: 1, 128>}, {pipeline_mode = #tpu.pipeline_mode<synchronous>, transform_indices = @transform_34, window_bounds = array<i64: 2, 128>}]} {
    %c0 = arith.constant 0 : index
    %c0_0 = arith.constant 0 : index
    %c0_1 = arith.constant 0 : index
    %0 = vector.load %arg1[%c0, %c0_0, %c0_1] : memref<2x16x128xf32, #tpu.memory_space<vmem>>, vector<2x16x128xf32>
    %1 = vector.shape_cast %0 : vector<2x16x128xf32> to vector<32x128xf32>
    %c0_2 = arith.constant 0 : index
    %c0_3 = arith.constant 0 : index
    %c0_4 = arith.constant 0 : index
    %2 = vector.load %arg2[%c0_2, %c0_3, %c0_4] : memref<2x1x16xf32, #tpu.memory_space<vmem>>, vector<2x1x16xf32>
    %c0_5 = arith.constant 0 : index
    %c0_6 = arith.constant 0 : index
    %3 = vector.load %arg3[%c0_5, %c0_6] : memref<1x128xf32, #tpu.memory_space<vmem>>, vector<1x128xf32>
    %c0_7 = arith.constant 0 : index
    %c0_8 = arith.constant 0 : index
    %4 = vector.load %arg4[%c0_7, %c0_8] : memref<1x128xf32, #tpu.memory_space<vmem>>, vector<1x128xf32>
    %cst = arith.constant dense<0.000000e+00> : vector<32xf32>
    %5 = vector.multi_reduction <add>, %1, %cst [1] : vector<32x128xf32> to vector<32xf32>
    %6 = vector.shape_cast %5 : vector<32xf32> to vector<32x1xf32>
    %cst_9 = arith.constant 1.280000e+02 : f32
    %7 = vector.broadcast %cst_9 : f32 to vector<32x1xf32>
    %8 = arith.divf %6, %7 : vector<32x1xf32>
    %9 = vector.broadcast %8 : vector<32x1xf32> to vector<32x128xf32>
    %10 = arith.subf %1, %9 : vector<32x128xf32>
    %11 = vector.broadcast %8 : vector<32x1xf32> to vector<32x128xf32>
    %12 = arith.subf %1, %11 : vector<32x128xf32>
    %13 = arith.mulf %10, %12 : vector<32x128xf32>
    %cst_10 = arith.constant dense<0.000000e+00> : vector<32xf32>
    %14 = vector.multi_reduction <add>, %13, %cst_10 [1] : vector<32x128xf32> to vector<32xf32>
    %15 = vector.shape_cast %14 : vector<32xf32> to vector<32x1xf32>
    %cst_11 = arith.constant 1.280000e+02 : f32
    %16 = vector.broadcast %cst_11 : f32 to vector<32x1xf32>
    %17 = arith.divf %15, %16 : vector<32x1xf32>
    %cst_12 = arith.constant 9.99999996E-13 : f32
    %18 = vector.broadcast %cst_12 : f32 to vector<32x1xf32>
    %19 = arith.addf %17, %18 : vector<32x1xf32>
    %20 = math.rsqrt %19 : vector<32x1xf32>
    %21 = vector.broadcast %8 : vector<32x1xf32> to vector<32x128xf32>
    %22 = arith.subf %1, %21 : vector<32x128xf32>
    %23 = vector.broadcast %20 : vector<32x1xf32> to vector<32x128xf32>
    %24 = arith.mulf %22, %23 : vector<32x128xf32>
    %25 = vector.broadcast %3 : vector<1x128xf32> to vector<32x128xf32>
    %26 = arith.mulf %24, %25 : vector<32x128xf32>
    %27 = vector.broadcast %4 : vector<1x128xf32> to vector<32x128xf32>
    %28 = arith.addf %26, %27 : vector<32x128xf32>
    %c0_13 = arith.constant 0 : index
    %c0_14 = arith.constant 0 : index
    %c0_15 = arith.constant 0 : index
    %29 = vector.load %arg5[%c0_13, %c0_14, %c0_15] : memref<2x128x384xbf16, #tpu.memory_space<vmem>>, vector<1x128x384xbf16>
    %30 = vector.shape_cast %29 : vector<1x128x384xbf16> to vector<128x384xbf16>
    %c0_16 = arith.constant 0 : index
    %c0_17 = arith.constant 0 : index
    %c0_18 = arith.constant 0 : index
    %31 = vector.load %arg6[%c0_16, %c0_17, %c0_18] : memref<2x1x384xf32, #tpu.memory_space<vmem>>, vector<1x1x384xf32>
    %32 = vector.shape_cast %31 : vector<1x1x384xf32> to vector<1x384xf32>
    %c0_19 = arith.constant 0 : index
    %c0_20 = arith.constant 0 : index
    %c0_21 = arith.constant 0 : index
    %33 = vector.load %arg7[%c0_19, %c0_20, %c0_21] : memref<2x128x128xbf16, #tpu.memory_space<vmem>>, vector<1x128x128xbf16>
    %34 = vector.shape_cast %33 : vector<1x128x128xbf16> to vector<128x128xbf16>
    %c0_22 = arith.constant 0 : index
    %c0_23 = arith.constant 0 : index
    %c0_24 = arith.constant 0 : index
    %35 = vector.load %arg8[%c0_22, %c0_23, %c0_24] : memref<2x1x128xf32, #tpu.memory_space<vmem>>, vector<1x1x128xf32>
    %36 = vector.shape_cast %35 : vector<1x1x128xf32> to vector<1x128xf32>
    %37 = arith.truncf %28 : vector<32x128xf32> to vector<32x128xbf16>
    %cst_25 = arith.constant dense<0.000000e+00> : vector<32x384xf32>
    %38 = tpu.matmul %37, %30, %cst_25 {dimension_numbers = #tpu.dot_dimension_numbers<[1], [0], [0], [1], [0, 0, 1, 1], [], []>} : vector<32x128xbf16>, vector<128x384xbf16>, vector<32x384xf32> -> vector<32x384xf32>
    %39 = vector.broadcast %32 : vector<1x384xf32> to vector<32x384xf32>
    %40 = arith.addf %38, %39 : vector<32x384xf32>
    %41 = vector.shape_cast %40 : vector<32x384xf32> to vector<2x16x384xf32>
    %cst_26 = arith.constant 0.000000e+00 : f32
    %42 = vector.broadcast %cst_26 : f32 to vector<32x128xf32>
    %43 = vector.extract_strided_slice %41 {offsets = [0, 0, 0], sizes = [2, 16, 32], strides = [1, 1, 1]} : vector<2x16x384xf32> to vector<2x16x32xf32>
    %44 = vector.extract_strided_slice %41 {offsets = [0, 0, 128], sizes = [2, 16, 32], strides = [1, 1, 1]} : vector<2x16x384xf32> to vector<2x16x32xf32>
    %45 = vector.extract_strided_slice %41 {offsets = [0, 0, 256], sizes = [2, 16, 32], strides = [1, 1, 1]} : vector<2x16x384xf32> to vector<2x16x32xf32>
    %46 = arith.truncf %43 : vector<2x16x32xf32> to vector<2x16x32xbf16>
    %47 = arith.truncf %44 : vector<2x16x32xf32> to vector<2x16x32xbf16>
    "tpu.trace_start"() <{level = 10 : i32, message = "bqd,bkd->bqk"}> : () -> ()
    %cst_27 = arith.constant dense<0.000000e+00> : vector<2x16x16xf32>
    %48 = tpu.matmul %46, %47, %cst_27 {dimension_numbers = #tpu.dot_dimension_numbers<[2], [2], [1], [1], [0, 0, 0, 1, 1, 1], [0], [0]>} : vector<2x16x32xbf16>, vector<2x16x32xbf16>, vector<2x16x16xf32> -> vector<2x16x16xf32>
    "tpu.trace_stop"() : () -> ()
    %cst_28 = arith.constant 0.176776692 : f32
    %49 = vector.broadcast %cst_28 : f32 to vector<2x16x16xf32>
    %50 = arith.mulf %48, %49 : vector<2x16x16xf32>
    %51 = vector.broadcast %2 : vector<2x1x16xf32> to vector<2x16x16xf32>
    %52 = arith.addf %50, %51 : vector<2x16x16xf32>
    %cst_29 = arith.constant dense<0xFF800000> : vector<2x16xf32>
    %53 = vector.multi_reduction <maximumf>, %52, %cst_29 [2] : vector<2x16x16xf32> to vector<2x16xf32>
    %54 = vector.shape_cast %53 : vector<2x16xf32> to vector<2x16x1xf32>
    %55 = vector.broadcast %54 : vector<2x16x1xf32> to vector<2x16x16xf32>
    %56 = arith.subf %52, %55 : vector<2x16x16xf32>
    %57 = math.exp %56 : vector<2x16x16xf32>
    %cst_30 = arith.constant dense<0.000000e+00> : vector<2x16xf32>
    %58 = vector.multi_reduction <add>, %57, %cst_30 [2] : vector<2x16x16xf32> to vector<2x16xf32>
    %59 = vector.shape_cast %58 : vector<2x16xf32> to vector<2x16x1xf32>
    %60 = tpu.reciprocal %59 {approx = true} : vector<2x16x1xf32> -> vector<2x16x1xf32>
    %61 = vector.broadcast %60 : vector<2x16x1xf32> to vector<2x16x16xf32>
    %62 = arith.mulf %57, %61 : vector<2x16x16xf32>
    %63 = arith.truncf %62 : vector<2x16x16xf32> to vector<2x16x16xbf16>
    %64 = arith.truncf %45 : vector<2x16x32xf32> to vector<2x16x32xbf16>
    "tpu.trace_start"() <{level = 10 : i32, message = "bqk,bkd->bqd"}> : () -> ()
    %cst_31 = arith.constant dense<0.000000e+00> : vector<2x16x32xf32>
    %65 = tpu.matmul %63, %64, %cst_31 {dimension_numbers = #tpu.dot_dimension_numbers<[2], [1], [1], [2], [0, 0, 0, 1, 1, 2], [0], [0]>} : vector<2x16x16xbf16>, vector<2x16x32xbf16>, vector<2x16x32xf32> -> vector<2x16x32xf32>
    "tpu.trace_stop"() : () -> ()
    %66 = vector.shape_cast %65 : vector<2x16x32xf32> to vector<32x32xf32>
    %67 = vector.extract_strided_slice %34 {offsets = [0, 0], sizes = [32, 128], strides = [1, 1]} : vector<128x128xbf16> to vector<32x128xbf16>
    %68 = arith.truncf %66 : vector<32x32xf32> to vector<32x32xbf16>
    %cst_32 = arith.constant dense<0.000000e+00> : vector<32x128xf32>
    %69 = tpu.matmul %68, %67, %cst_32 {dimension_numbers = #tpu.dot_dimension_numbers<[1], [0], [0], [1], [0, 0, 1, 1], [], []>} : vector<32x32xbf16>, vector<32x128xbf16>, vector<32x128xf32> -> vector<32x128xf32>
    %70 = arith.addf %42, %69 : vector<32x128xf32>
    %71 = vector.extract_strided_slice %41 {offsets = [0, 0, 32], sizes = [2, 16, 32], strides = [1, 1, 1]} : vector<2x16x384xf32> to vector<2x16x32xf32>
    %72 = vector.extract_strided_slice %41 {offsets = [0, 0, 160], sizes = [2, 16, 32], strides = [1, 1, 1]} : vector<2x16x384xf32> to vector<2x16x32xf32>
    %73 = vector.extract_strided_slice %41 {offsets = [0, 0, 288], sizes = [2, 16, 32], strides = [1, 1, 1]} : vector<2x16x384xf32> to vector<2x16x32xf32>
    %74 = arith.truncf %71 : vector<2x16x32xf32> to vector<2x16x32xbf16>
    %75 = arith.truncf %72 : vector<2x16x32xf32> to vector<2x16x32xbf16>
    "tpu.trace_start"() <{level = 10 : i32, message = "bqd,bkd->bqk"}> : () -> ()
    %cst_33 = arith.constant dense<0.000000e+00> : vector<2x16x16xf32>
    %76 = tpu.matmul %74, %75, %cst_33 {dimension_numbers = #tpu.dot_dimension_numbers<[2], [2], [1], [1], [0, 0, 0, 1, 1, 1], [0], [0]>} : vector<2x16x32xbf16>, vector<2x16x32xbf16>, vector<2x16x16xf32> -> vector<2x16x16xf32>
    "tpu.trace_stop"() : () -> ()
    %cst_34 = arith.constant 0.176776692 : f32
    %77 = vector.broadcast %cst_34 : f32 to vector<2x16x16xf32>
    %78 = arith.mulf %76, %77 : vector<2x16x16xf32>
    %79 = vector.broadcast %2 : vector<2x1x16xf32> to vector<2x16x16xf32>
    %80 = arith.addf %78, %79 : vector<2x16x16xf32>
    %cst_35 = arith.constant dense<0xFF800000> : vector<2x16xf32>
    %81 = vector.multi_reduction <maximumf>, %80, %cst_35 [2] : vector<2x16x16xf32> to vector<2x16xf32>
    %82 = vector.shape_cast %81 : vector<2x16xf32> to vector<2x16x1xf32>
    %83 = vector.broadcast %82 : vector<2x16x1xf32> to vector<2x16x16xf32>
    %84 = arith.subf %80, %83 : vector<2x16x16xf32>
    %85 = math.exp %84 : vector<2x16x16xf32>
    %cst_36 = arith.constant dense<0.000000e+00> : vector<2x16xf32>
    %86 = vector.multi_reduction <add>, %85, %cst_36 [2] : vector<2x16x16xf32> to vector<2x16xf32>
    %87 = vector.shape_cast %86 : vector<2x16xf32> to vector<2x16x1xf32>
    %88 = tpu.reciprocal %87 {approx = true} : vector<2x16x1xf32> -> vector<2x16x1xf32>
    %89 = vector.broadcast %88 : vector<2x16x1xf32> to vector<2x16x16xf32>
    %90 = arith.mulf %85, %89 : vector<2x16x16xf32>
    %91 = arith.truncf %90 : vector<2x16x16xf32> to vector<2x16x16xbf16>
    %92 = arith.truncf %73 : vector<2x16x32xf32> to vector<2x16x32xbf16>
    "tpu.trace_start"() <{level = 10 : i32, message = "bqk,bkd->bqd"}> : () -> ()
    %cst_37 = arith.constant dense<0.000000e+00> : vector<2x16x32xf32>
    %93 = tpu.matmul %91, %92, %cst_37 {dimension_numbers = #tpu.dot_dimension_numbers<[2], [1], [1], [2], [0, 0, 0, 1, 1, 2], [0], [0]>} : vector<2x16x16xbf16>, vector<2x16x32xbf16>, vector<2x16x32xf32> -> vector<2x16x32xf32>
    "tpu.trace_stop"() : () -> ()
    %94 = vector.shape_cast %93 : vector<2x16x32xf32> to vector<32x32xf32>
    %95 = vector.extract_strided_slice %34 {offsets = [32, 0], sizes = [32, 128], strides = [1, 1]} : vector<128x128xbf16> to vector<32x128xbf16>
    %96 = arith.truncf %94 : vector<32x32xf32> to vector<32x32xbf16>
    %cst_38 = arith.constant dense<0.000000e+00> : vector<32x128xf32>
    %97 = tpu.matmul %96, %95, %cst_38 {dimension_numbers = #tpu.dot_dimension_numbers<[1], [0], [0], [1], [0, 0, 1, 1], [], []>} : vector<32x32xbf16>, vector<32x128xbf16>, vector<32x128xf32> -> vector<32x128xf32>
    %98 = arith.addf %70, %97 : vector<32x128xf32>
    %99 = vector.extract_strided_slice %41 {offsets = [0, 0, 64], sizes = [2, 16, 32], strides = [1, 1, 1]} : vector<2x16x384xf32> to vector<2x16x32xf32>
    %100 = vector.extract_strided_slice %41 {offsets = [0, 0, 192], sizes = [2, 16, 32], strides = [1, 1, 1]} : vector<2x16x384xf32> to vector<2x16x32xf32>
    %101 = vector.extract_strided_slice %41 {offsets = [0, 0, 320], sizes = [2, 16, 32], strides = [1, 1, 1]} : vector<2x16x384xf32> to vector<2x16x32xf32>
    %102 = arith.truncf %99 : vector<2x16x32xf32> to vector<2x16x32xbf16>
    %103 = arith.truncf %100 : vector<2x16x32xf32> to vector<2x16x32xbf16>
    "tpu.trace_start"() <{level = 10 : i32, message = "bqd,bkd->bqk"}> : () -> ()
    %cst_39 = arith.constant dense<0.000000e+00> : vector<2x16x16xf32>
    %104 = tpu.matmul %102, %103, %cst_39 {dimension_numbers = #tpu.dot_dimension_numbers<[2], [2], [1], [1], [0, 0, 0, 1, 1, 1], [0], [0]>} : vector<2x16x32xbf16>, vector<2x16x32xbf16>, vector<2x16x16xf32> -> vector<2x16x16xf32>
    "tpu.trace_stop"() : () -> ()
    %cst_40 = arith.constant 0.176776692 : f32
    %105 = vector.broadcast %cst_40 : f32 to vector<2x16x16xf32>
    %106 = arith.mulf %104, %105 : vector<2x16x16xf32>
    %107 = vector.broadcast %2 : vector<2x1x16xf32> to vector<2x16x16xf32>
    %108 = arith.addf %106, %107 : vector<2x16x16xf32>
    %cst_41 = arith.constant dense<0xFF800000> : vector<2x16xf32>
    %109 = vector.multi_reduction <maximumf>, %108, %cst_41 [2] : vector<2x16x16xf32> to vector<2x16xf32>
    %110 = vector.shape_cast %109 : vector<2x16xf32> to vector<2x16x1xf32>
    %111 = vector.broadcast %110 : vector<2x16x1xf32> to vector<2x16x16xf32>
    %112 = arith.subf %108, %111 : vector<2x16x16xf32>
    %113 = math.exp %112 : vector<2x16x16xf32>
    %cst_42 = arith.constant dense<0.000000e+00> : vector<2x16xf32>
    %114 = vector.multi_reduction <add>, %113, %cst_42 [2] : vector<2x16x16xf32> to vector<2x16xf32>
    %115 = vector.shape_cast %114 : vector<2x16xf32> to vector<2x16x1xf32>
    %116 = tpu.reciprocal %115 {approx = true} : vector<2x16x1xf32> -> vector<2x16x1xf32>
    %117 = vector.broadcast %116 : vector<2x16x1xf32> to vector<2x16x16xf32>
    %118 = arith.mulf %113, %117 : vector<2x16x16xf32>
    %119 = arith.truncf %118 : vector<2x16x16xf32> to vector<2x16x16xbf16>
    %120 = arith.truncf %101 : vector<2x16x32xf32> to vector<2x16x32xbf16>
    "tpu.trace_start"() <{level = 10 : i32, message = "bqk,bkd->bqd"}> : () -> ()
    %cst_43 = arith.constant dense<0.000000e+00> : vector<2x16x32xf32>
    %121 = tpu.matmul %119, %120, %cst_43 {dimension_numbers = #tpu.dot_dimension_numbers<[2], [1], [1], [2], [0, 0, 0, 1, 1, 2], [0], [0]>} : vector<2x16x16xbf16>, vector<2x16x32xbf16>, vector<2x16x32xf32> -> vector<2x16x32xf32>
    "tpu.trace_stop"() : () -> ()
    %122 = vector.shape_cast %121 : vector<2x16x32xf32> to vector<32x32xf32>
    %123 = vector.extract_strided_slice %34 {offsets = [64, 0], sizes = [32, 128], strides = [1, 1]} : vector<128x128xbf16> to vector<32x128xbf16>
    %124 = arith.truncf %122 : vector<32x32xf32> to vector<32x32xbf16>
    %cst_44 = arith.constant dense<0.000000e+00> : vector<32x128xf32>
    %125 = tpu.matmul %124, %123, %cst_44 {dimension_numbers = #tpu.dot_dimension_numbers<[1], [0], [0], [1], [0, 0, 1, 1], [], []>} : vector<32x32xbf16>, vector<32x128xbf16>, vector<32x128xf32> -> vector<32x128xf32>
    %126 = arith.addf %98, %125 : vector<32x128xf32>
    %127 = vector.extract_strided_slice %41 {offsets = [0, 0, 96], sizes = [2, 16, 32], strides = [1, 1, 1]} : vector<2x16x384xf32> to vector<2x16x32xf32>
    %128 = vector.extract_strided_slice %41 {offsets = [0, 0, 224], sizes = [2, 16, 32], strides = [1, 1, 1]} : vector<2x16x384xf32> to vector<2x16x32xf32>
    %129 = vector.extract_strided_slice %41 {offsets = [0, 0, 352], sizes = [2, 16, 32], strides = [1, 1, 1]} : vector<2x16x384xf32> to vector<2x16x32xf32>
    %130 = arith.truncf %127 : vector<2x16x32xf32> to vector<2x16x32xbf16>
    %131 = arith.truncf %128 : vector<2x16x32xf32> to vector<2x16x32xbf16>
    "tpu.trace_start"() <{level = 10 : i32, message = "bqd,bkd->bqk"}> : () -> ()
    %cst_45 = arith.constant dense<0.000000e+00> : vector<2x16x16xf32>
    %132 = tpu.matmul %130, %131, %cst_45 {dimension_numbers = #tpu.dot_dimension_numbers<[2], [2], [1], [1], [0, 0, 0, 1, 1, 1], [0], [0]>} : vector<2x16x32xbf16>, vector<2x16x32xbf16>, vector<2x16x16xf32> -> vector<2x16x16xf32>
    "tpu.trace_stop"() : () -> ()
    %cst_46 = arith.constant 0.176776692 : f32
    %133 = vector.broadcast %cst_46 : f32 to vector<2x16x16xf32>
    %134 = arith.mulf %132, %133 : vector<2x16x16xf32>
    %135 = vector.broadcast %2 : vector<2x1x16xf32> to vector<2x16x16xf32>
    %136 = arith.addf %134, %135 : vector<2x16x16xf32>
    %cst_47 = arith.constant dense<0xFF800000> : vector<2x16xf32>
    %137 = vector.multi_reduction <maximumf>, %136, %cst_47 [2] : vector<2x16x16xf32> to vector<2x16xf32>
    %138 = vector.shape_cast %137 : vector<2x16xf32> to vector<2x16x1xf32>
    %139 = vector.broadcast %138 : vector<2x16x1xf32> to vector<2x16x16xf32>
    %140 = arith.subf %136, %139 : vector<2x16x16xf32>
    %141 = math.exp %140 : vector<2x16x16xf32>
    %cst_48 = arith.constant dense<0.000000e+00> : vector<2x16xf32>
    %142 = vector.multi_reduction <add>, %141, %cst_48 [2] : vector<2x16x16xf32> to vector<2x16xf32>
    %143 = vector.shape_cast %142 : vector<2x16xf32> to vector<2x16x1xf32>
    %144 = tpu.reciprocal %143 {approx = true} : vector<2x16x1xf32> -> vector<2x16x1xf32>
    %145 = vector.broadcast %144 : vector<2x16x1xf32> to vector<2x16x16xf32>
    %146 = arith.mulf %141, %145 : vector<2x16x16xf32>
    %147 = arith.truncf %146 : vector<2x16x16xf32> to vector<2x16x16xbf16>
    %148 = arith.truncf %129 : vector<2x16x32xf32> to vector<2x16x32xbf16>
    "tpu.trace_start"() <{level = 10 : i32, message = "bqk,bkd->bqd"}> : () -> ()
    %cst_49 = arith.constant dense<0.000000e+00> : vector<2x16x32xf32>
    %149 = tpu.matmul %147, %148, %cst_49 {dimension_numbers = #tpu.dot_dimension_numbers<[2], [1], [1], [2], [0, 0, 0, 1, 1, 2], [0], [0]>} : vector<2x16x16xbf16>, vector<2x16x32xbf16>, vector<2x16x32xf32> -> vector<2x16x32xf32>
    "tpu.trace_stop"() : () -> ()
    %150 = vector.shape_cast %149 : vector<2x16x32xf32> to vector<32x32xf32>
    %151 = vector.extract_strided_slice %34 {offsets = [96, 0], sizes = [32, 128], strides = [1, 1]} : vector<128x128xbf16> to vector<32x128xbf16>
    %152 = arith.truncf %150 : vector<32x32xf32> to vector<32x32xbf16>
    %cst_50 = arith.constant dense<0.000000e+00> : vector<32x128xf32>
    %153 = tpu.matmul %152, %151, %cst_50 {dimension_numbers = #tpu.dot_dimension_numbers<[1], [0], [0], [1], [0, 0, 1, 1], [], []>} : vector<32x32xbf16>, vector<32x128xbf16>, vector<32x128xf32> -> vector<32x128xf32>
    %154 = arith.addf %126, %153 : vector<32x128xf32>
    %155 = arith.addf %28, %154 : vector<32x128xf32>
    %156 = vector.broadcast %36 : vector<1x128xf32> to vector<32x128xf32>
    %157 = arith.addf %155, %156 : vector<32x128xf32>
    %c0_51 = arith.constant 0 : index
    %c0_52 = arith.constant 0 : index
    %c0_53 = arith.constant 0 : index
    %158 = vector.load %arg9[%c0_51, %c0_52, %c0_53] : memref<2x1x128xf32, #tpu.memory_space<vmem>>, vector<1x1x128xf32>
    %159 = vector.shape_cast %158 : vector<1x1x128xf32> to vector<1x128xf32>
    %c0_54 = arith.constant 0 : index
    %c0_55 = arith.constant 0 : index
    %c0_56 = arith.constant 0 : index
    %160 = vector.load %arg10[%c0_54, %c0_55, %c0_56] : memref<2x1x128xf32, #tpu.memory_space<vmem>>, vector<1x1x128xf32>
    %161 = vector.shape_cast %160 : vector<1x1x128xf32> to vector<1x128xf32>
    %cst_57 = arith.constant dense<0.000000e+00> : vector<32xf32>
    %162 = vector.multi_reduction <add>, %157, %cst_57 [1] : vector<32x128xf32> to vector<32xf32>
    %163 = vector.shape_cast %162 : vector<32xf32> to vector<32x1xf32>
    %cst_58 = arith.constant 1.280000e+02 : f32
    %164 = vector.broadcast %cst_58 : f32 to vector<32x1xf32>
    %165 = arith.divf %163, %164 : vector<32x1xf32>
    %166 = vector.broadcast %165 : vector<32x1xf32> to vector<32x128xf32>
    %167 = arith.subf %157, %166 : vector<32x128xf32>
    %168 = vector.broadcast %165 : vector<32x1xf32> to vector<32x128xf32>
    %169 = arith.subf %157, %168 : vector<32x128xf32>
    %170 = arith.mulf %167, %169 : vector<32x128xf32>
    %cst_59 = arith.constant dense<0.000000e+00> : vector<32xf32>
    %171 = vector.multi_reduction <add>, %170, %cst_59 [1] : vector<32x128xf32> to vector<32xf32>
    %172 = vector.shape_cast %171 : vector<32xf32> to vector<32x1xf32>
    %cst_60 = arith.constant 1.280000e+02 : f32
    %173 = vector.broadcast %cst_60 : f32 to vector<32x1xf32>
    %174 = arith.divf %172, %173 : vector<32x1xf32>
    %cst_61 = arith.constant 9.99999996E-13 : f32
    %175 = vector.broadcast %cst_61 : f32 to vector<32x1xf32>
    %176 = arith.addf %174, %175 : vector<32x1xf32>
    %177 = math.rsqrt %176 : vector<32x1xf32>
    %178 = vector.broadcast %165 : vector<32x1xf32> to vector<32x128xf32>
    %179 = arith.subf %157, %178 : vector<32x128xf32>
    %180 = vector.broadcast %177 : vector<32x1xf32> to vector<32x128xf32>
    %181 = arith.mulf %179, %180 : vector<32x128xf32>
    %182 = vector.broadcast %159 : vector<1x128xf32> to vector<32x128xf32>
    %183 = arith.mulf %181, %182 : vector<32x128xf32>
    %184 = vector.broadcast %161 : vector<1x128xf32> to vector<32x128xf32>
    %185 = arith.addf %183, %184 : vector<32x128xf32>
    %c0_62 = arith.constant 0 : index
    %c0_63 = arith.constant 0 : index
    %c0_64 = arith.constant 0 : index
    %186 = vector.load %arg11[%c0_62, %c0_63, %c0_64] : memref<2x128x512xbf16, #tpu.memory_space<vmem>>, vector<1x128x512xbf16>
    %187 = vector.shape_cast %186 : vector<1x128x512xbf16> to vector<128x512xbf16>
    %188 = arith.truncf %185 : vector<32x128xf32> to vector<32x128xbf16>
    %cst_65 = arith.constant dense<0.000000e+00> : vector<32x512xf32>
    %189 = tpu.matmul %188, %187, %cst_65 {dimension_numbers = #tpu.dot_dimension_numbers<[1], [0], [0], [1], [0, 0, 1, 1], [], []>} : vector<32x128xbf16>, vector<128x512xbf16>, vector<32x512xf32> -> vector<32x512xf32>
    %c0_66 = arith.constant 0 : index
    %c0_67 = arith.constant 0 : index
    %c0_68 = arith.constant 0 : index
    %190 = vector.load %arg12[%c0_66, %c0_67, %c0_68] : memref<2x1x512xf32, #tpu.memory_space<vmem>>, vector<1x1x512xf32>
    %191 = vector.shape_cast %190 : vector<1x1x512xf32> to vector<1x512xf32>
    %192 = vector.broadcast %191 : vector<1x512xf32> to vector<32x512xf32>
    %193 = arith.addf %189, %192 : vector<32x512xf32>
    %cst_69 = arith.constant 5.000000e-01 : f32
    %194 = vector.broadcast %cst_69 : f32 to vector<32x512xf32>
    %195 = arith.mulf %194, %193 : vector<32x512xf32>
    %cst_70 = arith.constant 4.471500e-02 : f32
    %196 = vector.broadcast %cst_70 : f32 to vector<32x512xf32>
    %197 = arith.mulf %196, %193 : vector<32x512xf32>
    %198 = arith.mulf %197, %193 : vector<32x512xf32>
    %199 = arith.mulf %198, %193 : vector<32x512xf32>
    %200 = arith.addf %193, %199 : vector<32x512xf32>
    %cst_71 = arith.constant 0.797884583 : f32
    %201 = vector.broadcast %cst_71 : f32 to vector<32x512xf32>
    %202 = arith.mulf %201, %200 : vector<32x512xf32>
    %203 = math.tanh %202 : vector<32x512xf32>
    %cst_72 = arith.constant 1.000000e+00 : f32
    %204 = vector.broadcast %cst_72 : f32 to vector<32x512xf32>
    %205 = arith.addf %204, %203 : vector<32x512xf32>
    %206 = arith.mulf %195, %205 : vector<32x512xf32>
    %c0_73 = arith.constant 0 : index
    %c0_74 = arith.constant 0 : index
    %c0_75 = arith.constant 0 : index
    %207 = vector.load %arg13[%c0_73, %c0_74, %c0_75] : memref<2x512x128xbf16, #tpu.memory_space<vmem>>, vector<1x512x128xbf16>
    %208 = vector.shape_cast %207 : vector<1x512x128xbf16> to vector<512x128xbf16>
    %209 = arith.truncf %206 : vector<32x512xf32> to vector<32x512xbf16>
    %cst_76 = arith.constant dense<0.000000e+00> : vector<32x128xf32>
    %210 = tpu.matmul %209, %208, %cst_76 {dimension_numbers = #tpu.dot_dimension_numbers<[1], [0], [0], [1], [0, 0, 1, 1], [], []>} : vector<32x512xbf16>, vector<512x128xbf16>, vector<32x128xf32> -> vector<32x128xf32>
    %211 = arith.addf %185, %210 : vector<32x128xf32>
    %c0_77 = arith.constant 0 : index
    %c0_78 = arith.constant 0 : index
    %c0_79 = arith.constant 0 : index
    %212 = vector.load %arg14[%c0_77, %c0_78, %c0_79] : memref<2x1x128xf32, #tpu.memory_space<vmem>>, vector<1x1x128xf32>
    %213 = vector.shape_cast %212 : vector<1x1x128xf32> to vector<1x128xf32>
    %214 = vector.broadcast %213 : vector<1x128xf32> to vector<32x128xf32>
    %215 = arith.addf %211, %214 : vector<32x128xf32>
    %c0_80 = arith.constant 0 : index
    %c0_81 = arith.constant 0 : index
    %c0_82 = arith.constant 0 : index
    %216 = vector.load %arg15[%c0_80, %c0_81, %c0_82] : memref<2x1x128xf32, #tpu.memory_space<vmem>>, vector<1x1x128xf32>
    %217 = vector.shape_cast %216 : vector<1x1x128xf32> to vector<1x128xf32>
    %c0_83 = arith.constant 0 : index
    %c0_84 = arith.constant 0 : index
    %c0_85 = arith.constant 0 : index
    %218 = vector.load %arg16[%c0_83, %c0_84, %c0_85] : memref<2x1x128xf32, #tpu.memory_space<vmem>>, vector<1x1x128xf32>
    %219 = vector.shape_cast %218 : vector<1x1x128xf32> to vector<1x128xf32>
    %cst_86 = arith.constant dense<0.000000e+00> : vector<32xf32>
    %220 = vector.multi_reduction <add>, %215, %cst_86 [1] : vector<32x128xf32> to vector<32xf32>
    %221 = vector.shape_cast %220 : vector<32xf32> to vector<32x1xf32>
    %cst_87 = arith.constant 1.280000e+02 : f32
    %222 = vector.broadcast %cst_87 : f32 to vector<32x1xf32>
    %223 = arith.divf %221, %222 : vector<32x1xf32>
    %224 = vector.broadcast %223 : vector<32x1xf32> to vector<32x128xf32>
    %225 = arith.subf %215, %224 : vector<32x128xf32>
    %226 = vector.broadcast %223 : vector<32x1xf32> to vector<32x128xf32>
    %227 = arith.subf %215, %226 : vector<32x128xf32>
    %228 = arith.mulf %225, %227 : vector<32x128xf32>
    %cst_88 = arith.constant dense<0.000000e+00> : vector<32xf32>
    %229 = vector.multi_reduction <add>, %228, %cst_88 [1] : vector<32x128xf32> to vector<32xf32>
    %230 = vector.shape_cast %229 : vector<32xf32> to vector<32x1xf32>
    %cst_89 = arith.constant 1.280000e+02 : f32
    %231 = vector.broadcast %cst_89 : f32 to vector<32x1xf32>
    %232 = arith.divf %230, %231 : vector<32x1xf32>
    %cst_90 = arith.constant 9.99999996E-13 : f32
    %233 = vector.broadcast %cst_90 : f32 to vector<32x1xf32>
    %234 = arith.addf %232, %233 : vector<32x1xf32>
    %235 = math.rsqrt %234 : vector<32x1xf32>
    %236 = vector.broadcast %223 : vector<32x1xf32> to vector<32x128xf32>
    %237 = arith.subf %215, %236 : vector<32x128xf32>
    %238 = vector.broadcast %235 : vector<32x1xf32> to vector<32x128xf32>
    %239 = arith.mulf %237, %238 : vector<32x128xf32>
    %240 = vector.broadcast %217 : vector<1x128xf32> to vector<32x128xf32>
    %241 = arith.mulf %239, %240 : vector<32x128xf32>
    %242 = vector.broadcast %219 : vector<1x128xf32> to vector<32x128xf32>
    %243 = arith.addf %241, %242 : vector<32x128xf32>
    %c1 = arith.constant 1 : index
    %c0_91 = arith.constant 0 : index
    %c0_92 = arith.constant 0 : index
    %244 = vector.load %arg5[%c1, %c0_91, %c0_92] : memref<2x128x384xbf16, #tpu.memory_space<vmem>>, vector<1x128x384xbf16>
    %245 = vector.shape_cast %244 : vector<1x128x384xbf16> to vector<128x384xbf16>
    %c1_93 = arith.constant 1 : index
    %c0_94 = arith.constant 0 : index
    %c0_95 = arith.constant 0 : index
    %246 = vector.load %arg6[%c1_93, %c0_94, %c0_95] : memref<2x1x384xf32, #tpu.memory_space<vmem>>, vector<1x1x384xf32>
    %247 = vector.shape_cast %246 : vector<1x1x384xf32> to vector<1x384xf32>
    %c1_96 = arith.constant 1 : index
    %c0_97 = arith.constant 0 : index
    %c0_98 = arith.constant 0 : index
    %248 = vector.load %arg7[%c1_96, %c0_97, %c0_98] : memref<2x128x128xbf16, #tpu.memory_space<vmem>>, vector<1x128x128xbf16>
    %249 = vector.shape_cast %248 : vector<1x128x128xbf16> to vector<128x128xbf16>
    %c1_99 = arith.constant 1 : index
    %c0_100 = arith.constant 0 : index
    %c0_101 = arith.constant 0 : index
    %250 = vector.load %arg8[%c1_99, %c0_100, %c0_101] : memref<2x1x128xf32, #tpu.memory_space<vmem>>, vector<1x1x128xf32>
    %251 = vector.shape_cast %250 : vector<1x1x128xf32> to vector<1x128xf32>
    %252 = arith.truncf %243 : vector<32x128xf32> to vector<32x128xbf16>
    %cst_102 = arith.constant dense<0.000000e+00> : vector<32x384xf32>
    %253 = tpu.matmul %252, %245, %cst_102 {dimension_numbers = #tpu.dot_dimension_numbers<[1], [0], [0], [1], [0, 0, 1, 1], [], []>} : vector<32x128xbf16>, vector<128x384xbf16>, vector<32x384xf32> -> vector<32x384xf32>
    %254 = vector.broadcast %247 : vector<1x384xf32> to vector<32x384xf32>
    %255 = arith.addf %253, %254 : vector<32x384xf32>
    %256 = vector.shape_cast %255 : vector<32x384xf32> to vector<2x16x384xf32>
    %cst_103 = arith.constant 0.000000e+00 : f32
    %257 = vector.broadcast %cst_103 : f32 to vector<32x128xf32>
    %258 = vector.extract_strided_slice %256 {offsets = [0, 0, 0], sizes = [2, 16, 32], strides = [1, 1, 1]} : vector<2x16x384xf32> to vector<2x16x32xf32>
    %259 = vector.extract_strided_slice %256 {offsets = [0, 0, 128], sizes = [2, 16, 32], strides = [1, 1, 1]} : vector<2x16x384xf32> to vector<2x16x32xf32>
    %260 = vector.extract_strided_slice %256 {offsets = [0, 0, 256], sizes = [2, 16, 32], strides = [1, 1, 1]} : vector<2x16x384xf32> to vector<2x16x32xf32>
    %261 = arith.truncf %258 : vector<2x16x32xf32> to vector<2x16x32xbf16>
    %262 = arith.truncf %259 : vector<2x16x32xf32> to vector<2x16x32xbf16>
    "tpu.trace_start"() <{level = 10 : i32, message = "bqd,bkd->bqk"}> : () -> ()
    %cst_104 = arith.constant dense<0.000000e+00> : vector<2x16x16xf32>
    %263 = tpu.matmul %261, %262, %cst_104 {dimension_numbers = #tpu.dot_dimension_numbers<[2], [2], [1], [1], [0, 0, 0, 1, 1, 1], [0], [0]>} : vector<2x16x32xbf16>, vector<2x16x32xbf16>, vector<2x16x16xf32> -> vector<2x16x16xf32>
    "tpu.trace_stop"() : () -> ()
    %cst_105 = arith.constant 0.176776692 : f32
    %264 = vector.broadcast %cst_105 : f32 to vector<2x16x16xf32>
    %265 = arith.mulf %263, %264 : vector<2x16x16xf32>
    %266 = vector.broadcast %2 : vector<2x1x16xf32> to vector<2x16x16xf32>
    %267 = arith.addf %265, %266 : vector<2x16x16xf32>
    %cst_106 = arith.constant dense<0xFF800000> : vector<2x16xf32>
    %268 = vector.multi_reduction <maximumf>, %267, %cst_106 [2] : vector<2x16x16xf32> to vector<2x16xf32>
    %269 = vector.shape_cast %268 : vector<2x16xf32> to vector<2x16x1xf32>
    %270 = vector.broadcast %269 : vector<2x16x1xf32> to vector<2x16x16xf32>
    %271 = arith.subf %267, %270 : vector<2x16x16xf32>
    %272 = math.exp %271 : vector<2x16x16xf32>
    %cst_107 = arith.constant dense<0.000000e+00> : vector<2x16xf32>
    %273 = vector.multi_reduction <add>, %272, %cst_107 [2] : vector<2x16x16xf32> to vector<2x16xf32>
    %274 = vector.shape_cast %273 : vector<2x16xf32> to vector<2x16x1xf32>
    %275 = tpu.reciprocal %274 {approx = true} : vector<2x16x1xf32> -> vector<2x16x1xf32>
    %276 = vector.broadcast %275 : vector<2x16x1xf32> to vector<2x16x16xf32>
    %277 = arith.mulf %272, %276 : vector<2x16x16xf32>
    %278 = arith.truncf %277 : vector<2x16x16xf32> to vector<2x16x16xbf16>
    %279 = arith.truncf %260 : vector<2x16x32xf32> to vector<2x16x32xbf16>
    "tpu.trace_start"() <{level = 10 : i32, message = "bqk,bkd->bqd"}> : () -> ()
    %cst_108 = arith.constant dense<0.000000e+00> : vector<2x16x32xf32>
    %280 = tpu.matmul %278, %279, %cst_108 {dimension_numbers = #tpu.dot_dimension_numbers<[2], [1], [1], [2], [0, 0, 0, 1, 1, 2], [0], [0]>} : vector<2x16x16xbf16>, vector<2x16x32xbf16>, vector<2x16x32xf32> -> vector<2x16x32xf32>
    "tpu.trace_stop"() : () -> ()
    %281 = vector.shape_cast %280 : vector<2x16x32xf32> to vector<32x32xf32>
    %282 = vector.extract_strided_slice %249 {offsets = [0, 0], sizes = [32, 128], strides = [1, 1]} : vector<128x128xbf16> to vector<32x128xbf16>
    %283 = arith.truncf %281 : vector<32x32xf32> to vector<32x32xbf16>
    %cst_109 = arith.constant dense<0.000000e+00> : vector<32x128xf32>
    %284 = tpu.matmul %283, %282, %cst_109 {dimension_numbers = #tpu.dot_dimension_numbers<[1], [0], [0], [1], [0, 0, 1, 1], [], []>} : vector<32x32xbf16>, vector<32x128xbf16>, vector<32x128xf32> -> vector<32x128xf32>
    %285 = arith.addf %257, %284 : vector<32x128xf32>
    %286 = vector.extract_strided_slice %256 {offsets = [0, 0, 32], sizes = [2, 16, 32], strides = [1, 1, 1]} : vector<2x16x384xf32> to vector<2x16x32xf32>
    %287 = vector.extract_strided_slice %256 {offsets = [0, 0, 160], sizes = [2, 16, 32], strides = [1, 1, 1]} : vector<2x16x384xf32> to vector<2x16x32xf32>
    %288 = vector.extract_strided_slice %256 {offsets = [0, 0, 288], sizes = [2, 16, 32], strides = [1, 1, 1]} : vector<2x16x384xf32> to vector<2x16x32xf32>
    %289 = arith.truncf %286 : vector<2x16x32xf32> to vector<2x16x32xbf16>
    %290 = arith.truncf %287 : vector<2x16x32xf32> to vector<2x16x32xbf16>
    "tpu.trace_start"() <{level = 10 : i32, message = "bqd,bkd->bqk"}> : () -> ()
    %cst_110 = arith.constant dense<0.000000e+00> : vector<2x16x16xf32>
    %291 = tpu.matmul %289, %290, %cst_110 {dimension_numbers = #tpu.dot_dimension_numbers<[2], [2], [1], [1], [0, 0, 0, 1, 1, 1], [0], [0]>} : vector<2x16x32xbf16>, vector<2x16x32xbf16>, vector<2x16x16xf32> -> vector<2x16x16xf32>
    "tpu.trace_stop"() : () -> ()
    %cst_111 = arith.constant 0.176776692 : f32
    %292 = vector.broadcast %cst_111 : f32 to vector<2x16x16xf32>
    %293 = arith.mulf %291, %292 : vector<2x16x16xf32>
    %294 = vector.broadcast %2 : vector<2x1x16xf32> to vector<2x16x16xf32>
    %295 = arith.addf %293, %294 : vector<2x16x16xf32>
    %cst_112 = arith.constant dense<0xFF800000> : vector<2x16xf32>
    %296 = vector.multi_reduction <maximumf>, %295, %cst_112 [2] : vector<2x16x16xf32> to vector<2x16xf32>
    %297 = vector.shape_cast %296 : vector<2x16xf32> to vector<2x16x1xf32>
    %298 = vector.broadcast %297 : vector<2x16x1xf32> to vector<2x16x16xf32>
    %299 = arith.subf %295, %298 : vector<2x16x16xf32>
    %300 = math.exp %299 : vector<2x16x16xf32>
    %cst_113 = arith.constant dense<0.000000e+00> : vector<2x16xf32>
    %301 = vector.multi_reduction <add>, %300, %cst_113 [2] : vector<2x16x16xf32> to vector<2x16xf32>
    %302 = vector.shape_cast %301 : vector<2x16xf32> to vector<2x16x1xf32>
    %303 = tpu.reciprocal %302 {approx = true} : vector<2x16x1xf32> -> vector<2x16x1xf32>
    %304 = vector.broadcast %303 : vector<2x16x1xf32> to vector<2x16x16xf32>
    %305 = arith.mulf %300, %304 : vector<2x16x16xf32>
    %306 = arith.truncf %305 : vector<2x16x16xf32> to vector<2x16x16xbf16>
    %307 = arith.truncf %288 : vector<2x16x32xf32> to vector<2x16x32xbf16>
    "tpu.trace_start"() <{level = 10 : i32, message = "bqk,bkd->bqd"}> : () -> ()
    %cst_114 = arith.constant dense<0.000000e+00> : vector<2x16x32xf32>
    %308 = tpu.matmul %306, %307, %cst_114 {dimension_numbers = #tpu.dot_dimension_numbers<[2], [1], [1], [2], [0, 0, 0, 1, 1, 2], [0], [0]>} : vector<2x16x16xbf16>, vector<2x16x32xbf16>, vector<2x16x32xf32> -> vector<2x16x32xf32>
    "tpu.trace_stop"() : () -> ()
    %309 = vector.shape_cast %308 : vector<2x16x32xf32> to vector<32x32xf32>
    %310 = vector.extract_strided_slice %249 {offsets = [32, 0], sizes = [32, 128], strides = [1, 1]} : vector<128x128xbf16> to vector<32x128xbf16>
    %311 = arith.truncf %309 : vector<32x32xf32> to vector<32x32xbf16>
    %cst_115 = arith.constant dense<0.000000e+00> : vector<32x128xf32>
    %312 = tpu.matmul %311, %310, %cst_115 {dimension_numbers = #tpu.dot_dimension_numbers<[1], [0], [0], [1], [0, 0, 1, 1], [], []>} : vector<32x32xbf16>, vector<32x128xbf16>, vector<32x128xf32> -> vector<32x128xf32>
    %313 = arith.addf %285, %312 : vector<32x128xf32>
    %314 = vector.extract_strided_slice %256 {offsets = [0, 0, 64], sizes = [2, 16, 32], strides = [1, 1, 1]} : vector<2x16x384xf32> to vector<2x16x32xf32>
    %315 = vector.extract_strided_slice %256 {offsets = [0, 0, 192], sizes = [2, 16, 32], strides = [1, 1, 1]} : vector<2x16x384xf32> to vector<2x16x32xf32>
    %316 = vector.extract_strided_slice %256 {offsets = [0, 0, 320], sizes = [2, 16, 32], strides = [1, 1, 1]} : vector<2x16x384xf32> to vector<2x16x32xf32>
    %317 = arith.truncf %314 : vector<2x16x32xf32> to vector<2x16x32xbf16>
    %318 = arith.truncf %315 : vector<2x16x32xf32> to vector<2x16x32xbf16>
    "tpu.trace_start"() <{level = 10 : i32, message = "bqd,bkd->bqk"}> : () -> ()
    %cst_116 = arith.constant dense<0.000000e+00> : vector<2x16x16xf32>
    %319 = tpu.matmul %317, %318, %cst_116 {dimension_numbers = #tpu.dot_dimension_numbers<[2], [2], [1], [1], [0, 0, 0, 1, 1, 1], [0], [0]>} : vector<2x16x32xbf16>, vector<2x16x32xbf16>, vector<2x16x16xf32> -> vector<2x16x16xf32>
    "tpu.trace_stop"() : () -> ()
    %cst_117 = arith.constant 0.176776692 : f32
    %320 = vector.broadcast %cst_117 : f32 to vector<2x16x16xf32>
    %321 = arith.mulf %319, %320 : vector<2x16x16xf32>
    %322 = vector.broadcast %2 : vector<2x1x16xf32> to vector<2x16x16xf32>
    %323 = arith.addf %321, %322 : vector<2x16x16xf32>
    %cst_118 = arith.constant dense<0xFF800000> : vector<2x16xf32>
    %324 = vector.multi_reduction <maximumf>, %323, %cst_118 [2] : vector<2x16x16xf32> to vector<2x16xf32>
    %325 = vector.shape_cast %324 : vector<2x16xf32> to vector<2x16x1xf32>
    %326 = vector.broadcast %325 : vector<2x16x1xf32> to vector<2x16x16xf32>
    %327 = arith.subf %323, %326 : vector<2x16x16xf32>
    %328 = math.exp %327 : vector<2x16x16xf32>
    %cst_119 = arith.constant dense<0.000000e+00> : vector<2x16xf32>
    %329 = vector.multi_reduction <add>, %328, %cst_119 [2] : vector<2x16x16xf32> to vector<2x16xf32>
    %330 = vector.shape_cast %329 : vector<2x16xf32> to vector<2x16x1xf32>
    %331 = tpu.reciprocal %330 {approx = true} : vector<2x16x1xf32> -> vector<2x16x1xf32>
    %332 = vector.broadcast %331 : vector<2x16x1xf32> to vector<2x16x16xf32>
    %333 = arith.mulf %328, %332 : vector<2x16x16xf32>
    %334 = arith.truncf %333 : vector<2x16x16xf32> to vector<2x16x16xbf16>
    %335 = arith.truncf %316 : vector<2x16x32xf32> to vector<2x16x32xbf16>
    "tpu.trace_start"() <{level = 10 : i32, message = "bqk,bkd->bqd"}> : () -> ()
    %cst_120 = arith.constant dense<0.000000e+00> : vector<2x16x32xf32>
    %336 = tpu.matmul %334, %335, %cst_120 {dimension_numbers = #tpu.dot_dimension_numbers<[2], [1], [1], [2], [0, 0, 0, 1, 1, 2], [0], [0]>} : vector<2x16x16xbf16>, vector<2x16x32xbf16>, vector<2x16x32xf32> -> vector<2x16x32xf32>
    "tpu.trace_stop"() : () -> ()
    %337 = vector.shape_cast %336 : vector<2x16x32xf32> to vector<32x32xf32>
    %338 = vector.extract_strided_slice %249 {offsets = [64, 0], sizes = [32, 128], strides = [1, 1]} : vector<128x128xbf16> to vector<32x128xbf16>
    %339 = arith.truncf %337 : vector<32x32xf32> to vector<32x32xbf16>
    %cst_121 = arith.constant dense<0.000000e+00> : vector<32x128xf32>
    %340 = tpu.matmul %339, %338, %cst_121 {dimension_numbers = #tpu.dot_dimension_numbers<[1], [0], [0], [1], [0, 0, 1, 1], [], []>} : vector<32x32xbf16>, vector<32x128xbf16>, vector<32x128xf32> -> vector<32x128xf32>
    %341 = arith.addf %313, %340 : vector<32x128xf32>
    %342 = vector.extract_strided_slice %256 {offsets = [0, 0, 96], sizes = [2, 16, 32], strides = [1, 1, 1]} : vector<2x16x384xf32> to vector<2x16x32xf32>
    %343 = vector.extract_strided_slice %256 {offsets = [0, 0, 224], sizes = [2, 16, 32], strides = [1, 1, 1]} : vector<2x16x384xf32> to vector<2x16x32xf32>
    %344 = vector.extract_strided_slice %256 {offsets = [0, 0, 352], sizes = [2, 16, 32], strides = [1, 1, 1]} : vector<2x16x384xf32> to vector<2x16x32xf32>
    %345 = arith.truncf %342 : vector<2x16x32xf32> to vector<2x16x32xbf16>
    %346 = arith.truncf %343 : vector<2x16x32xf32> to vector<2x16x32xbf16>
    "tpu.trace_start"() <{level = 10 : i32, message = "bqd,bkd->bqk"}> : () -> ()
    %cst_122 = arith.constant dense<0.000000e+00> : vector<2x16x16xf32>
    %347 = tpu.matmul %345, %346, %cst_122 {dimension_numbers = #tpu.dot_dimension_numbers<[2], [2], [1], [1], [0, 0, 0, 1, 1, 1], [0], [0]>} : vector<2x16x32xbf16>, vector<2x16x32xbf16>, vector<2x16x16xf32> -> vector<2x16x16xf32>
    "tpu.trace_stop"() : () -> ()
    %cst_123 = arith.constant 0.176776692 : f32
    %348 = vector.broadcast %cst_123 : f32 to vector<2x16x16xf32>
    %349 = arith.mulf %347, %348 : vector<2x16x16xf32>
    %350 = vector.broadcast %2 : vector<2x1x16xf32> to vector<2x16x16xf32>
    %351 = arith.addf %349, %350 : vector<2x16x16xf32>
    %cst_124 = arith.constant dense<0xFF800000> : vector<2x16xf32>
    %352 = vector.multi_reduction <maximumf>, %351, %cst_124 [2] : vector<2x16x16xf32> to vector<2x16xf32>
    %353 = vector.shape_cast %352 : vector<2x16xf32> to vector<2x16x1xf32>
    %354 = vector.broadcast %353 : vector<2x16x1xf32> to vector<2x16x16xf32>
    %355 = arith.subf %351, %354 : vector<2x16x16xf32>
    %356 = math.exp %355 : vector<2x16x16xf32>
    %cst_125 = arith.constant dense<0.000000e+00> : vector<2x16xf32>
    %357 = vector.multi_reduction <add>, %356, %cst_125 [2] : vector<2x16x16xf32> to vector<2x16xf32>
    %358 = vector.shape_cast %357 : vector<2x16xf32> to vector<2x16x1xf32>
    %359 = tpu.reciprocal %358 {approx = true} : vector<2x16x1xf32> -> vector<2x16x1xf32>
    %360 = vector.broadcast %359 : vector<2x16x1xf32> to vector<2x16x16xf32>
    %361 = arith.mulf %356, %360 : vector<2x16x16xf32>
    %362 = arith.truncf %361 : vector<2x16x16xf32> to vector<2x16x16xbf16>
    %363 = arith.truncf %344 : vector<2x16x32xf32> to vector<2x16x32xbf16>
    "tpu.trace_start"() <{level = 10 : i32, message = "bqk,bkd->bqd"}> : () -> ()
    %cst_126 = arith.constant dense<0.000000e+00> : vector<2x16x32xf32>
    %364 = tpu.matmul %362, %363, %cst_126 {dimension_numbers = #tpu.dot_dimension_numbers<[2], [1], [1], [2], [0, 0, 0, 1, 1, 2], [0], [0]>} : vector<2x16x16xbf16>, vector<2x16x32xbf16>, vector<2x16x32xf32> -> vector<2x16x32xf32>
    "tpu.trace_stop"() : () -> ()
    %365 = vector.shape_cast %364 : vector<2x16x32xf32> to vector<32x32xf32>
    %366 = vector.extract_strided_slice %249 {offsets = [96, 0], sizes = [32, 128], strides = [1, 1]} : vector<128x128xbf16> to vector<32x128xbf16>
    %367 = arith.truncf %365 : vector<32x32xf32> to vector<32x32xbf16>
    %cst_127 = arith.constant dense<0.000000e+00> : vector<32x128xf32>
    %368 = tpu.matmul %367, %366, %cst_127 {dimension_numbers = #tpu.dot_dimension_numbers<[1], [0], [0], [1], [0, 0, 1, 1], [], []>} : vector<32x32xbf16>, vector<32x128xbf16>, vector<32x128xf32> -> vector<32x128xf32>
    %369 = arith.addf %341, %368 : vector<32x128xf32>
    %370 = arith.addf %243, %369 : vector<32x128xf32>
    %371 = vector.broadcast %251 : vector<1x128xf32> to vector<32x128xf32>
    %372 = arith.addf %370, %371 : vector<32x128xf32>
    %c1_128 = arith.constant 1 : index
    %c0_129 = arith.constant 0 : index
    %c0_130 = arith.constant 0 : index
    %373 = vector.load %arg9[%c1_128, %c0_129, %c0_130] : memref<2x1x128xf32, #tpu.memory_space<vmem>>, vector<1x1x128xf32>
    %374 = vector.shape_cast %373 : vector<1x1x128xf32> to vector<1x128xf32>
    %c1_131 = arith.constant 1 : index
    %c0_132 = arith.constant 0 : index
    %c0_133 = arith.constant 0 : index
    %375 = vector.load %arg10[%c1_131, %c0_132, %c0_133] : memref<2x1x128xf32, #tpu.memory_space<vmem>>, vector<1x1x128xf32>
    %376 = vector.shape_cast %375 : vector<1x1x128xf32> to vector<1x128xf32>
    %cst_134 = arith.constant dense<0.000000e+00> : vector<32xf32>
    %377 = vector.multi_reduction <add>, %372, %cst_134 [1] : vector<32x128xf32> to vector<32xf32>
    %378 = vector.shape_cast %377 : vector<32xf32> to vector<32x1xf32>
    %cst_135 = arith.constant 1.280000e+02 : f32
    %379 = vector.broadcast %cst_135 : f32 to vector<32x1xf32>
    %380 = arith.divf %378, %379 : vector<32x1xf32>
    %381 = vector.broadcast %380 : vector<32x1xf32> to vector<32x128xf32>
    %382 = arith.subf %372, %381 : vector<32x128xf32>
    %383 = vector.broadcast %380 : vector<32x1xf32> to vector<32x128xf32>
    %384 = arith.subf %372, %383 : vector<32x128xf32>
    %385 = arith.mulf %382, %384 : vector<32x128xf32>
    %cst_136 = arith.constant dense<0.000000e+00> : vector<32xf32>
    %386 = vector.multi_reduction <add>, %385, %cst_136 [1] : vector<32x128xf32> to vector<32xf32>
    %387 = vector.shape_cast %386 : vector<32xf32> to vector<32x1xf32>
    %cst_137 = arith.constant 1.280000e+02 : f32
    %388 = vector.broadcast %cst_137 : f32 to vector<32x1xf32>
    %389 = arith.divf %387, %388 : vector<32x1xf32>
    %cst_138 = arith.constant 9.99999996E-13 : f32
    %390 = vector.broadcast %cst_138 : f32 to vector<32x1xf32>
    %391 = arith.addf %389, %390 : vector<32x1xf32>
    %392 = math.rsqrt %391 : vector<32x1xf32>
    %393 = vector.broadcast %380 : vector<32x1xf32> to vector<32x128xf32>
    %394 = arith.subf %372, %393 : vector<32x128xf32>
    %395 = vector.broadcast %392 : vector<32x1xf32> to vector<32x128xf32>
    %396 = arith.mulf %394, %395 : vector<32x128xf32>
    %397 = vector.broadcast %374 : vector<1x128xf32> to vector<32x128xf32>
    %398 = arith.mulf %396, %397 : vector<32x128xf32>
    %399 = vector.broadcast %376 : vector<1x128xf32> to vector<32x128xf32>
    %400 = arith.addf %398, %399 : vector<32x128xf32>
    %c1_139 = arith.constant 1 : index
    %c0_140 = arith.constant 0 : index
    %c0_141 = arith.constant 0 : index
    %401 = vector.load %arg11[%c1_139, %c0_140, %c0_141] : memref<2x128x512xbf16, #tpu.memory_space<vmem>>, vector<1x128x512xbf16>
    %402 = vector.shape_cast %401 : vector<1x128x512xbf16> to vector<128x512xbf16>
    %403 = arith.truncf %400 : vector<32x128xf32> to vector<32x128xbf16>
    %cst_142 = arith.constant dense<0.000000e+00> : vector<32x512xf32>
    %404 = tpu.matmul %403, %402, %cst_142 {dimension_numbers = #tpu.dot_dimension_numbers<[1], [0], [0], [1], [0, 0, 1, 1], [], []>} : vector<32x128xbf16>, vector<128x512xbf16>, vector<32x512xf32> -> vector<32x512xf32>
    %c1_143 = arith.constant 1 : index
    %c0_144 = arith.constant 0 : index
    %c0_145 = arith.constant 0 : index
    %405 = vector.load %arg12[%c1_143, %c0_144, %c0_145] : memref<2x1x512xf32, #tpu.memory_space<vmem>>, vector<1x1x512xf32>
    %406 = vector.shape_cast %405 : vector<1x1x512xf32> to vector<1x512xf32>
    %407 = vector.broadcast %406 : vector<1x512xf32> to vector<32x512xf32>
    %408 = arith.addf %404, %407 : vector<32x512xf32>
    %cst_146 = arith.constant 5.000000e-01 : f32
    %409 = vector.broadcast %cst_146 : f32 to vector<32x512xf32>
    %410 = arith.mulf %409, %408 : vector<32x512xf32>
    %cst_147 = arith.constant 4.471500e-02 : f32
    %411 = vector.broadcast %cst_147 : f32 to vector<32x512xf32>
    %412 = arith.mulf %411, %408 : vector<32x512xf32>
    %413 = arith.mulf %412, %408 : vector<32x512xf32>
    %414 = arith.mulf %413, %408 : vector<32x512xf32>
    %415 = arith.addf %408, %414 : vector<32x512xf32>
    %cst_148 = arith.constant 0.797884583 : f32
    %416 = vector.broadcast %cst_148 : f32 to vector<32x512xf32>
    %417 = arith.mulf %416, %415 : vector<32x512xf32>
    %418 = math.tanh %417 : vector<32x512xf32>
    %cst_149 = arith.constant 1.000000e+00 : f32
    %419 = vector.broadcast %cst_149 : f32 to vector<32x512xf32>
    %420 = arith.addf %419, %418 : vector<32x512xf32>
    %421 = arith.mulf %410, %420 : vector<32x512xf32>
    %c1_150 = arith.constant 1 : index
    %c0_151 = arith.constant 0 : index
    %c0_152 = arith.constant 0 : index
    %422 = vector.load %arg13[%c1_150, %c0_151, %c0_152] : memref<2x512x128xbf16, #tpu.memory_space<vmem>>, vector<1x512x128xbf16>
    %423 = vector.shape_cast %422 : vector<1x512x128xbf16> to vector<512x128xbf16>
    %424 = arith.truncf %421 : vector<32x512xf32> to vector<32x512xbf16>
    %cst_153 = arith.constant dense<0.000000e+00> : vector<32x128xf32>
    %425 = tpu.matmul %424, %423, %cst_153 {dimension_numbers = #tpu.dot_dimension_numbers<[1], [0], [0], [1], [0, 0, 1, 1], [], []>} : vector<32x512xbf16>, vector<512x128xbf16>, vector<32x128xf32> -> vector<32x128xf32>
    %426 = arith.addf %400, %425 : vector<32x128xf32>
    %c1_154 = arith.constant 1 : index
    %c0_155 = arith.constant 0 : index
    %c0_156 = arith.constant 0 : index
    %427 = vector.load %arg14[%c1_154, %c0_155, %c0_156] : memref<2x1x128xf32, #tpu.memory_space<vmem>>, vector<1x1x128xf32>
    %428 = vector.shape_cast %427 : vector<1x1x128xf32> to vector<1x128xf32>
    %429 = vector.broadcast %428 : vector<1x128xf32> to vector<32x128xf32>
    %430 = arith.addf %426, %429 : vector<32x128xf32>
    %c1_157 = arith.constant 1 : index
    %c0_158 = arith.constant 0 : index
    %c0_159 = arith.constant 0 : index
    %431 = vector.load %arg15[%c1_157, %c0_158, %c0_159] : memref<2x1x128xf32, #tpu.memory_space<vmem>>, vector<1x1x128xf32>
    %432 = vector.shape_cast %431 : vector<1x1x128xf32> to vector<1x128xf32>
    %c1_160 = arith.constant 1 : index
    %c0_161 = arith.constant 0 : index
    %c0_162 = arith.constant 0 : index
    %433 = vector.load %arg16[%c1_160, %c0_161, %c0_162] : memref<2x1x128xf32, #tpu.memory_space<vmem>>, vector<1x1x128xf32>
    %434 = vector.shape_cast %433 : vector<1x1x128xf32> to vector<1x128xf32>
    %cst_163 = arith.constant dense<0.000000e+00> : vector<32xf32>
    %435 = vector.multi_reduction <add>, %430, %cst_163 [1] : vector<32x128xf32> to vector<32xf32>
    %436 = vector.shape_cast %435 : vector<32xf32> to vector<32x1xf32>
    %cst_164 = arith.constant 1.280000e+02 : f32
    %437 = vector.broadcast %cst_164 : f32 to vector<32x1xf32>
    %438 = arith.divf %436, %437 : vector<32x1xf32>
    %439 = vector.broadcast %438 : vector<32x1xf32> to vector<32x128xf32>
    %440 = arith.subf %430, %439 : vector<32x128xf32>
    %441 = vector.broadcast %438 : vector<32x1xf32> to vector<32x128xf32>
    %442 = arith.subf %430, %441 : vector<32x128xf32>
    %443 = arith.mulf %440, %442 : vector<32x128xf32>
    %cst_165 = arith.constant dense<0.000000e+00> : vector<32xf32>
    %444 = vector.multi_reduction <add>, %443, %cst_165 [1] : vector<32x128xf32> to vector<32xf32>
    %445 = vector.shape_cast %444 : vector<32xf32> to vector<32x1xf32>
    %cst_166 = arith.constant 1.280000e+02 : f32
    %446 = vector.broadcast %cst_166 : f32 to vector<32x1xf32>
    %447 = arith.divf %445, %446 : vector<32x1xf32>
    %cst_167 = arith.constant 9.99999996E-13 : f32
    %448 = vector.broadcast %cst_167 : f32 to vector<32x1xf32>
    %449 = arith.addf %447, %448 : vector<32x1xf32>
    %450 = math.rsqrt %449 : vector<32x1xf32>
    %451 = vector.broadcast %438 : vector<32x1xf32> to vector<32x128xf32>
    %452 = arith.subf %430, %451 : vector<32x128xf32>
    %453 = vector.broadcast %450 : vector<32x1xf32> to vector<32x128xf32>
    %454 = arith.mulf %452, %453 : vector<32x128xf32>
    %455 = vector.broadcast %432 : vector<1x128xf32> to vector<32x128xf32>
    %456 = arith.mulf %454, %455 : vector<32x128xf32>
    %457 = vector.broadcast %434 : vector<1x128xf32> to vector<32x128xf32>
    %458 = arith.addf %456, %457 : vector<32x128xf32>
    %459 = vector.shape_cast %458 : vector<32x128xf32> to vector<2x16x128xf32>
    %460 = vector.extract_strided_slice %459 {offsets = [0, 0, 0], sizes = [2, 1, 128], strides = [1, 1, 1]} : vector<2x16x128xf32> to vector<2x1x128xf32>
    %461 = vector.shape_cast %460 : vector<2x1x128xf32> to vector<2x128xf32>
    %c0_168 = arith.constant 0 : index
    %c0_169 = arith.constant 0 : index
    %462 = vector.load %arg17[%c0_168, %c0_169] : memref<128x128xbf16, #tpu.memory_space<vmem>>, vector<128x128xbf16>
    %463 = arith.truncf %461 : vector<2x128xf32> to vector<2x128xbf16>
    %cst_170 = arith.constant dense<0.000000e+00> : vector<2x128xf32>
    %464 = tpu.matmul %463, %462, %cst_170 {dimension_numbers = #tpu.dot_dimension_numbers<[1], [0], [0], [1], [0, 0, 1, 1], [], []>} : vector<2x128xbf16>, vector<128x128xbf16>, vector<2x128xf32> -> vector<2x128xf32>
    %c0_171 = arith.constant 0 : index
    %c0_172 = arith.constant 0 : index
    %465 = vector.load %arg18[%c0_171, %c0_172] : memref<1x128xf32, #tpu.memory_space<vmem>>, vector<1x128xf32>
    %466 = vector.broadcast %465 : vector<1x128xf32> to vector<2x128xf32>
    %467 = arith.addf %464, %466 : vector<2x128xf32>
    %468 = math.tanh %467 : vector<2x128xf32>
    %c0_173 = arith.constant 0 : index
    %c0_174 = arith.constant 0 : index
    %469 = vector.load %arg19[%c0_173, %c0_174] : memref<128x512xbf16, #tpu.memory_space<vmem>>, vector<128x512xbf16>
    %c0_175 = arith.constant 0 : index
    %c0_176 = arith.constant 0 : index
    %470 = vector.load %arg20[%c0_175, %c0_176] : memref<1x512xf32, #tpu.memory_space<vmem>>, vector<1x512xf32>
    %471 = arith.truncf %468 : vector<2x128xf32> to vector<2x128xbf16>
    %cst_177 = arith.constant dense<0.000000e+00> : vector<2x512xf32>
    %472 = tpu.matmul %471, %469, %cst_177 {dimension_numbers = #tpu.dot_dimension_numbers<[1], [0], [0], [1], [0, 0, 1, 1], [], []>} : vector<2x128xbf16>, vector<128x512xbf16>, vector<2x512xf32> -> vector<2x512xf32>
    %473 = vector.broadcast %470 : vector<1x512xf32> to vector<2x512xf32>
    %474 = arith.addf %472, %473 : vector<2x512xf32>
    %cst_178 = arith.constant 0.000000e+00 : f32
    %475 = vector.broadcast %cst_178 : f32 to vector<2x512xf32>
    %476 = arith.maximumf %474, %475 : vector<2x512xf32>
    %c0_179 = arith.constant 0 : index
    %c0_180 = arith.constant 0 : index
    %477 = vector.load %arg21[%c0_179, %c0_180] : memref<512x256xbf16, #tpu.memory_space<vmem>>, vector<512x256xbf16>
    %c0_181 = arith.constant 0 : index
    %c0_182 = arith.constant 0 : index
    %478 = vector.load %arg22[%c0_181, %c0_182] : memref<1x256xf32, #tpu.memory_space<vmem>>, vector<1x256xf32>
    %479 = arith.truncf %476 : vector<2x512xf32> to vector<2x512xbf16>
    %cst_183 = arith.constant dense<0.000000e+00> : vector<2x256xf32>
    %480 = tpu.matmul %479, %477, %cst_183 {dimension_numbers = #tpu.dot_dimension_numbers<[1], [0], [0], [1], [0, 0, 1, 1], [], []>} : vector<2x512xbf16>, vector<512x256xbf16>, vector<2x256xf32> -> vector<2x256xf32>
    %481 = vector.broadcast %478 : vector<1x256xf32> to vector<2x256xf32>
    %482 = arith.addf %480, %481 : vector<2x256xf32>
    %cst_184 = arith.constant 0.000000e+00 : f32
    %483 = vector.broadcast %cst_184 : f32 to vector<2x256xf32>
    %484 = arith.maximumf %482, %483 : vector<2x256xf32>
    %c0_185 = arith.constant 0 : index
    %c0_186 = arith.constant 0 : index
    %485 = vector.load %arg23[%c0_185, %c0_186] : memref<256x128xbf16, #tpu.memory_space<vmem>>, vector<256x128xbf16>
    %c0_187 = arith.constant 0 : index
    %c0_188 = arith.constant 0 : index
    %486 = vector.load %arg24[%c0_187, %c0_188] : memref<1x128xf32, #tpu.memory_space<vmem>>, vector<1x128xf32>
    %487 = arith.truncf %484 : vector<2x256xf32> to vector<2x256xbf16>
    %cst_189 = arith.constant dense<0.000000e+00> : vector<2x128xf32>
    %488 = tpu.matmul %487, %485, %cst_189 {dimension_numbers = #tpu.dot_dimension_numbers<[1], [0], [0], [1], [0, 0, 1, 1], [], []>} : vector<2x256xbf16>, vector<256x128xbf16>, vector<2x128xf32> -> vector<2x128xf32>
    %489 = vector.broadcast %486 : vector<1x128xf32> to vector<2x128xf32>
    %490 = arith.addf %488, %489 : vector<2x128xf32>
    %cst_190 = arith.constant 0.000000e+00 : f32
    %491 = vector.broadcast %cst_190 : f32 to vector<2x128xf32>
    %492 = arith.maximumf %490, %491 : vector<2x128xf32>
    %c0_191 = arith.constant 0 : index
    %c0_192 = arith.constant 0 : index
    %493 = vector.load %arg25[%c0_191, %c0_192] : memref<128x128xbf16, #tpu.memory_space<vmem>>, vector<128x128xbf16>
    %c0_193 = arith.constant 0 : index
    %c0_194 = arith.constant 0 : index
    %494 = vector.load %arg26[%c0_193, %c0_194] : memref<1x128xf32, #tpu.memory_space<vmem>>, vector<1x128xf32>
    %495 = arith.truncf %492 : vector<2x128xf32> to vector<2x128xbf16>
    %cst_195 = arith.constant dense<0.000000e+00> : vector<2x128xf32>
    %496 = tpu.matmul %495, %493, %cst_195 {dimension_numbers = #tpu.dot_dimension_numbers<[1], [0], [0], [1], [0, 0, 1, 1], [], []>} : vector<2x128xbf16>, vector<128x128xbf16>, vector<2x128xf32> -> vector<2x128xf32>
    %497 = vector.broadcast %494 : vector<1x128xf32> to vector<2x128xf32>
    %498 = arith.addf %496, %497 : vector<2x128xf32>
    %cst_196 = arith.constant 0.000000e+00 : f32
    %499 = vector.broadcast %cst_196 : f32 to vector<2x128xf32>
    %500 = arith.maximumf %498, %499 : vector<2x128xf32>
    %c0_197 = arith.constant 0 : index
    %c0_198 = arith.constant 0 : index
    %501 = vector.load %arg27[%c0_197, %c0_198] : memref<128x128xbf16, #tpu.memory_space<vmem>>, vector<128x128xbf16>
    %c0_199 = arith.constant 0 : index
    %c0_200 = arith.constant 0 : index
    %502 = vector.load %arg28[%c0_199, %c0_200] : memref<1x128xf32, #tpu.memory_space<vmem>>, vector<1x128xf32>
    %503 = arith.truncf %500 : vector<2x128xf32> to vector<2x128xbf16>
    %cst_201 = arith.constant dense<0.000000e+00> : vector<2x128xf32>
    %504 = tpu.matmul %503, %501, %cst_201 {dimension_numbers = #tpu.dot_dimension_numbers<[1], [0], [0], [1], [0, 0, 1, 1], [], []>} : vector<2x128xbf16>, vector<128x128xbf16>, vector<2x128xf32> -> vector<2x128xf32>
    %505 = vector.broadcast %502 : vector<1x128xf32> to vector<2x128xf32>
    %506 = arith.addf %504, %505 : vector<2x128xf32>
    %cst_202 = arith.constant 0.000000e+00 : f32
    %507 = vector.broadcast %cst_202 : f32 to vector<2x128xf32>
    %508 = arith.maximumf %506, %507 : vector<2x128xf32>
    %c0_203 = arith.constant 0 : index
    %c0_204 = arith.constant 0 : index
    %509 = vector.load %arg29[%c0_203, %c0_204] : memref<128x128xbf16, #tpu.memory_space<vmem>>, vector<128x128xbf16>
    %c0_205 = arith.constant 0 : index
    %c0_206 = arith.constant 0 : index
    %510 = vector.load %arg30[%c0_205, %c0_206] : memref<1x128xf32, #tpu.memory_space<vmem>>, vector<1x128xf32>
    %511 = arith.truncf %508 : vector<2x128xf32> to vector<2x128xbf16>
    %cst_207 = arith.constant dense<0.000000e+00> : vector<2x128xf32>
    %512 = tpu.matmul %511, %509, %cst_207 {dimension_numbers = #tpu.dot_dimension_numbers<[1], [0], [0], [1], [0, 0, 1, 1], [], []>} : vector<2x128xbf16>, vector<128x128xbf16>, vector<2x128xf32> -> vector<2x128xf32>
    %513 = vector.broadcast %510 : vector<1x128xf32> to vector<2x128xf32>
    %514 = arith.addf %512, %513 : vector<2x128xf32>
    %cst_208 = arith.constant 0.000000e+00 : f32
    %515 = vector.broadcast %cst_208 : f32 to vector<2x128xf32>
    %516 = arith.maximumf %514, %515 : vector<2x128xf32>
    %c0_209 = arith.constant 0 : index
    %c0_210 = arith.constant 0 : index
    %517 = vector.load %arg31[%c0_209, %c0_210] : memref<128x128xbf16, #tpu.memory_space<vmem>>, vector<128x128xbf16>
    %c0_211 = arith.constant 0 : index
    %c0_212 = arith.constant 0 : index
    %518 = vector.load %arg32[%c0_211, %c0_212] : memref<1x128xf32, #tpu.memory_space<vmem>>, vector<1x128xf32>
    %519 = arith.truncf %516 : vector<2x128xf32> to vector<2x128xbf16>
    %cst_213 = arith.constant dense<0.000000e+00> : vector<2x128xf32>
    %520 = tpu.matmul %519, %517, %cst_213 {dimension_numbers = #tpu.dot_dimension_numbers<[1], [0], [0], [1], [0, 0, 1, 1], [], []>} : vector<2x128xbf16>, vector<128x128xbf16>, vector<2x128xf32> -> vector<2x128xf32>
    %521 = vector.broadcast %518 : vector<1x128xf32> to vector<2x128xf32>
    %522 = arith.addf %520, %521 : vector<2x128xf32>
    %cst_214 = arith.constant 0.000000e+00 : f32
    %523 = vector.broadcast %cst_214 : f32 to vector<2x128xf32>
    %524 = arith.maximumf %522, %523 : vector<2x128xf32>
    %c0_215 = arith.constant 0 : index
    %c0_216 = arith.constant 0 : index
    %525 = vector.load %arg33[%c0_215, %c0_216] : memref<128x128xbf16, #tpu.memory_space<vmem>>, vector<128x128xbf16>
    %c0_217 = arith.constant 0 : index
    %c0_218 = arith.constant 0 : index
    %526 = vector.load %arg34[%c0_217, %c0_218] : memref<1x128xf32, #tpu.memory_space<vmem>>, vector<1x128xf32>
    %527 = arith.truncf %524 : vector<2x128xf32> to vector<2x128xbf16>
    %cst_219 = arith.constant dense<0.000000e+00> : vector<2x128xf32>
    %528 = tpu.matmul %527, %525, %cst_219 {dimension_numbers = #tpu.dot_dimension_numbers<[1], [0], [0], [1], [0, 0, 1, 1], [], []>} : vector<2x128xbf16>, vector<128x128xbf16>, vector<2x128xf32> -> vector<2x128xf32>
    %529 = vector.broadcast %526 : vector<1x128xf32> to vector<2x128xf32>
    %530 = arith.addf %528, %529 : vector<2x128xf32>
    %cst_220 = arith.constant 0.000000e+00 : f32
    %531 = vector.broadcast %cst_220 : f32 to vector<2x128xf32>
    %532 = arith.maximumf %530, %531 : vector<2x128xf32>
    %c0_221 = arith.constant 0 : index
    %c0_222 = arith.constant 0 : index
    %533 = vector.load %arg35[%c0_221, %c0_222] : memref<2x128xf32, #tpu.memory_space<vmem>>, vector<2x128xf32>
    tpu.vector_store %arg35[%c0_221, %c0_222], %532 {strides = array<i32>} : memref<2x128xf32, #tpu.memory_space<vmem>>, vector<2x128xf32>,
    return
  }
  func.func @transform_0(%arg0: i32) -> (i32, i32, i32) {
    %c0_i32 = arith.constant 0 : i32
    %c0_i32_0 = arith.constant 0 : i32
    %c0_i32_1 = arith.constant 0 : i32
    %c0_i32_2 = arith.constant 0 : i32
    return %c0_i32, %c0_i32_0, %c0_i32_1 : i32, i32, i32
  }
  func.func @transform_1(%arg0: i32) -> (i32, i32, i32) {
    %c0_i32 = arith.constant 0 : i32
    %c0_i32_0 = arith.constant 0 : i32
    %c0_i32_1 = arith.constant 0 : i32
    %c0_i32_2 = arith.constant 0 : i32
    return %c0_i32, %c0_i32_0, %c0_i32_1 : i32, i32, i32
  }
  func.func @transform_2(%arg0: i32) -> (i32, i32) {
    %c0_i32 = arith.constant 0 : i32
    %c0_i32_0 = arith.constant 0 : i32
    %c0_i32_1 = arith.constant 0 : i32
    return %c0_i32, %c0_i32_0 : i32, i32
  }
  func.func @transform_3(%arg0: i32) -> (i32, i32) {
    %c0_i32 = arith.constant 0 : i32
    %c0_i32_0 = arith.constant 0 : i32
    %c0_i32_1 = arith.constant 0 : i32
    return %c0_i32, %c0_i32_0 : i32, i32
  }
  func.func @transform_4(%arg0: i32) -> (i32, i32, i32) {
    %c0_i32 = arith.constant 0 : i32
    %c0_i32_0 = arith.constant 0 : i32
    %c0_i32_1 = arith.constant 0 : i32
    %c0_i32_2 = arith.constant 0 : i32
    return %c0_i32, %c0_i32_0, %c0_i32_1 : i32, i32, i32
  }
  func.func @transform_5(%arg0: i32) -> (i32, i32, i32) {
    %c0_i32 = arith.constant 0 : i32
    %c0_i32_0 = arith.constant 0 : i32
    %c0_i32_1 = arith.constant 0 : i32
    %c0_i32_2 = arith.constant 0 : i32
    return %c0_i32, %c0_i32_0, %c0_i32_1 : i32, i32, i32
  }
  func.func @transform_6(%arg0: i32) -> (i32, i32, i32) {
    %c0_i32 = arith.constant 0 : i32
    %c0_i32_0 = arith.constant 0 : i32
    %c0_i32_1 = arith.constant 0 : i32
    %c0_i32_2 = arith.constant 0 : i32
    return %c0_i32, %c0_i32_0, %c0_i32_1 : i32, i32, i32
  }
  func.func @transform_7(%arg0: i32) -> (i32, i32, i32) {
    %c0_i32 = arith.constant 0 : i32
    %c0_i32_0 = arith.constant 0 : i32
    %c0_i32_1 = arith.constant 0 : i32
    %c0_i32_2 = arith.constant 0 : i32
    return %c0_i32, %c0_i32_0, %c0_i32_1 : i32, i32, i32
  }
  func.func @transform_8(%arg0: i32) -> (i32, i32, i32) {
    %c0_i32 = arith.constant 0 : i32
    %c0_i32_0 = arith.constant 0 : i32
    %c0_i32_1 = arith.constant 0 : i32
    %c0_i32_2 = arith.constant 0 : i32
    return %c0_i32, %c0_i32_0, %c0_i32_1 : i32, i32, i32
  }
  func.func @transform_9(%arg0: i32) -> (i32, i32, i32) {
    %c0_i32 = arith.constant 0 : i32
    %c0_i32_0 = arith.constant 0 : i32
    %c0_i32_1 = arith.constant 0 : i32
    %c0_i32_2 = arith.constant 0 : i32
    return %c0_i32, %c0_i32_0, %c0_i32_1 : i32, i32, i32
  }
  func.func @transform_10(%arg0: i32) -> (i32, i32, i32) {
    %c0_i32 = arith.constant 0 : i32
    %c0_i32_0 = arith.constant 0 : i32
    %c0_i32_1 = arith.constant 0 : i32
    %c0_i32_2 = arith.constant 0 : i32
    return %c0_i32, %c0_i32_0, %c0_i32_1 : i32, i32, i32
  }
  func.func @transform_11(%arg0: i32) -> (i32, i32, i32) {
    %c0_i32 = arith.constant 0 : i32
    %c0_i32_0 = arith.constant 0 : i32
    %c0_i32_1 = arith.constant 0 : i32
    %c0_i32_2 = arith.constant 0 : i32
    return %c0_i32, %c0_i32_0, %c0_i32_1 : i32, i32, i32
  }
  func.func @transform_12(%arg0: i32) -> (i32, i32, i32) {
    %c0_i32 = arith.constant 0 : i32
    %c0_i32_0 = arith.constant 0 : i32
    %c0_i32_1 = arith.constant 0 : i32
    %c0_i32_2 = arith.constant 0 : i32
    return %c0_i32, %c0_i32_0, %c0_i32_1 : i32, i32, i32
  }
  func.func @transform_13(%arg0: i32) -> (i32, i32, i32) {
    %c0_i32 = arith.constant 0 : i32
    %c0_i32_0 = arith.constant 0 : i32
    %c0_i32_1 = arith.constant 0 : i32
    %c0_i32_2 = arith.constant 0 : i32
    return %c0_i32, %c0_i32_0, %c0_i32_1 : i32, i32, i32
  }
  func.func @transform_14(%arg0: i32) -> (i32, i32, i32) {
    %c0_i32 = arith.constant 0 : i32
    %c0_i32_0 = arith.constant 0 : i32
    %c0_i32_1 = arith.constant 0 : i32
    %c0_i32_2 = arith.constant 0 : i32
    return %c0_i32, %c0_i32_0, %c0_i32_1 : i32, i32, i32
  }
  func.func @transform_15(%arg0: i32) -> (i32, i32, i32) {
    %c0_i32 = arith.constant 0 : i32
    %c0_i32_0 = arith.constant 0 : i32
    %c0_i32_1 = arith.constant 0 : i32
    %c0_i32_2 = arith.constant 0 : i32
    return %c0_i32, %c0_i32_0, %c0_i32_1 : i32, i32, i32
  }
  func.func @transform_16(%arg0: i32) -> (i32, i32) {
    %c0_i32 = arith.constant 0 : i32
    %c0_i32_0 = arith.constant 0 : i32
    %c0_i32_1 = arith.constant 0 : i32
    return %c0_i32, %c0_i32_0 : i32, i32
  }
  func.func @transform_17(%arg0: i32) -> (i32, i32) {
    %c0_i32 = arith.constant 0 : i32
    %c0_i32_0 = arith.constant 0 : i32
    %c0_i32_1 = arith.constant 0 : i32
    return %c0_i32, %c0_i32_0 : i32, i32
  }
  func.func @transform_18(%arg0: i32) -> (i32, i32) {
    %c0_i32 = arith.constant 0 : i32
    %c0_i32_0 = arith.constant 0 : i32
    %c0_i32_1 = arith.constant 0 : i32
    return %c0_i32, %c0_i32_0 : i32, i32
  }
  func.func @transform_19(%arg0: i32) -> (i32, i32) {
    %c0_i32 = arith.constant 0 : i32
    %c0_i32_0 = arith.constant 0 : i32
    %c0_i32_1 = arith.constant 0 : i32
    return %c0_i32, %c0_i32_0 : i32, i32
  }
  func.func @transform_20(%arg0: i32) -> (i32, i32) {
    %c0_i32 = arith.constant 0 : i32
    %c0_i32_0 = arith.constant 0 : i32
    %c0_i32_1 = arith.constant 0 : i32
    return %c0_i32, %c0_i32_0 : i32, i32
  }
  func.func @transform_21(%arg0: i32) -> (i32, i32) {
    %c0_i32 = arith.constant 0 : i32
    %c0_i32_0 = arith.constant 0 : i32
    %c0_i32_1 = arith.constant 0 : i32
    return %c0_i32, %c0_i32_0 : i32, i32
  }
  func.func @transform_22(%arg0: i32) -> (i32, i32) {
    %c0_i32 = arith.constant 0 : i32
    %c0_i32_0 = arith.constant 0 : i32
    %c0_i32_1 = arith.constant 0 : i32
    return %c0_i32, %c0_i32_0 : i32, i32
  }
  func.func @transform_23(%arg0: i32) -> (i32, i32) {
    %c0_i32 = arith.constant 0 : i32
    %c0_i32_0 = arith.constant 0 : i32
    %c0_i32_1 = arith.constant 0 : i32
    return %c0_i32, %c0_i32_0 : i32, i32
  }
  func.func @transform_24(%arg0: i32) -> (i32, i32) {
    %c0_i32 = arith.constant 0 : i32
    %c0_i32_0 = arith.constant 0 : i32
    %c0_i32_1 = arith.constant 0 : i32
    return %c0_i32, %c0_i32_0 : i32, i32
  }
  func.func @transform_25(%arg0: i32) -> (i32, i32) {
    %c0_i32 = arith.constant 0 : i32
    %c0_i32_0 = arith.constant 0 : i32
    %c0_i32_1 = arith.constant 0 : i32
    return %c0_i32, %c0_i32_0 : i32, i32
  }
  func.func @transform_26(%arg0: i32) -> (i32, i32) {
    %c0_i32 = arith.constant 0 : i32
    %c0_i32_0 = arith.constant 0 : i32
    %c0_i32_1 = arith.constant 0 : i32
    return %c0_i32, %c0_i32_0 : i32, i32
  }
  func.func @transform_27(%arg0: i32) -> (i32, i32) {
    %c0_i32 = arith.constant 0 : i32
    %c0_i32_0 = arith.constant 0 : i32
    %c0_i32_1 = arith.constant 0 : i32
    return %c0_i32, %c0_i32_0 : i32, i32
  }
  func.func @transform_28(%arg0: i32) -> (i32, i32) {
    %c0_i32 = arith.constant 0 : i32
    %c0_i32_0 = arith.constant 0 : i32
    %c0_i32_1 = arith.constant 0 : i32
    return %c0_i32, %c0_i32_0 : i32, i32
  }
  func.func @transform_29(%arg0: i32) -> (i32, i32) {
    %c0_i32 = arith.constant 0 : i32
    %c0_i32_0 = arith.constant 0 : i32
    %c0_i32_1 = arith.constant 0 : i32
    return %c0_i32, %c0_i32_0 : i32, i32
  }
  func.func @transform_30(%arg0: i32) -> (i32, i32) {
    %c0_i32 = arith.constant 0 : i32
    %c0_i32_0 = arith.constant 0 : i32
    %c0_i32_1 = arith.constant 0 : i32
    return %c0_i32, %c0_i32_0 : i32, i32
  }
  func.func @transform_31(%arg0: i32) -> (i32, i32) {
    %c0_i32 = arith.constant 0 : i32
    %c0_i32_0 = arith.constant 0 : i32
    %c0_i32_1 = arith.constant 0 : i32
    return %c0_i32, %c0_i32_0 : i32, i32
  }
  func.func @transform_32(%arg0: i32) -> (i32, i32) {
    %c0_i32 = arith.constant 0 : i32
    %c0_i32_0 = arith.constant 0 : i32
    %c0_i32_1 = arith.constant 0 : i32
    return %c0_i32, %c0_i32_0 : i32, i32
  }
  func.func @transform_33(%arg0: i32) -> (i32, i32) {
    %c0_i32 = arith.constant 0 : i32
    %c0_i32_0 = arith.constant 0 : i32
    %c0_i32_1 = arith.constant 0 : i32
    return %c0_i32, %c0_i32_0 : i32, i32
  }
  func.func @transform_34(%arg0: i32) -> (i32, i32) {
    %c0_i32 = arith.constant 0 : i32
    %c0_i32_0 = arith.constant 0 : i32
    %c0_i32_1 = arith.constant 0 : i32
    return %c0_i32, %c0_i32_0 : i32, i32
  }
}

</mosaic_0001>

<llo_original>
// kernel: bert_model_forward.1
$region0: #{bert_model_forward.1}
  #allocation0 [shape = 'u32[]', space=smem, size = 0x4, offset = 0x4, fixed_abs, tag = 'smem constant byte address 0x4 - core index']
  #allocation1 [shape = 'u32[144,128]{1,0:T(1,128)}', space=vmem, size = 0x12000, scoped, tag = 'internal scratch']
  %s0 = inlined_call_operand.smem [shape: u32[35], index: -1, kind: input, shape index: {}]
  %s1 = sld [smem:[%s0]]
  %s2 = scalar_lea.smem %s0, 1
  %s3 = sld [smem:[%s2]]
  %s4 = scalar_lea.smem %s0, 2
  %s5 = sld [smem:[%s4]]
  %s6 = scalar_lea.smem %s0, 3
  %s7 = sld [smem:[%s6]]
  %s8 = scalar_lea.smem %s0, 4
  %s9 = sld [smem:[%s8]]
  %s10 = scalar_lea.smem %s0, 5
  %s11 = sld [smem:[%s10]]
  %s12 = scalar_lea.smem %s0, 6
  %s13 = sld [smem:[%s12]]
  %s14 = scalar_lea.smem %s0, 7
  %s15 = sld [smem:[%s14]]
  %s16 = scalar_lea.smem %s0, 8
  %s17 = sld [smem:[%s16]]
  %s18 = scalar_lea.smem %s0, 9
  %s19 = sld [smem:[%s18]]
  %s20 = scalar_lea.smem %s0, 10
  %s21 = sld [smem:[%s20]]
  %s22 = scalar_lea.smem %s0, 11
  %s23 = sld [smem:[%s22]]
  %s24 = scalar_lea.smem %s0, 12
  %s25 = sld [smem:[%s24]]
  %s26 = scalar_lea.smem %s0, 13
  %s27 = sld [smem:[%s26]]
  %s28 = scalar_lea.smem %s0, 14
  %s29 = sld [smem:[%s28]]
  %s30 = scalar_lea.smem %s0, 15
  %s31 = sld [smem:[%s30]]
  %s32 = scalar_lea.smem %s0, 16
  %s33 = sld [smem:[%s32]]
  %s34 = scalar_lea.smem %s0, 17
  %s35 = sld [smem:[%s34]]
  %s36 = scalar_lea.smem %s0, 18
  %s37 = sld [smem:[%s36]]
  %s38 = scalar_lea.smem %s0, 19
  %s39 = sld [smem:[%s38]]
  %s40 = scalar_lea.smem %s0, 20
  %s41 = sld [smem:[%s40]]
  %s42 = scalar_lea.smem %s0, 21
  %s43 = sld [smem:[%s42]]
  %s44 = scalar_lea.smem %s0, 22
  %s45 = sld [smem:[%s44]]
  %s46 = scalar_lea.smem %s0, 23
  %s47 = sld [smem:[%s46]]
  %s48 = scalar_lea.smem %s0, 24
  %s49 = sld [smem:[%s48]]
  %s50 = scalar_lea.smem %s0, 25
  %s51 = sld [smem:[%s50]]
  %s52 = scalar_lea.smem %s0, 26
  %s53 = sld [smem:[%s52]]
  %s54 = scalar_lea.smem %s0, 27
  %s55 = sld [smem:[%s54]]
  %s56 = scalar_lea.smem %s0, 28
  %s57 = sld [smem:[%s56]]
  %s58 = scalar_lea.smem %s0, 29
  %s59 = sld [smem:[%s58]]
  %s60 = scalar_lea.smem %s0, 30
  %s61 = sld [smem:[%s60]]
  %s62 = scalar_lea.smem %s0, 31
  %s63 = sld [smem:[%s62]]
  %s64 = scalar_lea.smem %s0, 32
  %s65 = sld [smem:[%s64]]
  %s66 = scalar_lea.smem %s0, 33
  %s67 = sld [smem:[%s66]]
  %s68 = scalar_lea.smem %s0, 34
  %s69 = sld [smem:[%s68]]
  %s70 = sld [smem:[#allocation0]]
  $region186: #{bert_model_forward.1} parent=0
    _
  %s72 = ssub.s32 1, %s70
  %s73 = scalar_select 0, %s72, %s70
  $region1: #{bert_model_forward.1} parent=0
    #allocation2 [shape = 'u8[65536]{0}', space=vmem, size = 0x10000, scoped, tag = 'input window, operand 6, single buffered']
    #allocation3 [shape = 's32[1]{0}', space=sflag, size = 0x4, scoped, tag = 'scoped memory for bert_model_forward.1']
    #allocation4 [shape = 's32[1]{0}', space=sflag, size = 0x4, scoped, tag = 'scoped memory for bert_model_forward.1']
    #allocation5 [shape = 'u8[262144]{0}', space=vmem, size = 0x40000, scoped, tag = 'input window, operand 10, single buffered']
    #allocation6 [shape = 's32[1]{0}', space=sflag, size = 0x4, scoped, tag = 'scoped memory for bert_model_forward.1']
    #allocation7 [shape = 'u8[262144]{0}', space=vmem, size = 0x40000, scoped, tag = 'input window, operand 12, single buffered']
    #allocation8 [shape = 'u8[262144]{0}', space=vmem, size = 0x40000, scoped, tag = 'input window, operand 20, single buffered']
    #allocation9 [shape = 's32[1]{0}', space=sflag, size = 0x4, scoped, tag = 'scoped memory for bert_model_forward.1']
    #allocation10 [shape = 'u8[65536]{0}', space=vmem, size = 0x10000, scoped, tag = 'input window, operand 22, single buffered']
    #allocation11 [shape = 'u8[32768]{0}', space=vmem, size = 0x8000, scoped, tag = 'input window, operand 24, single buffered']
    #allocation12 [shape = 's32[1]{0}', space=sflag, size = 0x4, scoped, tag = 'scoped memory for bert_model_forward.1']
    #allocation13 [shape = 'u8[32768]{0}', space=vmem, size = 0x8000, scoped, tag = 'input window, operand 26, single buffered']
    #allocation14 [shape = 'u8[32768]{0}', space=vmem, size = 0x8000, scoped, tag = 'input window, operand 28, single buffered']
    #allocation15 [shape = 's32[1]{0}', space=sflag, size = 0x4, scoped, tag = 'scoped memory for bert_model_forward.1']
    #allocation16 [shape = 'u8[32768]{0}', space=vmem, size = 0x8000, scoped, tag = 'input window, operand 30, single buffered']
    #allocation17 [shape = 'u8[32768]{0}', space=vmem, size = 0x8000, scoped, tag = 'input window, operand 32, single buffered']
    #allocation18 [shape = 's32[1]{0}', space=sflag, size = 0x4, scoped, tag = 'scoped memory for bert_model_forward.1']
    #allocation19 [shape = 'u8[1024]{0}', space=vmem, size = 0x400, scoped, tag = 'output window, operand 0, single buffered']
    %74 = vsyncpa [#allocation3], 0
    %75 = vsyncpa [#allocation6], 0
    %76 = vsyncpa [#allocation9], 0
    %77 = vsyncpa [#allocation12], 0
    %78 = vsyncpa [#allocation15], 0
    %79 = vsyncpa [#allocation18], 0
    %80 = vsyncpa [#allocation4], 0
    // Predicated region
    $region2: #{bert_model_forward.1} parent=1 // pred_check
      _
    $region3: #{bert_model_forward.1} parent=1 // pred_check_branch
      %82 = sbr.rel (0) target = $region5
    $region4: #{bert_model_forward.1} parent=1 // pred_region
      _
    $region5: #{bert_model_forward.1} parent=1 // pred_fallthru
      _
    // Predicated region
    $region6: #{bert_model_forward.1} parent=1 // pred_check
      _
    $region7: #{bert_model_forward.1} parent=1 // pred_check_branch
      %84 = sbr.rel (0) target = $region9
    $region8: #{bert_model_forward.1} parent=1 // pred_region
      _
    $region9: #{bert_model_forward.1} parent=1 // pred_fallthru
      _
    // Predicated region
    $region10: #{bert_model_forward.1} parent=1 // pred_check
      _
    $region11: #{bert_model_forward.1} parent=1 // pred_check_branch
      %86 = sbr.rel (0) target = $region13
    $region12: #{bert_model_forward.1} parent=1 // pred_region
      _
    $region13: #{bert_model_forward.1} parent=1 // pred_fallthru
      _
    // Predicated region
    $region14: #{bert_model_forward.1} parent=1 // pred_check
      _
    $region15: #{bert_model_forward.1} parent=1 // pred_check_branch
      %88 = sbr.rel (0) target = $region17
    $region16: #{bert_model_forward.1} parent=1 // pred_region
      _
    $region17: #{bert_model_forward.1} parent=1 // pred_fallthru
      _
    // Predicated region
    $region18: #{bert_model_forward.1} parent=1 // pred_check
      _
    $region19: #{bert_model_forward.1} parent=1 // pred_check_branch
      %90 = sbr.rel (0) target = $region21
    $region20: #{bert_model_forward.1} parent=1 // pred_region
      _
    $region21: #{bert_model_forward.1} parent=1 // pred_fallthru
      _
    // Predicated region
    $region22: #{bert_model_forward.1} parent=1 // pred_check
      _
    $region23: #{bert_model_forward.1} parent=1 // pred_check_branch
      %92 = sbr.rel (0) target = $region25
    $region24: #{bert_model_forward.1} parent=1 // pred_region
      _
    $region25: #{bert_model_forward.1} parent=1 // pred_fallthru
      _
    // Predicated region
    $region26: #{bert_model_forward.1} parent=1 // pred_check
      _
    $region27: #{bert_model_forward.1} parent=1 // pred_check_branch
      %94 = sbr.rel (0) target = $region29
    $region28: #{bert_model_forward.1} parent=1 // pred_region
      %s96 = ssub.s32 2048, 2048
      %97 = vsyncadd [#allocation3], %s96
      %s98 = sshll.u32 [#allocation2], 4
      %s99 = int_to_ptr.vmem [resolvable:$true] %s98
      %104 = dma.hbm_to_vmem [thread:$0]  %s13, 2048, %s99, [#allocation3], 64, 64, 4
    $region29: #{bert_model_forward.1} parent=1 // pred_fallthru
      _
    // Predicated region
    $region30: #{bert_model_forward.1} parent=1 // pred_check
      _
    $region31: #{bert_model_forward.1} parent=1 // pred_check_branch
      %106 = sbr.rel (0) target = $region33
    $region32: #{bert_model_forward.1} parent=1 // pred_region
      _
    $region33: #{bert_model_forward.1} parent=1 // pred_fallthru
      _
    // Predicated region
    $region34: #{bert_model_forward.1} parent=1 // pred_check
      _
    $region35: #{bert_model_forward.1} parent=1 // pred_check_branch
      %108 = sbr.rel (0) target = $region37
    $region36: #{bert_model_forward.1} parent=1 // pred_region
      _
    $region37: #{bert_model_forward.1} parent=1 // pred_fallthru
      _
    // Predicated region
    $region38: #{bert_model_forward.1} parent=1 // pred_check
      _
    $region39: #{bert_model_forward.1} parent=1 // pred_check_branch
      %110 = sbr.rel (0) target = $region41
    $region40: #{bert_model_forward.1} parent=1 // pred_region
      _
    $region41: #{bert_model_forward.1} parent=1 // pred_fallthru
      _
    // Predicated region
    $region42: #{bert_model_forward.1} parent=1 // pred_check
      _
    $region43: #{bert_model_forward.1} parent=1 // pred_check_branch
      %112 = sbr.rel (0) target = $region45
    $region44: #{bert_model_forward.1} parent=1 // pred_region
      %s114 = ssub.s32 8192, 8192
      %115 = vsyncadd [#allocation6], %s114
      %s116 = sshll.u32 [#allocation5], 4
      %s117 = int_to_ptr.vmem [resolvable:$true] %s116
      %122 = dma.hbm_to_vmem [thread:$0]  %s21, 8192, %s117, [#allocation6], 256, 256, 16
    $region45: #{bert_model_forward.1} parent=1 // pred_fallthru
      _
    // Predicated region
    $region46: #{bert_model_forward.1} parent=1 // pred_check
      _
    $region47: #{bert_model_forward.1} parent=1 // pred_check_branch
      %124 = sbr.rel (0) target = $region49
    $region48: #{bert_model_forward.1} parent=1 // pred_region
      _
    $region49: #{bert_model_forward.1} parent=1 // pred_fallthru
      _
    // Predicated region
    $region50: #{bert_model_forward.1} parent=1 // pred_check
      _
    $region51: #{bert_model_forward.1} parent=1 // pred_check_branch
      %126 = sbr.rel (0) target = $region53
    $region52: #{bert_model_forward.1} parent=1 // pred_region
      %s128 = ssub.s32 8192, 8192
      %129 = vsyncadd [#allocation6], %s128
      %s130 = sshll.u32 [#allocation7], 4
      %s131 = int_to_ptr.vmem [resolvable:$true] %s130
      %136 = dma.hbm_to_vmem [thread:$0]  %s25, 8192, %s131, [#allocation6], 64, 64, 4
    $region53: #{bert_model_forward.1} parent=1 // pred_fallthru
      _
    // Predicated region
    $region54: #{bert_model_forward.1} parent=1 // pred_check
      _
    $region55: #{bert_model_forward.1} parent=1 // pred_check_branch
      %138 = sbr.rel (0) target = $region57
    $region56: #{bert_model_forward.1} parent=1 // pred_region
      _
    $region57: #{bert_model_forward.1} parent=1 // pred_fallthru
      _
    // Predicated region
    $region58: #{bert_model_forward.1} parent=1 // pred_check
      _
    $region59: #{bert_model_forward.1} parent=1 // pred_check_branch
      %140 = sbr.rel (0) target = $region61
    $region60: #{bert_model_forward.1} parent=1 // pred_region
      _
    $region61: #{bert_model_forward.1} parent=1 // pred_fallthru
      _
    // Predicated region
    $region62: #{bert_model_forward.1} parent=1 // pred_check
      _
    $region63: #{bert_model_forward.1} parent=1 // pred_check_branch
      %142 = sbr.rel (0) target = $region65
    $region64: #{bert_model_forward.1} parent=1 // pred_region
      _
    $region65: #{bert_model_forward.1} parent=1 // pred_fallthru
      _
    // Predicated region
    $region66: #{bert_model_forward.1} parent=1 // pred_check
      _
    $region67: #{bert_model_forward.1} parent=1 // pred_check_branch
      %144 = sbr.rel (0) target = $region69
    $region68: #{bert_model_forward.1} parent=1 // pred_region
      _
    $region69: #{bert_model_forward.1} parent=1 // pred_fallthru
      _
    // Predicated region
    $region70: #{bert_model_forward.1} parent=1 // pred_check
      _
    $region71: #{bert_model_forward.1} parent=1 // pred_check_branch
      %146 = sbr.rel (0) target = $region73
    $region72: #{bert_model_forward.1} parent=1 // pred_region
      _
    $region73: #{bert_model_forward.1} parent=1 // pred_fallthru
      _
    // Predicated region
    $region74: #{bert_model_forward.1} parent=1 // pred_check
      _
    $region75: #{bert_model_forward.1} parent=1 // pred_check_branch
      %148 = sbr.rel (0) target = $region77
    $region76: #{bert_model_forward.1} parent=1 // pred_region
      _
    $region77: #{bert_model_forward.1} parent=1 // pred_fallthru
      _
    // Predicated region
    $region78: #{bert_model_forward.1} parent=1 // pred_check
      _
    $region79: #{bert_model_forward.1} parent=1 // pred_check_branch
      %150 = sbr.rel (0) target = $region81
    $region80: #{bert_model_forward.1} parent=1 // pred_region
      _
    $region81: #{bert_model_forward.1} parent=1 // pred_fallthru
      _
    // Predicated region
    $region82: #{bert_model_forward.1} parent=1 // pred_check
      _
    $region83: #{bert_model_forward.1} parent=1 // pred_check_branch
      %152 = sbr.rel (0) target = $region85
    $region84: #{bert_model_forward.1} parent=1 // pred_region
      %s154 = ssub.s32 8192, 8192
      %155 = vsyncadd [#allocation9], %s154
      %s156 = sshll.u32 [#allocation8], 4
      %s157 = int_to_ptr.vmem [resolvable:$true] %s156
      %162 = dma.hbm_to_vmem [thread:$0]  %s41, 8192, %s157, [#allocation9], 128, 128, 8
    $region85: #{bert_model_forward.1} parent=1 // pred_fallthru
      _
    // Predicated region
    $region86: #{bert_model_forward.1} parent=1 // pred_check
      _
    $region87: #{bert_model_forward.1} parent=1 // pred_check_branch
      %164 = sbr.rel (0) target = $region89
    $region88: #{bert_model_forward.1} parent=1 // pred_region
      _
    $region89: #{bert_model_forward.1} parent=1 // pred_fallthru
      _
    // Predicated region
    $region90: #{bert_model_forward.1} parent=1 // pred_check
      _
    $region91: #{bert_model_forward.1} parent=1 // pred_check_branch
      %166 = sbr.rel (0) target = $region93
    $region92: #{bert_model_forward.1} parent=1 // pred_region
      %s168 = ssub.s32 2048, 2048
      %169 = vsyncadd [#allocation9], %s168
      %s170 = sshll.u32 [#allocation10], 4
      %s171 = int_to_ptr.vmem [resolvable:$true] %s170
      %176 = dma.hbm_to_vmem [thread:$0]  %s45, 2048, %s171, [#allocation9], 64, 64, 4
    $region93: #{bert_model_forward.1} parent=1 // pred_fallthru
      _
    // Predicated region
    $region94: #{bert_model_forward.1} parent=1 // pred_check
      _
    $region95: #{bert_model_forward.1} parent=1 // pred_check_branch
      %178 = sbr.rel (0) target = $region97
    $region96: #{bert_model_forward.1} parent=1 // pred_region
      _
    $region97: #{bert_model_forward.1} parent=1 // pred_fallthru
      _
    // Predicated region
    $region98: #{bert_model_forward.1} parent=1 // pred_check
      _
    $region99: #{bert_model_forward.1} parent=1 // pred_check_branch
      %180 = sbr.rel (0) target = $region101
    $region100: #{bert_model_forward.1} parent=1 // pred_region
      %s182 = ssub.s32 1024, 1024
      %183 = vsyncadd [#allocation12], %s182
      %s184 = sshll.u32 [#allocation11], 4
      %s185 = int_to_ptr.vmem [resolvable:$true] %s184
      %190 = dma.hbm_to_vmem [thread:$0]  %s49, 1024, %s185, [#allocation12], 64, 64, 4
    $region101: #{bert_model_forward.1} parent=1 // pred_fallthru
      _
    // Predicated region
    $region102: #{bert_model_forward.1} parent=1 // pred_check
      _
    $region103: #{bert_model_forward.1} parent=1 // pred_check_branch
      %192 = sbr.rel (0) target = $region105
    $region104: #{bert_model_forward.1} parent=1 // pred_region
      _
    $region105: #{bert_model_forward.1} parent=1 // pred_fallthru
      _
    // Predicated region
    $region106: #{bert_model_forward.1} parent=1 // pred_check
      _
    $region107: #{bert_model_forward.1} parent=1 // pred_check_branch
      %194 = sbr.rel (0) target = $region109
    $region108: #{bert_model_forward.1} parent=1 // pred_region
      %s196 = ssub.s32 1024, 1024
      %197 = vsyncadd [#allocation12], %s196
      %s198 = sshll.u32 [#allocation13], 4
      %s199 = int_to_ptr.vmem [resolvable:$true] %s198
      %204 = dma.hbm_to_vmem [thread:$0]  %s53, 1024, %s199, [#allocation12], 64, 64, 4
    $region109: #{bert_model_forward.1} parent=1 // pred_fallthru
      _
    // Predicated region
    $region110: #{bert_model_forward.1} parent=1 // pred_check
      _
    $region111: #{bert_model_forward.1} parent=1 // pred_check_branch
      %206 = sbr.rel (0) target = $region113
    $region112: #{bert_model_forward.1} parent=1 // pred_region
      _
    $region113: #{bert_model_forward.1} parent=1 // pred_fallthru
      _
    // Predicated region
    $region114: #{bert_model_forward.1} parent=1 // pred_check
      _
    $region115: #{bert_model_forward.1} parent=1 // pred_check_branch
      %208 = sbr.rel (0) target = $region117
    $region116: #{bert_model_forward.1} parent=1 // pred_region
      %s210 = ssub.s32 1024, 1024
      %211 = vsyncadd [#allocation15], %s210
      %s212 = sshll.u32 [#allocation14], 4
      %s213 = int_to_ptr.vmem [resolvable:$true] %s212
      %218 = dma.hbm_to_vmem [thread:$0]  %s57, 1024, %s213, [#allocation15], 64, 64, 4
    $region117: #{bert_model_forward.1} parent=1 // pred_fallthru
      _
    // Predicated region
    $region118: #{bert_model_forward.1} parent=1 // pred_check
      _
    $region119: #{bert_model_forward.1} parent=1 // pred_check_branch
      %220 = sbr.rel (0) target = $region121
    $region120: #{bert_model_forward.1} parent=1 // pred_region
      _
    $region121: #{bert_model_forward.1} parent=1 // pred_fallthru
      _
    // Predicated region
    $region122: #{bert_model_forward.1} parent=1 // pred_check
      _
    $region123: #{bert_model_forward.1} parent=1 // pred_check_branch
      %222 = sbr.rel (0) target = $region125
    $region124: #{bert_model_forward.1} parent=1 // pred_region
      %s224 = ssub.s32 1024, 1024
      %225 = vsyncadd [#allocation15], %s224
      %s226 = sshll.u32 [#allocation16], 4
      %s227 = int_to_ptr.vmem [resolvable:$true] %s226
      %232 = dma.hbm_to_vmem [thread:$0]  %s61, 1024, %s227, [#allocation15], 64, 64, 4
    $region125: #{bert_model_forward.1} parent=1 // pred_fallthru
      _
    // Predicated region
    $region126: #{bert_model_forward.1} parent=1 // pred_check
      _
    $region127: #{bert_model_forward.1} parent=1 // pred_check_branch
      %234 = sbr.rel (0) target = $region129
    $region128: #{bert_model_forward.1} parent=1 // pred_region
      _
    $region129: #{bert_model_forward.1} parent=1 // pred_fallthru
      _
    // Predicated region
    $region130: #{bert_model_forward.1} parent=1 // pred_check
      _
    $region131: #{bert_model_forward.1} parent=1 // pred_check_branch
      %236 = sbr.rel (0) target = $region133
    $region132: #{bert_model_forward.1} parent=1 // pred_region
      %s238 = ssub.s32 1024, 1024
      %239 = vsyncadd [#allocation18], %s238
      %s240 = sshll.u32 [#allocation17], 4
      %s241 = int_to_ptr.vmem [resolvable:$true] %s240
      %246 = dma.hbm_to_vmem [thread:$0]  %s65, 1024, %s241, [#allocation18], 64, 64, 4
    $region133: #{bert_model_forward.1} parent=1 // pred_fallthru
      _
    // Predicated region
    $region134: #{bert_model_forward.1} parent=1 // pred_check
      _
    $region135: #{bert_model_forward.1} parent=1 // pred_check_branch
      %248 = sbr.rel (0) target = $region137
    $region136: #{bert_model_forward.1} parent=1 // pred_region
      _
    $region137: #{bert_model_forward.1} parent=1 // pred_fallthru
      _
    // Predicated region
    $region138: #{bert_model_forward.1} parent=1 // pred_check
      _
    $region139: #{bert_model_forward.1} parent=1 // pred_check_branch
      %250 = sbr.rel (0) target = $region141
    $region140: #{bert_model_forward.1} parent=1 // pred_region
      %251 = dma.done [#allocation3], 2048
    $region141: #{bert_model_forward.1} parent=1 // pred_fallthru
      _
    // Predicated region
    $region142: #{bert_model_forward.1} parent=1 // pred_check
      _
    $region143: #{bert_model_forward.1} parent=1 // pred_check_branch
      %253 = sbr.rel (0) target = $region145
    $region144: #{bert_model_forward.1} parent=1 // pred_region
      %254 = dma.done [#allocation6], 8192
    $region145: #{bert_model_forward.1} parent=1 // pred_fallthru
      _
    // Predicated region
    $region146: #{bert_model_forward.1} parent=1 // pred_check
      _
    $region147: #{bert_model_forward.1} parent=1 // pred_check_branch
      %256 = sbr.rel (0) target = $region149
    $region148: #{bert_model_forward.1} parent=1 // pred_region
      %257 = dma.done [#allocation6], 8192
    $region149: #{bert_model_forward.1} parent=1 // pred_fallthru
      _
    // Predicated region
    $region150: #{bert_model_forward.1} parent=1 // pred_check
      _
    $region151: #{bert_model_forward.1} parent=1 // pred_check_branch
      %259 = sbr.rel (0) target = $region153
    $region152: #{bert_model_forward.1} parent=1 // pred_region
      %260 = dma.done [#allocation9], 8192
    $region153: #{bert_model_forward.1} parent=1 // pred_fallthru
      _
    // Predicated region
    $region154: #{bert_model_forward.1} parent=1 // pred_check
      _
    $region155: #{bert_model_forward.1} parent=1 // pred_check_branch
      %262 = sbr.rel (0) target = $region157
    $region156: #{bert_model_forward.1} parent=1 // pred_region
      %263 = dma.done [#allocation9], 2048
    $region157: #{bert_model_forward.1} parent=1 // pred_fallthru
      _
    // Predicated region
    $region158: #{bert_model_forward.1} parent=1 // pred_check
      _
    $region159: #{bert_model_forward.1} parent=1 // pred_check_branch
      %265 = sbr.rel (0) target = $region161
    $region160: #{bert_model_forward.1} parent=1 // pred_region
      %266 = dma.done [#allocation12], 1024
    $region161: #{bert_model_forward.1} parent=1 // pred_fallthru
      _
    // Predicated region
    $region162: #{bert_model_forward.1} parent=1 // pred_check
      _
    $region163: #{bert_model_forward.1} parent=1 // pred_check_branch
      %268 = sbr.rel (0) target = $region165
    $region164: #{bert_model_forward.1} parent=1 // pred_region
      %269 = dma.done [#allocation12], 1024
    $region165: #{bert_model_forward.1} parent=1 // pred_fallthru
      _
    // Predicated region
    $region166: #{bert_model_forward.1} parent=1 // pred_check
      _
    $region167: #{bert_model_forward.1} parent=1 // pred_check_branch
      %271 = sbr.rel (0) target = $region169
    $region168: #{bert_model_forward.1} parent=1 // pred_region
      %272 = dma.done [#allocation15], 1024
    $region169: #{bert_model_forward.1} parent=1 // pred_fallthru
      _
    // Predicated region
    $region170: #{bert_model_forward.1} parent=1 // pred_check
      _
    $region171: #{bert_model_forward.1} parent=1 // pred_check_branch
      %274 = sbr.rel (0) target = $region173
    $region172: #{bert_model_forward.1} parent=1 // pred_region
      %275 = dma.done [#allocation15], 1024
    $region173: #{bert_model_forward.1} parent=1 // pred_fallthru
      _
    // Predicated region
    $region174: #{bert_model_forward.1} parent=1 // pred_check
      _
    $region175: #{bert_model_forward.1} parent=1 // pred_check_branch
      %277 = sbr.rel (0) target = $region177
    $region176: #{bert_model_forward.1} parent=1 // pred_region
      %278 = dma.done [#allocation18], 1024
    $region177: #{bert_model_forward.1} parent=1 // pred_fallthru
      _
    %v280 = vld [vmem:[%s1] sm:$0xff]
    %v281 = vld [vmem:[%s1 + $0x8] sm:$0xff]
    %v282 = vld [vmem:[%s1 + $0x10] sm:$0xff]
    %v283 = vld [vmem:[%s1 + $0x18] sm:$0xff]
    %v284 = vld [vmem:[%s3] sm:$0x1]
    %v285 = vld [vmem:[%s3 + $0x1] sm:$0x1]
    %v286 = vld [vmem:[%s5] sm:$0x1]
    %v287 = vld [vmem:[%s7] sm:$0x1]
    %288 = vadd.xlane.f32.xlu0 %v280
    %v289 = vpop.xlane.xlu0 %288
    %290 = vadd.xlane.f32.xlu0 %v281
    %v291 = vpop.xlane.xlu0 %290
    %292 = vadd.xlane.f32.xlu0 %v282
    %v293 = vpop.xlane.xlu0 %292
    %294 = vadd.xlane.f32.xlu0 %v283
    %v295 = vpop.xlane.xlu0 %294
    %v296 = vrcp.pop 128.0
    %v297 = vmul.f32 %v289, %v296
    %v298 = vmul.f32 %v291, %v296
    %v299 = vmul.f32 %v293, %v296
    %v300 = vmul.f32 %v295, %v296
    %v301 = vsub.f32 %v280, %v297
    %v302 = vsub.f32 %v281, %v298
    %v303 = vsub.f32 %v282, %v299
    %v304 = vsub.f32 %v283, %v300
    %v305 = vmul.f32 %v301, %v301
    %v306 = vmul.f32 %v302, %v302
    %v307 = vmul.f32 %v303, %v303
    %v308 = vmul.f32 %v304, %v304
    %309 = vadd.xlane.f32.xlu0 %v305
    %v310 = vpop.xlane.xlu0 %309
    %311 = vadd.xlane.f32.xlu0 %v306
    %v312 = vpop.xlane.xlu0 %311
    %313 = vadd.xlane.f32.xlu0 %v307
    %v314 = vpop.xlane.xlu0 %313
    %315 = vadd.xlane.f32.xlu0 %v308
    %v316 = vpop.xlane.xlu0 %315
    %v317 = vmul.f32 %v310, %v296
    %v318 = vmul.f32 %v312, %v296
    %v319 = vmul.f32 %v314, %v296
    %v320 = vmul.f32 %v316, %v296
    %v321 = vadd.f32 %v317, 1e-12
    %v322 = vadd.f32 %v318, 1e-12
    %v323 = vadd.f32 %v319, 1e-12
    %v324 = vadd.f32 %v320, 1e-12
    %v325 = vrsqrt.pop %v321
    %v326 = vrsqrt.pop %v322
    %v327 = vrsqrt.pop %v323
    %v328 = vrsqrt.pop %v324
    %v329 = vmul.f32 %v301, %v325
    %v330 = vmul.f32 %v302, %v326
    %v331 = vmul.f32 %v303, %v327
    %v332 = vmul.f32 %v304, %v328
    %v334 = vlaneseq
    %v335 = vshrl.u32 %v334, 7
    %v336 = vsub.s32 0, %v335
    %v337 = vrot.slane %v286, %v336
    %v339 = vmul.f32 %v329, %v337
    %v340 = vmul.f32 %v330, %v337
    %v341 = vmul.f32 %v331, %v337
    %v342 = vmul.f32 %v332, %v337
    %v344 = vlaneseq
    %v345 = vshrl.u32 %v344, 7
    %v346 = vsub.s32 0, %v345
    %v347 = vrot.slane %v287, %v346
    %v349 = vadd.f32 %v339, %v347
    %v350 = vadd.f32 %v340, %v347
    %v351 = vadd.f32 %v341, %v347
    %v352 = vadd.f32 %v342, %v347
    %v353 = vld [vmem:[%s9] sm:$0xff]
    %v354 = vld [vmem:[%s9 + $0x8] sm:$0xf]
    %v355 = vld [vmem:[%s9 + $0xc] sm:$0xff]
    %v356 = vld [vmem:[%s9 + $0x14] sm:$0xf]
    %v357 = vld [vmem:[%s9 + $0x18] sm:$0xff]
    %v358 = vld [vmem:[%s9 + $0x20] sm:$0xf]
    %v359 = vld [vmem:[%s9 + $0x24] sm:$0xff]
    %v360 = vld [vmem:[%s9 + $0x2c] sm:$0xf]
    %v361 = vld [vmem:[%s9 + $0x30] sm:$0xff]
    %v362 = vld [vmem:[%s9 + $0x38] sm:$0xf]
    %v363 = vld [vmem:[%s9 + $0x3c] sm:$0xff]
    %v364 = vld [vmem:[%s9 + $0x44] sm:$0xf]
    %v365 = vld [vmem:[%s9 + $0x48] sm:$0xff]
    %v366 = vld [vmem:[%s9 + $0x50] sm:$0xf]
    %v367 = vld [vmem:[%s9 + $0x54] sm:$0xff]
    %v368 = vld [vmem:[%s9 + $0x5c] sm:$0xf]
    %v369 = vld [vmem:[%s9 + $0x60] sm:$0xff]
    %v370 = vld [vmem:[%s9 + $0x68] sm:$0xf]
    %v371 = vld [vmem:[%s9 + $0x6c] sm:$0xff]
    %v372 = vld [vmem:[%s9 + $0x74] sm:$0xf]
    %v373 = vld [vmem:[%s9 + $0x78] sm:$0xff]
    %v374 = vld [vmem:[%s9 + $0x80] sm:$0xf]
    %v375 = vld [vmem:[%s9 + $0x84] sm:$0xff]
    %v376 = vld [vmem:[%s9 + $0x8c] sm:$0xf]
    %v377 = vld [vmem:[%s9 + $0x90] sm:$0xff]
    %v378 = vld [vmem:[%s9 + $0x98] sm:$0xf]
    %v379 = vld [vmem:[%s9 + $0x9c] sm:$0xff]
    %v380 = vld [vmem:[%s9 + $0xa4] sm:$0xf]
    %v381 = vld [vmem:[%s9 + $0xa8] sm:$0xff]
    %v382 = vld [vmem:[%s9 + $0xb0] sm:$0xf]
    %v383 = vld [vmem:[%s9 + $0xb4] sm:$0xff]
    %v384 = vld [vmem:[%s9 + $0xbc] sm:$0xf]
    %v385 = vld [vmem:[%s11] sm:$0x7]
    %v386 = vld [vmem:[#allocation2] sm:$0xf]
    %v387 = vld [vmem:[#allocation2 + $0x4] sm:$0xf]
    %v388 = vld [vmem:[#allocation2 + $0x8] sm:$0xf]
    %v389 = vld [vmem:[#allocation2 + $0xc] sm:$0xf]
    %v390 = vld [vmem:[#allocation2 + $0x10] sm:$0xf]
    %v391 = vld [vmem:[#allocation2 + $0x14] sm:$0xf]
    %v392 = vld [vmem:[#allocation2 + $0x18] sm:$0xf]
    %v393 = vld [vmem:[#allocation2 + $0x1c] sm:$0xf]
    %v394 = vld [vmem:[#allocation2 + $0x20] sm:$0xf]
    %v395 = vld [vmem:[#allocation2 + $0x24] sm:$0xf]
    %v396 = vld [vmem:[#allocation2 + $0x28] sm:$0xf]
    %v397 = vld [vmem:[#allocation2 + $0x2c] sm:$0xf]
    %v398 = vld [vmem:[#allocation2 + $0x30] sm:$0xf]
    %v399 = vld [vmem:[#allocation2 + $0x34] sm:$0xf]
    %v400 = vld [vmem:[#allocation2 + $0x38] sm:$0xf]
    %v401 = vld [vmem:[#allocation2 + $0x3c] sm:$0xf]
    %v402 = vld [vmem:[%s15] sm:$0x1]
    %v403 = vpack.c.bf16 %v350, %v349
    %v404 = vpack.c.bf16 %v352, %v351
    %v406 = vlaneseq
    %v407 = vshrl.u32 %v406, 7
    %v408 = vsub.s32 0, %v407
    %v409 = vrot.slane %v385, %v408
    %v410 = vlaneseq
    %v411 = vshrl.u32 %v410, 7
    %v412 = vsub.s32 1, %v411
    %v413 = vrot.slane %v385, %v412
    %v414 = vlaneseq
    %v415 = vshrl.u32 %v414, 7
    %v416 = vsub.s32 2, %v415
    %v417 = vrot.slane %v385, %v416
    %v453 = vunpack.c.l.b16 %v353
    %v454 = vunpack.c.h.b16 %v353
    %v455 = vunpack.c.l.b16 %v354
    %v456 = vunpack.c.l.b16 %v355
    %v457 = vunpack.c.h.b16 %v355
    %v458 = vunpack.c.l.b16 %v356
    %v459 = vunpack.c.l.b16 %v357
    %v460 = vunpack.c.h.b16 %v357
    %v461 = vunpack.c.l.b16 %v358
    %v462 = vunpack.c.l.b16 %v359
    %v463 = vunpack.c.h.b16 %v359
    %v464 = vunpack.c.l.b16 %v360
    %v465 = vunpack.c.l.b16 %v361
    %v466 = vunpack.c.h.b16 %v361
    %v467 = vunpack.c.l.b16 %v362
    %v468 = vunpack.c.l.b16 %v363
    %v469 = vunpack.c.h.b16 %v363
    %v470 = vunpack.c.l.b16 %v364
    %v471 = vunpack.c.l.b16 %v365
    %v472 = vunpack.c.h.b16 %v365
    %v473 = vunpack.c.l.b16 %v366
    %v474 = vunpack.c.l.b16 %v367
    %v475 = vunpack.c.h.b16 %v367
    %v476 = vunpack.c.l.b16 %v368
    %v477 = vunpack.c.l.b16 %v369
    %v478 = vunpack.c.h.b16 %v369
    %v479 = vunpack.c.l.b16 %v370
    %v480 = vunpack.c.l.b16 %v371
    %v481 = vunpack.c.h.b16 %v371
    %v482 = vunpack.c.l.b16 %v372
    %v483 = vunpack.c.l.b16 %v373
    %v484 = vunpack.c.h.b16 %v373
    %v485 = vunpack.c.l.b16 %v374
    %v486 = vunpack.c.l.b16 %v375
    %v487 = vunpack.c.h.b16 %v375
    %v488 = vunpack.c.l.b16 %v376
    %v489 = vunpack.c.l.b16 %v377
    %v490 = vunpack.c.h.b16 %v377
    %v491 = vunpack.c.l.b16 %v378
    %v492 = vunpack.c.l.b16 %v379
    %v493 = vunpack.c.h.b16 %v379
    %v494 = vunpack.c.l.b16 %v380
    %v495 = vunpack.c.l.b16 %v381
    %v496 = vunpack.c.h.b16 %v381
    %v497 = vunpack.c.l.b16 %v382
    %v498 = vunpack.c.l.b16 %v383
    %v499 = vunpack.c.h.b16 %v383
    %v500 = vunpack.c.l.b16 %v384
    %v501 = vpack.c.b16 %v456, %v453
    %v502 = vpack.c.b16 %v457, %v454
    %v503 = vpack.c.b16 %v458, %v455
    %v504 = vpack.c.b16 %v462, %v459
    %v505 = vpack.c.b16 %v463, %v460
    %v506 = vpack.c.b16 %v464, %v461
    %v507 = vpack.c.b16 %v468, %v465
    %v508 = vpack.c.b16 %v469, %v466
    %v509 = vpack.c.b16 %v470, %v467
    %v510 = vpack.c.b16 %v474, %v471
    %v511 = vpack.c.b16 %v475, %v472
    %v512 = vpack.c.b16 %v476, %v473
    %v513 = vpack.c.b16 %v480, %v477
    %v514 = vpack.c.b16 %v481, %v478
    %v515 = vpack.c.b16 %v482, %v479
    %v516 = vpack.c.b16 %v486, %v483
    %v517 = vpack.c.b16 %v487, %v484
    %v518 = vpack.c.b16 %v488, %v485
    %v519 = vpack.c.b16 %v492, %v489
    %v520 = vpack.c.b16 %v493, %v490
    %v521 = vpack.c.b16 %v494, %v491
    %v522 = vpack.c.b16 %v498, %v495
    %v523 = vpack.c.b16 %v499, %v496
    %v524 = vpack.c.b16 %v500, %v497
    %549 = vmatprep.subr.bf16.mxu0 %v523
    %550 = vmatpush1.bf16.msra.mxu0 %v522
    %551 = vmatprep.subr.bf16.mxu0 %v520
    %552 = vmatpush1.bf16.msra.mxu0 %v519
    %553 = vmatprep.subr.bf16.mxu0 %v517
    %554 = vmatpush1.bf16.msra.mxu0 %v516
    %555 = vmatprep.subr.bf16.mxu0 %v514
    %556 = vmatpush1.bf16.msra.mxu0 %v513
    %557 = vmatprep.subr.bf16.mxu0 %v511
    %558 = vmatpush1.bf16.msra.mxu0 %v510
    %559 = vmatprep.subr.bf16.mxu0 %v508
    %560 = vmatpush1.bf16.msra.mxu0 %v507
    %561 = vmatprep.subr.bf16.mxu0 %v505
    %562 = vmatpush1.bf16.msra.mxu0 %v504
    %563 = vmatprep.subr.bf16.mxu0 %v502
    %564 = vmatpush1.bf16.msra.mxu0 %v501
    %565 = vmatprep.subr.bf16.mxu0 0
    %566 = vmatpush2.bf16.msra.mxu0 0
    %567 = vmatprep.subr.bf16.mxu0 0
    %568 = vmatpush2.bf16.msra.mxu0 0
    %569 = vmatprep.subr.bf16.mxu0 0
    %570 = vmatpush2.bf16.msra.mxu0 0
    %571 = vmatprep.subr.bf16.mxu0 0
    %572 = vmatpush2.bf16.msra.mxu0 0
    %573 = vmatprep.subr.bf16.mxu0 0
    %574 = vmatpush2.bf16.msra.mxu0 0
    %575 = vmatprep.subr.bf16.mxu0 0
    %576 = vmatpush2.bf16.msra.mxu0 0
    %577 = vmatprep.subr.bf16.mxu0 0
    %578 = vmatpush2.bf16.msra.mxu0 0
    %579 = vmatprep.subr.bf16.mxu0 0
    %580 = vmatpush2.bf16.msra.mxu0 0
    %581 = vmatprep.mubr.bf16.mxu0 0
    %582 = vmatmul.mubr.bf16.gmra.mxu0 %v403
    %v583 = vpop.f32.mrf.mxu0
    %v584 = vadd.f32 %v409, %v583
    %v585 = vpop.f32.mrf.mxu0
    %v586 = vadd.f32 %v413, %v585
    %v587 = vpop.f32.mrf.mxu0
    %v588 = vadd.f32 %v409, %v587
    %v589 = vpop.f32.mrf.mxu0
    %v590 = vadd.f32 %v413, %v589
    %591 = vmatprep.mubr.bf16.mxu0 0
    %592 = vmatmul.mubr.bf16.gmra.mxu0 %v404
    %v593 = vpop.f32.mrf.mxu0
    %v594 = vadd.f32 %v409, %v593
    %v595 = vpop.f32.mrf.mxu0
    %v596 = vadd.f32 %v413, %v595
    %v597 = vpop.f32.mrf.mxu0
    %v598 = vadd.f32 %v409, %v597
    %v599 = vpop.f32.mrf.mxu0
    %v600 = vadd.f32 %v413, %v599
    %601 = vdwg.mxu0
    %602 = vmatprep.subr.bf16.mxu0 0
    %603 = vmatpush1.bf16.msra.mxu0 %v524
    %604 = vmatprep.subr.bf16.mxu0 0
    %605 = vmatpush1.bf16.msra.mxu0 %v521
    %606 = vmatprep.subr.bf16.mxu0 0
    %607 = vmatpush1.bf16.msra.mxu0 %v518
    %608 = vmatprep.subr.bf16.mxu0 0
    %609 = vmatpush1.bf16.msra.mxu0 %v515
    %610 = vmatprep.subr.bf16.mxu0 0
    %611 = vmatpush1.bf16.msra.mxu0 %v512
    %612 = vmatprep.subr.bf16.mxu0 0
    %613 = vmatpush1.bf16.msra.mxu0 %v509
    %614 = vmatprep.subr.bf16.mxu0 0
    %615 = vmatpush1.bf16.msra.mxu0 %v506
    %616 = vmatprep.subr.bf16.mxu0 0
    %617 = vmatpush1.bf16.msra.mxu0 %v503
    %618 = vmatprep.subr.bf16.mxu0 0
    %619 = vmatpush2.bf16.msra.mxu0 0
    %620 = vmatprep.subr.bf16.mxu0 0
    %621 = vmatpush2.bf16.msra.mxu0 0
    %622 = vmatprep.subr.bf16.mxu0 0
    %623 = vmatpush2.bf16.msra.mxu0 0
    %624 = vmatprep.subr.bf16.mxu0 0
    %625 = vmatpush2.bf16.msra.mxu0 0
    %626 = vmatprep.subr.bf16.mxu0 0
    %627 = vmatpush2.bf16.msra.mxu0 0
    %628 = vmatprep.subr.bf16.mxu0 0
    %629 = vmatpush2.bf16.msra.mxu0 0
    %630 = vmatprep.subr.bf16.mxu0 0
    %631 = vmatpush2.bf16.msra.mxu0 0
    %632 = vmatprep.subr.bf16.mxu0 0
    %633 = vmatpush2.bf16.msra.mxu0 0
    %634 = vmatprep.mubr.bf16.mxu0 0
    %635 = vmatmul.mubr.bf16.gmra.mxu0 %v403
    %v636 = vpop.f32.mrf.mxu0
    %v637 = vadd.f32 %v417, %v636
    %v638 = vpop.f32.mrf.mxu0
    %v639 = vpop.f32.mrf.mxu0
    %v640 = vadd.f32 %v417, %v639
    %v641 = vpop.f32.mrf.mxu0
    %642 = vmatprep.mubr.bf16.mxu0 0
    %643 = vmatmul.mubr.bf16.gmra.mxu0 %v404
    %v644 = vpop.f32.mrf.mxu0
    %v645 = vadd.f32 %v417, %v644
    %v646 = vpop.f32.mrf.mxu0
    %v647 = vpop.f32.mrf.mxu0
    %v648 = vadd.f32 %v417, %v647
    %v649 = vpop.f32.mrf.mxu0
    %650 = vdwg.mxu0
    %v651 = vpack.c.bf16 %v588, %v584
    %v652 = vpack.c.bf16 %v598, %v594
    %v653 = vpack.c.bf16 %v590, %v586
    %v654 = vpack.c.bf16 %v600, %v596
    %vm655 = vcmask 261120
    %v657 = vsel %vm655, %v651, 0
    %v660 = vsel %vm655, %v653, 0
    %662 = vmatprep.subr.bf16.mxu0 0
    %663 = vmatpush1.bf16.xpose.msra.mxu0 0
    %664 = vmatprep.subr.bf16.mxu0 0
    %665 = vmatpush1.bf16.xpose.msra.mxu0 0
    %666 = vmatprep.subr.bf16.mxu0 0
    %667 = vmatpush1.bf16.xpose.msra.mxu0 0
    %668 = vmatprep.subr.bf16.mxu0 0
    %669 = vmatpush1.bf16.xpose.msra.mxu0 0
    %670 = vmatprep.subr.bf16.mxu0 0
    %671 = vmatpush1.bf16.xpose.msra.mxu0 0
    %672 = vmatprep.subr.bf16.mxu0 0
    %673 = vmatpush1.bf16.xpose.msra.mxu0 0
    %674 = vmatprep.subr.bf16.mxu0 0
    %675 = vmatpush1.bf16.xpose.msra.mxu0 0
    %676 = vmatprep.subr.bf16.mxu0 0
    %677 = vmatpush1.bf16.xpose.msra.mxu0 %v660
    %678 = vmatprep.subr.bf16.mxu0 0
    %679 = vmatpush2.bf16.xpose.msra.mxu0 0
    %680 = vmatprep.subr.bf16.mxu0 0
    %681 = vmatpush2.bf16.xpose.msra.mxu0 0
    %682 = vmatprep.subr.bf16.mxu0 0
    %683 = vmatpush2.bf16.xpose.msra.mxu0 0
    %684 = vmatprep.subr.bf16.mxu0 0
    %685 = vmatpush2.bf16.xpose.msra.mxu0 0
    %686 = vmatprep.subr.bf16.mxu0 0
    %687 = vmatpush2.bf16.xpose.msra.mxu0 0
    %688 = vmatprep.subr.bf16.mxu0 0
    %689 = vmatpush2.bf16.xpose.msra.mxu0 0
    %690 = vmatprep.subr.bf16.mxu0 0
    %691 = vmatpush2.bf16.xpose.msra.mxu0 0
    %692 = vmatprep.subr.bf16.mxu0 0
    %693 = vmatpush2.bf16.xpose.msra.mxu0 0
    %694 = vmatprep.mubr.bf16.mxu0 0
    %695 = vmatmul.mubr.bf16.gmra.mxu0 %v657
    %v696 = vpop.f32.mrf.mxu0
    %v697 = vadd.f32 0.0, %v696
    %v698 = vpop.f32.mrf.mxu0
    %v699 = vpop.f32.mrf.mxu0
    %v700 = vadd.f32 0.0, %v699
    %v701 = vpop.f32.mrf.mxu0
    %702 = vdwg.mxu0
    %v704 = vsel %vm655, %v652, 0
    %v707 = vsel %vm655, %v654, 0
    %709 = vmatprep.subr.bf16.mxu0 0
    %710 = vmatpush1.bf16.xpose.msra.mxu0 0
    %711 = vmatprep.subr.bf16.mxu0 0
    %712 = vmatpush1.bf16.xpose.msra.mxu0 0
    %713 = vmatprep.subr.bf16.mxu0 0
    %714 = vmatpush1.bf16.xpose.msra.mxu0 0
    %715 = vmatprep.subr.bf16.mxu0 0
    %716 = vmatpush1.bf16.xpose.msra.mxu0 0
    %717 = vmatprep.subr.bf16.mxu0 0
    %718 = vmatpush1.bf16.xpose.msra.mxu0 0
    %719 = vmatprep.subr.bf16.mxu0 0
    %720 = vmatpush1.bf16.xpose.msra.mxu0 0
    %721 = vmatprep.subr.bf16.mxu0 0
    %722 = vmatpush1.bf16.xpose.msra.mxu0 0
    %723 = vmatprep.subr.bf16.mxu0 0
    %724 = vmatpush1.bf16.xpose.msra.mxu0 %v707
    %725 = vmatprep.subr.bf16.mxu0 0
    %726 = vmatpush2.bf16.xpose.msra.mxu0 0
    %727 = vmatprep.subr.bf16.mxu0 0
    %728 = vmatpush2.bf16.xpose.msra.mxu0 0
    %729 = vmatprep.subr.bf16.mxu0 0
    %730 = vmatpush2.bf16.xpose.msra.mxu0 0
    %731 = vmatprep.subr.bf16.mxu0 0
    %732 = vmatpush2.bf16.xpose.msra.mxu0 0
    %733 = vmatprep.subr.bf16.mxu0 0
    %734 = vmatpush2.bf16.xpose.msra.mxu0 0
    %735 = vmatprep.subr.bf16.mxu0 0
    %736 = vmatpush2.bf16.xpose.msra.mxu0 0
    %737 = vmatprep.subr.bf16.mxu0 0
    %738 = vmatpush2.bf16.xpose.msra.mxu0 0
    %739 = vmatprep.subr.bf16.mxu0 0
    %740 = vmatpush2.bf16.xpose.msra.mxu0 0
    %741 = vmatprep.mubr.bf16.mxu0 0
    %742 = vmatmul.mubr.bf16.gmra.mxu0 %v704
    %v743 = vpop.f32.mrf.mxu0
    %v744 = vadd.f32 0.0, %v743
    %v745 = vpop.f32.mrf.mxu0
    %v746 = vpop.f32.mrf.mxu0
    %v747 = vadd.f32 0.0, %v746
    %v748 = vpop.f32.mrf.mxu0
    %749 = vdwg.mxu0
    %v750 = vmul.f32 %v697, 0.17677669
    %v751 = vmul.f32 %v700, 0.17677669
    %v752 = vmul.f32 %v744, 0.17677669
    %v753 = vmul.f32 %v747, 0.17677669
    %v756 = vlaneseq
    %v757 = vshrl.u32 %v756, 7
    %v758 = vsub.s32 0, %v757
    %v759 = vrot.slane %v284, %v758
    %v760 = vlaneseq
    %v761 = vshrl.u32 %v760, 7
    %v762 = vsub.s32 0, %v761
    %v763 = vrot.slane %v285, %v762
    %v766 = vadd.f32 %v750, %v759
    %v767 = vadd.f32 %v751, %v759
    %v768 = vadd.f32 %v752, %v763
    %v769 = vadd.f32 %v753, %v763
    %vm770 = vcmask 130048
    %v771 = vsel %vm770, %v766, -inf
    %772 = vmax.xlane.f32.xlu0 %v771
    %v773 = vpop.xlane.xlu0 %772
    %v774 = vsel %vm770, %v767, -inf
    %775 = vmax.xlane.f32.xlu0 %v774
    %v776 = vpop.xlane.xlu0 %775
    %v777 = vsel %vm770, %v768, -inf
    %778 = vmax.xlane.f32.xlu0 %v777
    %v779 = vpop.xlane.xlu0 %778
    %v780 = vsel %vm770, %v769, -inf
    %781 = vmax.xlane.f32.xlu0 %v780
    %v782 = vpop.xlane.xlu0 %781
    %v783 = vsub.f32 %v766, %v773
    %v784 = vsub.f32 %v767, %v776
    %v785 = vsub.f32 %v768, %v779
    %v786 = vsub.f32 %v769, %v782
    %v787 = vmul.f32 %v783, 1.442695
    %v788 = vpow.pop %v787
    %v789 = vmul.f32 %v784, 1.442695
    %v790 = vpow.pop %v789
    %v791 = vmul.f32 %v785, 1.442695
    %v792 = vpow.pop %v791
    %v793 = vmul.f32 %v786, 1.442695
    %v794 = vpow.pop %v793
    %v795 = vsel %vm770, %v788, 0.0
    %796 = vadd.xlane.f32.xlu0 %v795
    %v797 = vpop.xlane.xlu0 %796
    %v798 = vsel %vm770, %v790, 0.0
    %799 = vadd.xlane.f32.xlu0 %v798
    %v800 = vpop.xlane.xlu0 %799
    %v801 = vsel %vm770, %v792, 0.0
    %802 = vadd.xlane.f32.xlu0 %v801
    %v803 = vpop.xlane.xlu0 %802
    %v804 = vsel %vm770, %v794, 0.0
    %805 = vadd.xlane.f32.xlu0 %v804
    %v806 = vpop.xlane.xlu0 %805
    %v807 = vrcp.pop %v797
    %v808 = vrcp.pop %v800
    %v809 = vrcp.pop %v803
    %v810 = vrcp.pop %v806
    %v811 = vmul.f32 %v788, %v807
    %v812 = vmul.f32 %v790, %v808
    %v813 = vmul.f32 %v792, %v809
    %v814 = vmul.f32 %v794, %v810
    %v815 = vpack.c.bf16 %v812, %v811
    %v816 = vpack.c.bf16 %v814, %v813
    %v817 = vpack.c.bf16 %v640, %v637
    %v818 = vpack.c.bf16 %v648, %v645
    %v820 = vsel %vm770, %v815, 0
    %822 = vmatprep.subr.bf16.mxu0 0
    %823 = vmatpush1.bf16.msra.mxu0 0
    %824 = vmatprep.subr.bf16.mxu0 0
    %825 = vmatpush1.bf16.msra.mxu0 0
    %826 = vmatprep.subr.bf16.mxu0 0
    %827 = vmatpush1.bf16.msra.mxu0 0
    %828 = vmatprep.subr.bf16.mxu0 0
    %829 = vmatpush1.bf16.msra.mxu0 0
    %830 = vmatprep.subr.bf16.mxu0 0
    %831 = vmatpush1.bf16.msra.mxu0 0
    %832 = vmatprep.subr.bf16.mxu0 0
    %833 = vmatpush1.bf16.msra.mxu0 0
    %834 = vmatprep.subr.bf16.mxu0 0
    %835 = vmatpush1.bf16.msra.mxu0 0
    %836 = vmatprep.subr.bf16.mxu0 0
    %837 = vmatpush1.bf16.msra.mxu0 %v817
    %838 = vmatprep.subr.bf16.mxu0 0
    %839 = vmatpush2.bf16.msra.mxu0 0
    %840 = vmatprep.subr.bf16.mxu0 0
    %841 = vmatpush2.bf16.msra.mxu0 0
    %842 = vmatprep.subr.bf16.mxu0 0
    %843 = vmatpush2.bf16.msra.mxu0 0
    %844 = vmatprep.subr.bf16.mxu0 0
    %845 = vmatpush2.bf16.msra.mxu0 0
    %846 = vmatprep.subr.bf16.mxu0 0
    %847 = vmatpush2.bf16.msra.mxu0 0
    %848 = vmatprep.subr.bf16.mxu0 0
    %849 = vmatpush2.bf16.msra.mxu0 0
    %850 = vmatprep.subr.bf16.mxu0 0
    %851 = vmatpush2.bf16.msra.mxu0 0
    %852 = vmatprep.subr.bf16.mxu0 0
    %853 = vmatpush2.bf16.msra.mxu0 0
    %854 = vmatprep.mubr.bf16.mxu0 0
    %855 = vmatmul.mubr.bf16.gmra.mxu0 %v820
    %v856 = vpop.f32.mrf.mxu0
    %v857 = vadd.f32 0.0, %v856
    %v858 = vpop.f32.mrf.mxu0
    %v859 = vpop.f32.mrf.mxu0
    %v860 = vadd.f32 0.0, %v859
    %v861 = vpop.f32.mrf.mxu0
    %862 = vdwg.mxu0
    %v864 = vsel %vm770, %v816, 0
    %866 = vmatprep.subr.bf16.mxu0 0
    %867 = vmatpush1.bf16.msra.mxu0 0
    %868 = vmatprep.subr.bf16.mxu0 0
    %869 = vmatpush1.bf16.msra.mxu0 0
    %870 = vmatprep.subr.bf16.mxu0 0
    %871 = vmatpush1.bf16.msra.mxu0 0
    %872 = vmatprep.subr.bf16.mxu0 0
    %873 = vmatpush1.bf16.msra.mxu0 0
    %874 = vmatprep.subr.bf16.mxu0 0
    %875 = vmatpush1.bf16.msra.mxu0 0
    %876 = vmatprep.subr.bf16.mxu0 0
    %877 = vmatpush1.bf16.msra.mxu0 0
    %878 = vmatprep.subr.bf16.mxu0 0
    %879 = vmatpush1.bf16.msra.mxu0 0
    %880 = vmatprep.subr.bf16.mxu0 0
    %881 = vmatpush1.bf16.msra.mxu0 %v818
    %882 = vmatprep.subr.bf16.mxu0 0
    %883 = vmatpush2.bf16.msra.mxu0 0
    %884 = vmatprep.subr.bf16.mxu0 0
    %885 = vmatpush2.bf16.msra.mxu0 0
    %886 = vmatprep.subr.bf16.mxu0 0
    %887 = vmatpush2.bf16.msra.mxu0 0
    %888 = vmatprep.subr.bf16.mxu0 0
    %889 = vmatpush2.bf16.msra.mxu0 0
    %890 = vmatprep.subr.bf16.mxu0 0
    %891 = vmatpush2.bf16.msra.mxu0 0
    %892 = vmatprep.subr.bf16.mxu0 0
    %893 = vmatpush2.bf16.msra.mxu0 0
    %894 = vmatprep.subr.bf16.mxu0 0
    %895 = vmatpush2.bf16.msra.mxu0 0
    %896 = vmatprep.subr.bf16.mxu0 0
    %897 = vmatpush2.bf16.msra.mxu0 0
    %898 = vmatprep.mubr.bf16.mxu0 0
    %899 = vmatmul.mubr.bf16.gmra.mxu0 %v864
    %v900 = vpop.f32.mrf.mxu0
    %v901 = vadd.f32 0.0, %v900
    %v902 = vpop.f32.mrf.mxu0
    %v903 = vpop.f32.mrf.mxu0
    %v904 = vadd.f32 0.0, %v903
    %v905 = vpop.f32.mrf.mxu0
    %906 = vdwg.mxu0
    %v907 = vpack.c.bf16 %v860, %v857
    %v908 = vpack.c.bf16 %v904, %v901
    %910 = vrot.lane.b32.xlu0 %v651, 96
    %v911 = vpop.permute.xlu0 %910
    %913 = vrot.lane.b32.xlu0 %v653, 96
    %v914 = vpop.permute.xlu0 %913
    %v916 = vsel %vm655, %v911, 0
    %v919 = vsel %vm655, %v914, 0
    %921 = vmatprep.subr.bf16.mxu0 0
    %922 = vmatpush1.bf16.xpose.msra.mxu0 0
    %923 = vmatprep.subr.bf16.mxu0 0
    %924 = vmatpush1.bf16.xpose.msra.mxu0 0
    %925 = vmatprep.subr.bf16.mxu0 0
    %926 = vmatpush1.bf16.xpose.msra.mxu0 0
    %927 = vmatprep.subr.bf16.mxu0 0
    %928 = vmatpush1.bf16.xpose.msra.mxu0 0
    %929 = vmatprep.subr.bf16.mxu0 0
    %930 = vmatpush1.bf16.xpose.msra.mxu0 0
    %931 = vmatprep.subr.bf16.mxu0 0
    %932 = vmatpush1.bf16.xpose.msra.mxu0 0
    %933 = vmatprep.subr.bf16.mxu0 0
    %934 = vmatpush1.bf16.xpose.msra.mxu0 0
    %935 = vmatprep.subr.bf16.mxu0 0
    %936 = vmatpush1.bf16.xpose.msra.mxu0 %v919
    %937 = vmatprep.subr.bf16.mxu0 0
    %938 = vmatpush2.bf16.xpose.msra.mxu0 0
    %939 = vmatprep.subr.bf16.mxu0 0
    %940 = vmatpush2.bf16.xpose.msra.mxu0 0
    %941 = vmatprep.subr.bf16.mxu0 0
    %942 = vmatpush2.bf16.xpose.msra.mxu0 0
    %943 = vmatprep.subr.bf16.mxu0 0
    %944 = vmatpush2.bf16.xpose.msra.mxu0 0
    %945 = vmatprep.subr.bf16.mxu0 0
    %946 = vmatpush2.bf16.xpose.msra.mxu0 0
    %947 = vmatprep.subr.bf16.mxu0 0
    %948 = vmatpush2.bf16.xpose.msra.mxu0 0
    %949 = vmatprep.subr.bf16.mxu0 0
    %950 = vmatpush2.bf16.xpose.msra.mxu0 0
    %951 = vmatprep.subr.bf16.mxu0 0
    %952 = vmatpush2.bf16.xpose.msra.mxu0 0
    %953 = vmatprep.mubr.bf16.mxu0 0
    %954 = vmatmul.mubr.bf16.gmra.mxu0 %v916
    %v955 = vpop.f32.mrf.mxu0
    %v956 = vadd.f32 0.0, %v955
    %v957 = vpop.f32.mrf.mxu0
    %v958 = vpop.f32.mrf.mxu0
    %v959 = vadd.f32 0.0, %v958
    %v960 = vpop.f32.mrf.mxu0
    %961 = vdwg.mxu0
    %963 = vrot.lane.b32.xlu0 %v652, 96
    %v964 = vpop.permute.xlu0 %963
    %966 = vrot.lane.b32.xlu0 %v654, 96
    %v967 = vpop.permute.xlu0 %966
    %v969 = vsel %vm655, %v964, 0
    %v972 = vsel %vm655, %v967, 0
    %974 = vmatprep.subr.bf16.mxu0 0
    %975 = vmatpush1.bf16.xpose.msra.mxu0 0
    %976 = vmatprep.subr.bf16.mxu0 0
    %977 = vmatpush1.bf16.xpose.msra.mxu0 0
    %978 = vmatprep.subr.bf16.mxu0 0
    %979 = vmatpush1.bf16.xpose.msra.mxu0 0
    %980 = vmatprep.subr.bf16.mxu0 0
    %981 = vmatpush1.bf16.xpose.msra.mxu0 0
    %982 = vmatprep.subr.bf16.mxu0 0
    %983 = vmatpush1.bf16.xpose.msra.mxu0 0
    %984 = vmatprep.subr.bf16.mxu0 0
    %985 = vmatpush1.bf16.xpose.msra.mxu0 0
    %986 = vmatprep.subr.bf16.mxu0 0
    %987 = vmatpush1.bf16.xpose.msra.mxu0 0
    %988 = vmatprep.subr.bf16.mxu0 0
    %989 = vmatpush1.bf16.xpose.msra.mxu0 %v972
    %990 = vmatprep.subr.bf16.mxu0 0
    %991 = vmatpush2.bf16.xpose.msra.mxu0 0
    %992 = vmatprep.subr.bf16.mxu0 0
    %993 = vmatpush2.bf16.xpose.msra.mxu0 0
    %994 = vmatprep.subr.bf16.mxu0 0
    %995 = vmatpush2.bf16.xpose.msra.mxu0 0
    %996 = vmatprep.subr.bf16.mxu0 0
    %997 = vmatpush2.bf16.xpose.msra.mxu0 0
    %998 = vmatprep.subr.bf16.mxu0 0
    %999 = vmatpush2.bf16.xpose.msra.mxu0 0
    %1000 = vmatprep.subr.bf16.mxu0 0
    %1001 = vmatpush2.bf16.xpose.msra.mxu0 0
    %1002 = vmatprep.subr.bf16.mxu0 0
    %1003 = vmatpush2.bf16.xpose.msra.mxu0 0
    %1004 = vmatprep.subr.bf16.mxu0 0
    %1005 = vmatpush2.bf16.xpose.msra.mxu0 0
    %1006 = vmatprep.mubr.bf16.mxu0 0
    %1007 = vmatmul.mubr.bf16.gmra.mxu0 %v969
    %v1008 = vpop.f32.mrf.mxu0
    %v1009 = vadd.f32 0.0, %v1008
    %v1010 = vpop.f32.mrf.mxu0
    %v1011 = vpop.f32.mrf.mxu0
    %v1012 = vadd.f32 0.0, %v1011
    %v1013 = vpop.f32.mrf.mxu0
    %1014 = vdwg.mxu0
    %v1015 = vmul.f32 %v956, 0.17677669
    %v1016 = vmul.f32 %v959, 0.17677669
    %v1017 = vmul.f32 %v1009, 0.17677669
    %v1018 = vmul.f32 %v1012, 0.17677669
    %v1019 = vadd.f32 %v1015, %v759
    %v1020 = vadd.f32 %v1016, %v759
    %v1021 = vadd.f32 %v1017, %v763
    %v1022 = vadd.f32 %v1018, %v763
    %v1023 = vsel %vm770, %v1019, -inf
    %1024 = vmax.xlane.f32.xlu0 %v1023
    %v1025 = vpop.xlane.xlu0 %1024
    %v1026 = vsel %vm770, %v1020, -inf
    %1027 = vmax.xlane.f32.xlu0 %v1026
    %v1028 = vpop.xlane.xlu0 %1027
    %v1029 = vsel %vm770, %v1021, -inf
    %1030 = vmax.xlane.f32.xlu0 %v1029
    %v1031 = vpop.xlane.xlu0 %1030
    %v1032 = vsel %vm770, %v1022, -inf
    %1033 = vmax.xlane.f32.xlu0 %v1032
    %v1034 = vpop.xlane.xlu0 %1033
    %v1035 = vsub.f32 %v1019, %v1025
    %v1036 = vsub.f32 %v1020, %v1028
    %v1037 = vsub.f32 %v1021, %v1031
    %v1038 = vsub.f32 %v1022, %v1034
    %v1039 = vmul.f32 %v1035, 1.442695
    %v1040 = vpow.pop %v1039
    %v1041 = vmul.f32 %v1036, 1.442695
    %v1042 = vpow.pop %v1041
    %v1043 = vmul.f32 %v1037, 1.442695
    %v1044 = vpow.pop %v1043
    %v1045 = vmul.f32 %v1038, 1.442695
    %v1046 = vpow.pop %v1045
    %v1047 = vsel %vm770, %v1040, 0.0
    %1048 = vadd.xlane.f32.xlu0 %v1047
    %v1049 = vpop.xlane.xlu0 %1048
    %v1050 = vsel %vm770, %v1042, 0.0
    %1051 = vadd.xlane.f32.xlu0 %v1050
    %v1052 = vpop.xlane.xlu0 %1051
    %v1053 = vsel %vm770, %v1044, 0.0
    %1054 = vadd.xlane.f32.xlu0 %v1053
    %v1055 = vpop.xlane.xlu0 %1054
    %v1056 = vsel %vm770, %v1046, 0.0
    %1057 = vadd.xlane.f32.xlu0 %v1056
    %v1058 = vpop.xlane.xlu0 %1057
    %v1059 = vrcp.pop %v1049
    %v1060 = vrcp.pop %v1052
    %v1061 = vrcp.pop %v1055
    %v1062 = vrcp.pop %v1058
    %v1063 = vmul.f32 %v1040, %v1059
    %v1064 = vmul.f32 %v1042, %v1060
    %v1065 = vmul.f32 %v1044, %v1061
    %v1066 = vmul.f32 %v1046, %v1062
    %v1067 = vpack.c.bf16 %v1064, %v1063
    %v1068 = vpack.c.bf16 %v1066, %v1065
    %1070 = vrot.lane.b32.xlu0 %v817, 96
    %v1071 = vpop.permute.xlu0 %1070
    %v1074 = vsel %vm770, %v1067, 0
    %1076 = vmatprep.subr.bf16.mxu0 0
    %1077 = vmatpush1.bf16.msra.mxu0 0
    %1078 = vmatprep.subr.bf16.mxu0 0
    %1079 = vmatpush1.bf16.msra.mxu0 0
    %1080 = vmatprep.subr.bf16.mxu0 0
    %1081 = vmatpush1.bf16.msra.mxu0 0
    %1082 = vmatprep.subr.bf16.mxu0 0
    %1083 = vmatpush1.bf16.msra.mxu0 0
    %1084 = vmatprep.subr.bf16.mxu0 0
    %1085 = vmatpush1.bf16.msra.mxu0 0
    %1086 = vmatprep.subr.bf16.mxu0 0
    %1087 = vmatpush1.bf16.msra.mxu0 0
    %1088 = vmatprep.subr.bf16.mxu0 0
    %1089 = vmatpush1.bf16.msra.mxu0 0
    %1090 = vmatprep.subr.bf16.mxu0 0
    %1091 = vmatpush1.bf16.msra.mxu0 %v1071
    %1092 = vmatprep.subr.bf16.mxu0 0
    %1093 = vmatpush2.bf16.msra.mxu0 0
    %1094 = vmatprep.subr.bf16.mxu0 0
    %1095 = vmatpush2.bf16.msra.mxu0 0
    %1096 = vmatprep.subr.bf16.mxu0 0
    %1097 = vmatpush2.bf16.msra.mxu0 0
    %1098 = vmatprep.subr.bf16.mxu0 0
    %1099 = vmatpush2.bf16.msra.mxu0 0
    %1100 = vmatprep.subr.bf16.mxu0 0
    %1101 = vmatpush2.bf16.msra.mxu0 0
    %1102 = vmatprep.subr.bf16.mxu0 0
    %1103 = vmatpush2.bf16.msra.mxu0 0
    %1104 = vmatprep.subr.bf16.mxu0 0
    %1105 = vmatpush2.bf16.msra.mxu0 0
    %1106 = vmatprep.subr.bf16.mxu0 0
    %1107 = vmatpush2.bf16.msra.mxu0 0
    %1108 = vmatprep.mubr.bf16.mxu0 0
    %1109 = vmatmul.mubr.bf16.gmra.mxu0 %v1074
    %v1110 = vpop.f32.mrf.mxu0
    %v1111 = vadd.f32 0.0, %v1110
    %v1112 = vpop.f32.mrf.mxu0
    %v1113 = vpop.f32.mrf.mxu0
    %v1114 = vadd.f32 0.0, %v1113
    %v1115 = vpop.f32.mrf.mxu0
    %1116 = vdwg.mxu0
    %1118 = vrot.lane.b32.xlu0 %v818, 96
    %v1119 = vpop.permute.xlu0 %1118
    %v1122 = vsel %vm770, %v1068, 0
    %1124 = vmatprep.subr.bf16.mxu0 0
    %1125 = vmatpush1.bf16.msra.mxu0 0
    %1126 = vmatprep.subr.bf16.mxu0 0
    %1127 = vmatpush1.bf16.msra.mxu0 0
    %1128 = vmatprep.subr.bf16.mxu0 0
    %1129 = vmatpush1.bf16.msra.mxu0 0
    %1130 = vmatprep.subr.bf16.mxu0 0
    %1131 = vmatpush1.bf16.msra.mxu0 0
    %1132 = vmatprep.subr.bf16.mxu0 0
    %1133 = vmatpush1.bf16.msra.mxu0 0
    %1134 = vmatprep.subr.bf16.mxu0 0
    %1135 = vmatpush1.bf16.msra.mxu0 0
    %1136 = vmatprep.subr.bf16.mxu0 0
    %1137 = vmatpush1.bf16.msra.mxu0 0
    %1138 = vmatprep.subr.bf16.mxu0 0
    %1139 = vmatpush1.bf16.msra.mxu0 %v1119
    %1140 = vmatprep.subr.bf16.mxu0 0
    %1141 = vmatpush2.bf16.msra.mxu0 0
    %1142 = vmatprep.subr.bf16.mxu0 0
    %1143 = vmatpush2.bf16.msra.mxu0 0
    %1144 = vmatprep.subr.bf16.mxu0 0
    %1145 = vmatpush2.bf16.msra.mxu0 0
    %1146 = vmatprep.subr.bf16.mxu0 0
    %1147 = vmatpush2.bf16.msra.mxu0 0
    %1148 = vmatprep.subr.bf16.mxu0 0
    %1149 = vmatpush2.bf16.msra.mxu0 0
    %1150 = vmatprep.subr.bf16.mxu0 0
    %1151 = vmatpush2.bf16.msra.mxu0 0
    %1152 = vmatprep.subr.bf16.mxu0 0
    %1153 = vmatpush2.bf16.msra.mxu0 0
    %1154 = vmatprep.subr.bf16.mxu0 0
    %1155 = vmatpush2.bf16.msra.mxu0 0
    %1156 = vmatprep.mubr.bf16.mxu0 0
    %1157 = vmatmul.mubr.bf16.gmra.mxu0 %v1122
    %v1158 = vpop.f32.mrf.mxu0
    %v1159 = vadd.f32 0.0, %v1158
    %v1160 = vpop.f32.mrf.mxu0
    %v1161 = vpop.f32.mrf.mxu0
    %v1162 = vadd.f32 0.0, %v1161
    %v1163 = vpop.f32.mrf.mxu0
    %1164 = vdwg.mxu0
    %v1165 = vpack.c.bf16 %v1114, %v1111
    %v1166 = vpack.c.bf16 %v1162, %v1159
    %v1171 = vunpack.c.l.b16 %v390
    %v1172 = vunpack.c.l.b16 %v391
    %v1173 = vunpack.c.l.b16 %v392
    %v1174 = vunpack.c.l.b16 %v393
    %v1175 = vpack.c.b16 %v1172, %v1171
    %v1176 = vpack.c.b16 %v1174, %v1173
    %v1180 = vsel %vm655, %v1165, 0
    %v1183 = vsel %vm655, %v1166, 0
    %1185 = vmatprep.subr.bf16.mxu0 0
    %1186 = vmatpush1.bf16.msra.mxu0 0
    %1187 = vmatprep.subr.bf16.mxu0 0
    %1188 = vmatpush1.bf16.msra.mxu0 0
    %1189 = vmatprep.subr.bf16.mxu0 0
    %1190 = vmatpush1.bf16.msra.mxu0 0
    %1191 = vmatprep.subr.bf16.mxu0 0
    %1192 = vmatpush1.bf16.msra.mxu0 0
    %1193 = vmatprep.subr.bf16.mxu0 0
    %1194 = vmatpush1.bf16.msra.mxu0 0
    %1195 = vmatprep.subr.bf16.mxu0 0
    %1196 = vmatpush1.bf16.msra.mxu0 0
    %1197 = vmatprep.subr.bf16.mxu0 0
    %1198 = vmatpush1.bf16.msra.mxu0 %v1176
    %1199 = vmatprep.subr.bf16.mxu0 0
    %1200 = vmatpush1.bf16.msra.mxu0 %v1175
    %1201 = vmatprep.subr.bf16.mxu0 0
    %1202 = vmatpush2.bf16.msra.mxu0 0
    %1203 = vmatprep.subr.bf16.mxu0 0
    %1204 = vmatpush2.bf16.msra.mxu0 0
    %1205 = vmatprep.subr.bf16.mxu0 0
    %1206 = vmatpush2.bf16.msra.mxu0 0
    %1207 = vmatprep.subr.bf16.mxu0 0
    %1208 = vmatpush2.bf16.msra.mxu0 0
    %1209 = vmatprep.subr.bf16.mxu0 0
    %1210 = vmatpush2.bf16.msra.mxu0 0
    %1211 = vmatprep.subr.bf16.mxu0 0
    %1212 = vmatpush2.bf16.msra.mxu0 0
    %1213 = vmatprep.subr.bf16.mxu0 0
    %1214 = vmatpush2.bf16.msra.mxu0 0
    %1215 = vmatprep.subr.bf16.mxu0 0
    %1216 = vmatpush2.bf16.msra.mxu0 0
    %1217 = vmatprep.mubr.bf16.mxu0 0
    %1218 = vmatmul.mubr.bf16.gmra.mxu0 %v1180
    %v1219 = vpop.f32.mrf.mxu0
    %v1220 = vadd.f32 0.0, %v1219
    %v1221 = vpop.f32.mrf.mxu0
    %v1222 = vpop.f32.mrf.mxu0
    %v1223 = vadd.f32 0.0, %v1222
    %v1224 = vpop.f32.mrf.mxu0
    %1225 = vmatprep.mubr.bf16.mxu0 0
    %1226 = vmatmul.mubr.bf16.gmra.mxu0 %v1183
    %v1227 = vpop.f32.mrf.mxu0
    %v1228 = vadd.f32 0.0, %v1227
    %v1229 = vpop.f32.mrf.mxu0
    %v1230 = vpop.f32.mrf.mxu0
    %v1231 = vadd.f32 0.0, %v1230
    %v1232 = vpop.f32.mrf.mxu0
    %1233 = vdwg.mxu0
    %v1238 = vunpack.c.l.b16 %v386
    %v1239 = vunpack.c.l.b16 %v387
    %v1240 = vunpack.c.l.b16 %v388
    %v1241 = vunpack.c.l.b16 %v389
    %v1242 = vpack.c.b16 %v1239, %v1238
    %v1243 = vpack.c.b16 %v1241, %v1240
    %v1247 = vsel %vm655, %v907, 0
    %v1250 = vsel %vm655, %v908, 0
    %1252 = vmatprep.subr.bf16.mxu0 0
    %1253 = vmatpush1.bf16.msra.mxu0 0
    %1254 = vmatprep.subr.bf16.mxu0 0
    %1255 = vmatpush1.bf16.msra.mxu0 0
    %1256 = vmatprep.subr.bf16.mxu0 0
    %1257 = vmatpush1.bf16.msra.mxu0 0
    %1258 = vmatprep.subr.bf16.mxu0 0
    %1259 = vmatpush1.bf16.msra.mxu0 0
    %1260 = vmatprep.subr.bf16.mxu0 0
    %1261 = vmatpush1.bf16.msra.mxu0 0
    %1262 = vmatprep.subr.bf16.mxu0 0
    %1263 = vmatpush1.bf16.msra.mxu0 0
    %1264 = vmatprep.subr.bf16.mxu0 0
    %1265 = vmatpush1.bf16.msra.mxu0 %v1243
    %1266 = vmatprep.subr.bf16.mxu0 0
    %1267 = vmatpush1.bf16.msra.mxu0 %v1242
    %1268 = vmatprep.subr.bf16.mxu0 0
    %1269 = vmatpush2.bf16.msra.mxu0 0
    %1270 = vmatprep.subr.bf16.mxu0 0
    %1271 = vmatpush2.bf16.msra.mxu0 0
    %1272 = vmatprep.subr.bf16.mxu0 0
    %1273 = vmatpush2.bf16.msra.mxu0 0
    %1274 = vmatprep.subr.bf16.mxu0 0
    %1275 = vmatpush2.bf16.msra.mxu0 0
    %1276 = vmatprep.subr.bf16.mxu0 0
    %1277 = vmatpush2.bf16.msra.mxu0 0
    %1278 = vmatprep.subr.bf16.mxu0 0
    %1279 = vmatpush2.bf16.msra.mxu0 0
    %1280 = vmatprep.subr.bf16.mxu0 0
    %1281 = vmatpush2.bf16.msra.mxu0 0
    %1282 = vmatprep.subr.bf16.mxu0 0
    %1283 = vmatpush2.bf16.msra.mxu0 0
    %1284 = vmatprep.mubr.bf16.mxu0 0
    %1285 = vmatmul.mubr.bf16.gmra.mxu0 %v1247
    %v1286 = vpop.f32.mrf.mxu0
    %v1287 = vadd.f32 %v1220, %v1286
    %v1288 = vpop.f32.mrf.mxu0
    %v1289 = vpop.f32.mrf.mxu0
    %v1290 = vadd.f32 %v1223, %v1289
    %v1291 = vpop.f32.mrf.mxu0
    %1292 = vmatprep.mubr.bf16.mxu0 0
    %1293 = vmatmul.mubr.bf16.gmra.mxu0 %v1250
    %v1294 = vpop.f32.mrf.mxu0
    %v1295 = vadd.f32 %v1228, %v1294
    %v1296 = vpop.f32.mrf.mxu0
    %v1297 = vpop.f32.mrf.mxu0
    %v1298 = vadd.f32 %v1231, %v1297
    %v1299 = vpop.f32.mrf.mxu0
    %1300 = vdwg.mxu0
    %1301 = vrot.lane.b32.xlu0 %v651, 64
    %v1302 = vpop.permute.xlu0 %1301
    %1303 = vrot.lane.b32.xlu0 %v653, 64
    %v1304 = vpop.permute.xlu0 %1303
    %v1306 = vsel %vm655, %v1302, 0
    %v1309 = vsel %vm655, %v1304, 0
    %1311 = vmatprep.subr.bf16.mxu0 0
    %1312 = vmatpush1.bf16.xpose.msra.mxu0 0
    %1313 = vmatprep.subr.bf16.mxu0 0
    %1314 = vmatpush1.bf16.xpose.msra.mxu0 0
    %1315 = vmatprep.subr.bf16.mxu0 0
    %1316 = vmatpush1.bf16.xpose.msra.mxu0 0
    %1317 = vmatprep.subr.bf16.mxu0 0
    %1318 = vmatpush1.bf16.xpose.msra.mxu0 0
    %1319 = vmatprep.subr.bf16.mxu0 0
    %1320 = vmatpush1.bf16.xpose.msra.mxu0 0
    %1321 = vmatprep.subr.bf16.mxu0 0
    %1322 = vmatpush1.bf16.xpose.msra.mxu0 0
    %1323 = vmatprep.subr.bf16.mxu0 0
    %1324 = vmatpush1.bf16.xpose.msra.mxu0 0
    %1325 = vmatprep.subr.bf16.mxu0 0
    %1326 = vmatpush1.bf16.xpose.msra.mxu0 %v1309
    %1327 = vmatprep.subr.bf16.mxu0 0
    %1328 = vmatpush2.bf16.xpose.msra.mxu0 0
    %1329 = vmatprep.subr.bf16.mxu0 0
    %1330 = vmatpush2.bf16.xpose.msra.mxu0 0
    %1331 = vmatprep.subr.bf16.mxu0 0
    %1332 = vmatpush2.bf16.xpose.msra.mxu0 0
    %1333 = vmatprep.subr.bf16.mxu0 0
    %1334 = vmatpush2.bf16.xpose.msra.mxu0 0
    %1335 = vmatprep.subr.bf16.mxu0 0
    %1336 = vmatpush2.bf16.xpose.msra.mxu0 0
    %1337 = vmatprep.subr.bf16.mxu0 0
    %1338 = vmatpush2.bf16.xpose.msra.mxu0 0
    %1339 = vmatprep.subr.bf16.mxu0 0
    %1340 = vmatpush2.bf16.xpose.msra.mxu0 0
    %1341 = vmatprep.subr.bf16.mxu0 0
    %1342 = vmatpush2.bf16.xpose.msra.mxu0 0
    %1343 = vmatprep.mubr.bf16.mxu0 0
    %1344 = vmatmul.mubr.bf16.gmra.mxu0 %v1306
    %v1345 = vpop.f32.mrf.mxu0
    %v1346 = vadd.f32 0.0, %v1345
    %v1347 = vpop.f32.mrf.mxu0
    %v1348 = vpop.f32.mrf.mxu0
    %v1349 = vadd.f32 0.0, %v1348
    %v1350 = vpop.f32.mrf.mxu0
    %1351 = vdwg.mxu0
    %1352 = vrot.lane.b32.xlu0 %v652, 64
    %v1353 = vpop.permute.xlu0 %1352
    %1354 = vrot.lane.b32.xlu0 %v654, 64
    %v1355 = vpop.permute.xlu0 %1354
    %v1357 = vsel %vm655, %v1353, 0
    %v1360 = vsel %vm655, %v1355, 0
    %1362 = vmatprep.subr.bf16.mxu0 0
    %1363 = vmatpush1.bf16.xpose.msra.mxu0 0
    %1364 = vmatprep.subr.bf16.mxu0 0
    %1365 = vmatpush1.bf16.xpose.msra.mxu0 0
    %1366 = vmatprep.subr.bf16.mxu0 0
    %1367 = vmatpush1.bf16.xpose.msra.mxu0 0
    %1368 = vmatprep.subr.bf16.mxu0 0
    %1369 = vmatpush1.bf16.xpose.msra.mxu0 0
    %1370 = vmatprep.subr.bf16.mxu0 0
    %1371 = vmatpush1.bf16.xpose.msra.mxu0 0
    %1372 = vmatprep.subr.bf16.mxu0 0
    %1373 = vmatpush1.bf16.xpose.msra.mxu0 0
    %1374 = vmatprep.subr.bf16.mxu0 0
    %1375 = vmatpush1.bf16.xpose.msra.mxu0 0
    %1376 = vmatprep.subr.bf16.mxu0 0
    %1377 = vmatpush1.bf16.xpose.msra.mxu0 %v1360
    %1378 = vmatprep.subr.bf16.mxu0 0
    %1379 = vmatpush2.bf16.xpose.msra.mxu0 0
    %1380 = vmatprep.subr.bf16.mxu0 0
    %1381 = vmatpush2.bf16.xpose.msra.mxu0 0
    %1382 = vmatprep.subr.bf16.mxu0 0
    %1383 = vmatpush2.bf16.xpose.msra.mxu0 0
    %1384 = vmatprep.subr.bf16.mxu0 0
    %1385 = vmatpush2.bf16.xpose.msra.mxu0 0
    %1386 = vmatprep.subr.bf16.mxu0 0
    %1387 = vmatpush2.bf16.xpose.msra.mxu0 0
    %1388 = vmatprep.subr.bf16.mxu0 0
    %1389 = vmatpush2.bf16.xpose.msra.mxu0 0
    %1390 = vmatprep.subr.bf16.mxu0 0
    %1391 = vmatpush2.bf16.xpose.msra.mxu0 0
    %1392 = vmatprep.subr.bf16.mxu0 0
    %1393 = vmatpush2.bf16.xpose.msra.mxu0 0
    %1394 = vmatprep.mubr.bf16.mxu0 0
    %1395 = vmatmul.mubr.bf16.gmra.mxu0 %v1357
    %v1396 = vpop.f32.mrf.mxu0
    %v1397 = vadd.f32 0.0, %v1396
    %v1398 = vpop.f32.mrf.mxu0
    %v1399 = vpop.f32.mrf.mxu0
    %v1400 = vadd.f32 0.0, %v1399
    %v1401 = vpop.f32.mrf.mxu0
    %1402 = vdwg.mxu0
    %v1403 = vmul.f32 %v1346, 0.17677669
    %v1404 = vmul.f32 %v1349, 0.17677669
    %v1405 = vmul.f32 %v1397, 0.17677669
    %v1406 = vmul.f32 %v1400, 0.17677669
    %v1407 = vadd.f32 %v1403, %v759
    %v1408 = vadd.f32 %v1404, %v759
    %v1409 = vadd.f32 %v1405, %v763
    %v1410 = vadd.f32 %v1406, %v763
    %v1411 = vsel %vm770, %v1407, -inf
    %1412 = vmax.xlane.f32.xlu0 %v1411
    %v1413 = vpop.xlane.xlu0 %1412
    %v1414 = vsel %vm770, %v1408, -inf
    %1415 = vmax.xlane.f32.xlu0 %v1414
    %v1416 = vpop.xlane.xlu0 %1415
    %v1417 = vsel %vm770, %v1409, -inf
    %1418 = vmax.xlane.f32.xlu0 %v1417
    %v1419 = vpop.xlane.xlu0 %1418
    %v1420 = vsel %vm770, %v1410, -inf
    %1421 = vmax.xlane.f32.xlu0 %v1420
    %v1422 = vpop.xlane.xlu0 %1421
    %v1423 = vsub.f32 %v1407, %v1413
    %v1424 = vsub.f32 %v1408, %v1416
    %v1425 = vsub.f32 %v1409, %v1419
    %v1426 = vsub.f32 %v1410, %v1422
    %v1427 = vmul.f32 %v1423, 1.442695
    %v1428 = vpow.pop %v1427
    %v1429 = vmul.f32 %v1424, 1.442695
    %v1430 = vpow.pop %v1429
    %v1431 = vmul.f32 %v1425, 1.442695
    %v1432 = vpow.pop %v1431
    %v1433 = vmul.f32 %v1426, 1.442695
    %v1434 = vpow.pop %v1433
    %v1435 = vsel %vm770, %v1428, 0.0
    %1436 = vadd.xlane.f32.xlu0 %v1435
    %v1437 = vpop.xlane.xlu0 %1436
    %v1438 = vsel %vm770, %v1430, 0.0
    %1439 = vadd.xlane.f32.xlu0 %v1438
    %v1440 = vpop.xlane.xlu0 %1439
    %v1441 = vsel %vm770, %v1432, 0.0
    %1442 = vadd.xlane.f32.xlu0 %v1441
    %v1443 = vpop.xlane.xlu0 %1442
    %v1444 = vsel %vm770, %v1434, 0.0
    %1445 = vadd.xlane.f32.xlu0 %v1444
    %v1446 = vpop.xlane.xlu0 %1445
    %v1447 = vrcp.pop %v1437
    %v1448 = vrcp.pop %v1440
    %v1449 = vrcp.pop %v1443
    %v1450 = vrcp.pop %v1446
    %v1451 = vmul.f32 %v1428, %v1447
    %v1452 = vmul.f32 %v1430, %v1448
    %v1453 = vmul.f32 %v1432, %v1449
    %v1454 = vmul.f32 %v1434, %v1450
    %v1455 = vpack.c.bf16 %v1452, %v1451
    %v1456 = vpack.c.bf16 %v1454, %v1453
    %1457 = vrot.lane.b32.xlu0 %v817, 64
    %v1458 = vpop.permute.xlu0 %1457
    %v1461 = vsel %vm770, %v1455, 0
    %1463 = vmatprep.subr.bf16.mxu0 0
    %1464 = vmatpush1.bf16.msra.mxu0 0
    %1465 = vmatprep.subr.bf16.mxu0 0
    %1466 = vmatpush1.bf16.msra.mxu0 0
    %1467 = vmatprep.subr.bf16.mxu0 0
    %1468 = vmatpush1.bf16.msra.mxu0 0
    %1469 = vmatprep.subr.bf16.mxu0 0
    %1470 = vmatpush1.bf16.msra.mxu0 0
    %1471 = vmatprep.subr.bf16.mxu0 0
    %1472 = vmatpush1.bf16.msra.mxu0 0
    %1473 = vmatprep.subr.bf16.mxu0 0
    %1474 = vmatpush1.bf16.msra.mxu0 0
    %1475 = vmatprep.subr.bf16.mxu0 0
    %1476 = vmatpush1.bf16.msra.mxu0 0
    %1477 = vmatprep.subr.bf16.mxu0 0
    %1478 = vmatpush1.bf16.msra.mxu0 %v1458
    %1479 = vmatprep.subr.bf16.mxu0 0
    %1480 = vmatpush2.bf16.msra.mxu0 0
    %1481 = vmatprep.subr.bf16.mxu0 0
    %1482 = vmatpush2.bf16.msra.mxu0 0
    %1483 = vmatprep.subr.bf16.mxu0 0
    %1484 = vmatpush2.bf16.msra.mxu0 0
    %1485 = vmatprep.subr.bf16.mxu0 0
    %1486 = vmatpush2.bf16.msra.mxu0 0
    %1487 = vmatprep.subr.bf16.mxu0 0
    %1488 = vmatpush2.bf16.msra.mxu0 0
    %1489 = vmatprep.subr.bf16.mxu0 0
    %1490 = vmatpush2.bf16.msra.mxu0 0
    %1491 = vmatprep.subr.bf16.mxu0 0
    %1492 = vmatpush2.bf16.msra.mxu0 0
    %1493 = vmatprep.subr.bf16.mxu0 0
    %1494 = vmatpush2.bf16.msra.mxu0 0
    %1495 = vmatprep.mubr.bf16.mxu0 0
    %1496 = vmatmul.mubr.bf16.gmra.mxu0 %v1461
    %v1497 = vpop.f32.mrf.mxu0
    %v1498 = vadd.f32 0.0, %v1497
    %v1499 = vpop.f32.mrf.mxu0
    %v1500 = vpop.f32.mrf.mxu0
    %v1501 = vadd.f32 0.0, %v1500
    %v1502 = vpop.f32.mrf.mxu0
    %1503 = vdwg.mxu0
    %1504 = vrot.lane.b32.xlu0 %v818, 64
    %v1505 = vpop.permute.xlu0 %1504
    %v1508 = vsel %vm770, %v1456, 0
    %1510 = vmatprep.subr.bf16.mxu0 0
    %1511 = vmatpush1.bf16.msra.mxu0 0
    %1512 = vmatprep.subr.bf16.mxu0 0
    %1513 = vmatpush1.bf16.msra.mxu0 0
    %1514 = vmatprep.subr.bf16.mxu0 0
    %1515 = vmatpush1.bf16.msra.mxu0 0
    %1516 = vmatprep.subr.bf16.mxu0 0
    %1517 = vmatpush1.bf16.msra.mxu0 0
    %1518 = vmatprep.subr.bf16.mxu0 0
    %1519 = vmatpush1.bf16.msra.mxu0 0
    %1520 = vmatprep.subr.bf16.mxu0 0
    %1521 = vmatpush1.bf16.msra.mxu0 0
    %1522 = vmatprep.subr.bf16.mxu0 0
    %1523 = vmatpush1.bf16.msra.mxu0 0
    %1524 = vmatprep.subr.bf16.mxu0 0
    %1525 = vmatpush1.bf16.msra.mxu0 %v1505
    %1526 = vmatprep.subr.bf16.mxu0 0
    %1527 = vmatpush2.bf16.msra.mxu0 0
    %1528 = vmatprep.subr.bf16.mxu0 0
    %1529 = vmatpush2.bf16.msra.mxu0 0
    %1530 = vmatprep.subr.bf16.mxu0 0
    %1531 = vmatpush2.bf16.msra.mxu0 0
    %1532 = vmatprep.subr.bf16.mxu0 0
    %1533 = vmatpush2.bf16.msra.mxu0 0
    %1534 = vmatprep.subr.bf16.mxu0 0
    %1535 = vmatpush2.bf16.msra.mxu0 0
    %1536 = vmatprep.subr.bf16.mxu0 0
    %1537 = vmatpush2.bf16.msra.mxu0 0
    %1538 = vmatprep.subr.bf16.mxu0 0
    %1539 = vmatpush2.bf16.msra.mxu0 0
    %1540 = vmatprep.subr.bf16.mxu0 0
    %1541 = vmatpush2.bf16.msra.mxu0 0
    %1542 = vmatprep.mubr.bf16.mxu0 0
    %1543 = vmatmul.mubr.bf16.gmra.mxu0 %v1508
    %v1544 = vpop.f32.mrf.mxu0
    %v1545 = vadd.f32 0.0, %v1544
    %v1546 = vpop.f32.mrf.mxu0
    %v1547 = vpop.f32.mrf.mxu0
    %v1548 = vadd.f32 0.0, %v1547
    %v1549 = vpop.f32.mrf.mxu0
    %1550 = vdwg.mxu0
    %v1551 = vpack.c.bf16 %v1501, %v1498
    %v1552 = vpack.c.bf16 %v1548, %v1545
    %v1557 = vunpack.c.l.b16 %v394
    %v1558 = vunpack.c.l.b16 %v395
    %v1559 = vunpack.c.l.b16 %v396
    %v1560 = vunpack.c.l.b16 %v397
    %v1561 = vpack.c.b16 %v1558, %v1557
    %v1562 = vpack.c.b16 %v1560, %v1559
    %v1566 = vsel %vm655, %v1551, 0
    %v1569 = vsel %vm655, %v1552, 0
    %1571 = vmatprep.subr.bf16.mxu0 0
    %1572 = vmatpush1.bf16.msra.mxu0 0
    %1573 = vmatprep.subr.bf16.mxu0 0
    %1574 = vmatpush1.bf16.msra.mxu0 0
    %1575 = vmatprep.subr.bf16.mxu0 0
    %1576 = vmatpush1.bf16.msra.mxu0 0
    %1577 = vmatprep.subr.bf16.mxu0 0
    %1578 = vmatpush1.bf16.msra.mxu0 0
    %1579 = vmatprep.subr.bf16.mxu0 0
    %1580 = vmatpush1.bf16.msra.mxu0 0
    %1581 = vmatprep.subr.bf16.mxu0 0
    %1582 = vmatpush1.bf16.msra.mxu0 0
    %1583 = vmatprep.subr.bf16.mxu0 0
    %1584 = vmatpush1.bf16.msra.mxu0 %v1562
    %1585 = vmatprep.subr.bf16.mxu0 0
    %1586 = vmatpush1.bf16.msra.mxu0 %v1561
    %1587 = vmatprep.subr.bf16.mxu0 0
    %1588 = vmatpush2.bf16.msra.mxu0 0
    %1589 = vmatprep.subr.bf16.mxu0 0
    %1590 = vmatpush2.bf16.msra.mxu0 0
    %1591 = vmatprep.subr.bf16.mxu0 0
    %1592 = vmatpush2.bf16.msra.mxu0 0
    %1593 = vmatprep.subr.bf16.mxu0 0
    %1594 = vmatpush2.bf16.msra.mxu0 0
    %1595 = vmatprep.subr.bf16.mxu0 0
    %1596 = vmatpush2.bf16.msra.mxu0 0
    %1597 = vmatprep.subr.bf16.mxu0 0
    %1598 = vmatpush2.bf16.msra.mxu0 0
    %1599 = vmatprep.subr.bf16.mxu0 0
    %1600 = vmatpush2.bf16.msra.mxu0 0
    %1601 = vmatprep.subr.bf16.mxu0 0
    %1602 = vmatpush2.bf16.msra.mxu0 0
    %1603 = vmatprep.mubr.bf16.mxu0 0
    %1604 = vmatmul.mubr.bf16.gmra.mxu0 %v1566
    %v1605 = vpop.f32.mrf.mxu0
    %v1606 = vadd.f32 0.0, %v1605
    %v1607 = vpop.f32.mrf.mxu0
    %v1608 = vpop.f32.mrf.mxu0
    %v1609 = vadd.f32 0.0, %v1608
    %v1610 = vpop.f32.mrf.mxu0
    %1611 = vmatprep.mubr.bf16.mxu0 0
    %1612 = vmatmul.mubr.bf16.gmra.mxu0 %v1569
    %v1613 = vpop.f32.mrf.mxu0
    %v1614 = vadd.f32 0.0, %v1613
    %v1615 = vpop.f32.mrf.mxu0
    %v1616 = vpop.f32.mrf.mxu0
    %v1617 = vadd.f32 0.0, %v1616
    %v1618 = vpop.f32.mrf.mxu0
    %1619 = vdwg.mxu0
    %v1620 = vadd.f32 %v1287, %v1606
    %v1621 = vadd.f32 %v1290, %v1609
    %v1622 = vadd.f32 %v1295, %v1614
    %v1623 = vadd.f32 %v1298, %v1617
    %1624 = vrot.lane.b32.xlu0 %v651, 32
    %v1625 = vpop.permute.xlu0 %1624
    %1626 = vrot.lane.b32.xlu0 %v653, 32
    %v1627 = vpop.permute.xlu0 %1626
    %v1629 = vsel %vm655, %v1625, 0
    %v1632 = vsel %vm655, %v1627, 0
    %1634 = vmatprep.subr.bf16.mxu0 0
    %1635 = vmatpush1.bf16.xpose.msra.mxu0 0
    %1636 = vmatprep.subr.bf16.mxu0 0
    %1637 = vmatpush1.bf16.xpose.msra.mxu0 0
    %1638 = vmatprep.subr.bf16.mxu0 0
    %1639 = vmatpush1.bf16.xpose.msra.mxu0 0
    %1640 = vmatprep.subr.bf16.mxu0 0
    %1641 = vmatpush1.bf16.xpose.msra.mxu0 0
    %1642 = vmatprep.subr.bf16.mxu0 0
    %1643 = vmatpush1.bf16.xpose.msra.mxu0 0
    %1644 = vmatprep.subr.bf16.mxu0 0
    %1645 = vmatpush1.bf16.xpose.msra.mxu0 0
    %1646 = vmatprep.subr.bf16.mxu0 0
    %1647 = vmatpush1.bf16.xpose.msra.mxu0 0
    %1648 = vmatprep.subr.bf16.mxu0 0
    %1649 = vmatpush1.bf16.xpose.msra.mxu0 %v1632
    %1650 = vmatprep.subr.bf16.mxu0 0
    %1651 = vmatpush2.bf16.xpose.msra.mxu0 0
    %1652 = vmatprep.subr.bf16.mxu0 0
    %1653 = vmatpush2.bf16.xpose.msra.mxu0 0
    %1654 = vmatprep.subr.bf16.mxu0 0
    %1655 = vmatpush2.bf16.xpose.msra.mxu0 0
    %1656 = vmatprep.subr.bf16.mxu0 0
    %1657 = vmatpush2.bf16.xpose.msra.mxu0 0
    %1658 = vmatprep.subr.bf16.mxu0 0
    %1659 = vmatpush2.bf16.xpose.msra.mxu0 0
    %1660 = vmatprep.subr.bf16.mxu0 0
    %1661 = vmatpush2.bf16.xpose.msra.mxu0 0
    %1662 = vmatprep.subr.bf16.mxu0 0
    %1663 = vmatpush2.bf16.xpose.msra.mxu0 0
    %1664 = vmatprep.subr.bf16.mxu0 0
    %1665 = vmatpush2.bf16.xpose.msra.mxu0 0
    %1666 = vmatprep.mubr.bf16.mxu0 0
    %1667 = vmatmul.mubr.bf16.gmra.mxu0 %v1629
    %v1668 = vpop.f32.mrf.mxu0
    %v1669 = vadd.f32 0.0, %v1668
    %v1670 = vpop.f32.mrf.mxu0
    %v1671 = vpop.f32.mrf.mxu0
    %v1672 = vadd.f32 0.0, %v1671
    %v1673 = vpop.f32.mrf.mxu0
    %1674 = vdwg.mxu0
    %1675 = vrot.lane.b32.xlu0 %v652, 32
    %v1676 = vpop.permute.xlu0 %1675
    %1677 = vrot.lane.b32.xlu0 %v654, 32
    %v1678 = vpop.permute.xlu0 %1677
    %v1680 = vsel %vm655, %v1676, 0
    %v1683 = vsel %vm655, %v1678, 0
    %1685 = vmatprep.subr.bf16.mxu0 0
    %1686 = vmatpush1.bf16.xpose.msra.mxu0 0
    %1687 = vmatprep.subr.bf16.mxu0 0
    %1688 = vmatpush1.bf16.xpose.msra.mxu0 0
    %1689 = vmatprep.subr.bf16.mxu0 0
    %1690 = vmatpush1.bf16.xpose.msra.mxu0 0
    %1691 = vmatprep.subr.bf16.mxu0 0
    %1692 = vmatpush1.bf16.xpose.msra.mxu0 0
    %1693 = vmatprep.subr.bf16.mxu0 0
    %1694 = vmatpush1.bf16.xpose.msra.mxu0 0
    %1695 = vmatprep.subr.bf16.mxu0 0
    %1696 = vmatpush1.bf16.xpose.msra.mxu0 0
    %1697 = vmatprep.subr.bf16.mxu0 0
    %1698 = vmatpush1.bf16.xpose.msra.mxu0 0
    %1699 = vmatprep.subr.bf16.mxu0 0
    %1700 = vmatpush1.bf16.xpose.msra.mxu0 %v1683
    %1701 = vmatprep.subr.bf16.mxu0 0
    %1702 = vmatpush2.bf16.xpose.msra.mxu0 0
    %1703 = vmatprep.subr.bf16.mxu0 0
    %1704 = vmatpush2.bf16.xpose.msra.mxu0 0
    %1705 = vmatprep.subr.bf16.mxu0 0
    %1706 = vmatpush2.bf16.xpose.msra.mxu0 0
    %1707 = vmatprep.subr.bf16.mxu0 0
    %1708 = vmatpush2.bf16.xpose.msra.mxu0 0
    %1709 = vmatprep.subr.bf16.mxu0 0
    %1710 = vmatpush2.bf16.xpose.msra.mxu0 0
    %1711 = vmatprep.subr.bf16.mxu0 0
    %1712 = vmatpush2.bf16.xpose.msra.mxu0 0
    %1713 = vmatprep.subr.bf16.mxu0 0
    %1714 = vmatpush2.bf16.xpose.msra.mxu0 0
    %1715 = vmatprep.subr.bf16.mxu0 0
    %1716 = vmatpush2.bf16.xpose.msra.mxu0 0
    %1717 = vmatprep.mubr.bf16.mxu0 0
    %1718 = vmatmul.mubr.bf16.gmra.mxu0 %v1680
    %v1719 = vpop.f32.mrf.mxu0
    %v1720 = vadd.f32 0.0, %v1719
    %v1721 = vpop.f32.mrf.mxu0
    %v1722 = vpop.f32.mrf.mxu0
    %v1723 = vadd.f32 0.0, %v1722
    %v1724 = vpop.f32.mrf.mxu0
    %1725 = vdwg.mxu0
    %v1726 = vmul.f32 %v1669, 0.17677669
    %v1727 = vmul.f32 %v1672, 0.17677669
    %v1728 = vmul.f32 %v1720, 0.17677669
    %v1729 = vmul.f32 %v1723, 0.17677669
    %v1730 = vadd.f32 %v1726, %v759
    %v1731 = vadd.f32 %v1727, %v759
    %v1732 = vadd.f32 %v1728, %v763
    %v1733 = vadd.f32 %v1729, %v763
    %v1734 = vsel %vm770, %v1730, -inf
    %1735 = vmax.xlane.f32.xlu0 %v1734
    %v1736 = vpop.xlane.xlu0 %1735
    %v1737 = vsel %vm770, %v1731, -inf
    %1738 = vmax.xlane.f32.xlu0 %v1737
    %v1739 = vpop.xlane.xlu0 %1738
    %v1740 = vsel %vm770, %v1732, -inf
    %1741 = vmax.xlane.f32.xlu0 %v1740
    %v1742 = vpop.xlane.xlu0 %1741
    %v1743 = vsel %vm770, %v1733, -inf
    %1744 = vmax.xlane.f32.xlu0 %v1743
    %v1745 = vpop.xlane.xlu0 %1744
    %v1746 = vsub.f32 %v1730, %v1736
    %v1747 = vsub.f32 %v1731, %v1739
    %v1748 = vsub.f32 %v1732, %v1742
    %v1749 = vsub.f32 %v1733, %v1745
    %v1750 = vmul.f32 %v1746, 1.442695
    %v1751 = vpow.pop %v1750
    %v1752 = vmul.f32 %v1747, 1.442695
    %v1753 = vpow.pop %v1752
    %v1754 = vmul.f32 %v1748, 1.442695
    %v1755 = vpow.pop %v1754
    %v1756 = vmul.f32 %v1749, 1.442695
    %v1757 = vpow.pop %v1756
    %v1758 = vsel %vm770, %v1751, 0.0
    %1759 = vadd.xlane.f32.xlu0 %v1758
    %v1760 = vpop.xlane.xlu0 %1759
    %v1761 = vsel %vm770, %v1753, 0.0
    %1762 = vadd.xlane.f32.xlu0 %v1761
    %v1763 = vpop.xlane.xlu0 %1762
    %v1764 = vsel %vm770, %v1755, 0.0
    %1765 = vadd.xlane.f32.xlu0 %v1764
    %v1766 = vpop.xlane.xlu0 %1765
    %v1767 = vsel %vm770, %v1757, 0.0
    %1768 = vadd.xlane.f32.xlu0 %v1767
    %v1769 = vpop.xlane.xlu0 %1768
    %v1770 = vrcp.pop %v1760
    %v1771 = vrcp.pop %v1763
    %v1772 = vrcp.pop %v1766
    %v1773 = vrcp.pop %v1769
    %v1774 = vmul.f32 %v1751, %v1770
    %v1775 = vmul.f32 %v1753, %v1771
    %v1776 = vmul.f32 %v1755, %v1772
    %v1777 = vmul.f32 %v1757, %v1773
    %v1778 = vpack.c.bf16 %v1775, %v1774
    %v1779 = vpack.c.bf16 %v1777, %v1776
    %1780 = vrot.lane.b32.xlu0 %v817, 32
    %v1781 = vpop.permute.xlu0 %1780
    %v1784 = vsel %vm770, %v1778, 0
    %1786 = vmatprep.subr.bf16.mxu0 0
    %1787 = vmatpush1.bf16.msra.mxu0 0
    %1788 = vmatprep.subr.bf16.mxu0 0
    %1789 = vmatpush1.bf16.msra.mxu0 0
    %1790 = vmatprep.subr.bf16.mxu0 0
    %1791 = vmatpush1.bf16.msra.mxu0 0
    %1792 = vmatprep.subr.bf16.mxu0 0
    %1793 = vmatpush1.bf16.msra.mxu0 0
    %1794 = vmatprep.subr.bf16.mxu0 0
    %1795 = vmatpush1.bf16.msra.mxu0 0
    %1796 = vmatprep.subr.bf16.mxu0 0
    %1797 = vmatpush1.bf16.msra.mxu0 0
    %1798 = vmatprep.subr.bf16.mxu0 0
    %1799 = vmatpush1.bf16.msra.mxu0 0
    %1800 = vmatprep.subr.bf16.mxu0 0
    %1801 = vmatpush1.bf16.msra.mxu0 %v1781
    %1802 = vmatprep.subr.bf16.mxu0 0
    %1803 = vmatpush2.bf16.msra.mxu0 0
    %1804 = vmatprep.subr.bf16.mxu0 0
    %1805 = vmatpush2.bf16.msra.mxu0 0
    %1806 = vmatprep.subr.bf16.mxu0 0
    %1807 = vmatpush2.bf16.msra.mxu0 0
    %1808 = vmatprep.subr.bf16.mxu0 0
    %1809 = vmatpush2.bf16.msra.mxu0 0
    %1810 = vmatprep.subr.bf16.mxu0 0
    %1811 = vmatpush2.bf16.msra.mxu0 0
    %1812 = vmatprep.subr.bf16.mxu0 0
    %1813 = vmatpush2.bf16.msra.mxu0 0
    %1814 = vmatprep.subr.bf16.mxu0 0
    %1815 = vmatpush2.bf16.msra.mxu0 0
    %1816 = vmatprep.subr.bf16.mxu0 0
    %1817 = vmatpush2.bf16.msra.mxu0 0
    %1818 = vmatprep.mubr.bf16.mxu0 0
    %1819 = vmatmul.mubr.bf16.gmra.mxu0 %v1784
    %v1820 = vpop.f32.mrf.mxu0
    %v1821 = vadd.f32 0.0, %v1820
    %v1822 = vpop.f32.mrf.mxu0
    %v1823 = vpop.f32.mrf.mxu0
    %v1824 = vadd.f32 0.0, %v1823
    %v1825 = vpop.f32.mrf.mxu0
    %1826 = vdwg.mxu0
    %1827 = vrot.lane.b32.xlu0 %v818, 32
    %v1828 = vpop.permute.xlu0 %1827
    %v1831 = vsel %vm770, %v1779, 0
    %1833 = vmatprep.subr.bf16.mxu0 0
    %1834 = vmatpush1.bf16.msra.mxu0 0
    %1835 = vmatprep.subr.bf16.mxu0 0
    %1836 = vmatpush1.bf16.msra.mxu0 0
    %1837 = vmatprep.subr.bf16.mxu0 0
    %1838 = vmatpush1.bf16.msra.mxu0 0
    %1839 = vmatprep.subr.bf16.mxu0 0
    %1840 = vmatpush1.bf16.msra.mxu0 0
    %1841 = vmatprep.subr.bf16.mxu0 0
    %1842 = vmatpush1.bf16.msra.mxu0 0
    %1843 = vmatprep.subr.bf16.mxu0 0
    %1844 = vmatpush1.bf16.msra.mxu0 0
    %1845 = vmatprep.subr.bf16.mxu0 0
    %1846 = vmatpush1.bf16.msra.mxu0 0
    %1847 = vmatprep.subr.bf16.mxu0 0
    %1848 = vmatpush1.bf16.msra.mxu0 %v1828
    %1849 = vmatprep.subr.bf16.mxu0 0
    %1850 = vmatpush2.bf16.msra.mxu0 0
    %1851 = vmatprep.subr.bf16.mxu0 0
    %1852 = vmatpush2.bf16.msra.mxu0 0
    %1853 = vmatprep.subr.bf16.mxu0 0
    %1854 = vmatpush2.bf16.msra.mxu0 0
    %1855 = vmatprep.subr.bf16.mxu0 0
    %1856 = vmatpush2.bf16.msra.mxu0 0
    %1857 = vmatprep.subr.bf16.mxu0 0
    %1858 = vmatpush2.bf16.msra.mxu0 0
    %1859 = vmatprep.subr.bf16.mxu0 0
    %1860 = vmatpush2.bf16.msra.mxu0 0
    %1861 = vmatprep.subr.bf16.mxu0 0
    %1862 = vmatpush2.bf16.msra.mxu0 0
    %1863 = vmatprep.subr.bf16.mxu0 0
    %1864 = vmatpush2.bf16.msra.mxu0 0
    %1865 = vmatprep.mubr.bf16.mxu0 0
    %1866 = vmatmul.mubr.bf16.gmra.mxu0 %v1831
    %v1867 = vpop.f32.mrf.mxu0
    %v1868 = vadd.f32 0.0, %v1867
    %v1869 = vpop.f32.mrf.mxu0
    %v1870 = vpop.f32.mrf.mxu0
    %v1871 = vadd.f32 0.0, %v1870
    %v1872 = vpop.f32.mrf.mxu0
    %1873 = vdwg.mxu0
    %v1874 = vpack.c.bf16 %v1824, %v1821
    %v1875 = vpack.c.bf16 %v1871, %v1868
    %v1880 = vunpack.c.l.b16 %v398
    %v1881 = vunpack.c.l.b16 %v399
    %v1882 = vunpack.c.l.b16 %v400
    %v1883 = vunpack.c.l.b16 %v401
    %v1884 = vpack.c.b16 %v1881, %v1880
    %v1885 = vpack.c.b16 %v1883, %v1882
    %v1889 = vsel %vm655, %v1874, 0
    %v1892 = vsel %vm655, %v1875, 0
    %1894 = vmatprep.subr.bf16.mxu0 0
    %1895 = vmatpush1.bf16.msra.mxu0 0
    %1896 = vmatprep.subr.bf16.mxu0 0
    %1897 = vmatpush1.bf16.msra.mxu0 0
    %1898 = vmatprep.subr.bf16.mxu0 0
    %1899 = vmatpush1.bf16.msra.mxu0 0
    %1900 = vmatprep.subr.bf16.mxu0 0
    %1901 = vmatpush1.bf16.msra.mxu0 0
    %1902 = vmatprep.subr.bf16.mxu0 0
    %1903 = vmatpush1.bf16.msra.mxu0 0
    %1904 = vmatprep.subr.bf16.mxu0 0
    %1905 = vmatpush1.bf16.msra.mxu0 0
    %1906 = vmatprep.subr.bf16.mxu0 0
    %1907 = vmatpush1.bf16.msra.mxu0 %v1885
    %1908 = vmatprep.subr.bf16.mxu0 0
    %1909 = vmatpush1.bf16.msra.mxu0 %v1884
    %1910 = vmatprep.subr.bf16.mxu0 0
    %1911 = vmatpush2.bf16.msra.mxu0 0
    %1912 = vmatprep.subr.bf16.mxu0 0
    %1913 = vmatpush2.bf16.msra.mxu0 0
    %1914 = vmatprep.subr.bf16.mxu0 0
    %1915 = vmatpush2.bf16.msra.mxu0 0
    %1916 = vmatprep.subr.bf16.mxu0 0
    %1917 = vmatpush2.bf16.msra.mxu0 0
    %1918 = vmatprep.subr.bf16.mxu0 0
    %1919 = vmatpush2.bf16.msra.mxu0 0
    %1920 = vmatprep.subr.bf16.mxu0 0
    %1921 = vmatpush2.bf16.msra.mxu0 0
    %1922 = vmatprep.subr.bf16.mxu0 0
    %1923 = vmatpush2.bf16.msra.mxu0 0
    %1924 = vmatprep.subr.bf16.mxu0 0
    %1925 = vmatpush2.bf16.msra.mxu0 0
    %1926 = vmatprep.mubr.bf16.mxu0 0
    %1927 = vmatmul.mubr.bf16.gmra.mxu0 %v1889
    %v1928 = vpop.f32.mrf.mxu0
    %v1929 = vadd.f32 0.0, %v1928
    %v1930 = vpop.f32.mrf.mxu0
    %v1931 = vpop.f32.mrf.mxu0
    %v1932 = vadd.f32 0.0, %v1931
    %v1933 = vpop.f32.mrf.mxu0
    %1934 = vmatprep.mubr.bf16.mxu0 0
    %1935 = vmatmul.mubr.bf16.gmra.mxu0 %v1892
    %v1936 = vpop.f32.mrf.mxu0
    %v1937 = vadd.f32 0.0, %v1936
    %v1938 = vpop.f32.mrf.mxu0
    %v1939 = vpop.f32.mrf.mxu0
    %v1940 = vadd.f32 0.0, %v1939
    %v1941 = vpop.f32.mrf.mxu0
    %1942 = vdwg.mxu0
    %v1943 = vadd.f32 %v1620, %v1929
    %v1944 = vadd.f32 %v1621, %v1932
    %v1945 = vadd.f32 %v1622, %v1937
    %v1946 = vadd.f32 %v1623, %v1940
    %v1947 = vadd.f32 %v349, %v1943
    %v1948 = vadd.f32 %v350, %v1944
    %v1949 = vadd.f32 %v351, %v1945
    %v1950 = vadd.f32 %v352, %v1946
    %v1952 = vlaneseq
    %v1953 = vshrl.u32 %v1952, 7
    %v1954 = vsub.s32 0, %v1953
    %v1955 = vrot.slane %v402, %v1954
    %v1957 = vadd.f32 %v1947, %v1955
    %v1958 = vadd.f32 %v1948, %v1955
    %v1959 = vadd.f32 %v1949, %v1955
    %v1960 = vadd.f32 %v1950, %v1955
    %v1961 = vld [vmem:[%s17] sm:$0x1]
    %v1962 = vld [vmem:[%s19] sm:$0x1]
    %1963 = vadd.xlane.f32.xlu0 %v1957
    %v1964 = vpop.xlane.xlu0 %1963
    %1965 = vadd.xlane.f32.xlu0 %v1958
    %v1966 = vpop.xlane.xlu0 %1965
    %1967 = vadd.xlane.f32.xlu0 %v1959
    %v1968 = vpop.xlane.xlu0 %1967
    %1969 = vadd.xlane.f32.xlu0 %v1960
    %v1970 = vpop.xlane.xlu0 %1969
    %v1971 = vmul.f32 %v1964, %v296
    %v1972 = vmul.f32 %v1966, %v296
    %v1973 = vmul.f32 %v1968, %v296
    %v1974 = vmul.f32 %v1970, %v296
    %v1975 = vsub.f32 %v1957, %v1971
    %v1976 = vsub.f32 %v1958, %v1972
    %v1977 = vsub.f32 %v1959, %v1973
    %v1978 = vsub.f32 %v1960, %v1974
    %v1979 = vmul.f32 %v1975, %v1975
    %v1980 = vmul.f32 %v1976, %v1976
    %v1981 = vmul.f32 %v1977, %v1977
    %v1982 = vmul.f32 %v1978, %v1978
    %1983 = vadd.xlane.f32.xlu0 %v1979
    %v1984 = vpop.xlane.xlu0 %1983
    %1985 = vadd.xlane.f32.xlu0 %v1980
    %v1986 = vpop.xlane.xlu0 %1985
    %1987 = vadd.xlane.f32.xlu0 %v1981
    %v1988 = vpop.xlane.xlu0 %1987
    %1989 = vadd.xlane.f32.xlu0 %v1982
    %v1990 = vpop.xlane.xlu0 %1989
    %v1991 = vmul.f32 %v1984, %v296
    %v1992 = vmul.f32 %v1986, %v296
    %v1993 = vmul.f32 %v1988, %v296
    %v1994 = vmul.f32 %v1990, %v296
    %v1995 = vadd.f32 %v1991, 1e-12
    %v1996 = vadd.f32 %v1992, 1e-12
    %v1997 = vadd.f32 %v1993, 1e-12
    %v1998 = vadd.f32 %v1994, 1e-12
    %v1999 = vrsqrt.pop %v1995
    %v2000 = vrsqrt.pop %v1996
    %v2001 = vrsqrt.pop %v1997
    %v2002 = vrsqrt.pop %v1998
    %v2003 = vmul.f32 %v1975, %v1999
    %v2004 = vmul.f32 %v1976, %v2000
    %v2005 = vmul.f32 %v1977, %v2001
    %v2006 = vmul.f32 %v1978, %v2002
    %v2008 = vlaneseq
    %v2009 = vshrl.u32 %v2008, 7
    %v2010 = vsub.s32 0, %v2009
    %v2011 = vrot.slane %v1961, %v2010
    %v2013 = vmul.f32 %v2003, %v2011
    %v2014 = vmul.f32 %v2004, %v2011
    %v2015 = vmul.f32 %v2005, %v2011
    %v2016 = vmul.f32 %v2006, %v2011
    %v2018 = vlaneseq
    %v2019 = vshrl.u32 %v2018, 7
    %v2020 = vsub.s32 0, %v2019
    %v2021 = vrot.slane %v1962, %v2020
    %v2023 = vadd.f32 %v2013, %v2021
    %v2024 = vadd.f32 %v2014, %v2021
    %v2025 = vadd.f32 %v2015, %v2021
    %v2026 = vadd.f32 %v2016, %v2021
    %v2027 = vld [vmem:[#allocation5] sm:$0xff]
    %v2028 = vld [vmem:[#allocation5 + $0x8] sm:$0xff]
    %v2029 = vld [vmem:[#allocation5 + $0x10] sm:$0xff]
    %v2030 = vld [vmem:[#allocation5 + $0x18] sm:$0xff]
    %v2031 = vld [vmem:[#allocation5 + $0x20] sm:$0xff]
    %v2032 = vld [vmem:[#allocation5 + $0x28] sm:$0xff]
    %v2033 = vld [vmem:[#allocation5 + $0x30] sm:$0xff]
    %v2034 = vld [vmem:[#allocation5 + $0x38] sm:$0xff]
    %v2035 = vld [vmem:[#allocation5 + $0x40] sm:$0xff]
    %v2036 = vld [vmem:[#allocation5 + $0x48] sm:$0xff]
    %v2037 = vld [vmem:[#allocation5 + $0x50] sm:$0xff]
    %v2038 = vld [vmem:[#allocation5 + $0x58] sm:$0xff]
    %v2039 = vld [vmem:[#allocation5 + $0x60] sm:$0xff]
    %v2040 = vld [vmem:[#allocation5 + $0x68] sm:$0xff]
    %v2041 = vld [vmem:[#allocation5 + $0x70] sm:$0xff]
    %v2042 = vld [vmem:[#allocation5 + $0x78] sm:$0xff]
    %v2043 = vld [vmem:[#allocation5 + $0x80] sm:$0xff]
    %v2044 = vld [vmem:[#allocation5 + $0x88] sm:$0xff]
    %v2045 = vld [vmem:[#allocation5 + $0x90] sm:$0xff]
    %v2046 = vld [vmem:[#allocation5 + $0x98] sm:$0xff]
    %v2047 = vld [vmem:[#allocation5 + $0xa0] sm:$0xff]
    %v2048 = vld [vmem:[#allocation5 + $0xa8] sm:$0xff]
    %v2049 = vld [vmem:[#allocation5 + $0xb0] sm:$0xff]
    %v2050 = vld [vmem:[#allocation5 + $0xb8] sm:$0xff]
    %v2051 = vld [vmem:[#allocation5 + $0xc0] sm:$0xff]
    %v2052 = vld [vmem:[#allocation5 + $0xc8] sm:$0xff]
    %v2053 = vld [vmem:[#allocation5 + $0xd0] sm:$0xff]
    %v2054 = vld [vmem:[#allocation5 + $0xd8] sm:$0xff]
    %v2055 = vld [vmem:[#allocation5 + $0xe0] sm:$0xff]
    %v2056 = vld [vmem:[#allocation5 + $0xe8] sm:$0xff]
    %v2057 = vld [vmem:[#allocation5 + $0xf0] sm:$0xff]
    %v2058 = vld [vmem:[#allocation5 + $0xf8] sm:$0xff]
    %v2059 = vpack.c.bf16 %v2024, %v2023
    %v2060 = vpack.c.bf16 %v2026, %v2025
    %v2061 = vld [vmem:[%s23] sm:$0xf]
    %v2063 = vlaneseq
    %v2064 = vshrl.u32 %v2063, 7
    %v2065 = vsub.s32 0, %v2064
    %v2066 = vrot.slane %v2061, %v2065
    %v2067 = vlaneseq
    %v2068 = vshrl.u32 %v2067, 7
    %v2069 = vsub.s32 1, %v2068
    %v2070 = vrot.slane %v2061, %v2069
    %v2071 = vlaneseq
    %v2072 = vshrl.u32 %v2071, 7
    %v2073 = vsub.s32 2, %v2072
    %v2074 = vrot.slane %v2061, %v2073
    %v2075 = vlaneseq
    %v2076 = vshrl.u32 %v2075, 7
    %v2077 = vsub.s32 3, %v2076
    %v2078 = vrot.slane %v2061, %v2077
    %v2115 = vunpack.c.l.b16 %v2027
    %v2116 = vunpack.c.h.b16 %v2027
    %v2117 = vunpack.c.l.b16 %v2028
    %v2118 = vunpack.c.h.b16 %v2028
    %v2119 = vunpack.c.l.b16 %v2029
    %v2120 = vunpack.c.h.b16 %v2029
    %v2121 = vunpack.c.l.b16 %v2030
    %v2122 = vunpack.c.h.b16 %v2030
    %v2123 = vunpack.c.l.b16 %v2031
    %v2124 = vunpack.c.h.b16 %v2031
    %v2125 = vunpack.c.l.b16 %v2032
    %v2126 = vunpack.c.h.b16 %v2032
    %v2127 = vunpack.c.l.b16 %v2033
    %v2128 = vunpack.c.h.b16 %v2033
    %v2129 = vunpack.c.l.b16 %v2034
    %v2130 = vunpack.c.h.b16 %v2034
    %v2131 = vunpack.c.l.b16 %v2035
    %v2132 = vunpack.c.h.b16 %v2035
    %v2133 = vunpack.c.l.b16 %v2036
    %v2134 = vunpack.c.h.b16 %v2036
    %v2135 = vunpack.c.l.b16 %v2037
    %v2136 = vunpack.c.h.b16 %v2037
    %v2137 = vunpack.c.l.b16 %v2038
    %v2138 = vunpack.c.h.b16 %v2038
    %v2139 = vunpack.c.l.b16 %v2039
    %v2140 = vunpack.c.h.b16 %v2039
    %v2141 = vunpack.c.l.b16 %v2040
    %v2142 = vunpack.c.h.b16 %v2040
    %v2143 = vunpack.c.l.b16 %v2041
    %v2144 = vunpack.c.h.b16 %v2041
    %v2145 = vunpack.c.l.b16 %v2042
    %v2146 = vunpack.c.h.b16 %v2042
    %v2147 = vunpack.c.l.b16 %v2043
    %v2148 = vunpack.c.h.b16 %v2043
    %v2149 = vunpack.c.l.b16 %v2044
    %v2150 = vunpack.c.h.b16 %v2044
    %v2151 = vunpack.c.l.b16 %v2045
    %v2152 = vunpack.c.h.b16 %v2045
    %v2153 = vunpack.c.l.b16 %v2046
    %v2154 = vunpack.c.h.b16 %v2046
    %v2155 = vunpack.c.l.b16 %v2047
    %v2156 = vunpack.c.h.b16 %v2047
    %v2157 = vunpack.c.l.b16 %v2048
    %v2158 = vunpack.c.h.b16 %v2048
    %v2159 = vunpack.c.l.b16 %v2049
    %v2160 = vunpack.c.h.b16 %v2049
    %v2161 = vunpack.c.l.b16 %v2050
    %v2162 = vunpack.c.h.b16 %v2050
    %v2163 = vunpack.c.l.b16 %v2051
    %v2164 = vunpack.c.h.b16 %v2051
    %v2165 = vunpack.c.l.b16 %v2052
    %v2166 = vunpack.c.h.b16 %v2052
    %v2167 = vunpack.c.l.b16 %v2053
    %v2168 = vunpack.c.h.b16 %v2053
    %v2169 = vunpack.c.l.b16 %v2054
    %v2170 = vunpack.c.h.b16 %v2054
    %v2171 = vunpack.c.l.b16 %v2055
    %v2172 = vunpack.c.h.b16 %v2055
    %v2173 = vunpack.c.l.b16 %v2056
    %v2174 = vunpack.c.h.b16 %v2056
    %v2175 = vunpack.c.l.b16 %v2057
    %v2176 = vunpack.c.h.b16 %v2057
    %v2177 = vunpack.c.l.b16 %v2058
    %v2178 = vunpack.c.h.b16 %v2058
    %v2179 = vpack.c.b16 %v2119, %v2115
    %v2180 = vpack.c.b16 %v2120, %v2116
    %v2181 = vpack.c.b16 %v2121, %v2117
    %v2182 = vpack.c.b16 %v2122, %v2118
    %v2183 = vpack.c.b16 %v2127, %v2123
    %v2184 = vpack.c.b16 %v2128, %v2124
    %v2185 = vpack.c.b16 %v2129, %v2125
    %v2186 = vpack.c.b16 %v2130, %v2126
    %v2187 = vpack.c.b16 %v2135, %v2131
    %v2188 = vpack.c.b16 %v2136, %v2132
    %v2189 = vpack.c.b16 %v2137, %v2133
    %v2190 = vpack.c.b16 %v2138, %v2134
    %v2191 = vpack.c.b16 %v2143, %v2139
    %v2192 = vpack.c.b16 %v2144, %v2140
    %v2193 = vpack.c.b16 %v2145, %v2141
    %v2194 = vpack.c.b16 %v2146, %v2142
    %v2195 = vpack.c.b16 %v2151, %v2147
    %v2196 = vpack.c.b16 %v2152, %v2148
    %v2197 = vpack.c.b16 %v2153, %v2149
    %v2198 = vpack.c.b16 %v2154, %v2150
    %v2199 = vpack.c.b16 %v2159, %v2155
    %v2200 = vpack.c.b16 %v2160, %v2156
    %v2201 = vpack.c.b16 %v2161, %v2157
    %v2202 = vpack.c.b16 %v2162, %v2158
    %v2203 = vpack.c.b16 %v2167, %v2163
    %v2204 = vpack.c.b16 %v2168, %v2164
    %v2205 = vpack.c.b16 %v2169, %v2165
    %v2206 = vpack.c.b16 %v2170, %v2166
    %v2207 = vpack.c.b16 %v2175, %v2171
    %v2208 = vpack.c.b16 %v2176, %v2172
    %v2209 = vpack.c.b16 %v2177, %v2173
    %v2210 = vpack.c.b16 %v2178, %v2174
    %2243 = vmatprep.subr.bf16.mxu0 %v2208
    %2244 = vmatpush1.bf16.msra.mxu0 %v2207
    %2245 = vmatprep.subr.bf16.mxu0 %v2204
    %2246 = vmatpush1.bf16.msra.mxu0 %v2203
    %2247 = vmatprep.subr.bf16.mxu0 %v2200
    %2248 = vmatpush1.bf16.msra.mxu0 %v2199
    %2249 = vmatprep.subr.bf16.mxu0 %v2196
    %2250 = vmatpush1.bf16.msra.mxu0 %v2195
    %2251 = vmatprep.subr.bf16.mxu0 %v2192
    %2252 = vmatpush1.bf16.msra.mxu0 %v2191
    %2253 = vmatprep.subr.bf16.mxu0 %v2188
    %2254 = vmatpush1.bf16.msra.mxu0 %v2187
    %2255 = vmatprep.subr.bf16.mxu0 %v2184
    %2256 = vmatpush1.bf16.msra.mxu0 %v2183
    %2257 = vmatprep.subr.bf16.mxu0 %v2180
    %2258 = vmatpush1.bf16.msra.mxu0 %v2179
    %2259 = vmatprep.subr.bf16.mxu0 0
    %2260 = vmatpush2.bf16.msra.mxu0 0
    %2261 = vmatprep.subr.bf16.mxu0 0
    %2262 = vmatpush2.bf16.msra.mxu0 0
    %2263 = vmatprep.subr.bf16.mxu0 0
    %2264 = vmatpush2.bf16.msra.mxu0 0
    %2265 = vmatprep.subr.bf16.mxu0 0
    %2266 = vmatpush2.bf16.msra.mxu0 0
    %2267 = vmatprep.subr.bf16.mxu0 0
    %2268 = vmatpush2.bf16.msra.mxu0 0
    %2269 = vmatprep.subr.bf16.mxu0 0
    %2270 = vmatpush2.bf16.msra.mxu0 0
    %2271 = vmatprep.subr.bf16.mxu0 0
    %2272 = vmatpush2.bf16.msra.mxu0 0
    %2273 = vmatprep.subr.bf16.mxu0 0
    %2274 = vmatpush2.bf16.msra.mxu0 0
    %2275 = vmatprep.mubr.bf16.mxu0 0
    %2276 = vmatmul.mubr.bf16.gmra.mxu0 %v2059
    %v2277 = vpop.f32.mrf.mxu0
    %v2278 = vadd.f32 %v2066, %v2277
    %v2279 = vpop.f32.mrf.mxu0
    %v2280 = vadd.f32 %v2070, %v2279
    %v2281 = vpop.f32.mrf.mxu0
    %v2282 = vadd.f32 %v2066, %v2281
    %v2283 = vpop.f32.mrf.mxu0
    %v2284 = vadd.f32 %v2070, %v2283
    %2285 = vmatprep.mubr.bf16.mxu0 0
    %2286 = vmatmul.mubr.bf16.gmra.mxu0 %v2060
    %v2287 = vpop.f32.mrf.mxu0
    %v2288 = vadd.f32 %v2066, %v2287
    %v2289 = vpop.f32.mrf.mxu0
    %v2290 = vadd.f32 %v2070, %v2289
    %v2291 = vpop.f32.mrf.mxu0
    %v2292 = vadd.f32 %v2066, %v2291
    %v2293 = vpop.f32.mrf.mxu0
    %v2294 = vadd.f32 %v2070, %v2293
    %2295 = vdwg.mxu0
    %2296 = vmatprep.subr.bf16.mxu0 %v2210
    %2297 = vmatpush1.bf16.msra.mxu0 %v2209
    %2298 = vmatprep.subr.bf16.mxu0 %v2206
    %2299 = vmatpush1.bf16.msra.mxu0 %v2205
    %2300 = vmatprep.subr.bf16.mxu0 %v2202
    %2301 = vmatpush1.bf16.msra.mxu0 %v2201
    %2302 = vmatprep.subr.bf16.mxu0 %v2198
    %2303 = vmatpush1.bf16.msra.mxu0 %v2197
    %2304 = vmatprep.subr.bf16.mxu0 %v2194
    %2305 = vmatpush1.bf16.msra.mxu0 %v2193
    %2306 = vmatprep.subr.bf16.mxu0 %v2190
    %2307 = vmatpush1.bf16.msra.mxu0 %v2189
    %2308 = vmatprep.subr.bf16.mxu0 %v2186
    %2309 = vmatpush1.bf16.msra.mxu0 %v2185
    %2310 = vmatprep.subr.bf16.mxu0 %v2182
    %2311 = vmatpush1.bf16.msra.mxu0 %v2181
    %2312 = vmatprep.subr.bf16.mxu0 0
    %2313 = vmatpush2.bf16.msra.mxu0 0
    %2314 = vmatprep.subr.bf16.mxu0 0
    %2315 = vmatpush2.bf16.msra.mxu0 0
    %2316 = vmatprep.subr.bf16.mxu0 0
    %2317 = vmatpush2.bf16.msra.mxu0 0
    %2318 = vmatprep.subr.bf16.mxu0 0
    %2319 = vmatpush2.bf16.msra.mxu0 0
    %2320 = vmatprep.subr.bf16.mxu0 0
    %2321 = vmatpush2.bf16.msra.mxu0 0
    %2322 = vmatprep.subr.bf16.mxu0 0
    %2323 = vmatpush2.bf16.msra.mxu0 0
    %2324 = vmatprep.subr.bf16.mxu0 0
    %2325 = vmatpush2.bf16.msra.mxu0 0
    %2326 = vmatprep.subr.bf16.mxu0 0
    %2327 = vmatpush2.bf16.msra.mxu0 0
    %2328 = vmatprep.mubr.bf16.mxu0 0
    %2329 = vmatmul.mubr.bf16.gmra.mxu0 %v2059
    %v2330 = vpop.f32.mrf.mxu0
    %v2331 = vadd.f32 %v2074, %v2330
    %v2332 = vpop.f32.mrf.mxu0
    %v2333 = vadd.f32 %v2078, %v2332
    %v2334 = vpop.f32.mrf.mxu0
    %v2335 = vadd.f32 %v2074, %v2334
    %v2336 = vpop.f32.mrf.mxu0
    %v2337 = vadd.f32 %v2078, %v2336
    %2338 = vmatprep.mubr.bf16.mxu0 0
    %2339 = vmatmul.mubr.bf16.gmra.mxu0 %v2060
    %v2340 = vpop.f32.mrf.mxu0
    %v2341 = vadd.f32 %v2074, %v2340
    %v2342 = vpop.f32.mrf.mxu0
    %v2343 = vadd.f32 %v2078, %v2342
    %v2344 = vpop.f32.mrf.mxu0
    %v2345 = vadd.f32 %v2074, %v2344
    %v2346 = vpop.f32.mrf.mxu0
    %v2347 = vadd.f32 %v2078, %v2346
    %2348 = vdwg.mxu0
    %v2349 = vmul.f32 %v2278, 0.5
    %v2350 = vmul.f32 %v2280, 0.5
    %v2351 = vmul.f32 %v2331, 0.5
    %v2352 = vmul.f32 %v2333, 0.5
    %v2353 = vmul.f32 %v2282, 0.5
    %v2354 = vmul.f32 %v2284, 0.5
    %v2355 = vmul.f32 %v2335, 0.5
    %v2356 = vmul.f32 %v2337, 0.5
    %v2357 = vmul.f32 %v2288, 0.5
    %v2358 = vmul.f32 %v2290, 0.5
    %v2359 = vmul.f32 %v2341, 0.5
    %v2360 = vmul.f32 %v2343, 0.5
    %v2361 = vmul.f32 %v2292, 0.5
    %v2362 = vmul.f32 %v2294, 0.5
    %v2363 = vmul.f32 %v2345, 0.5
    %v2364 = vmul.f32 %v2347, 0.5
    %v2365 = vmul.f32 %v2278, 0.044715
    %v2366 = vmul.f32 %v2280, 0.044715
    %v2367 = vmul.f32 %v2331, 0.044715
    %v2368 = vmul.f32 %v2333, 0.044715
    %v2369 = vmul.f32 %v2282, 0.044715
    %v2370 = vmul.f32 %v2284, 0.044715
    %v2371 = vmul.f32 %v2335, 0.044715
    %v2372 = vmul.f32 %v2337, 0.044715
    %v2373 = vmul.f32 %v2288, 0.044715
    %v2374 = vmul.f32 %v2290, 0.044715
    %v2375 = vmul.f32 %v2341, 0.044715
    %v2376 = vmul.f32 %v2343, 0.044715
    %v2377 = vmul.f32 %v2292, 0.044715
    %v2378 = vmul.f32 %v2294, 0.044715
    %v2379 = vmul.f32 %v2345, 0.044715
    %v2380 = vmul.f32 %v2347, 0.044715
    %v2381 = vmul.f32 %v2365, %v2278
    %v2382 = vmul.f32 %v2366, %v2280
    %v2383 = vmul.f32 %v2367, %v2331
    %v2384 = vmul.f32 %v2368, %v2333
    %v2385 = vmul.f32 %v2369, %v2282
    %v2386 = vmul.f32 %v2370, %v2284
    %v2387 = vmul.f32 %v2371, %v2335
    %v2388 = vmul.f32 %v2372, %v2337
    %v2389 = vmul.f32 %v2373, %v2288
    %v2390 = vmul.f32 %v2374, %v2290
    %v2391 = vmul.f32 %v2375, %v2341
    %v2392 = vmul.f32 %v2376, %v2343
    %v2393 = vmul.f32 %v2377, %v2292
    %v2394 = vmul.f32 %v2378, %v2294
    %v2395 = vmul.f32 %v2379, %v2345
    %v2396 = vmul.f32 %v2380, %v2347
    %v2397 = vmul.f32 %v2381, %v2278
    %v2398 = vmul.f32 %v2382, %v2280
    %v2399 = vmul.f32 %v2383, %v2331
    %v2400 = vmul.f32 %v2384, %v2333
    %v2401 = vmul.f32 %v2385, %v2282
    %v2402 = vmul.f32 %v2386, %v2284
    %v2403 = vmul.f32 %v2387, %v2335
    %v2404 = vmul.f32 %v2388, %v2337
    %v2405 = vmul.f32 %v2389, %v2288
    %v2406 = vmul.f32 %v2390, %v2290
    %v2407 = vmul.f32 %v2391, %v2341
    %v2408 = vmul.f32 %v2392, %v2343
    %v2409 = vmul.f32 %v2393, %v2292
    %v2410 = vmul.f32 %v2394, %v2294
    %v2411 = vmul.f32 %v2395, %v2345
    %v2412 = vmul.f32 %v2396, %v2347
    %v2413 = vadd.f32 %v2278, %v2397
    %v2414 = vadd.f32 %v2280, %v2398
    %v2415 = vadd.f32 %v2331, %v2399
    %v2416 = vadd.f32 %v2333, %v2400
    %v2417 = vadd.f32 %v2282, %v2401
    %v2418 = vadd.f32 %v2284, %v2402
    %v2419 = vadd.f32 %v2335, %v2403
    %v2420 = vadd.f32 %v2337, %v2404
    %v2421 = vadd.f32 %v2288, %v2405
    %v2422 = vadd.f32 %v2290, %v2406
    %v2423 = vadd.f32 %v2341, %v2407
    %v2424 = vadd.f32 %v2343, %v2408
    %v2425 = vadd.f32 %v2292, %v2409
    %v2426 = vadd.f32 %v2294, %v2410
    %v2427 = vadd.f32 %v2345, %v2411
    %v2428 = vadd.f32 %v2347, %v2412
    %v2429 = vmul.f32 %v2413, 0.7978846
    %v2430 = vmul.f32 %v2414, 0.7978846
    %v2431 = vmul.f32 %v2415, 0.7978846
    %v2432 = vmul.f32 %v2416, 0.7978846
    %v2433 = vmul.f32 %v2417, 0.7978846
    %v2434 = vmul.f32 %v2418, 0.7978846
    %v2435 = vmul.f32 %v2419, 0.7978846
    %v2436 = vmul.f32 %v2420, 0.7978846
    %v2437 = vmul.f32 %v2421, 0.7978846
    %v2438 = vmul.f32 %v2422, 0.7978846
    %v2439 = vmul.f32 %v2423, 0.7978846
    %v2440 = vmul.f32 %v2424, 0.7978846
    %v2441 = vmul.f32 %v2425, 0.7978846
    %v2442 = vmul.f32 %v2426, 0.7978846
    %v2443 = vmul.f32 %v2427, 0.7978846
    %v2444 = vmul.f32 %v2428, 0.7978846
    %v2445 = vtanh.pop %v2429
    %v2446 = vtanh.pop %v2430
    %v2447 = vtanh.pop %v2431
    %v2448 = vtanh.pop %v2432
    %v2449 = vtanh.pop %v2433
    %v2450 = vtanh.pop %v2434
    %v2451 = vtanh.pop %v2435
    %v2452 = vtanh.pop %v2436
    %v2453 = vtanh.pop %v2437
    %v2454 = vtanh.pop %v2438
    %v2455 = vtanh.pop %v2439
    %v2456 = vtanh.pop %v2440
    %v2457 = vtanh.pop %v2441
    %v2458 = vtanh.pop %v2442
    %v2459 = vtanh.pop %v2443
    %v2460 = vtanh.pop %v2444
    %v2461 = vadd.f32 %v2445, 1.0
    %v2462 = vadd.f32 %v2446, 1.0
    %v2463 = vadd.f32 %v2447, 1.0
    %v2464 = vadd.f32 %v2448, 1.0
    %v2465 = vadd.f32 %v2449, 1.0
    %v2466 = vadd.f32 %v2450, 1.0
    %v2467 = vadd.f32 %v2451, 1.0
    %v2468 = vadd.f32 %v2452, 1.0
    %v2469 = vadd.f32 %v2453, 1.0
    %v2470 = vadd.f32 %v2454, 1.0
    %v2471 = vadd.f32 %v2455, 1.0
    %v2472 = vadd.f32 %v2456, 1.0
    %v2473 = vadd.f32 %v2457, 1.0
    %v2474 = vadd.f32 %v2458, 1.0
    %v2475 = vadd.f32 %v2459, 1.0
    %v2476 = vadd.f32 %v2460, 1.0
    %v2477 = vmul.f32 %v2349, %v2461
    %v2478 = vmul.f32 %v2350, %v2462
    %v2479 = vmul.f32 %v2351, %v2463
    %v2480 = vmul.f32 %v2352, %v2464
    %v2481 = vmul.f32 %v2353, %v2465
    %v2482 = vmul.f32 %v2354, %v2466
    %v2483 = vmul.f32 %v2355, %v2467
    %v2484 = vmul.f32 %v2356, %v2468
    %v2485 = vmul.f32 %v2357, %v2469
    %v2486 = vmul.f32 %v2358, %v2470
    %v2487 = vmul.f32 %v2359, %v2471
    %v2488 = vmul.f32 %v2360, %v2472
    %v2489 = vmul.f32 %v2361, %v2473
    %v2490 = vmul.f32 %v2362, %v2474
    %v2491 = vmul.f32 %v2363, %v2475
    %v2492 = vmul.f32 %v2364, %v2476
    %v2493 = vld [vmem:[#allocation7] sm:$0xf]
    %v2494 = vld [vmem:[#allocation7 + $0x4] sm:$0xf]
    %v2495 = vld [vmem:[#allocation7 + $0x8] sm:$0xf]
    %v2496 = vld [vmem:[#allocation7 + $0xc] sm:$0xf]
    %v2497 = vld [vmem:[#allocation7 + $0x10] sm:$0xf]
    %v2498 = vld [vmem:[#allocation7 + $0x14] sm:$0xf]
    %v2499 = vld [vmem:[#allocation7 + $0x18] sm:$0xf]
    %v2500 = vld [vmem:[#allocation7 + $0x1c] sm:$0xf]
    %v2501 = vld [vmem:[#allocation7 + $0x20] sm:$0xf]
    %v2502 = vld [vmem:[#allocation7 + $0x24] sm:$0xf]
    %v2503 = vld [vmem:[#allocation7 + $0x28] sm:$0xf]
    %v2504 = vld [vmem:[#allocation7 + $0x2c] sm:$0xf]
    %v2505 = vld [vmem:[#allocation7 + $0x30] sm:$0xf]
    %v2506 = vld [vmem:[#allocation7 + $0x34] sm:$0xf]
    %v2507 = vld [vmem:[#allocation7 + $0x38] sm:$0xf]
    %v2508 = vld [vmem:[#allocation7 + $0x3c] sm:$0xf]
    %v2509 = vld [vmem:[#allocation7 + $0x40] sm:$0xf]
    %v2510 = vld [vmem:[#allocation7 + $0x44] sm:$0xf]
    %v2511 = vld [vmem:[#allocation7 + $0x48] sm:$0xf]
    %v2512 = vld [vmem:[#allocation7 + $0x4c] sm:$0xf]
    %v2513 = vld [vmem:[#allocation7 + $0x50] sm:$0xf]
    %v2514 = vld [vmem:[#allocation7 + $0x54] sm:$0xf]
    %v2515 = vld [vmem:[#allocation7 + $0x58] sm:$0xf]
    %v2516 = vld [vmem:[#allocation7 + $0x5c] sm:$0xf]
    %v2517 = vld [vmem:[#allocation7 + $0x60] sm:$0xf]
    %v2518 = vld [vmem:[#allocation7 + $0x64] sm:$0xf]
    %v2519 = vld [vmem:[#allocation7 + $0x68] sm:$0xf]
    %v2520 = vld [vmem:[#allocation7 + $0x6c] sm:$0xf]
    %v2521 = vld [vmem:[#allocation7 + $0x70] sm:$0xf]
    %v2522 = vld [vmem:[#allocation7 + $0x74] sm:$0xf]
    %v2523 = vld [vmem:[#allocation7 + $0x78] sm:$0xf]
    %v2524 = vld [vmem:[#allocation7 + $0x7c] sm:$0xf]
    %v2525 = vld [vmem:[#allocation7 + $0x80] sm:$0xf]
    %v2526 = vld [vmem:[#allocation7 + $0x84] sm:$0xf]
    %v2527 = vld [vmem:[#allocation7 + $0x88] sm:$0xf]
    %v2528 = vld [vmem:[#allocation7 + $0x8c] sm:$0xf]
    %v2529 = vld [vmem:[#allocation7 + $0x90] sm:$0xf]
    %v2530 = vld [vmem:[#allocation7 + $0x94] sm:$0xf]
    %v2531 = vld [vmem:[#allocation7 + $0x98] sm:$0xf]
    %v2532 = vld [vmem:[#allocation7 + $0x9c] sm:$0xf]
    %v2533 = vld [vmem:[#allocation7 + $0xa0] sm:$0xf]
    %v2534 = vld [vmem:[#allocation7 + $0xa4] sm:$0xf]
    %v2535 = vld [vmem:[#allocation7 + $0xa8] sm:$0xf]
    %v2536 = vld [vmem:[#allocation7 + $0xac] sm:$0xf]
    %v2537 = vld [vmem:[#allocation7 + $0xb0] sm:$0xf]
    %v2538 = vld [vmem:[#allocation7 + $0xb4] sm:$0xf]
    %v2539 = vld [vmem:[#allocation7 + $0xb8] sm:$0xf]
    %v2540 = vld [vmem:[#allocation7 + $0xbc] sm:$0xf]
    %v2541 = vld [vmem:[#allocation7 + $0xc0] sm:$0xf]
    %v2542 = vld [vmem:[#allocation7 + $0xc4] sm:$0xf]
    %v2543 = vld [vmem:[#allocation7 + $0xc8] sm:$0xf]
    %v2544 = vld [vmem:[#allocation7 + $0xcc] sm:$0xf]
    %v2545 = vld [vmem:[#allocation7 + $0xd0] sm:$0xf]
    %v2546 = vld [vmem:[#allocation7 + $0xd4] sm:$0xf]
    %v2547 = vld [vmem:[#allocation7 + $0xd8] sm:$0xf]
    %v2548 = vld [vmem:[#allocation7 + $0xdc] sm:$0xf]
    %v2549 = vld [vmem:[#allocation7 + $0xe0] sm:$0xf]
    %v2550 = vld [vmem:[#allocation7 + $0xe4] sm:$0xf]
    %v2551 = vld [vmem:[#allocation7 + $0xe8] sm:$0xf]
    %v2552 = vld [vmem:[#allocation7 + $0xec] sm:$0xf]
    %v2553 = vld [vmem:[#allocation7 + $0xf0] sm:$0xf]
    %v2554 = vld [vmem:[#allocation7 + $0xf4] sm:$0xf]
    %v2555 = vld [vmem:[#allocation7 + $0xf8] sm:$0xf]
    %v2556 = vld [vmem:[#allocation7 + $0xfc] sm:$0xf]
    %v2557 = vpack.c.bf16 %v2481, %v2477
    %v2558 = vpack.c.bf16 %v2482, %v2478
    %v2559 = vpack.c.bf16 %v2483, %v2479
    %v2560 = vpack.c.bf16 %v2484, %v2480
    %v2561 = vpack.c.bf16 %v2489, %v2485
    %v2562 = vpack.c.bf16 %v2490, %v2486
    %v2563 = vpack.c.bf16 %v2491, %v2487
    %v2564 = vpack.c.bf16 %v2492, %v2488
    %v2629 = vunpack.c.l.b16 %v2493
    %v2630 = vunpack.c.l.b16 %v2494
    %v2631 = vunpack.c.l.b16 %v2495
    %v2632 = vunpack.c.l.b16 %v2496
    %v2633 = vunpack.c.l.b16 %v2497
    %v2634 = vunpack.c.l.b16 %v2498
    %v2635 = vunpack.c.l.b16 %v2499
    %v2636 = vunpack.c.l.b16 %v2500
    %v2637 = vunpack.c.l.b16 %v2501
    %v2638 = vunpack.c.l.b16 %v2502
    %v2639 = vunpack.c.l.b16 %v2503
    %v2640 = vunpack.c.l.b16 %v2504
    %v2641 = vunpack.c.l.b16 %v2505
    %v2642 = vunpack.c.l.b16 %v2506
    %v2643 = vunpack.c.l.b16 %v2507
    %v2644 = vunpack.c.l.b16 %v2508
    %v2645 = vunpack.c.l.b16 %v2509
    %v2646 = vunpack.c.l.b16 %v2510
    %v2647 = vunpack.c.l.b16 %v2511
    %v2648 = vunpack.c.l.b16 %v2512
    %v2649 = vunpack.c.l.b16 %v2513
    %v2650 = vunpack.c.l.b16 %v2514
    %v2651 = vunpack.c.l.b16 %v2515
    %v2652 = vunpack.c.l.b16 %v2516
    %v2653 = vunpack.c.l.b16 %v2517
    %v2654 = vunpack.c.l.b16 %v2518
    %v2655 = vunpack.c.l.b16 %v2519
    %v2656 = vunpack.c.l.b16 %v2520
    %v2657 = vunpack.c.l.b16 %v2521
    %v2658 = vunpack.c.l.b16 %v2522
    %v2659 = vunpack.c.l.b16 %v2523
    %v2660 = vunpack.c.l.b16 %v2524
    %v2661 = vunpack.c.l.b16 %v2525
    %v2662 = vunpack.c.l.b16 %v2526
    %v2663 = vunpack.c.l.b16 %v2527
    %v2664 = vunpack.c.l.b16 %v2528
    %v2665 = vunpack.c.l.b16 %v2529
    %v2666 = vunpack.c.l.b16 %v2530
    %v2667 = vunpack.c.l.b16 %v2531
    %v2668 = vunpack.c.l.b16 %v2532
    %v2669 = vunpack.c.l.b16 %v2533
    %v2670 = vunpack.c.l.b16 %v2534
    %v2671 = vunpack.c.l.b16 %v2535
    %v2672 = vunpack.c.l.b16 %v2536
    %v2673 = vunpack.c.l.b16 %v2537
    %v2674 = vunpack.c.l.b16 %v2538
    %v2675 = vunpack.c.l.b16 %v2539
    %v2676 = vunpack.c.l.b16 %v2540
    %v2677 = vunpack.c.l.b16 %v2541
    %v2678 = vunpack.c.l.b16 %v2542
    %v2679 = vunpack.c.l.b16 %v2543
    %v2680 = vunpack.c.l.b16 %v2544
    %v2681 = vunpack.c.l.b16 %v2545
    %v2682 = vunpack.c.l.b16 %v2546
    %v2683 = vunpack.c.l.b16 %v2547
    %v2684 = vunpack.c.l.b16 %v2548
    %v2685 = vunpack.c.l.b16 %v2549
    %v2686 = vunpack.c.l.b16 %v2550
    %v2687 = vunpack.c.l.b16 %v2551
    %v2688 = vunpack.c.l.b16 %v2552
    %v2689 = vunpack.c.l.b16 %v2553
    %v2690 = vunpack.c.l.b16 %v2554
    %v2691 = vunpack.c.l.b16 %v2555
    %v2692 = vunpack.c.l.b16 %v2556
    %v2693 = vpack.c.b16 %v2630, %v2629
    %v2694 = vpack.c.b16 %v2632, %v2631
    %v2695 = vpack.c.b16 %v2634, %v2633
    %v2696 = vpack.c.b16 %v2636, %v2635
    %v2697 = vpack.c.b16 %v2638, %v2637
    %v2698 = vpack.c.b16 %v2640, %v2639
    %v2699 = vpack.c.b16 %v2642, %v2641
    %v2700 = vpack.c.b16 %v2644, %v2643
    %v2701 = vpack.c.b16 %v2646, %v2645
    %v2702 = vpack.c.b16 %v2648, %v2647
    %v2703 = vpack.c.b16 %v2650, %v2649
    %v2704 = vpack.c.b16 %v2652, %v2651
    %v2705 = vpack.c.b16 %v2654, %v2653
    %v2706 = vpack.c.b16 %v2656, %v2655
    %v2707 = vpack.c.b16 %v2658, %v2657
    %v2708 = vpack.c.b16 %v2660, %v2659
    %v2709 = vpack.c.b16 %v2662, %v2661
    %v2710 = vpack.c.b16 %v2664, %v2663
    %v2711 = vpack.c.b16 %v2666, %v2665
    %v2712 = vpack.c.b16 %v2668, %v2667
    %v2713 = vpack.c.b16 %v2670, %v2669
    %v2714 = vpack.c.b16 %v2672, %v2671
    %v2715 = vpack.c.b16 %v2674, %v2673
    %v2716 = vpack.c.b16 %v2676, %v2675
    %v2717 = vpack.c.b16 %v2678, %v2677
    %v2718 = vpack.c.b16 %v2680, %v2679
    %v2719 = vpack.c.b16 %v2682, %v2681
    %v2720 = vpack.c.b16 %v2684, %v2683
    %v2721 = vpack.c.b16 %v2686, %v2685
    %v2722 = vpack.c.b16 %v2688, %v2687
    %v2723 = vpack.c.b16 %v2690, %v2689
    %v2724 = vpack.c.b16 %v2692, %v2691
    %2757 = vmatprep.subr.bf16.mxu0 0
    %2758 = vmatpush1.bf16.msra.mxu0 %v2700
    %2759 = vmatprep.subr.bf16.mxu0 0
    %2760 = vmatpush1.bf16.msra.mxu0 %v2699
    %2761 = vmatprep.subr.bf16.mxu0 0
    %2762 = vmatpush1.bf16.msra.mxu0 %v2698
    %2763 = vmatprep.subr.bf16.mxu0 0
    %2764 = vmatpush1.bf16.msra.mxu0 %v2697
    %2765 = vmatprep.subr.bf16.mxu0 0
    %2766 = vmatpush1.bf16.msra.mxu0 %v2696
    %2767 = vmatprep.subr.bf16.mxu0 0
    %2768 = vmatpush1.bf16.msra.mxu0 %v2695
    %2769 = vmatprep.subr.bf16.mxu0 0
    %2770 = vmatpush1.bf16.msra.mxu0 %v2694
    %2771 = vmatprep.subr.bf16.mxu0 0
    %2772 = vmatpush1.bf16.msra.mxu0 %v2693
    %2773 = vmatprep.subr.bf16.mxu0 0
    %2774 = vmatpush2.bf16.msra.mxu0 %v2708
    %2775 = vmatprep.subr.bf16.mxu0 0
    %2776 = vmatpush2.bf16.msra.mxu0 %v2707
    %2777 = vmatprep.subr.bf16.mxu0 0
    %2778 = vmatpush2.bf16.msra.mxu0 %v2706
    %2779 = vmatprep.subr.bf16.mxu0 0
    %2780 = vmatpush2.bf16.msra.mxu0 %v2705
    %2781 = vmatprep.subr.bf16.mxu0 0
    %2782 = vmatpush2.bf16.msra.mxu0 %v2704
    %2783 = vmatprep.subr.bf16.mxu0 0
    %2784 = vmatpush2.bf16.msra.mxu0 %v2703
    %2785 = vmatprep.subr.bf16.mxu0 0
    %2786 = vmatpush2.bf16.msra.mxu0 %v2702
    %2787 = vmatprep.subr.bf16.mxu0 0
    %2788 = vmatpush2.bf16.msra.mxu0 %v2701
    %2789 = vmatprep.mubr.bf16.mxu0 %v2558
    %2790 = vmatmul.mubr.bf16.gmra.mxu0 %v2557
    %v2791 = vpop.f32.mrf.mxu0
    %v2792 = vadd.f32 0.0, %v2791
    %v2793 = vpop.f32.mrf.mxu0
    %v2794 = vpop.f32.mrf.mxu0
    %v2795 = vadd.f32 0.0, %v2794
    %v2796 = vpop.f32.mrf.mxu0
    %2797 = vmatprep.mubr.bf16.mxu0 %v2562
    %2798 = vmatmul.mubr.bf16.gmra.mxu0 %v2561
    %v2799 = vpop.f32.mrf.mxu0
    %v2800 = vadd.f32 0.0, %v2799
    %v2801 = vpop.f32.mrf.mxu0
    %v2802 = vpop.f32.mrf.mxu0
    %v2803 = vadd.f32 0.0, %v2802
    %v2804 = vpop.f32.mrf.mxu0
    %2805 = vdwg.mxu0
    %2806 = vmatprep.subr.bf16.mxu0 0
    %2807 = vmatpush1.bf16.msra.mxu0 %v2716
    %2808 = vmatprep.subr.bf16.mxu0 0
    %2809 = vmatpush1.bf16.msra.mxu0 %v2715
    %2810 = vmatprep.subr.bf16.mxu0 0
    %2811 = vmatpush1.bf16.msra.mxu0 %v2714
    %2812 = vmatprep.subr.bf16.mxu0 0
    %2813 = vmatpush1.bf16.msra.mxu0 %v2713
    %2814 = vmatprep.subr.bf16.mxu0 0
    %2815 = vmatpush1.bf16.msra.mxu0 %v2712
    %2816 = vmatprep.subr.bf16.mxu0 0
    %2817 = vmatpush1.bf16.msra.mxu0 %v2711
    %2818 = vmatprep.subr.bf16.mxu0 0
    %2819 = vmatpush1.bf16.msra.mxu0 %v2710
    %2820 = vmatprep.subr.bf16.mxu0 0
    %2821 = vmatpush1.bf16.msra.mxu0 %v2709
    %2822 = vmatprep.subr.bf16.mxu0 0
    %2823 = vmatpush2.bf16.msra.mxu0 %v2724
    %2824 = vmatprep.subr.bf16.mxu0 0
    %2825 = vmatpush2.bf16.msra.mxu0 %v2723
    %2826 = vmatprep.subr.bf16.mxu0 0
    %2827 = vmatpush2.bf16.msra.mxu0 %v2722
    %2828 = vmatprep.subr.bf16.mxu0 0
    %2829 = vmatpush2.bf16.msra.mxu0 %v2721
    %2830 = vmatprep.subr.bf16.mxu0 0
    %2831 = vmatpush2.bf16.msra.mxu0 %v2720
    %2832 = vmatprep.subr.bf16.mxu0 0
    %2833 = vmatpush2.bf16.msra.mxu0 %v2719
    %2834 = vmatprep.subr.bf16.mxu0 0
    %2835 = vmatpush2.bf16.msra.mxu0 %v2718
    %2836 = vmatprep.subr.bf16.mxu0 0
    %2837 = vmatpush2.bf16.msra.mxu0 %v2717
    %2838 = vmatprep.mubr.bf16.mxu0 %v2560
    %2839 = vmatmul.mubr.bf16.gmra.mxu0 %v2559
    %v2840 = vpop.f32.mrf.mxu0
    %v2841 = vadd.f32 %v2792, %v2840
    %v2842 = vpop.f32.mrf.mxu0
    %v2843 = vpop.f32.mrf.mxu0
    %v2844 = vadd.f32 %v2795, %v2843
    %v2845 = vpop.f32.mrf.mxu0
    %2846 = vmatprep.mubr.bf16.mxu0 %v2564
    %2847 = vmatmul.mubr.bf16.gmra.mxu0 %v2563
    %v2848 = vpop.f32.mrf.mxu0
    %v2849 = vadd.f32 %v2800, %v2848
    %v2850 = vpop.f32.mrf.mxu0
    %v2851 = vpop.f32.mrf.mxu0
    %v2852 = vadd.f32 %v2803, %v2851
    %v2853 = vpop.f32.mrf.mxu0
    %2854 = vdwg.mxu0
    %v2855 = vadd.f32 %v2023, %v2841
    %v2856 = vadd.f32 %v2024, %v2844
    %v2857 = vadd.f32 %v2025, %v2849
    %v2858 = vadd.f32 %v2026, %v2852
    %v2859 = vld [vmem:[%s27] sm:$0x1]
    %v2861 = vlaneseq
    %v2862 = vshrl.u32 %v2861, 7
    %v2863 = vsub.s32 0, %v2862
    %v2864 = vrot.slane %v2859, %v2863
    %v2866 = vadd.f32 %v2855, %v2864
    %v2867 = vadd.f32 %v2856, %v2864
    %v2868 = vadd.f32 %v2857, %v2864
    %v2869 = vadd.f32 %v2858, %v2864
    %v2870 = vld [vmem:[%s29] sm:$0x1]
    %v2871 = vld [vmem:[%s31] sm:$0x1]
    %2872 = vadd.xlane.f32.xlu0 %v2866
    %v2873 = vpop.xlane.xlu0 %2872
    %2874 = vadd.xlane.f32.xlu0 %v2867
    %v2875 = vpop.xlane.xlu0 %2874
    %2876 = vadd.xlane.f32.xlu0 %v2868
    %v2877 = vpop.xlane.xlu0 %2876
    %2878 = vadd.xlane.f32.xlu0 %v2869
    %v2879 = vpop.xlane.xlu0 %2878
    %v2880 = vmul.f32 %v2873, %v296
    %v2881 = vmul.f32 %v2875, %v296
    %v2882 = vmul.f32 %v2877, %v296
    %v2883 = vmul.f32 %v2879, %v296
    %v2884 = vsub.f32 %v2866, %v2880
    %v2885 = vsub.f32 %v2867, %v2881
    %v2886 = vsub.f32 %v2868, %v2882
    %v2887 = vsub.f32 %v2869, %v2883
    %v2888 = vmul.f32 %v2884, %v2884
    %v2889 = vmul.f32 %v2885, %v2885
    %v2890 = vmul.f32 %v2886, %v2886
    %v2891 = vmul.f32 %v2887, %v2887
    %2892 = vadd.xlane.f32.xlu0 %v2888
    %v2893 = vpop.xlane.xlu0 %2892
    %2894 = vadd.xlane.f32.xlu0 %v2889
    %v2895 = vpop.xlane.xlu0 %2894
    %2896 = vadd.xlane.f32.xlu0 %v2890
    %v2897 = vpop.xlane.xlu0 %2896
    %2898 = vadd.xlane.f32.xlu0 %v2891
    %v2899 = vpop.xlane.xlu0 %2898
    %v2900 = vmul.f32 %v2893, %v296
    %v2901 = vmul.f32 %v2895, %v296
    %v2902 = vmul.f32 %v2897, %v296
    %v2903 = vmul.f32 %v2899, %v296
    %v2904 = vadd.f32 %v2900, 1e-12
    %v2905 = vadd.f32 %v2901, 1e-12
    %v2906 = vadd.f32 %v2902, 1e-12
    %v2907 = vadd.f32 %v2903, 1e-12
    %v2908 = vrsqrt.pop %v2904
    %v2909 = vrsqrt.pop %v2905
    %v2910 = vrsqrt.pop %v2906
    %v2911 = vrsqrt.pop %v2907
    %v2912 = vmul.f32 %v2884, %v2908
    %v2913 = vmul.f32 %v2885, %v2909
    %v2914 = vmul.f32 %v2886, %v2910
    %v2915 = vmul.f32 %v2887, %v2911
    %v2917 = vlaneseq
    %v2918 = vshrl.u32 %v2917, 7
    %v2919 = vsub.s32 0, %v2918
    %v2920 = vrot.slane %v2870, %v2919
    %v2922 = vmul.f32 %v2912, %v2920
    %v2923 = vmul.f32 %v2913, %v2920
    %v2924 = vmul.f32 %v2914, %v2920
    %v2925 = vmul.f32 %v2915, %v2920
    %v2927 = vlaneseq
    %v2928 = vshrl.u32 %v2927, 7
    %v2929 = vsub.s32 0, %v2928
    %v2930 = vrot.slane %v2871, %v2929
    %v2932 = vadd.f32 %v2922, %v2930
    %v2933 = vadd.f32 %v2923, %v2930
    %v2934 = vadd.f32 %v2924, %v2930
    %v2935 = vadd.f32 %v2925, %v2930
    %s2936 = scalar_lea.vmem %s9, 192
    %v2937 = vld [vmem:[%s2936] sm:$0xff]
    %v2938 = vld [vmem:[%s2936 + $0x8] sm:$0xf]
    %v2939 = vld [vmem:[%s2936 + $0xc] sm:$0xff]
    %v2940 = vld [vmem:[%s2936 + $0x14] sm:$0xf]
    %v2941 = vld [vmem:[%s2936 + $0x18] sm:$0xff]
    %v2942 = vld [vmem:[%s2936 + $0x20] sm:$0xf]
    %v2943 = vld [vmem:[%s2936 + $0x24] sm:$0xff]
    %v2944 = vld [vmem:[%s2936 + $0x2c] sm:$0xf]
    %v2945 = vld [vmem:[%s2936 + $0x30] sm:$0xff]
    %v2946 = vld [vmem:[%s2936 + $0x38] sm:$0xf]
    %v2947 = vld [vmem:[%s2936 + $0x3c] sm:$0xff]
    %v2948 = vld [vmem:[%s2936 + $0x44] sm:$0xf]
    %v2949 = vld [vmem:[%s2936 + $0x48] sm:$0xff]
    %v2950 = vld [vmem:[%s2936 + $0x50] sm:$0xf]
    %v2951 = vld [vmem:[%s2936 + $0x54] sm:$0xff]
    %v2952 = vld [vmem:[%s2936 + $0x5c] sm:$0xf]
    %v2953 = vld [vmem:[%s2936 + $0x60] sm:$0xff]
    %v2954 = vld [vmem:[%s2936 + $0x68] sm:$0xf]
    %v2955 = vld [vmem:[%s2936 + $0x6c] sm:$0xff]
    %v2956 = vld [vmem:[%s2936 + $0x74] sm:$0xf]
    %v2957 = vld [vmem:[%s2936 + $0x78] sm:$0xff]
    %v2958 = vld [vmem:[%s2936 + $0x80] sm:$0xf]
    %v2959 = vld [vmem:[%s2936 + $0x84] sm:$0xff]
    %v2960 = vld [vmem:[%s2936 + $0x8c] sm:$0xf]
    %v2961 = vld [vmem:[%s2936 + $0x90] sm:$0xff]
    %v2962 = vld [vmem:[%s2936 + $0x98] sm:$0xf]
    %v2963 = vld [vmem:[%s2936 + $0x9c] sm:$0xff]
    %v2964 = vld [vmem:[%s2936 + $0xa4] sm:$0xf]
    %v2965 = vld [vmem:[%s2936 + $0xa8] sm:$0xff]
    %v2966 = vld [vmem:[%s2936 + $0xb0] sm:$0xf]
    %v2967 = vld [vmem:[%s2936 + $0xb4] sm:$0xff]
    %v2968 = vld [vmem:[%s2936 + $0xbc] sm:$0xf]
    %s2969 = scalar_lea.vmem %s11, 3
    %v2970 = vld [vmem:[%s2969] sm:$0x7]
    %s2971 = scalar_lea.vmem [#allocation2], 64
    %v2972 = vld [vmem:[%s2971] sm:$0xf]
    %v2973 = vld [vmem:[%s2971 + $0x4] sm:$0xf]
    %v2974 = vld [vmem:[%s2971 + $0x8] sm:$0xf]
    %v2975 = vld [vmem:[%s2971 + $0xc] sm:$0xf]
    %v2976 = vld [vmem:[%s2971 + $0x10] sm:$0xf]
    %v2977 = vld [vmem:[%s2971 + $0x14] sm:$0xf]
    %v2978 = vld [vmem:[%s2971 + $0x18] sm:$0xf]
    %v2979 = vld [vmem:[%s2971 + $0x1c] sm:$0xf]
    %v2980 = vld [vmem:[%s2971 + $0x20] sm:$0xf]
    %v2981 = vld [vmem:[%s2971 + $0x24] sm:$0xf]
    %v2982 = vld [vmem:[%s2971 + $0x28] sm:$0xf]
    %v2983 = vld [vmem:[%s2971 + $0x2c] sm:$0xf]
    %v2984 = vld [vmem:[%s2971 + $0x30] sm:$0xf]
    %v2985 = vld [vmem:[%s2971 + $0x34] sm:$0xf]
    %v2986 = vld [vmem:[%s2971 + $0x38] sm:$0xf]
    %v2987 = vld [vmem:[%s2971 + $0x3c] sm:$0xf]
    %s2988 = scalar_lea.vmem %s15, 1
    %v2989 = vld [vmem:[%s2988] sm:$0x1]
    %v2990 = vpack.c.bf16 %v2933, %v2932
    %v2991 = vpack.c.bf16 %v2935, %v2934
    %v2993 = vlaneseq
    %v2994 = vshrl.u32 %v2993, 7
    %v2995 = vsub.s32 0, %v2994
    %v2996 = vrot.slane %v2970, %v2995
    %v2997 = vlaneseq
    %v2998 = vshrl.u32 %v2997, 7
    %v2999 = vsub.s32 1, %v2998
    %v3000 = vrot.slane %v2970, %v2999
    %v3001 = vlaneseq
    %v3002 = vshrl.u32 %v3001, 7
    %v3003 = vsub.s32 2, %v3002
    %v3004 = vrot.slane %v2970, %v3003
    %v3040 = vunpack.c.l.b16 %v2937
    %v3041 = vunpack.c.h.b16 %v2937
    %v3042 = vunpack.c.l.b16 %v2938
    %v3043 = vunpack.c.l.b16 %v2939
    %v3044 = vunpack.c.h.b16 %v2939
    %v3045 = vunpack.c.l.b16 %v2940
    %v3046 = vunpack.c.l.b16 %v2941
    %v3047 = vunpack.c.h.b16 %v2941
    %v3048 = vunpack.c.l.b16 %v2942
    %v3049 = vunpack.c.l.b16 %v2943
    %v3050 = vunpack.c.h.b16 %v2943
    %v3051 = vunpack.c.l.b16 %v2944
    %v3052 = vunpack.c.l.b16 %v2945
    %v3053 = vunpack.c.h.b16 %v2945
    %v3054 = vunpack.c.l.b16 %v2946
    %v3055 = vunpack.c.l.b16 %v2947
    %v3056 = vunpack.c.h.b16 %v2947
    %v3057 = vunpack.c.l.b16 %v2948
    %v3058 = vunpack.c.l.b16 %v2949
    %v3059 = vunpack.c.h.b16 %v2949
    %v3060 = vunpack.c.l.b16 %v2950
    %v3061 = vunpack.c.l.b16 %v2951
    %v3062 = vunpack.c.h.b16 %v2951
    %v3063 = vunpack.c.l.b16 %v2952
    %v3064 = vunpack.c.l.b16 %v2953
    %v3065 = vunpack.c.h.b16 %v2953
    %v3066 = vunpack.c.l.b16 %v2954
    %v3067 = vunpack.c.l.b16 %v2955
    %v3068 = vunpack.c.h.b16 %v2955
    %v3069 = vunpack.c.l.b16 %v2956
    %v3070 = vunpack.c.l.b16 %v2957
    %v3071 = vunpack.c.h.b16 %v2957
    %v3072 = vunpack.c.l.b16 %v2958
    %v3073 = vunpack.c.l.b16 %v2959
    %v3074 = vunpack.c.h.b16 %v2959
    %v3075 = vunpack.c.l.b16 %v2960
    %v3076 = vunpack.c.l.b16 %v2961
    %v3077 = vunpack.c.h.b16 %v2961
    %v3078 = vunpack.c.l.b16 %v2962
    %v3079 = vunpack.c.l.b16 %v2963
    %v3080 = vunpack.c.h.b16 %v2963
    %v3081 = vunpack.c.l.b16 %v2964
    %v3082 = vunpack.c.l.b16 %v2965
    %v3083 = vunpack.c.h.b16 %v2965
    %v3084 = vunpack.c.l.b16 %v2966
    %v3085 = vunpack.c.l.b16 %v2967
    %v3086 = vunpack.c.h.b16 %v2967
    %v3087 = vunpack.c.l.b16 %v2968
    %v3088 = vpack.c.b16 %v3043, %v3040
    %v3089 = vpack.c.b16 %v3044, %v3041
    %v3090 = vpack.c.b16 %v3045, %v3042
    %v3091 = vpack.c.b16 %v3049, %v3046
    %v3092 = vpack.c.b16 %v3050, %v3047
    %v3093 = vpack.c.b16 %v3051, %v3048
    %v3094 = vpack.c.b16 %v3055, %v3052
    %v3095 = vpack.c.b16 %v3056, %v3053
    %v3096 = vpack.c.b16 %v3057, %v3054
    %v3097 = vpack.c.b16 %v3061, %v3058
    %v3098 = vpack.c.b16 %v3062, %v3059
    %v3099 = vpack.c.b16 %v3063, %v3060
    %v3100 = vpack.c.b16 %v3067, %v3064
    %v3101 = vpack.c.b16 %v3068, %v3065
    %v3102 = vpack.c.b16 %v3069, %v3066
    %v3103 = vpack.c.b16 %v3073, %v3070
    %v3104 = vpack.c.b16 %v3074, %v3071
    %v3105 = vpack.c.b16 %v3075, %v3072
    %v3106 = vpack.c.b16 %v3079, %v3076
    %v3107 = vpack.c.b16 %v3080, %v3077
    %v3108 = vpack.c.b16 %v3081, %v3078
    %v3109 = vpack.c.b16 %v3085, %v3082
    %v3110 = vpack.c.b16 %v3086, %v3083
    %v3111 = vpack.c.b16 %v3087, %v3084
    %3136 = vmatprep.subr.bf16.mxu0 %v3110
    %3137 = vmatpush1.bf16.msra.mxu0 %v3109
    %3138 = vmatprep.subr.bf16.mxu0 %v3107
    %3139 = vmatpush1.bf16.msra.mxu0 %v3106
    %3140 = vmatprep.subr.bf16.mxu0 %v3104
    %3141 = vmatpush1.bf16.msra.mxu0 %v3103
    %3142 = vmatprep.subr.bf16.mxu0 %v3101
    %3143 = vmatpush1.bf16.msra.mxu0 %v3100
    %3144 = vmatprep.subr.bf16.mxu0 %v3098
    %3145 = vmatpush1.bf16.msra.mxu0 %v3097
    %3146 = vmatprep.subr.bf16.mxu0 %v3095
    %3147 = vmatpush1.bf16.msra.mxu0 %v3094
    %3148 = vmatprep.subr.bf16.mxu0 %v3092
    %3149 = vmatpush1.bf16.msra.mxu0 %v3091
    %3150 = vmatprep.subr.bf16.mxu0 %v3089
    %3151 = vmatpush1.bf16.msra.mxu0 %v3088
    %3152 = vmatprep.subr.bf16.mxu0 0
    %3153 = vmatpush2.bf16.msra.mxu0 0
    %3154 = vmatprep.subr.bf16.mxu0 0
    %3155 = vmatpush2.bf16.msra.mxu0 0
    %3156 = vmatprep.subr.bf16.mxu0 0
    %3157 = vmatpush2.bf16.msra.mxu0 0
    %3158 = vmatprep.subr.bf16.mxu0 0
    %3159 = vmatpush2.bf16.msra.mxu0 0
    %3160 = vmatprep.subr.bf16.mxu0 0
    %3161 = vmatpush2.bf16.msra.mxu0 0
    %3162 = vmatprep.subr.bf16.mxu0 0
    %3163 = vmatpush2.bf16.msra.mxu0 0
    %3164 = vmatprep.subr.bf16.mxu0 0
    %3165 = vmatpush2.bf16.msra.mxu0 0
    %3166 = vmatprep.subr.bf16.mxu0 0
    %3167 = vmatpush2.bf16.msra.mxu0 0
    %3168 = vmatprep.mubr.bf16.mxu0 0
    %3169 = vmatmul.mubr.bf16.gmra.mxu0 %v2990
    %v3170 = vpop.f32.mrf.mxu0
    %v3171 = vadd.f32 %v2996, %v3170
    %v3172 = vpop.f32.mrf.mxu0
    %v3173 = vadd.f32 %v3000, %v3172
    %v3174 = vpop.f32.mrf.mxu0
    %v3175 = vadd.f32 %v2996, %v3174
    %v3176 = vpop.f32.mrf.mxu0
    %v3177 = vadd.f32 %v3000, %v3176
    %3178 = vmatprep.mubr.bf16.mxu0 0
    %3179 = vmatmul.mubr.bf16.gmra.mxu0 %v2991
    %v3180 = vpop.f32.mrf.mxu0
    %v3181 = vadd.f32 %v2996, %v3180
    %v3182 = vpop.f32.mrf.mxu0
    %v3183 = vadd.f32 %v3000, %v3182
    %v3184 = vpop.f32.mrf.mxu0
    %v3185 = vadd.f32 %v2996, %v3184
    %v3186 = vpop.f32.mrf.mxu0
    %v3187 = vadd.f32 %v3000, %v3186
    %3188 = vdwg.mxu0
    %3189 = vmatprep.subr.bf16.mxu0 0
    %3190 = vmatpush1.bf16.msra.mxu0 %v3111
    %3191 = vmatprep.subr.bf16.mxu0 0
    %3192 = vmatpush1.bf16.msra.mxu0 %v3108
    %3193 = vmatprep.subr.bf16.mxu0 0
    %3194 = vmatpush1.bf16.msra.mxu0 %v3105
    %3195 = vmatprep.subr.bf16.mxu0 0
    %3196 = vmatpush1.bf16.msra.mxu0 %v3102
    %3197 = vmatprep.subr.bf16.mxu0 0
    %3198 = vmatpush1.bf16.msra.mxu0 %v3099
    %3199 = vmatprep.subr.bf16.mxu0 0
    %3200 = vmatpush1.bf16.msra.mxu0 %v3096
    %3201 = vmatprep.subr.bf16.mxu0 0
    %3202 = vmatpush1.bf16.msra.mxu0 %v3093
    %3203 = vmatprep.subr.bf16.mxu0 0
    %3204 = vmatpush1.bf16.msra.mxu0 %v3090
    %3205 = vmatprep.subr.bf16.mxu0 0
    %3206 = vmatpush2.bf16.msra.mxu0 0
    %3207 = vmatprep.subr.bf16.mxu0 0
    %3208 = vmatpush2.bf16.msra.mxu0 0
    %3209 = vmatprep.subr.bf16.mxu0 0
    %3210 = vmatpush2.bf16.msra.mxu0 0
    %3211 = vmatprep.subr.bf16.mxu0 0
    %3212 = vmatpush2.bf16.msra.mxu0 0
    %3213 = vmatprep.subr.bf16.mxu0 0
    %3214 = vmatpush2.bf16.msra.mxu0 0
    %3215 = vmatprep.subr.bf16.mxu0 0
    %3216 = vmatpush2.bf16.msra.mxu0 0
    %3217 = vmatprep.subr.bf16.mxu0 0
    %3218 = vmatpush2.bf16.msra.mxu0 0
    %3219 = vmatprep.subr.bf16.mxu0 0
    %3220 = vmatpush2.bf16.msra.mxu0 0
    %3221 = vmatprep.mubr.bf16.mxu0 0
    %3222 = vmatmul.mubr.bf16.gmra.mxu0 %v2990
    %v3223 = vpop.f32.mrf.mxu0
    %v3224 = vadd.f32 %v3004, %v3223
    %v3225 = vpop.f32.mrf.mxu0
    %v3226 = vpop.f32.mrf.mxu0
    %v3227 = vadd.f32 %v3004, %v3226
    %v3228 = vpop.f32.mrf.mxu0
    %3229 = vmatprep.mubr.bf16.mxu0 0
    %3230 = vmatmul.mubr.bf16.gmra.mxu0 %v2991
    %v3231 = vpop.f32.mrf.mxu0
    %v3232 = vadd.f32 %v3004, %v3231
    %v3233 = vpop.f32.mrf.mxu0
    %v3234 = vpop.f32.mrf.mxu0
    %v3235 = vadd.f32 %v3004, %v3234
    %v3236 = vpop.f32.mrf.mxu0
    %3237 = vdwg.mxu0
    %v3238 = vpack.c.bf16 %v3175, %v3171
    %v3239 = vpack.c.bf16 %v3185, %v3181
    %v3240 = vpack.c.bf16 %v3177, %v3173
    %v3241 = vpack.c.bf16 %v3187, %v3183
    %v3243 = vsel %vm655, %v3238, 0
    %v3246 = vsel %vm655, %v3240, 0
    %3248 = vmatprep.subr.bf16.mxu0 0
    %3249 = vmatpush1.bf16.xpose.msra.mxu0 0
    %3250 = vmatprep.subr.bf16.mxu0 0
    %3251 = vmatpush1.bf16.xpose.msra.mxu0 0
    %3252 = vmatprep.subr.bf16.mxu0 0
    %3253 = vmatpush1.bf16.xpose.msra.mxu0 0
    %3254 = vmatprep.subr.bf16.mxu0 0
    %3255 = vmatpush1.bf16.xpose.msra.mxu0 0
    %3256 = vmatprep.subr.bf16.mxu0 0
    %3257 = vmatpush1.bf16.xpose.msra.mxu0 0
    %3258 = vmatprep.subr.bf16.mxu0 0
    %3259 = vmatpush1.bf16.xpose.msra.mxu0 0
    %3260 = vmatprep.subr.bf16.mxu0 0
    %3261 = vmatpush1.bf16.xpose.msra.mxu0 0
    %3262 = vmatprep.subr.bf16.mxu0 0
    %3263 = vmatpush1.bf16.xpose.msra.mxu0 %v3246
    %3264 = vmatprep.subr.bf16.mxu0 0
    %3265 = vmatpush2.bf16.xpose.msra.mxu0 0
    %3266 = vmatprep.subr.bf16.mxu0 0
    %3267 = vmatpush2.bf16.xpose.msra.mxu0 0
    %3268 = vmatprep.subr.bf16.mxu0 0
    %3269 = vmatpush2.bf16.xpose.msra.mxu0 0
    %3270 = vmatprep.subr.bf16.mxu0 0
    %3271 = vmatpush2.bf16.xpose.msra.mxu0 0
    %3272 = vmatprep.subr.bf16.mxu0 0
    %3273 = vmatpush2.bf16.xpose.msra.mxu0 0
    %3274 = vmatprep.subr.bf16.mxu0 0
    %3275 = vmatpush2.bf16.xpose.msra.mxu0 0
    %3276 = vmatprep.subr.bf16.mxu0 0
    %3277 = vmatpush2.bf16.xpose.msra.mxu0 0
    %3278 = vmatprep.subr.bf16.mxu0 0
    %3279 = vmatpush2.bf16.xpose.msra.mxu0 0
    %3280 = vmatprep.mubr.bf16.mxu0 0
    %3281 = vmatmul.mubr.bf16.gmra.mxu0 %v3243
    %v3282 = vpop.f32.mrf.mxu0
    %v3283 = vadd.f32 0.0, %v3282
    %v3284 = vpop.f32.mrf.mxu0
    %v3285 = vpop.f32.mrf.mxu0
    %v3286 = vadd.f32 0.0, %v3285
    %v3287 = vpop.f32.mrf.mxu0
    %3288 = vdwg.mxu0
    %v3290 = vsel %vm655, %v3239, 0
    %v3293 = vsel %vm655, %v3241, 0
    %3295 = vmatprep.subr.bf16.mxu0 0
    %3296 = vmatpush1.bf16.xpose.msra.mxu0 0
    %3297 = vmatprep.subr.bf16.mxu0 0
    %3298 = vmatpush1.bf16.xpose.msra.mxu0 0
    %3299 = vmatprep.subr.bf16.mxu0 0
    %3300 = vmatpush1.bf16.xpose.msra.mxu0 0
    %3301 = vmatprep.subr.bf16.mxu0 0
    %3302 = vmatpush1.bf16.xpose.msra.mxu0 0
    %3303 = vmatprep.subr.bf16.mxu0 0
    %3304 = vmatpush1.bf16.xpose.msra.mxu0 0
    %3305 = vmatprep.subr.bf16.mxu0 0
    %3306 = vmatpush1.bf16.xpose.msra.mxu0 0
    %3307 = vmatprep.subr.bf16.mxu0 0
    %3308 = vmatpush1.bf16.xpose.msra.mxu0 0
    %3309 = vmatprep.subr.bf16.mxu0 0
    %3310 = vmatpush1.bf16.xpose.msra.mxu0 %v3293
    %3311 = vmatprep.subr.bf16.mxu0 0
    %3312 = vmatpush2.bf16.xpose.msra.mxu0 0
    %3313 = vmatprep.subr.bf16.mxu0 0
    %3314 = vmatpush2.bf16.xpose.msra.mxu0 0
    %3315 = vmatprep.subr.bf16.mxu0 0
    %3316 = vmatpush2.bf16.xpose.msra.mxu0 0
    %3317 = vmatprep.subr.bf16.mxu0 0
    %3318 = vmatpush2.bf16.xpose.msra.mxu0 0
    %3319 = vmatprep.subr.bf16.mxu0 0
    %3320 = vmatpush2.bf16.xpose.msra.mxu0 0
    %3321 = vmatprep.subr.bf16.mxu0 0
    %3322 = vmatpush2.bf16.xpose.msra.mxu0 0
    %3323 = vmatprep.subr.bf16.mxu0 0
    %3324 = vmatpush2.bf16.xpose.msra.mxu0 0
    %3325 = vmatprep.subr.bf16.mxu0 0
    %3326 = vmatpush2.bf16.xpose.msra.mxu0 0
    %3327 = vmatprep.mubr.bf16.mxu0 0
    %3328 = vmatmul.mubr.bf16.gmra.mxu0 %v3290
    %v3329 = vpop.f32.mrf.mxu0
    %v3330 = vadd.f32 0.0, %v3329
    %v3331 = vpop.f32.mrf.mxu0
    %v3332 = vpop.f32.mrf.mxu0
    %v3333 = vadd.f32 0.0, %v3332
    %v3334 = vpop.f32.mrf.mxu0
    %3335 = vdwg.mxu0
    %v3336 = vmul.f32 %v3283, 0.17677669
    %v3337 = vmul.f32 %v3286, 0.17677669
    %v3338 = vmul.f32 %v3330, 0.17677669
    %v3339 = vmul.f32 %v3333, 0.17677669
    %v3340 = vadd.f32 %v3336, %v759
    %v3341 = vadd.f32 %v3337, %v759
    %v3342 = vadd.f32 %v3338, %v763
    %v3343 = vadd.f32 %v3339, %v763
    %v3344 = vsel %vm770, %v3340, -inf
    %3345 = vmax.xlane.f32.xlu0 %v3344
    %v3346 = vpop.xlane.xlu0 %3345
    %v3347 = vsel %vm770, %v3341, -inf
    %3348 = vmax.xlane.f32.xlu0 %v3347
    %v3349 = vpop.xlane.xlu0 %3348
    %v3350 = vsel %vm770, %v3342, -inf
    %3351 = vmax.xlane.f32.xlu0 %v3350
    %v3352 = vpop.xlane.xlu0 %3351
    %v3353 = vsel %vm770, %v3343, -inf
    %3354 = vmax.xlane.f32.xlu0 %v3353
    %v3355 = vpop.xlane.xlu0 %3354
    %v3356 = vsub.f32 %v3340, %v3346
    %v3357 = vsub.f32 %v3341, %v3349
    %v3358 = vsub.f32 %v3342, %v3352
    %v3359 = vsub.f32 %v3343, %v3355
    %v3360 = vmul.f32 %v3356, 1.442695
    %v3361 = vpow.pop %v3360
    %v3362 = vmul.f32 %v3357, 1.442695
    %v3363 = vpow.pop %v3362
    %v3364 = vmul.f32 %v3358, 1.442695
    %v3365 = vpow.pop %v3364
    %v3366 = vmul.f32 %v3359, 1.442695
    %v3367 = vpow.pop %v3366
    %v3368 = vsel %vm770, %v3361, 0.0
    %3369 = vadd.xlane.f32.xlu0 %v3368
    %v3370 = vpop.xlane.xlu0 %3369
    %v3371 = vsel %vm770, %v3363, 0.0
    %3372 = vadd.xlane.f32.xlu0 %v3371
    %v3373 = vpop.xlane.xlu0 %3372
    %v3374 = vsel %vm770, %v3365, 0.0
    %3375 = vadd.xlane.f32.xlu0 %v3374
    %v3376 = vpop.xlane.xlu0 %3375
    %v3377 = vsel %vm770, %v3367, 0.0
    %3378 = vadd.xlane.f32.xlu0 %v3377
    %v3379 = vpop.xlane.xlu0 %3378
    %v3380 = vrcp.pop %v3370
    %v3381 = vrcp.pop %v3373
    %v3382 = vrcp.pop %v3376
    %v3383 = vrcp.pop %v3379
    %v3384 = vmul.f32 %v3361, %v3380
    %v3385 = vmul.f32 %v3363, %v3381
    %v3386 = vmul.f32 %v3365, %v3382
    %v3387 = vmul.f32 %v3367, %v3383
    %v3388 = vpack.c.bf16 %v3385, %v3384
    %v3389 = vpack.c.bf16 %v3387, %v3386
    %v3390 = vpack.c.bf16 %v3227, %v3224
    %v3391 = vpack.c.bf16 %v3235, %v3232
    %v3393 = vsel %vm770, %v3388, 0
    %3395 = vmatprep.subr.bf16.mxu0 0
    %3396 = vmatpush1.bf16.msra.mxu0 0
    %3397 = vmatprep.subr.bf16.mxu0 0
    %3398 = vmatpush1.bf16.msra.mxu0 0
    %3399 = vmatprep.subr.bf16.mxu0 0
    %3400 = vmatpush1.bf16.msra.mxu0 0
    %3401 = vmatprep.subr.bf16.mxu0 0
    %3402 = vmatpush1.bf16.msra.mxu0 0
    %3403 = vmatprep.subr.bf16.mxu0 0
    %3404 = vmatpush1.bf16.msra.mxu0 0
    %3405 = vmatprep.subr.bf16.mxu0 0
    %3406 = vmatpush1.bf16.msra.mxu0 0
    %3407 = vmatprep.subr.bf16.mxu0 0
    %3408 = vmatpush1.bf16.msra.mxu0 0
    %3409 = vmatprep.subr.bf16.mxu0 0
    %3410 = vmatpush1.bf16.msra.mxu0 %v3390
    %3411 = vmatprep.subr.bf16.mxu0 0
    %3412 = vmatpush2.bf16.msra.mxu0 0
    %3413 = vmatprep.subr.bf16.mxu0 0
    %3414 = vmatpush2.bf16.msra.mxu0 0
    %3415 = vmatprep.subr.bf16.mxu0 0
    %3416 = vmatpush2.bf16.msra.mxu0 0
    %3417 = vmatprep.subr.bf16.mxu0 0
    %3418 = vmatpush2.bf16.msra.mxu0 0
    %3419 = vmatprep.subr.bf16.mxu0 0
    %3420 = vmatpush2.bf16.msra.mxu0 0
    %3421 = vmatprep.subr.bf16.mxu0 0
    %3422 = vmatpush2.bf16.msra.mxu0 0
    %3423 = vmatprep.subr.bf16.mxu0 0
    %3424 = vmatpush2.bf16.msra.mxu0 0
    %3425 = vmatprep.subr.bf16.mxu0 0
    %3426 = vmatpush2.bf16.msra.mxu0 0
    %3427 = vmatprep.mubr.bf16.mxu0 0
    %3428 = vmatmul.mubr.bf16.gmra.mxu0 %v3393
    %v3429 = vpop.f32.mrf.mxu0
    %v3430 = vadd.f32 0.0, %v3429
    %v3431 = vpop.f32.mrf.mxu0
    %v3432 = vpop.f32.mrf.mxu0
    %v3433 = vadd.f32 0.0, %v3432
    %v3434 = vpop.f32.mrf.mxu0
    %3435 = vdwg.mxu0
    %v3437 = vsel %vm770, %v3389, 0
    %3439 = vmatprep.subr.bf16.mxu0 0
    %3440 = vmatpush1.bf16.msra.mxu0 0
    %3441 = vmatprep.subr.bf16.mxu0 0
    %3442 = vmatpush1.bf16.msra.mxu0 0
    %3443 = vmatprep.subr.bf16.mxu0 0
    %3444 = vmatpush1.bf16.msra.mxu0 0
    %3445 = vmatprep.subr.bf16.mxu0 0
    %3446 = vmatpush1.bf16.msra.mxu0 0
    %3447 = vmatprep.subr.bf16.mxu0 0
    %3448 = vmatpush1.bf16.msra.mxu0 0
    %3449 = vmatprep.subr.bf16.mxu0 0
    %3450 = vmatpush1.bf16.msra.mxu0 0
    %3451 = vmatprep.subr.bf16.mxu0 0
    %3452 = vmatpush1.bf16.msra.mxu0 0
    %3453 = vmatprep.subr.bf16.mxu0 0
    %3454 = vmatpush1.bf16.msra.mxu0 %v3391
    %3455 = vmatprep.subr.bf16.mxu0 0
    %3456 = vmatpush2.bf16.msra.mxu0 0
    %3457 = vmatprep.subr.bf16.mxu0 0
    %3458 = vmatpush2.bf16.msra.mxu0 0
    %3459 = vmatprep.subr.bf16.mxu0 0
    %3460 = vmatpush2.bf16.msra.mxu0 0
    %3461 = vmatprep.subr.bf16.mxu0 0
    %3462 = vmatpush2.bf16.msra.mxu0 0
    %3463 = vmatprep.subr.bf16.mxu0 0
    %3464 = vmatpush2.bf16.msra.mxu0 0
    %3465 = vmatprep.subr.bf16.mxu0 0
    %3466 = vmatpush2.bf16.msra.mxu0 0
    %3467 = vmatprep.subr.bf16.mxu0 0
    %3468 = vmatpush2.bf16.msra.mxu0 0
    %3469 = vmatprep.subr.bf16.mxu0 0
    %3470 = vmatpush2.bf16.msra.mxu0 0
    %3471 = vmatprep.mubr.bf16.mxu0 0
    %3472 = vmatmul.mubr.bf16.gmra.mxu0 %v3437
    %v3473 = vpop.f32.mrf.mxu0
    %v3474 = vadd.f32 0.0, %v3473
    %v3475 = vpop.f32.mrf.mxu0
    %v3476 = vpop.f32.mrf.mxu0
    %v3477 = vadd.f32 0.0, %v3476
    %v3478 = vpop.f32.mrf.mxu0
    %3479 = vdwg.mxu0
    %v3480 = vpack.c.bf16 %v3433, %v3430
    %v3481 = vpack.c.bf16 %v3477, %v3474
    %3483 = vrot.lane.b32.xlu0 %v3238, 96
    %v3484 = vpop.permute.xlu0 %3483
    %3486 = vrot.lane.b32.xlu0 %v3240, 96
    %v3487 = vpop.permute.xlu0 %3486
    %v3489 = vsel %vm655, %v3484, 0
    %v3492 = vsel %vm655, %v3487, 0
    %3494 = vmatprep.subr.bf16.mxu0 0
    %3495 = vmatpush1.bf16.xpose.msra.mxu0 0
    %3496 = vmatprep.subr.bf16.mxu0 0
    %3497 = vmatpush1.bf16.xpose.msra.mxu0 0
    %3498 = vmatprep.subr.bf16.mxu0 0
    %3499 = vmatpush1.bf16.xpose.msra.mxu0 0
    %3500 = vmatprep.subr.bf16.mxu0 0
    %3501 = vmatpush1.bf16.xpose.msra.mxu0 0
    %3502 = vmatprep.subr.bf16.mxu0 0
    %3503 = vmatpush1.bf16.xpose.msra.mxu0 0
    %3504 = vmatprep.subr.bf16.mxu0 0
    %3505 = vmatpush1.bf16.xpose.msra.mxu0 0
    %3506 = vmatprep.subr.bf16.mxu0 0
    %3507 = vmatpush1.bf16.xpose.msra.mxu0 0
    %3508 = vmatprep.subr.bf16.mxu0 0
    %3509 = vmatpush1.bf16.xpose.msra.mxu0 %v3492
    %3510 = vmatprep.subr.bf16.mxu0 0
    %3511 = vmatpush2.bf16.xpose.msra.mxu0 0
    %3512 = vmatprep.subr.bf16.mxu0 0
    %3513 = vmatpush2.bf16.xpose.msra.mxu0 0
    %3514 = vmatprep.subr.bf16.mxu0 0
    %3515 = vmatpush2.bf16.xpose.msra.mxu0 0
    %3516 = vmatprep.subr.bf16.mxu0 0
    %3517 = vmatpush2.bf16.xpose.msra.mxu0 0
    %3518 = vmatprep.subr.bf16.mxu0 0
    %3519 = vmatpush2.bf16.xpose.msra.mxu0 0
    %3520 = vmatprep.subr.bf16.mxu0 0
    %3521 = vmatpush2.bf16.xpose.msra.mxu0 0
    %3522 = vmatprep.subr.bf16.mxu0 0
    %3523 = vmatpush2.bf16.xpose.msra.mxu0 0
    %3524 = vmatprep.subr.bf16.mxu0 0
    %3525 = vmatpush2.bf16.xpose.msra.mxu0 0
    %3526 = vmatprep.mubr.bf16.mxu0 0
    %3527 = vmatmul.mubr.bf16.gmra.mxu0 %v3489
    %v3528 = vpop.f32.mrf.mxu0
    %v3529 = vadd.f32 0.0, %v3528
    %v3530 = vpop.f32.mrf.mxu0
    %v3531 = vpop.f32.mrf.mxu0
    %v3532 = vadd.f32 0.0, %v3531
    %v3533 = vpop.f32.mrf.mxu0
    %3534 = vdwg.mxu0
    %3536 = vrot.lane.b32.xlu0 %v3239, 96
    %v3537 = vpop.permute.xlu0 %3536
    %3539 = vrot.lane.b32.xlu0 %v3241, 96
    %v3540 = vpop.permute.xlu0 %3539
    %v3542 = vsel %vm655, %v3537, 0
    %v3545 = vsel %vm655, %v3540, 0
    %3547 = vmatprep.subr.bf16.mxu0 0
    %3548 = vmatpush1.bf16.xpose.msra.mxu0 0
    %3549 = vmatprep.subr.bf16.mxu0 0
    %3550 = vmatpush1.bf16.xpose.msra.mxu0 0
    %3551 = vmatprep.subr.bf16.mxu0 0
    %3552 = vmatpush1.bf16.xpose.msra.mxu0 0
    %3553 = vmatprep.subr.bf16.mxu0 0
    %3554 = vmatpush1.bf16.xpose.msra.mxu0 0
    %3555 = vmatprep.subr.bf16.mxu0 0
    %3556 = vmatpush1.bf16.xpose.msra.mxu0 0
    %3557 = vmatprep.subr.bf16.mxu0 0
    %3558 = vmatpush1.bf16.xpose.msra.mxu0 0
    %3559 = vmatprep.subr.bf16.mxu0 0
    %3560 = vmatpush1.bf16.xpose.msra.mxu0 0
    %3561 = vmatprep.subr.bf16.mxu0 0
    %3562 = vmatpush1.bf16.xpose.msra.mxu0 %v3545
    %3563 = vmatprep.subr.bf16.mxu0 0
    %3564 = vmatpush2.bf16.xpose.msra.mxu0 0
    %3565 = vmatprep.subr.bf16.mxu0 0
    %3566 = vmatpush2.bf16.xpose.msra.mxu0 0
    %3567 = vmatprep.subr.bf16.mxu0 0
    %3568 = vmatpush2.bf16.xpose.msra.mxu0 0
    %3569 = vmatprep.subr.bf16.mxu0 0
    %3570 = vmatpush2.bf16.xpose.msra.mxu0 0
    %3571 = vmatprep.subr.bf16.mxu0 0
    %3572 = vmatpush2.bf16.xpose.msra.mxu0 0
    %3573 = vmatprep.subr.bf16.mxu0 0
    %3574 = vmatpush2.bf16.xpose.msra.mxu0 0
    %3575 = vmatprep.subr.bf16.mxu0 0
    %3576 = vmatpush2.bf16.xpose.msra.mxu0 0
    %3577 = vmatprep.subr.bf16.mxu0 0
    %3578 = vmatpush2.bf16.xpose.msra.mxu0 0
    %3579 = vmatprep.mubr.bf16.mxu0 0
    %3580 = vmatmul.mubr.bf16.gmra.mxu0 %v3542
    %v3581 = vpop.f32.mrf.mxu0
    %v3582 = vadd.f32 0.0, %v3581
    %v3583 = vpop.f32.mrf.mxu0
    %v3584 = vpop.f32.mrf.mxu0
    %v3585 = vadd.f32 0.0, %v3584
    %v3586 = vpop.f32.mrf.mxu0
    %3587 = vdwg.mxu0
    %v3588 = vmul.f32 %v3529, 0.17677669
    %v3589 = vmul.f32 %v3532, 0.17677669
    %v3590 = vmul.f32 %v3582, 0.17677669
    %v3591 = vmul.f32 %v3585, 0.17677669
    %v3592 = vadd.f32 %v3588, %v759
    %v3593 = vadd.f32 %v3589, %v759
    %v3594 = vadd.f32 %v3590, %v763
    %v3595 = vadd.f32 %v3591, %v763
    %v3596 = vsel %vm770, %v3592, -inf
    %3597 = vmax.xlane.f32.xlu0 %v3596
    %v3598 = vpop.xlane.xlu0 %3597
    %v3599 = vsel %vm770, %v3593, -inf
    %3600 = vmax.xlane.f32.xlu0 %v3599
    %v3601 = vpop.xlane.xlu0 %3600
    %v3602 = vsel %vm770, %v3594, -inf
    %3603 = vmax.xlane.f32.xlu0 %v3602
    %v3604 = vpop.xlane.xlu0 %3603
    %v3605 = vsel %vm770, %v3595, -inf
    %3606 = vmax.xlane.f32.xlu0 %v3605
    %v3607 = vpop.xlane.xlu0 %3606
    %v3608 = vsub.f32 %v3592, %v3598
    %v3609 = vsub.f32 %v3593, %v3601
    %v3610 = vsub.f32 %v3594, %v3604
    %v3611 = vsub.f32 %v3595, %v3607
    %v3612 = vmul.f32 %v3608, 1.442695
    %v3613 = vpow.pop %v3612
    %v3614 = vmul.f32 %v3609, 1.442695
    %v3615 = vpow.pop %v3614
    %v3616 = vmul.f32 %v3610, 1.442695
    %v3617 = vpow.pop %v3616
    %v3618 = vmul.f32 %v3611, 1.442695
    %v3619 = vpow.pop %v3618
    %v3620 = vsel %vm770, %v3613, 0.0
    %3621 = vadd.xlane.f32.xlu0 %v3620
    %v3622 = vpop.xlane.xlu0 %3621
    %v3623 = vsel %vm770, %v3615, 0.0
    %3624 = vadd.xlane.f32.xlu0 %v3623
    %v3625 = vpop.xlane.xlu0 %3624
    %v3626 = vsel %vm770, %v3617, 0.0
    %3627 = vadd.xlane.f32.xlu0 %v3626
    %v3628 = vpop.xlane.xlu0 %3627
    %v3629 = vsel %vm770, %v3619, 0.0
    %3630 = vadd.xlane.f32.xlu0 %v3629
    %v3631 = vpop.xlane.xlu0 %3630
    %v3632 = vrcp.pop %v3622
    %v3633 = vrcp.pop %v3625
    %v3634 = vrcp.pop %v3628
    %v3635 = vrcp.pop %v3631
    %v3636 = vmul.f32 %v3613, %v3632
    %v3637 = vmul.f32 %v3615, %v3633
    %v3638 = vmul.f32 %v3617, %v3634
    %v3639 = vmul.f32 %v3619, %v3635
    %v3640 = vpack.c.bf16 %v3637, %v3636
    %v3641 = vpack.c.bf16 %v3639, %v3638
    %3643 = vrot.lane.b32.xlu0 %v3390, 96
    %v3644 = vpop.permute.xlu0 %3643
    %v3647 = vsel %vm770, %v3640, 0
    %3649 = vmatprep.subr.bf16.mxu0 0
    %3650 = vmatpush1.bf16.msra.mxu0 0
    %3651 = vmatprep.subr.bf16.mxu0 0
    %3652 = vmatpush1.bf16.msra.mxu0 0
    %3653 = vmatprep.subr.bf16.mxu0 0
    %3654 = vmatpush1.bf16.msra.mxu0 0
    %3655 = vmatprep.subr.bf16.mxu0 0
    %3656 = vmatpush1.bf16.msra.mxu0 0
    %3657 = vmatprep.subr.bf16.mxu0 0
    %3658 = vmatpush1.bf16.msra.mxu0 0
    %3659 = vmatprep.subr.bf16.mxu0 0
    %3660 = vmatpush1.bf16.msra.mxu0 0
    %3661 = vmatprep.subr.bf16.mxu0 0
    %3662 = vmatpush1.bf16.msra.mxu0 0
    %3663 = vmatprep.subr.bf16.mxu0 0
    %3664 = vmatpush1.bf16.msra.mxu0 %v3644
    %3665 = vmatprep.subr.bf16.mxu0 0
    %3666 = vmatpush2.bf16.msra.mxu0 0
    %3667 = vmatprep.subr.bf16.mxu0 0
    %3668 = vmatpush2.bf16.msra.mxu0 0
    %3669 = vmatprep.subr.bf16.mxu0 0
    %3670 = vmatpush2.bf16.msra.mxu0 0
    %3671 = vmatprep.subr.bf16.mxu0 0
    %3672 = vmatpush2.bf16.msra.mxu0 0
    %3673 = vmatprep.subr.bf16.mxu0 0
    %3674 = vmatpush2.bf16.msra.mxu0 0
    %3675 = vmatprep.subr.bf16.mxu0 0
    %3676 = vmatpush2.bf16.msra.mxu0 0
    %3677 = vmatprep.subr.bf16.mxu0 0
    %3678 = vmatpush2.bf16.msra.mxu0 0
    %3679 = vmatprep.subr.bf16.mxu0 0
    %3680 = vmatpush2.bf16.msra.mxu0 0
    %3681 = vmatprep.mubr.bf16.mxu0 0
    %3682 = vmatmul.mubr.bf16.gmra.mxu0 %v3647
    %v3683 = vpop.f32.mrf.mxu0
    %v3684 = vadd.f32 0.0, %v3683
    %v3685 = vpop.f32.mrf.mxu0
    %v3686 = vpop.f32.mrf.mxu0
    %v3687 = vadd.f32 0.0, %v3686
    %v3688 = vpop.f32.mrf.mxu0
    %3689 = vdwg.mxu0
    %3691 = vrot.lane.b32.xlu0 %v3391, 96
    %v3692 = vpop.permute.xlu0 %3691
    %v3695 = vsel %vm770, %v3641, 0
    %3697 = vmatprep.subr.bf16.mxu0 0
    %3698 = vmatpush1.bf16.msra.mxu0 0
    %3699 = vmatprep.subr.bf16.mxu0 0
    %3700 = vmatpush1.bf16.msra.mxu0 0
    %3701 = vmatprep.subr.bf16.mxu0 0
    %3702 = vmatpush1.bf16.msra.mxu0 0
    %3703 = vmatprep.subr.bf16.mxu0 0
    %3704 = vmatpush1.bf16.msra.mxu0 0
    %3705 = vmatprep.subr.bf16.mxu0 0
    %3706 = vmatpush1.bf16.msra.mxu0 0
    %3707 = vmatprep.subr.bf16.mxu0 0
    %3708 = vmatpush1.bf16.msra.mxu0 0
    %3709 = vmatprep.subr.bf16.mxu0 0
    %3710 = vmatpush1.bf16.msra.mxu0 0
    %3711 = vmatprep.subr.bf16.mxu0 0
    %3712 = vmatpush1.bf16.msra.mxu0 %v3692
    %3713 = vmatprep.subr.bf16.mxu0 0
    %3714 = vmatpush2.bf16.msra.mxu0 0
    %3715 = vmatprep.subr.bf16.mxu0 0
    %3716 = vmatpush2.bf16.msra.mxu0 0
    %3717 = vmatprep.subr.bf16.mxu0 0
    %3718 = vmatpush2.bf16.msra.mxu0 0
    %3719 = vmatprep.subr.bf16.mxu0 0
    %3720 = vmatpush2.bf16.msra.mxu0 0
    %3721 = vmatprep.subr.bf16.mxu0 0
    %3722 = vmatpush2.bf16.msra.mxu0 0
    %3723 = vmatprep.subr.bf16.mxu0 0
    %3724 = vmatpush2.bf16.msra.mxu0 0
    %3725 = vmatprep.subr.bf16.mxu0 0
    %3726 = vmatpush2.bf16.msra.mxu0 0
    %3727 = vmatprep.subr.bf16.mxu0 0
    %3728 = vmatpush2.bf16.msra.mxu0 0
    %3729 = vmatprep.mubr.bf16.mxu0 0
    %3730 = vmatmul.mubr.bf16.gmra.mxu0 %v3695
    %v3731 = vpop.f32.mrf.mxu0
    %v3732 = vadd.f32 0.0, %v3731
    %v3733 = vpop.f32.mrf.mxu0
    %v3734 = vpop.f32.mrf.mxu0
    %v3735 = vadd.f32 0.0, %v3734
    %v3736 = vpop.f32.mrf.mxu0
    %3737 = vdwg.mxu0
    %v3738 = vpack.c.bf16 %v3687, %v3684
    %v3739 = vpack.c.bf16 %v3735, %v3732
    %v3744 = vunpack.c.l.b16 %v2976
    %v3745 = vunpack.c.l.b16 %v2977
    %v3746 = vunpack.c.l.b16 %v2978
    %v3747 = vunpack.c.l.b16 %v2979
    %v3748 = vpack.c.b16 %v3745, %v3744
    %v3749 = vpack.c.b16 %v3747, %v3746
    %v3753 = vsel %vm655, %v3738, 0
    %v3756 = vsel %vm655, %v3739, 0
    %3758 = vmatprep.subr.bf16.mxu0 0
    %3759 = vmatpush1.bf16.msra.mxu0 0
    %3760 = vmatprep.subr.bf16.mxu0 0
    %3761 = vmatpush1.bf16.msra.mxu0 0
    %3762 = vmatprep.subr.bf16.mxu0 0
    %3763 = vmatpush1.bf16.msra.mxu0 0
    %3764 = vmatprep.subr.bf16.mxu0 0
    %3765 = vmatpush1.bf16.msra.mxu0 0
    %3766 = vmatprep.subr.bf16.mxu0 0
    %3767 = vmatpush1.bf16.msra.mxu0 0
    %3768 = vmatprep.subr.bf16.mxu0 0
    %3769 = vmatpush1.bf16.msra.mxu0 0
    %3770 = vmatprep.subr.bf16.mxu0 0
    %3771 = vmatpush1.bf16.msra.mxu0 %v3749
    %3772 = vmatprep.subr.bf16.mxu0 0
    %3773 = vmatpush1.bf16.msra.mxu0 %v3748
    %3774 = vmatprep.subr.bf16.mxu0 0
    %3775 = vmatpush2.bf16.msra.mxu0 0
    %3776 = vmatprep.subr.bf16.mxu0 0
    %3777 = vmatpush2.bf16.msra.mxu0 0
    %3778 = vmatprep.subr.bf16.mxu0 0
    %3779 = vmatpush2.bf16.msra.mxu0 0
    %3780 = vmatprep.subr.bf16.mxu0 0
    %3781 = vmatpush2.bf16.msra.mxu0 0
    %3782 = vmatprep.subr.bf16.mxu0 0
    %3783 = vmatpush2.bf16.msra.mxu0 0
    %3784 = vmatprep.subr.bf16.mxu0 0
    %3785 = vmatpush2.bf16.msra.mxu0 0
    %3786 = vmatprep.subr.bf16.mxu0 0
    %3787 = vmatpush2.bf16.msra.mxu0 0
    %3788 = vmatprep.subr.bf16.mxu0 0
    %3789 = vmatpush2.bf16.msra.mxu0 0
    %3790 = vmatprep.mubr.bf16.mxu0 0
    %3791 = vmatmul.mubr.bf16.gmra.mxu0 %v3753
    %v3792 = vpop.f32.mrf.mxu0
    %v3793 = vadd.f32 0.0, %v3792
    %v3794 = vpop.f32.mrf.mxu0
    %v3795 = vpop.f32.mrf.mxu0
    %v3796 = vadd.f32 0.0, %v3795
    %v3797 = vpop.f32.mrf.mxu0
    %3798 = vmatprep.mubr.bf16.mxu0 0
    %3799 = vmatmul.mubr.bf16.gmra.mxu0 %v3756
    %v3800 = vpop.f32.mrf.mxu0
    %v3801 = vadd.f32 0.0, %v3800
    %v3802 = vpop.f32.mrf.mxu0
    %v3803 = vpop.f32.mrf.mxu0
    %v3804 = vadd.f32 0.0, %v3803
    %v3805 = vpop.f32.mrf.mxu0
    %3806 = vdwg.mxu0
    %v3811 = vunpack.c.l.b16 %v2972
    %v3812 = vunpack.c.l.b16 %v2973
    %v3813 = vunpack.c.l.b16 %v2974
    %v3814 = vunpack.c.l.b16 %v2975
    %v3815 = vpack.c.b16 %v3812, %v3811
    %v3816 = vpack.c.b16 %v3814, %v3813
    %v3820 = vsel %vm655, %v3480, 0
    %v3823 = vsel %vm655, %v3481, 0
    %3825 = vmatprep.subr.bf16.mxu0 0
    %3826 = vmatpush1.bf16.msra.mxu0 0
    %3827 = vmatprep.subr.bf16.mxu0 0
    %3828 = vmatpush1.bf16.msra.mxu0 0
    %3829 = vmatprep.subr.bf16.mxu0 0
    %3830 = vmatpush1.bf16.msra.mxu0 0
    %3831 = vmatprep.subr.bf16.mxu0 0
    %3832 = vmatpush1.bf16.msra.mxu0 0
    %3833 = vmatprep.subr.bf16.mxu0 0
    %3834 = vmatpush1.bf16.msra.mxu0 0
    %3835 = vmatprep.subr.bf16.mxu0 0
    %3836 = vmatpush1.bf16.msra.mxu0 0
    %3837 = vmatprep.subr.bf16.mxu0 0
    %3838 = vmatpush1.bf16.msra.mxu0 %v3816
    %3839 = vmatprep.subr.bf16.mxu0 0
    %3840 = vmatpush1.bf16.msra.mxu0 %v3815
    %3841 = vmatprep.subr.bf16.mxu0 0
    %3842 = vmatpush2.bf16.msra.mxu0 0
    %3843 = vmatprep.subr.bf16.mxu0 0
    %3844 = vmatpush2.bf16.msra.mxu0 0
    %3845 = vmatprep.subr.bf16.mxu0 0
    %3846 = vmatpush2.bf16.msra.mxu0 0
    %3847 = vmatprep.subr.bf16.mxu0 0
    %3848 = vmatpush2.bf16.msra.mxu0 0
    %3849 = vmatprep.subr.bf16.mxu0 0
    %3850 = vmatpush2.bf16.msra.mxu0 0
    %3851 = vmatprep.subr.bf16.mxu0 0
    %3852 = vmatpush2.bf16.msra.mxu0 0
    %3853 = vmatprep.subr.bf16.mxu0 0
    %3854 = vmatpush2.bf16.msra.mxu0 0
    %3855 = vmatprep.subr.bf16.mxu0 0
    %3856 = vmatpush2.bf16.msra.mxu0 0
    %3857 = vmatprep.mubr.bf16.mxu0 0
    %3858 = vmatmul.mubr.bf16.gmra.mxu0 %v3820
    %v3859 = vpop.f32.mrf.mxu0
    %v3860 = vadd.f32 %v3793, %v3859
    %v3861 = vpop.f32.mrf.mxu0
    %v3862 = vpop.f32.mrf.mxu0
    %v3863 = vadd.f32 %v3796, %v3862
    %v3864 = vpop.f32.mrf.mxu0
    %3865 = vmatprep.mubr.bf16.mxu0 0
    %3866 = vmatmul.mubr.bf16.gmra.mxu0 %v3823
    %v3867 = vpop.f32.mrf.mxu0
    %v3868 = vadd.f32 %v3801, %v3867
    %v3869 = vpop.f32.mrf.mxu0
    %v3870 = vpop.f32.mrf.mxu0
    %v3871 = vadd.f32 %v3804, %v3870
    %v3872 = vpop.f32.mrf.mxu0
    %3873 = vdwg.mxu0
    %3874 = vrot.lane.b32.xlu0 %v3238, 64
    %v3875 = vpop.permute.xlu0 %3874
    %3876 = vrot.lane.b32.xlu0 %v3240, 64
    %v3877 = vpop.permute.xlu0 %3876
    %v3879 = vsel %vm655, %v3875, 0
    %v3882 = vsel %vm655, %v3877, 0
    %3884 = vmatprep.subr.bf16.mxu0 0
    %3885 = vmatpush1.bf16.xpose.msra.mxu0 0
    %3886 = vmatprep.subr.bf16.mxu0 0
    %3887 = vmatpush1.bf16.xpose.msra.mxu0 0
    %3888 = vmatprep.subr.bf16.mxu0 0
    %3889 = vmatpush1.bf16.xpose.msra.mxu0 0
    %3890 = vmatprep.subr.bf16.mxu0 0
    %3891 = vmatpush1.bf16.xpose.msra.mxu0 0
    %3892 = vmatprep.subr.bf16.mxu0 0
    %3893 = vmatpush1.bf16.xpose.msra.mxu0 0
    %3894 = vmatprep.subr.bf16.mxu0 0
    %3895 = vmatpush1.bf16.xpose.msra.mxu0 0
    %3896 = vmatprep.subr.bf16.mxu0 0
    %3897 = vmatpush1.bf16.xpose.msra.mxu0 0
    %3898 = vmatprep.subr.bf16.mxu0 0
    %3899 = vmatpush1.bf16.xpose.msra.mxu0 %v3882
    %3900 = vmatprep.subr.bf16.mxu0 0
    %3901 = vmatpush2.bf16.xpose.msra.mxu0 0
    %3902 = vmatprep.subr.bf16.mxu0 0
    %3903 = vmatpush2.bf16.xpose.msra.mxu0 0
    %3904 = vmatprep.subr.bf16.mxu0 0
    %3905 = vmatpush2.bf16.xpose.msra.mxu0 0
    %3906 = vmatprep.subr.bf16.mxu0 0
    %3907 = vmatpush2.bf16.xpose.msra.mxu0 0
    %3908 = vmatprep.subr.bf16.mxu0 0
    %3909 = vmatpush2.bf16.xpose.msra.mxu0 0
    %3910 = vmatprep.subr.bf16.mxu0 0
    %3911 = vmatpush2.bf16.xpose.msra.mxu0 0
    %3912 = vmatprep.subr.bf16.mxu0 0
    %3913 = vmatpush2.bf16.xpose.msra.mxu0 0
    %3914 = vmatprep.subr.bf16.mxu0 0
    %3915 = vmatpush2.bf16.xpose.msra.mxu0 0
    %3916 = vmatprep.mubr.bf16.mxu0 0
    %3917 = vmatmul.mubr.bf16.gmra.mxu0 %v3879
    %v3918 = vpop.f32.mrf.mxu0
    %v3919 = vadd.f32 0.0, %v3918
    %v3920 = vpop.f32.mrf.mxu0
    %v3921 = vpop.f32.mrf.mxu0
    %v3922 = vadd.f32 0.0, %v3921
    %v3923 = vpop.f32.mrf.mxu0
    %3924 = vdwg.mxu0
    %3925 = vrot.lane.b32.xlu0 %v3239, 64
    %v3926 = vpop.permute.xlu0 %3925
    %3927 = vrot.lane.b32.xlu0 %v3241, 64
    %v3928 = vpop.permute.xlu0 %3927
    %v3930 = vsel %vm655, %v3926, 0
    %v3933 = vsel %vm655, %v3928, 0
    %3935 = vmatprep.subr.bf16.mxu0 0
    %3936 = vmatpush1.bf16.xpose.msra.mxu0 0
    %3937 = vmatprep.subr.bf16.mxu0 0
    %3938 = vmatpush1.bf16.xpose.msra.mxu0 0
    %3939 = vmatprep.subr.bf16.mxu0 0
    %3940 = vmatpush1.bf16.xpose.msra.mxu0 0
    %3941 = vmatprep.subr.bf16.mxu0 0
    %3942 = vmatpush1.bf16.xpose.msra.mxu0 0
    %3943 = vmatprep.subr.bf16.mxu0 0
    %3944 = vmatpush1.bf16.xpose.msra.mxu0 0
    %3945 = vmatprep.subr.bf16.mxu0 0
    %3946 = vmatpush1.bf16.xpose.msra.mxu0 0
    %3947 = vmatprep.subr.bf16.mxu0 0
    %3948 = vmatpush1.bf16.xpose.msra.mxu0 0
    %3949 = vmatprep.subr.bf16.mxu0 0
    %3950 = vmatpush1.bf16.xpose.msra.mxu0 %v3933
    %3951 = vmatprep.subr.bf16.mxu0 0
    %3952 = vmatpush2.bf16.xpose.msra.mxu0 0
    %3953 = vmatprep.subr.bf16.mxu0 0
    %3954 = vmatpush2.bf16.xpose.msra.mxu0 0
    %3955 = vmatprep.subr.bf16.mxu0 0
    %3956 = vmatpush2.bf16.xpose.msra.mxu0 0
    %3957 = vmatprep.subr.bf16.mxu0 0
    %3958 = vmatpush2.bf16.xpose.msra.mxu0 0
    %3959 = vmatprep.subr.bf16.mxu0 0
    %3960 = vmatpush2.bf16.xpose.msra.mxu0 0
    %3961 = vmatprep.subr.bf16.mxu0 0
    %3962 = vmatpush2.bf16.xpose.msra.mxu0 0
    %3963 = vmatprep.subr.bf16.mxu0 0
    %3964 = vmatpush2.bf16.xpose.msra.mxu0 0
    %3965 = vmatprep.subr.bf16.mxu0 0
    %3966 = vmatpush2.bf16.xpose.msra.mxu0 0
    %3967 = vmatprep.mubr.bf16.mxu0 0
    %3968 = vmatmul.mubr.bf16.gmra.mxu0 %v3930
    %v3969 = vpop.f32.mrf.mxu0
    %v3970 = vadd.f32 0.0, %v3969
    %v3971 = vpop.f32.mrf.mxu0
    %v3972 = vpop.f32.mrf.mxu0
    %v3973 = vadd.f32 0.0, %v3972
    %v3974 = vpop.f32.mrf.mxu0
    %3975 = vdwg.mxu0
    %v3976 = vmul.f32 %v3919, 0.17677669
    %v3977 = vmul.f32 %v3922, 0.17677669
    %v3978 = vmul.f32 %v3970, 0.17677669
    %v3979 = vmul.f32 %v3973, 0.17677669
    %v3980 = vadd.f32 %v3976, %v759
    %v3981 = vadd.f32 %v3977, %v759
    %v3982 = vadd.f32 %v3978, %v763
    %v3983 = vadd.f32 %v3979, %v763
    %v3984 = vsel %vm770, %v3980, -inf
    %3985 = vmax.xlane.f32.xlu0 %v3984
    %v3986 = vpop.xlane.xlu0 %3985
    %v3987 = vsel %vm770, %v3981, -inf
    %3988 = vmax.xlane.f32.xlu0 %v3987
    %v3989 = vpop.xlane.xlu0 %3988
    %v3990 = vsel %vm770, %v3982, -inf
    %3991 = vmax.xlane.f32.xlu0 %v3990
    %v3992 = vpop.xlane.xlu0 %3991
    %v3993 = vsel %vm770, %v3983, -inf
    %3994 = vmax.xlane.f32.xlu0 %v3993
    %v3995 = vpop.xlane.xlu0 %3994
    %v3996 = vsub.f32 %v3980, %v3986
    %v3997 = vsub.f32 %v3981, %v3989
    %v3998 = vsub.f32 %v3982, %v3992
    %v3999 = vsub.f32 %v3983, %v3995
    %v4000 = vmul.f32 %v3996, 1.442695
    %v4001 = vpow.pop %v4000
    %v4002 = vmul.f32 %v3997, 1.442695
    %v4003 = vpow.pop %v4002
    %v4004 = vmul.f32 %v3998, 1.442695
    %v4005 = vpow.pop %v4004
    %v4006 = vmul.f32 %v3999, 1.442695
    %v4007 = vpow.pop %v4006
    %v4008 = vsel %vm770, %v4001, 0.0
    %4009 = vadd.xlane.f32.xlu0 %v4008
    %v4010 = vpop.xlane.xlu0 %4009
    %v4011 = vsel %vm770, %v4003, 0.0
    %4012 = vadd.xlane.f32.xlu0 %v4011
    %v4013 = vpop.xlane.xlu0 %4012
    %v4014 = vsel %vm770, %v4005, 0.0
    %4015 = vadd.xlane.f32.xlu0 %v4014
    %v4016 = vpop.xlane.xlu0 %4015
    %v4017 = vsel %vm770, %v4007, 0.0
    %4018 = vadd.xlane.f32.xlu0 %v4017
    %v4019 = vpop.xlane.xlu0 %4018
    %v4020 = vrcp.pop %v4010
    %v4021 = vrcp.pop %v4013
    %v4022 = vrcp.pop %v4016
    %v4023 = vrcp.pop %v4019
    %v4024 = vmul.f32 %v4001, %v4020
    %v4025 = vmul.f32 %v4003, %v4021
    %v4026 = vmul.f32 %v4005, %v4022
    %v4027 = vmul.f32 %v4007, %v4023
    %v4028 = vpack.c.bf16 %v4025, %v4024
    %v4029 = vpack.c.bf16 %v4027, %v4026
    %4030 = vrot.lane.b32.xlu0 %v3390, 64
    %v4031 = vpop.permute.xlu0 %4030
    %v4034 = vsel %vm770, %v4028, 0
    %4036 = vmatprep.subr.bf16.mxu0 0
    %4037 = vmatpush1.bf16.msra.mxu0 0
    %4038 = vmatprep.subr.bf16.mxu0 0
    %4039 = vmatpush1.bf16.msra.mxu0 0
    %4040 = vmatprep.subr.bf16.mxu0 0
    %4041 = vmatpush1.bf16.msra.mxu0 0
    %4042 = vmatprep.subr.bf16.mxu0 0
    %4043 = vmatpush1.bf16.msra.mxu0 0
    %4044 = vmatprep.subr.bf16.mxu0 0
    %4045 = vmatpush1.bf16.msra.mxu0 0
    %4046 = vmatprep.subr.bf16.mxu0 0
    %4047 = vmatpush1.bf16.msra.mxu0 0
    %4048 = vmatprep.subr.bf16.mxu0 0
    %4049 = vmatpush1.bf16.msra.mxu0 0
    %4050 = vmatprep.subr.bf16.mxu0 0
    %4051 = vmatpush1.bf16.msra.mxu0 %v4031
    %4052 = vmatprep.subr.bf16.mxu0 0
    %4053 = vmatpush2.bf16.msra.mxu0 0
    %4054 = vmatprep.subr.bf16.mxu0 0
    %4055 = vmatpush2.bf16.msra.mxu0 0
    %4056 = vmatprep.subr.bf16.mxu0 0
    %4057 = vmatpush2.bf16.msra.mxu0 0
    %4058 = vmatprep.subr.bf16.mxu0 0
    %4059 = vmatpush2.bf16.msra.mxu0 0
    %4060 = vmatprep.subr.bf16.mxu0 0
    %4061 = vmatpush2.bf16.msra.mxu0 0
    %4062 = vmatprep.subr.bf16.mxu0 0
    %4063 = vmatpush2.bf16.msra.mxu0 0
    %4064 = vmatprep.subr.bf16.mxu0 0
    %4065 = vmatpush2.bf16.msra.mxu0 0
    %4066 = vmatprep.subr.bf16.mxu0 0
    %4067 = vmatpush2.bf16.msra.mxu0 0
    %4068 = vmatprep.mubr.bf16.mxu0 0
    %4069 = vmatmul.mubr.bf16.gmra.mxu0 %v4034
    %v4070 = vpop.f32.mrf.mxu0
    %v4071 = vadd.f32 0.0, %v4070
    %v4072 = vpop.f32.mrf.mxu0
    %v4073 = vpop.f32.mrf.mxu0
    %v4074 = vadd.f32 0.0, %v4073
    %v4075 = vpop.f32.mrf.mxu0
    %4076 = vdwg.mxu0
    %4077 = vrot.lane.b32.xlu0 %v3391, 64
    %v4078 = vpop.permute.xlu0 %4077
    %v4081 = vsel %vm770, %v4029, 0
    %4083 = vmatprep.subr.bf16.mxu0 0
    %4084 = vmatpush1.bf16.msra.mxu0 0
    %4085 = vmatprep.subr.bf16.mxu0 0
    %4086 = vmatpush1.bf16.msra.mxu0 0
    %4087 = vmatprep.subr.bf16.mxu0 0
    %4088 = vmatpush1.bf16.msra.mxu0 0
    %4089 = vmatprep.subr.bf16.mxu0 0
    %4090 = vmatpush1.bf16.msra.mxu0 0
    %4091 = vmatprep.subr.bf16.mxu0 0
    %4092 = vmatpush1.bf16.msra.mxu0 0
    %4093 = vmatprep.subr.bf16.mxu0 0
    %4094 = vmatpush1.bf16.msra.mxu0 0
    %4095 = vmatprep.subr.bf16.mxu0 0
    %4096 = vmatpush1.bf16.msra.mxu0 0
    %4097 = vmatprep.subr.bf16.mxu0 0
    %4098 = vmatpush1.bf16.msra.mxu0 %v4078
    %4099 = vmatprep.subr.bf16.mxu0 0
    %4100 = vmatpush2.bf16.msra.mxu0 0
    %4101 = vmatprep.subr.bf16.mxu0 0
    %4102 = vmatpush2.bf16.msra.mxu0 0
    %4103 = vmatprep.subr.bf16.mxu0 0
    %4104 = vmatpush2.bf16.msra.mxu0 0
    %4105 = vmatprep.subr.bf16.mxu0 0
    %4106 = vmatpush2.bf16.msra.mxu0 0
    %4107 = vmatprep.subr.bf16.mxu0 0
    %4108 = vmatpush2.bf16.msra.mxu0 0
    %4109 = vmatprep.subr.bf16.mxu0 0
    %4110 = vmatpush2.bf16.msra.mxu0 0
    %4111 = vmatprep.subr.bf16.mxu0 0
    %4112 = vmatpush2.bf16.msra.mxu0 0
    %4113 = vmatprep.subr.bf16.mxu0 0
    %4114 = vmatpush2.bf16.msra.mxu0 0
    %4115 = vmatprep.mubr.bf16.mxu0 0
    %4116 = vmatmul.mubr.bf16.gmra.mxu0 %v4081
    %v4117 = vpop.f32.mrf.mxu0
    %v4118 = vadd.f32 0.0, %v4117
    %v4119 = vpop.f32.mrf.mxu0
    %v4120 = vpop.f32.mrf.mxu0
    %v4121 = vadd.f32 0.0, %v4120
    %v4122 = vpop.f32.mrf.mxu0
    %4123 = vdwg.mxu0
    %v4124 = vpack.c.bf16 %v4074, %v4071
    %v4125 = vpack.c.bf16 %v4121, %v4118
    %v4130 = vunpack.c.l.b16 %v2980
    %v4131 = vunpack.c.l.b16 %v2981
    %v4132 = vunpack.c.l.b16 %v2982
    %v4133 = vunpack.c.l.b16 %v2983
    %v4134 = vpack.c.b16 %v4131, %v4130
    %v4135 = vpack.c.b16 %v4133, %v4132
    %v4139 = vsel %vm655, %v4124, 0
    %v4142 = vsel %vm655, %v4125, 0
    %4144 = vmatprep.subr.bf16.mxu0 0
    %4145 = vmatpush1.bf16.msra.mxu0 0
    %4146 = vmatprep.subr.bf16.mxu0 0
    %4147 = vmatpush1.bf16.msra.mxu0 0
    %4148 = vmatprep.subr.bf16.mxu0 0
    %4149 = vmatpush1.bf16.msra.mxu0 0
    %4150 = vmatprep.subr.bf16.mxu0 0
    %4151 = vmatpush1.bf16.msra.mxu0 0
    %4152 = vmatprep.subr.bf16.mxu0 0
    %4153 = vmatpush1.bf16.msra.mxu0 0
    %4154 = vmatprep.subr.bf16.mxu0 0
    %4155 = vmatpush1.bf16.msra.mxu0 0
    %4156 = vmatprep.subr.bf16.mxu0 0
    %4157 = vmatpush1.bf16.msra.mxu0 %v4135
    %4158 = vmatprep.subr.bf16.mxu0 0
    %4159 = vmatpush1.bf16.msra.mxu0 %v4134
    %4160 = vmatprep.subr.bf16.mxu0 0
    %4161 = vmatpush2.bf16.msra.mxu0 0
    %4162 = vmatprep.subr.bf16.mxu0 0
    %4163 = vmatpush2.bf16.msra.mxu0 0
    %4164 = vmatprep.subr.bf16.mxu0 0
    %4165 = vmatpush2.bf16.msra.mxu0 0
    %4166 = vmatprep.subr.bf16.mxu0 0
    %4167 = vmatpush2.bf16.msra.mxu0 0
    %4168 = vmatprep.subr.bf16.mxu0 0
    %4169 = vmatpush2.bf16.msra.mxu0 0
    %4170 = vmatprep.subr.bf16.mxu0 0
    %4171 = vmatpush2.bf16.msra.mxu0 0
    %4172 = vmatprep.subr.bf16.mxu0 0
    %4173 = vmatpush2.bf16.msra.mxu0 0
    %4174 = vmatprep.subr.bf16.mxu0 0
    %4175 = vmatpush2.bf16.msra.mxu0 0
    %4176 = vmatprep.mubr.bf16.mxu0 0
    %4177 = vmatmul.mubr.bf16.gmra.mxu0 %v4139
    %v4178 = vpop.f32.mrf.mxu0
    %v4179 = vadd.f32 0.0, %v4178
    %v4180 = vpop.f32.mrf.mxu0
    %v4181 = vpop.f32.mrf.mxu0
    %v4182 = vadd.f32 0.0, %v4181
    %v4183 = vpop.f32.mrf.mxu0
    %4184 = vmatprep.mubr.bf16.mxu0 0
    %4185 = vmatmul.mubr.bf16.gmra.mxu0 %v4142
    %v4186 = vpop.f32.mrf.mxu0
    %v4187 = vadd.f32 0.0, %v4186
    %v4188 = vpop.f32.mrf.mxu0
    %v4189 = vpop.f32.mrf.mxu0
    %v4190 = vadd.f32 0.0, %v4189
    %v4191 = vpop.f32.mrf.mxu0
    %4192 = vdwg.mxu0
    %v4193 = vadd.f32 %v3860, %v4179
    %v4194 = vadd.f32 %v3863, %v4182
    %v4195 = vadd.f32 %v3868, %v4187
    %v4196 = vadd.f32 %v3871, %v4190
    %4197 = vrot.lane.b32.xlu0 %v3238, 32
    %v4198 = vpop.permute.xlu0 %4197
    %4199 = vrot.lane.b32.xlu0 %v3240, 32
    %v4200 = vpop.permute.xlu0 %4199
    %v4202 = vsel %vm655, %v4198, 0
    %v4205 = vsel %vm655, %v4200, 0
    %4207 = vmatprep.subr.bf16.mxu0 0
    %4208 = vmatpush1.bf16.xpose.msra.mxu0 0
    %4209 = vmatprep.subr.bf16.mxu0 0
    %4210 = vmatpush1.bf16.xpose.msra.mxu0 0
    %4211 = vmatprep.subr.bf16.mxu0 0
    %4212 = vmatpush1.bf16.xpose.msra.mxu0 0
    %4213 = vmatprep.subr.bf16.mxu0 0
    %4214 = vmatpush1.bf16.xpose.msra.mxu0 0
    %4215 = vmatprep.subr.bf16.mxu0 0
    %4216 = vmatpush1.bf16.xpose.msra.mxu0 0
    %4217 = vmatprep.subr.bf16.mxu0 0
    %4218 = vmatpush1.bf16.xpose.msra.mxu0 0
    %4219 = vmatprep.subr.bf16.mxu0 0
    %4220 = vmatpush1.bf16.xpose.msra.mxu0 0
    %4221 = vmatprep.subr.bf16.mxu0 0
    %4222 = vmatpush1.bf16.xpose.msra.mxu0 %v4205
    %4223 = vmatprep.subr.bf16.mxu0 0
    %4224 = vmatpush2.bf16.xpose.msra.mxu0 0
    %4225 = vmatprep.subr.bf16.mxu0 0
    %4226 = vmatpush2.bf16.xpose.msra.mxu0 0
    %4227 = vmatprep.subr.bf16.mxu0 0
    %4228 = vmatpush2.bf16.xpose.msra.mxu0 0
    %4229 = vmatprep.subr.bf16.mxu0 0
    %4230 = vmatpush2.bf16.xpose.msra.mxu0 0
    %4231 = vmatprep.subr.bf16.mxu0 0
    %4232 = vmatpush2.bf16.xpose.msra.mxu0 0
    %4233 = vmatprep.subr.bf16.mxu0 0
    %4234 = vmatpush2.bf16.xpose.msra.mxu0 0
    %4235 = vmatprep.subr.bf16.mxu0 0
    %4236 = vmatpush2.bf16.xpose.msra.mxu0 0
    %4237 = vmatprep.subr.bf16.mxu0 0
    %4238 = vmatpush2.bf16.xpose.msra.mxu0 0
    %4239 = vmatprep.mubr.bf16.mxu0 0
    %4240 = vmatmul.mubr.bf16.gmra.mxu0 %v4202
    %v4241 = vpop.f32.mrf.mxu0
    %v4242 = vadd.f32 0.0, %v4241
    %v4243 = vpop.f32.mrf.mxu0
    %v4244 = vpop.f32.mrf.mxu0
    %v4245 = vadd.f32 0.0, %v4244
    %v4246 = vpop.f32.mrf.mxu0
    %4247 = vdwg.mxu0
    %4248 = vrot.lane.b32.xlu0 %v3239, 32
    %v4249 = vpop.permute.xlu0 %4248
    %4250 = vrot.lane.b32.xlu0 %v3241, 32
    %v4251 = vpop.permute.xlu0 %4250
    %v4253 = vsel %vm655, %v4249, 0
    %v4256 = vsel %vm655, %v4251, 0
    %4258 = vmatprep.subr.bf16.mxu0 0
    %4259 = vmatpush1.bf16.xpose.msra.mxu0 0
    %4260 = vmatprep.subr.bf16.mxu0 0
    %4261 = vmatpush1.bf16.xpose.msra.mxu0 0
    %4262 = vmatprep.subr.bf16.mxu0 0
    %4263 = vmatpush1.bf16.xpose.msra.mxu0 0
    %4264 = vmatprep.subr.bf16.mxu0 0
    %4265 = vmatpush1.bf16.xpose.msra.mxu0 0
    %4266 = vmatprep.subr.bf16.mxu0 0
    %4267 = vmatpush1.bf16.xpose.msra.mxu0 0
    %4268 = vmatprep.subr.bf16.mxu0 0
    %4269 = vmatpush1.bf16.xpose.msra.mxu0 0
    %4270 = vmatprep.subr.bf16.mxu0 0
    %4271 = vmatpush1.bf16.xpose.msra.mxu0 0
    %4272 = vmatprep.subr.bf16.mxu0 0
    %4273 = vmatpush1.bf16.xpose.msra.mxu0 %v4256
    %4274 = vmatprep.subr.bf16.mxu0 0
    %4275 = vmatpush2.bf16.xpose.msra.mxu0 0
    %4276 = vmatprep.subr.bf16.mxu0 0
    %4277 = vmatpush2.bf16.xpose.msra.mxu0 0
    %4278 = vmatprep.subr.bf16.mxu0 0
    %4279 = vmatpush2.bf16.xpose.msra.mxu0 0
    %4280 = vmatprep.subr.bf16.mxu0 0
    %4281 = vmatpush2.bf16.xpose.msra.mxu0 0
    %4282 = vmatprep.subr.bf16.mxu0 0
    %4283 = vmatpush2.bf16.xpose.msra.mxu0 0
    %4284 = vmatprep.subr.bf16.mxu0 0
    %4285 = vmatpush2.bf16.xpose.msra.mxu0 0
    %4286 = vmatprep.subr.bf16.mxu0 0
    %4287 = vmatpush2.bf16.xpose.msra.mxu0 0
    %4288 = vmatprep.subr.bf16.mxu0 0
    %4289 = vmatpush2.bf16.xpose.msra.mxu0 0
    %4290 = vmatprep.mubr.bf16.mxu0 0
    %4291 = vmatmul.mubr.bf16.gmra.mxu0 %v4253
    %v4292 = vpop.f32.mrf.mxu0
    %v4293 = vadd.f32 0.0, %v4292
    %v4294 = vpop.f32.mrf.mxu0
    %v4295 = vpop.f32.mrf.mxu0
    %v4296 = vadd.f32 0.0, %v4295
    %v4297 = vpop.f32.mrf.mxu0
    %4298 = vdwg.mxu0
    %v4299 = vmul.f32 %v4242, 0.17677669
    %v4300 = vmul.f32 %v4245, 0.17677669
    %v4301 = vmul.f32 %v4293, 0.17677669
    %v4302 = vmul.f32 %v4296, 0.17677669
    %v4303 = vadd.f32 %v4299, %v759
    %v4304 = vadd.f32 %v4300, %v759
    %v4305 = vadd.f32 %v4301, %v763
    %v4306 = vadd.f32 %v4302, %v763
    %v4307 = vsel %vm770, %v4303, -inf
    %4308 = vmax.xlane.f32.xlu0 %v4307
    %v4309 = vpop.xlane.xlu0 %4308
    %v4310 = vsel %vm770, %v4304, -inf
    %4311 = vmax.xlane.f32.xlu0 %v4310
    %v4312 = vpop.xlane.xlu0 %4311
    %v4313 = vsel %vm770, %v4305, -inf
    %4314 = vmax.xlane.f32.xlu0 %v4313
    %v4315 = vpop.xlane.xlu0 %4314
    %v4316 = vsel %vm770, %v4306, -inf
    %4317 = vmax.xlane.f32.xlu0 %v4316
    %v4318 = vpop.xlane.xlu0 %4317
    %v4319 = vsub.f32 %v4303, %v4309
    %v4320 = vsub.f32 %v4304, %v4312
    %v4321 = vsub.f32 %v4305, %v4315
    %v4322 = vsub.f32 %v4306, %v4318
    %v4323 = vmul.f32 %v4319, 1.442695
    %v4324 = vpow.pop %v4323
    %v4325 = vmul.f32 %v4320, 1.442695
    %v4326 = vpow.pop %v4325
    %v4327 = vmul.f32 %v4321, 1.442695
    %v4328 = vpow.pop %v4327
    %v4329 = vmul.f32 %v4322, 1.442695
    %v4330 = vpow.pop %v4329
    %v4331 = vsel %vm770, %v4324, 0.0
    %4332 = vadd.xlane.f32.xlu0 %v4331
    %v4333 = vpop.xlane.xlu0 %4332
    %v4334 = vsel %vm770, %v4326, 0.0
    %4335 = vadd.xlane.f32.xlu0 %v4334
    %v4336 = vpop.xlane.xlu0 %4335
    %v4337 = vsel %vm770, %v4328, 0.0
    %4338 = vadd.xlane.f32.xlu0 %v4337
    %v4339 = vpop.xlane.xlu0 %4338
    %v4340 = vsel %vm770, %v4330, 0.0
    %4341 = vadd.xlane.f32.xlu0 %v4340
    %v4342 = vpop.xlane.xlu0 %4341
    %v4343 = vrcp.pop %v4333
    %v4344 = vrcp.pop %v4336
    %v4345 = vrcp.pop %v4339
    %v4346 = vrcp.pop %v4342
    %v4347 = vmul.f32 %v4324, %v4343
    %v4348 = vmul.f32 %v4326, %v4344
    %v4349 = vmul.f32 %v4328, %v4345
    %v4350 = vmul.f32 %v4330, %v4346
    %v4351 = vpack.c.bf16 %v4348, %v4347
    %v4352 = vpack.c.bf16 %v4350, %v4349
    %4353 = vrot.lane.b32.xlu0 %v3390, 32
    %v4354 = vpop.permute.xlu0 %4353
    %v4357 = vsel %vm770, %v4351, 0
    %4359 = vmatprep.subr.bf16.mxu0 0
    %4360 = vmatpush1.bf16.msra.mxu0 0
    %4361 = vmatprep.subr.bf16.mxu0 0
    %4362 = vmatpush1.bf16.msra.mxu0 0
    %4363 = vmatprep.subr.bf16.mxu0 0
    %4364 = vmatpush1.bf16.msra.mxu0 0
    %4365 = vmatprep.subr.bf16.mxu0 0
    %4366 = vmatpush1.bf16.msra.mxu0 0
    %4367 = vmatprep.subr.bf16.mxu0 0
    %4368 = vmatpush1.bf16.msra.mxu0 0
    %4369 = vmatprep.subr.bf16.mxu0 0
    %4370 = vmatpush1.bf16.msra.mxu0 0
    %4371 = vmatprep.subr.bf16.mxu0 0
    %4372 = vmatpush1.bf16.msra.mxu0 0
    %4373 = vmatprep.subr.bf16.mxu0 0
    %4374 = vmatpush1.bf16.msra.mxu0 %v4354
    %4375 = vmatprep.subr.bf16.mxu0 0
    %4376 = vmatpush2.bf16.msra.mxu0 0
    %4377 = vmatprep.subr.bf16.mxu0 0
    %4378 = vmatpush2.bf16.msra.mxu0 0
    %4379 = vmatprep.subr.bf16.mxu0 0
    %4380 = vmatpush2.bf16.msra.mxu0 0
    %4381 = vmatprep.subr.bf16.mxu0 0
    %4382 = vmatpush2.bf16.msra.mxu0 0
    %4383 = vmatprep.subr.bf16.mxu0 0
    %4384 = vmatpush2.bf16.msra.mxu0 0
    %4385 = vmatprep.subr.bf16.mxu0 0
    %4386 = vmatpush2.bf16.msra.mxu0 0
    %4387 = vmatprep.subr.bf16.mxu0 0
    %4388 = vmatpush2.bf16.msra.mxu0 0
    %4389 = vmatprep.subr.bf16.mxu0 0
    %4390 = vmatpush2.bf16.msra.mxu0 0
    %4391 = vmatprep.mubr.bf16.mxu0 0
    %4392 = vmatmul.mubr.bf16.gmra.mxu0 %v4357
    %v4393 = vpop.f32.mrf.mxu0
    %v4394 = vadd.f32 0.0, %v4393
    %v4395 = vpop.f32.mrf.mxu0
    %v4396 = vpop.f32.mrf.mxu0
    %v4397 = vadd.f32 0.0, %v4396
    %v4398 = vpop.f32.mrf.mxu0
    %4399 = vdwg.mxu0
    %4400 = vrot.lane.b32.xlu0 %v3391, 32
    %v4401 = vpop.permute.xlu0 %4400
    %v4404 = vsel %vm770, %v4352, 0
    %4406 = vmatprep.subr.bf16.mxu0 0
    %4407 = vmatpush1.bf16.msra.mxu0 0
    %4408 = vmatprep.subr.bf16.mxu0 0
    %4409 = vmatpush1.bf16.msra.mxu0 0
    %4410 = vmatprep.subr.bf16.mxu0 0
    %4411 = vmatpush1.bf16.msra.mxu0 0
    %4412 = vmatprep.subr.bf16.mxu0 0
    %4413 = vmatpush1.bf16.msra.mxu0 0
    %4414 = vmatprep.subr.bf16.mxu0 0
    %4415 = vmatpush1.bf16.msra.mxu0 0
    %4416 = vmatprep.subr.bf16.mxu0 0
    %4417 = vmatpush1.bf16.msra.mxu0 0
    %4418 = vmatprep.subr.bf16.mxu0 0
    %4419 = vmatpush1.bf16.msra.mxu0 0
    %4420 = vmatprep.subr.bf16.mxu0 0
    %4421 = vmatpush1.bf16.msra.mxu0 %v4401
    %4422 = vmatprep.subr.bf16.mxu0 0
    %4423 = vmatpush2.bf16.msra.mxu0 0
    %4424 = vmatprep.subr.bf16.mxu0 0
    %4425 = vmatpush2.bf16.msra.mxu0 0
    %4426 = vmatprep.subr.bf16.mxu0 0
    %4427 = vmatpush2.bf16.msra.mxu0 0
    %4428 = vmatprep.subr.bf16.mxu0 0
    %4429 = vmatpush2.bf16.msra.mxu0 0
    %4430 = vmatprep.subr.bf16.mxu0 0
    %4431 = vmatpush2.bf16.msra.mxu0 0
    %4432 = vmatprep.subr.bf16.mxu0 0
    %4433 = vmatpush2.bf16.msra.mxu0 0
    %4434 = vmatprep.subr.bf16.mxu0 0
    %4435 = vmatpush2.bf16.msra.mxu0 0
    %4436 = vmatprep.subr.bf16.mxu0 0
    %4437 = vmatpush2.bf16.msra.mxu0 0
    %4438 = vmatprep.mubr.bf16.mxu0 0
    %4439 = vmatmul.mubr.bf16.gmra.mxu0 %v4404
    %v4440 = vpop.f32.mrf.mxu0
    %v4441 = vadd.f32 0.0, %v4440
    %v4442 = vpop.f32.mrf.mxu0
    %v4443 = vpop.f32.mrf.mxu0
    %v4444 = vadd.f32 0.0, %v4443
    %v4445 = vpop.f32.mrf.mxu0
    %4446 = vdwg.mxu0
    %v4447 = vpack.c.bf16 %v4397, %v4394
    %v4448 = vpack.c.bf16 %v4444, %v4441
    %v4453 = vunpack.c.l.b16 %v2984
    %v4454 = vunpack.c.l.b16 %v2985
    %v4455 = vunpack.c.l.b16 %v2986
    %v4456 = vunpack.c.l.b16 %v2987
    %v4457 = vpack.c.b16 %v4454, %v4453
    %v4458 = vpack.c.b16 %v4456, %v4455
    %v4462 = vsel %vm655, %v4447, 0
    %v4465 = vsel %vm655, %v4448, 0
    %4467 = vmatprep.subr.bf16.mxu0 0
    %4468 = vmatpush1.bf16.msra.mxu0 0
    %4469 = vmatprep.subr.bf16.mxu0 0
    %4470 = vmatpush1.bf16.msra.mxu0 0
    %4471 = vmatprep.subr.bf16.mxu0 0
    %4472 = vmatpush1.bf16.msra.mxu0 0
    %4473 = vmatprep.subr.bf16.mxu0 0
    %4474 = vmatpush1.bf16.msra.mxu0 0
    %4475 = vmatprep.subr.bf16.mxu0 0
    %4476 = vmatpush1.bf16.msra.mxu0 0
    %4477 = vmatprep.subr.bf16.mxu0 0
    %4478 = vmatpush1.bf16.msra.mxu0 0
    %4479 = vmatprep.subr.bf16.mxu0 0
    %4480 = vmatpush1.bf16.msra.mxu0 %v4458
    %4481 = vmatprep.subr.bf16.mxu0 0
    %4482 = vmatpush1.bf16.msra.mxu0 %v4457
    %4483 = vmatprep.subr.bf16.mxu0 0
    %4484 = vmatpush2.bf16.msra.mxu0 0
    %4485 = vmatprep.subr.bf16.mxu0 0
    %4486 = vmatpush2.bf16.msra.mxu0 0
    %4487 = vmatprep.subr.bf16.mxu0 0
    %4488 = vmatpush2.bf16.msra.mxu0 0
    %4489 = vmatprep.subr.bf16.mxu0 0
    %4490 = vmatpush2.bf16.msra.mxu0 0
    %4491 = vmatprep.subr.bf16.mxu0 0
    %4492 = vmatpush2.bf16.msra.mxu0 0
    %4493 = vmatprep.subr.bf16.mxu0 0
    %4494 = vmatpush2.bf16.msra.mxu0 0
    %4495 = vmatprep.subr.bf16.mxu0 0
    %4496 = vmatpush2.bf16.msra.mxu0 0
    %4497 = vmatprep.subr.bf16.mxu0 0
    %4498 = vmatpush2.bf16.msra.mxu0 0
    %4499 = vmatprep.mubr.bf16.mxu0 0
    %4500 = vmatmul.mubr.bf16.gmra.mxu0 %v4462
    %v4501 = vpop.f32.mrf.mxu0
    %v4502 = vadd.f32 0.0, %v4501
    %v4503 = vpop.f32.mrf.mxu0
    %v4504 = vpop.f32.mrf.mxu0
    %v4505 = vadd.f32 0.0, %v4504
    %v4506 = vpop.f32.mrf.mxu0
    %4507 = vmatprep.mubr.bf16.mxu0 0
    %4508 = vmatmul.mubr.bf16.gmra.mxu0 %v4465
    %v4509 = vpop.f32.mrf.mxu0
    %v4510 = vadd.f32 0.0, %v4509
    %v4511 = vpop.f32.mrf.mxu0
    %v4512 = vpop.f32.mrf.mxu0
    %v4513 = vadd.f32 0.0, %v4512
    %v4514 = vpop.f32.mrf.mxu0
    %4515 = vdwg.mxu0
    %v4516 = vadd.f32 %v4193, %v4502
    %v4517 = vadd.f32 %v4194, %v4505
    %v4518 = vadd.f32 %v4195, %v4510
    %v4519 = vadd.f32 %v4196, %v4513
    %v4520 = vadd.f32 %v2932, %v4516
    %v4521 = vadd.f32 %v2933, %v4517
    %v4522 = vadd.f32 %v2934, %v4518
    %v4523 = vadd.f32 %v2935, %v4519
    %v4525 = vlaneseq
    %v4526 = vshrl.u32 %v4525, 7
    %v4527 = vsub.s32 0, %v4526
    %v4528 = vrot.slane %v2989, %v4527
    %v4530 = vadd.f32 %v4520, %v4528
    %v4531 = vadd.f32 %v4521, %v4528
    %v4532 = vadd.f32 %v4522, %v4528
    %v4533 = vadd.f32 %v4523, %v4528
    %s4534 = scalar_lea.vmem %s17, 1
    %v4535 = vld [vmem:[%s4534] sm:$0x1]
    %s4536 = scalar_lea.vmem %s19, 1
    %v4537 = vld [vmem:[%s4536] sm:$0x1]
    %4538 = vadd.xlane.f32.xlu0 %v4530
    %v4539 = vpop.xlane.xlu0 %4538
    %4540 = vadd.xlane.f32.xlu0 %v4531
    %v4541 = vpop.xlane.xlu0 %4540
    %4542 = vadd.xlane.f32.xlu0 %v4532
    %v4543 = vpop.xlane.xlu0 %4542
    %4544 = vadd.xlane.f32.xlu0 %v4533
    %v4545 = vpop.xlane.xlu0 %4544
    %v4546 = vmul.f32 %v4539, %v296
    %v4547 = vmul.f32 %v4541, %v296
    %v4548 = vmul.f32 %v4543, %v296
    %v4549 = vmul.f32 %v4545, %v296
    %v4550 = vsub.f32 %v4530, %v4546
    %v4551 = vsub.f32 %v4531, %v4547
    %v4552 = vsub.f32 %v4532, %v4548
    %v4553 = vsub.f32 %v4533, %v4549
    %v4554 = vmul.f32 %v4550, %v4550
    %v4555 = vmul.f32 %v4551, %v4551
    %v4556 = vmul.f32 %v4552, %v4552
    %v4557 = vmul.f32 %v4553, %v4553
    %4558 = vadd.xlane.f32.xlu0 %v4554
    %v4559 = vpop.xlane.xlu0 %4558
    %4560 = vadd.xlane.f32.xlu0 %v4555
    %v4561 = vpop.xlane.xlu0 %4560
    %4562 = vadd.xlane.f32.xlu0 %v4556
    %v4563 = vpop.xlane.xlu0 %4562
    %4564 = vadd.xlane.f32.xlu0 %v4557
    %v4565 = vpop.xlane.xlu0 %4564
    %v4566 = vmul.f32 %v4559, %v296
    %v4567 = vmul.f32 %v4561, %v296
    %v4568 = vmul.f32 %v4563, %v296
    %v4569 = vmul.f32 %v4565, %v296
    %v4570 = vadd.f32 %v4566, 1e-12
    %v4571 = vadd.f32 %v4567, 1e-12
    %v4572 = vadd.f32 %v4568, 1e-12
    %v4573 = vadd.f32 %v4569, 1e-12
    %v4574 = vrsqrt.pop %v4570
    %v4575 = vrsqrt.pop %v4571
    %v4576 = vrsqrt.pop %v4572
    %v4577 = vrsqrt.pop %v4573
    %v4578 = vmul.f32 %v4550, %v4574
    %v4579 = vmul.f32 %v4551, %v4575
    %v4580 = vmul.f32 %v4552, %v4576
    %v4581 = vmul.f32 %v4553, %v4577
    %v4583 = vlaneseq
    %v4584 = vshrl.u32 %v4583, 7
    %v4585 = vsub.s32 0, %v4584
    %v4586 = vrot.slane %v4535, %v4585
    %v4588 = vmul.f32 %v4578, %v4586
    %v4589 = vmul.f32 %v4579, %v4586
    %v4590 = vmul.f32 %v4580, %v4586
    %v4591 = vmul.f32 %v4581, %v4586
    %v4593 = vlaneseq
    %v4594 = vshrl.u32 %v4593, 7
    %v4595 = vsub.s32 0, %v4594
    %v4596 = vrot.slane %v4537, %v4595
    %v4598 = vadd.f32 %v4588, %v4596
    %v4599 = vadd.f32 %v4589, %v4596
    %v4600 = vadd.f32 %v4590, %v4596
    %v4601 = vadd.f32 %v4591, %v4596
    %s4602 = scalar_lea.vmem [#allocation5], 256
    %v4603 = vld [vmem:[%s4602] sm:$0xff]
    %v4604 = vld [vmem:[%s4602 + $0x8] sm:$0xff]
    %v4605 = vld [vmem:[%s4602 + $0x10] sm:$0xff]
    %v4606 = vld [vmem:[%s4602 + $0x18] sm:$0xff]
    %v4607 = vld [vmem:[%s4602 + $0x20] sm:$0xff]
    %v4608 = vld [vmem:[%s4602 + $0x28] sm:$0xff]
    %v4609 = vld [vmem:[%s4602 + $0x30] sm:$0xff]
    %v4610 = vld [vmem:[%s4602 + $0x38] sm:$0xff]
    %v4611 = vld [vmem:[%s4602 + $0x40] sm:$0xff]
    %v4612 = vld [vmem:[%s4602 + $0x48] sm:$0xff]
    %v4613 = vld [vmem:[%s4602 + $0x50] sm:$0xff]
    %v4614 = vld [vmem:[%s4602 + $0x58] sm:$0xff]
    %v4615 = vld [vmem:[%s4602 + $0x60] sm:$0xff]
    %v4616 = vld [vmem:[%s4602 + $0x68] sm:$0xff]
    %v4617 = vld [vmem:[%s4602 + $0x70] sm:$0xff]
    %v4618 = vld [vmem:[%s4602 + $0x78] sm:$0xff]
    %v4619 = vld [vmem:[%s4602 + $0x80] sm:$0xff]
    %v4620 = vld [vmem:[%s4602 + $0x88] sm:$0xff]
    %v4621 = vld [vmem:[%s4602 + $0x90] sm:$0xff]
    %v4622 = vld [vmem:[%s4602 + $0x98] sm:$0xff]
    %v4623 = vld [vmem:[%s4602 + $0xa0] sm:$0xff]
    %v4624 = vld [vmem:[%s4602 + $0xa8] sm:$0xff]
    %v4625 = vld [vmem:[%s4602 + $0xb0] sm:$0xff]
    %v4626 = vld [vmem:[%s4602 + $0xb8] sm:$0xff]
    %v4627 = vld [vmem:[%s4602 + $0xc0] sm:$0xff]
    %v4628 = vld [vmem:[%s4602 + $0xc8] sm:$0xff]
    %v4629 = vld [vmem:[%s4602 + $0xd0] sm:$0xff]
    %v4630 = vld [vmem:[%s4602 + $0xd8] sm:$0xff]
    %v4631 = vld [vmem:[%s4602 + $0xe0] sm:$0xff]
    %v4632 = vld [vmem:[%s4602 + $0xe8] sm:$0xff]
    %v4633 = vld [vmem:[%s4602 + $0xf0] sm:$0xff]
    %v4634 = vld [vmem:[%s4602 + $0xf8] sm:$0xff]
    %v4635 = vpack.c.bf16 %v4599, %v4598
    %v4636 = vpack.c.bf16 %v4601, %v4600
    %s4637 = scalar_lea.vmem %s23, 4
    %v4638 = vld [vmem:[%s4637] sm:$0xf]
    %v4640 = vlaneseq
    %v4641 = vshrl.u32 %v4640, 7
    %v4642 = vsub.s32 0, %v4641
    %v4643 = vrot.slane %v4638, %v4642
    %v4644 = vlaneseq
    %v4645 = vshrl.u32 %v4644, 7
    %v4646 = vsub.s32 1, %v4645
    %v4647 = vrot.slane %v4638, %v4646
    %v4648 = vlaneseq
    %v4649 = vshrl.u32 %v4648, 7
    %v4650 = vsub.s32 2, %v4649
    %v4651 = vrot.slane %v4638, %v4650
    %v4652 = vlaneseq
    %v4653 = vshrl.u32 %v4652, 7
    %v4654 = vsub.s32 3, %v4653
    %v4655 = vrot.slane %v4638, %v4654
    %v4692 = vunpack.c.l.b16 %v4603
    %v4693 = vunpack.c.h.b16 %v4603
    %v4694 = vunpack.c.l.b16 %v4604
    %v4695 = vunpack.c.h.b16 %v4604
    %v4696 = vunpack.c.l.b16 %v4605
    %v4697 = vunpack.c.h.b16 %v4605
    %v4698 = vunpack.c.l.b16 %v4606
    %v4699 = vunpack.c.h.b16 %v4606
    %v4700 = vunpack.c.l.b16 %v4607
    %v4701 = vunpack.c.h.b16 %v4607
    %v4702 = vunpack.c.l.b16 %v4608
    %v4703 = vunpack.c.h.b16 %v4608
    %v4704 = vunpack.c.l.b16 %v4609
    %v4705 = vunpack.c.h.b16 %v4609
    %v4706 = vunpack.c.l.b16 %v4610
    %v4707 = vunpack.c.h.b16 %v4610
    %v4708 = vunpack.c.l.b16 %v4611
    %v4709 = vunpack.c.h.b16 %v4611
    %v4710 = vunpack.c.l.b16 %v4612
    %v4711 = vunpack.c.h.b16 %v4612
    %v4712 = vunpack.c.l.b16 %v4613
    %v4713 = vunpack.c.h.b16 %v4613
    %v4714 = vunpack.c.l.b16 %v4614
    %v4715 = vunpack.c.h.b16 %v4614
    %v4716 = vunpack.c.l.b16 %v4615
    %v4717 = vunpack.c.h.b16 %v4615
    %v4718 = vunpack.c.l.b16 %v4616
    %v4719 = vunpack.c.h.b16 %v4616
    %v4720 = vunpack.c.l.b16 %v4617
    %v4721 = vunpack.c.h.b16 %v4617
    %v4722 = vunpack.c.l.b16 %v4618
    %v4723 = vunpack.c.h.b16 %v4618
    %v4724 = vunpack.c.l.b16 %v4619
    %v4725 = vunpack.c.h.b16 %v4619
    %v4726 = vunpack.c.l.b16 %v4620
    %v4727 = vunpack.c.h.b16 %v4620
    %v4728 = vunpack.c.l.b16 %v4621
    %v4729 = vunpack.c.h.b16 %v4621
    %v4730 = vunpack.c.l.b16 %v4622
    %v4731 = vunpack.c.h.b16 %v4622
    %v4732 = vunpack.c.l.b16 %v4623
    %v4733 = vunpack.c.h.b16 %v4623
    %v4734 = vunpack.c.l.b16 %v4624
    %v4735 = vunpack.c.h.b16 %v4624
    %v4736 = vunpack.c.l.b16 %v4625
    %v4737 = vunpack.c.h.b16 %v4625
    %v4738 = vunpack.c.l.b16 %v4626
    %v4739 = vunpack.c.h.b16 %v4626
    %v4740 = vunpack.c.l.b16 %v4627
    %v4741 = vunpack.c.h.b16 %v4627
    %v4742 = vunpack.c.l.b16 %v4628
    %v4743 = vunpack.c.h.b16 %v4628
    %v4744 = vunpack.c.l.b16 %v4629
    %v4745 = vunpack.c.h.b16 %v4629
    %v4746 = vunpack.c.l.b16 %v4630
    %v4747 = vunpack.c.h.b16 %v4630
    %v4748 = vunpack.c.l.b16 %v4631
    %v4749 = vunpack.c.h.b16 %v4631
    %v4750 = vunpack.c.l.b16 %v4632
    %v4751 = vunpack.c.h.b16 %v4632
    %v4752 = vunpack.c.l.b16 %v4633
    %v4753 = vunpack.c.h.b16 %v4633
    %v4754 = vunpack.c.l.b16 %v4634
    %v4755 = vunpack.c.h.b16 %v4634
    %v4756 = vpack.c.b16 %v4696, %v4692
    %v4757 = vpack.c.b16 %v4697, %v4693
    %v4758 = vpack.c.b16 %v4698, %v4694
    %v4759 = vpack.c.b16 %v4699, %v4695
    %v4760 = vpack.c.b16 %v4704, %v4700
    %v4761 = vpack.c.b16 %v4705, %v4701
    %v4762 = vpack.c.b16 %v4706, %v4702
    %v4763 = vpack.c.b16 %v4707, %v4703
    %v4764 = vpack.c.b16 %v4712, %v4708
    %v4765 = vpack.c.b16 %v4713, %v4709
    %v4766 = vpack.c.b16 %v4714, %v4710
    %v4767 = vpack.c.b16 %v4715, %v4711
    %v4768 = vpack.c.b16 %v4720, %v4716
    %v4769 = vpack.c.b16 %v4721, %v4717
    %v4770 = vpack.c.b16 %v4722, %v4718
    %v4771 = vpack.c.b16 %v4723, %v4719
    %v4772 = vpack.c.b16 %v4728, %v4724
    %v4773 = vpack.c.b16 %v4729, %v4725
    %v4774 = vpack.c.b16 %v4730, %v4726
    %v4775 = vpack.c.b16 %v4731, %v4727
    %v4776 = vpack.c.b16 %v4736, %v4732
    %v4777 = vpack.c.b16 %v4737, %v4733
    %v4778 = vpack.c.b16 %v4738, %v4734
    %v4779 = vpack.c.b16 %v4739, %v4735
    %v4780 = vpack.c.b16 %v4744, %v4740
    %v4781 = vpack.c.b16 %v4745, %v4741
    %v4782 = vpack.c.b16 %v4746, %v4742
    %v4783 = vpack.c.b16 %v4747, %v4743
    %v4784 = vpack.c.b16 %v4752, %v4748
    %v4785 = vpack.c.b16 %v4753, %v4749
    %v4786 = vpack.c.b16 %v4754, %v4750
    %v4787 = vpack.c.b16 %v4755, %v4751
    %4820 = vmatprep.subr.bf16.mxu0 %v4785
    %4821 = vmatpush1.bf16.msra.mxu0 %v4784
    %4822 = vmatprep.subr.bf16.mxu0 %v4781
    %4823 = vmatpush1.bf16.msra.mxu0 %v4780
    %4824 = vmatprep.subr.bf16.mxu0 %v4777
    %4825 = vmatpush1.bf16.msra.mxu0 %v4776
    %4826 = vmatprep.subr.bf16.mxu0 %v4773
    %4827 = vmatpush1.bf16.msra.mxu0 %v4772
    %4828 = vmatprep.subr.bf16.mxu0 %v4769
    %4829 = vmatpush1.bf16.msra.mxu0 %v4768
    %4830 = vmatprep.subr.bf16.mxu0 %v4765
    %4831 = vmatpush1.bf16.msra.mxu0 %v4764
    %4832 = vmatprep.subr.bf16.mxu0 %v4761
    %4833 = vmatpush1.bf16.msra.mxu0 %v4760
    %4834 = vmatprep.subr.bf16.mxu0 %v4757
    %4835 = vmatpush1.bf16.msra.mxu0 %v4756
    %4836 = vmatprep.subr.bf16.mxu0 0
    %4837 = vmatpush2.bf16.msra.mxu0 0
    %4838 = vmatprep.subr.bf16.mxu0 0
    %4839 = vmatpush2.bf16.msra.mxu0 0
    %4840 = vmatprep.subr.bf16.mxu0 0
    %4841 = vmatpush2.bf16.msra.mxu0 0
    %4842 = vmatprep.subr.bf16.mxu0 0
    %4843 = vmatpush2.bf16.msra.mxu0 0
    %4844 = vmatprep.subr.bf16.mxu0 0
    %4845 = vmatpush2.bf16.msra.mxu0 0
    %4846 = vmatprep.subr.bf16.mxu0 0
    %4847 = vmatpush2.bf16.msra.mxu0 0
    %4848 = vmatprep.subr.bf16.mxu0 0
    %4849 = vmatpush2.bf16.msra.mxu0 0
    %4850 = vmatprep.subr.bf16.mxu0 0
    %4851 = vmatpush2.bf16.msra.mxu0 0
    %4852 = vmatprep.mubr.bf16.mxu0 0
    %4853 = vmatmul.mubr.bf16.gmra.mxu0 %v4635
    %v4854 = vpop.f32.mrf.mxu0
    %v4855 = vadd.f32 %v4643, %v4854
    %v4856 = vpop.f32.mrf.mxu0
    %v4857 = vadd.f32 %v4647, %v4856
    %v4858 = vpop.f32.mrf.mxu0
    %v4859 = vadd.f32 %v4643, %v4858
    %v4860 = vpop.f32.mrf.mxu0
    %v4861 = vadd.f32 %v4647, %v4860
    %4862 = vmatprep.mubr.bf16.mxu0 0
    %4863 = vmatmul.mubr.bf16.gmra.mxu0 %v4636
    %v4864 = vpop.f32.mrf.mxu0
    %v4865 = vadd.f32 %v4643, %v4864
    %v4866 = vpop.f32.mrf.mxu0
    %v4867 = vadd.f32 %v4647, %v4866
    %v4868 = vpop.f32.mrf.mxu0
    %v4869 = vadd.f32 %v4643, %v4868
    %v4870 = vpop.f32.mrf.mxu0
    %v4871 = vadd.f32 %v4647, %v4870
    %4872 = vdwg.mxu0
    %4873 = vmatprep.subr.bf16.mxu0 %v4787
    %4874 = vmatpush1.bf16.msra.mxu0 %v4786
    %4875 = vmatprep.subr.bf16.mxu0 %v4783
    %4876 = vmatpush1.bf16.msra.mxu0 %v4782
    %4877 = vmatprep.subr.bf16.mxu0 %v4779
    %4878 = vmatpush1.bf16.msra.mxu0 %v4778
    %4879 = vmatprep.subr.bf16.mxu0 %v4775
    %4880 = vmatpush1.bf16.msra.mxu0 %v4774
    %4881 = vmatprep.subr.bf16.mxu0 %v4771
    %4882 = vmatpush1.bf16.msra.mxu0 %v4770
    %4883 = vmatprep.subr.bf16.mxu0 %v4767
    %4884 = vmatpush1.bf16.msra.mxu0 %v4766
    %4885 = vmatprep.subr.bf16.mxu0 %v4763
    %4886 = vmatpush1.bf16.msra.mxu0 %v4762
    %4887 = vmatprep.subr.bf16.mxu0 %v4759
    %4888 = vmatpush1.bf16.msra.mxu0 %v4758
    %4889 = vmatprep.subr.bf16.mxu0 0
    %4890 = vmatpush2.bf16.msra.mxu0 0
    %4891 = vmatprep.subr.bf16.mxu0 0
    %4892 = vmatpush2.bf16.msra.mxu0 0
    %4893 = vmatprep.subr.bf16.mxu0 0
    %4894 = vmatpush2.bf16.msra.mxu0 0
    %4895 = vmatprep.subr.bf16.mxu0 0
    %4896 = vmatpush2.bf16.msra.mxu0 0
    %4897 = vmatprep.subr.bf16.mxu0 0
    %4898 = vmatpush2.bf16.msra.mxu0 0
    %4899 = vmatprep.subr.bf16.mxu0 0
    %4900 = vmatpush2.bf16.msra.mxu0 0
    %4901 = vmatprep.subr.bf16.mxu0 0
    %4902 = vmatpush2.bf16.msra.mxu0 0
    %4903 = vmatprep.subr.bf16.mxu0 0
    %4904 = vmatpush2.bf16.msra.mxu0 0
    %4905 = vmatprep.mubr.bf16.mxu0 0
    %4906 = vmatmul.mubr.bf16.gmra.mxu0 %v4635
    %v4907 = vpop.f32.mrf.mxu0
    %v4908 = vadd.f32 %v4651, %v4907
    %v4909 = vpop.f32.mrf.mxu0
    %v4910 = vadd.f32 %v4655, %v4909
    %v4911 = vpop.f32.mrf.mxu0
    %v4912 = vadd.f32 %v4651, %v4911
    %v4913 = vpop.f32.mrf.mxu0
    %v4914 = vadd.f32 %v4655, %v4913
    %4915 = vmatprep.mubr.bf16.mxu0 0
    %4916 = vmatmul.mubr.bf16.gmra.mxu0 %v4636
    %v4917 = vpop.f32.mrf.mxu0
    %v4918 = vadd.f32 %v4651, %v4917
    %v4919 = vpop.f32.mrf.mxu0
    %v4920 = vadd.f32 %v4655, %v4919
    %v4921 = vpop.f32.mrf.mxu0
    %v4922 = vadd.f32 %v4651, %v4921
    %v4923 = vpop.f32.mrf.mxu0
    %v4924 = vadd.f32 %v4655, %v4923
    %4925 = vdwg.mxu0
    %v4926 = vmul.f32 %v4855, 0.5
    %v4927 = vmul.f32 %v4857, 0.5
    %v4928 = vmul.f32 %v4908, 0.5
    %v4929 = vmul.f32 %v4910, 0.5
    %v4930 = vmul.f32 %v4859, 0.5
    %v4931 = vmul.f32 %v4861, 0.5
    %v4932 = vmul.f32 %v4912, 0.5
    %v4933 = vmul.f32 %v4914, 0.5
    %v4934 = vmul.f32 %v4865, 0.5
    %v4935 = vmul.f32 %v4867, 0.5
    %v4936 = vmul.f32 %v4918, 0.5
    %v4937 = vmul.f32 %v4920, 0.5
    %v4938 = vmul.f32 %v4869, 0.5
    %v4939 = vmul.f32 %v4871, 0.5
    %v4940 = vmul.f32 %v4922, 0.5
    %v4941 = vmul.f32 %v4924, 0.5
    %v4942 = vmul.f32 %v4855, 0.044715
    %v4943 = vmul.f32 %v4857, 0.044715
    %v4944 = vmul.f32 %v4908, 0.044715
    %v4945 = vmul.f32 %v4910, 0.044715
    %v4946 = vmul.f32 %v4859, 0.044715
    %v4947 = vmul.f32 %v4861, 0.044715
    %v4948 = vmul.f32 %v4912, 0.044715
    %v4949 = vmul.f32 %v4914, 0.044715
    %v4950 = vmul.f32 %v4865, 0.044715
    %v4951 = vmul.f32 %v4867, 0.044715
    %v4952 = vmul.f32 %v4918, 0.044715
    %v4953 = vmul.f32 %v4920, 0.044715
    %v4954 = vmul.f32 %v4869, 0.044715
    %v4955 = vmul.f32 %v4871, 0.044715
    %v4956 = vmul.f32 %v4922, 0.044715
    %v4957 = vmul.f32 %v4924, 0.044715
    %v4958 = vmul.f32 %v4942, %v4855
    %v4959 = vmul.f32 %v4943, %v4857
    %v4960 = vmul.f32 %v4944, %v4908
    %v4961 = vmul.f32 %v4945, %v4910
    %v4962 = vmul.f32 %v4946, %v4859
    %v4963 = vmul.f32 %v4947, %v4861
    %v4964 = vmul.f32 %v4948, %v4912
    %v4965 = vmul.f32 %v4949, %v4914
    %v4966 = vmul.f32 %v4950, %v4865
    %v4967 = vmul.f32 %v4951, %v4867
    %v4968 = vmul.f32 %v4952, %v4918
    %v4969 = vmul.f32 %v4953, %v4920
    %v4970 = vmul.f32 %v4954, %v4869
    %v4971 = vmul.f32 %v4955, %v4871
    %v4972 = vmul.f32 %v4956, %v4922
    %v4973 = vmul.f32 %v4957, %v4924
    %v4974 = vmul.f32 %v4958, %v4855
    %v4975 = vmul.f32 %v4959, %v4857
    %v4976 = vmul.f32 %v4960, %v4908
    %v4977 = vmul.f32 %v4961, %v4910
    %v4978 = vmul.f32 %v4962, %v4859
    %v4979 = vmul.f32 %v4963, %v4861
    %v4980 = vmul.f32 %v4964, %v4912
    %v4981 = vmul.f32 %v4965, %v4914
    %v4982 = vmul.f32 %v4966, %v4865
    %v4983 = vmul.f32 %v4967, %v4867
    %v4984 = vmul.f32 %v4968, %v4918
    %v4985 = vmul.f32 %v4969, %v4920
    %v4986 = vmul.f32 %v4970, %v4869
    %v4987 = vmul.f32 %v4971, %v4871
    %v4988 = vmul.f32 %v4972, %v4922
    %v4989 = vmul.f32 %v4973, %v4924
    %v4990 = vadd.f32 %v4855, %v4974
    %v4991 = vadd.f32 %v4857, %v4975
    %v4992 = vadd.f32 %v4908, %v4976
    %v4993 = vadd.f32 %v4910, %v4977
    %v4994 = vadd.f32 %v4859, %v4978
    %v4995 = vadd.f32 %v4861, %v4979
    %v4996 = vadd.f32 %v4912, %v4980
    %v4997 = vadd.f32 %v4914, %v4981
    %v4998 = vadd.f32 %v4865, %v4982
    %v4999 = vadd.f32 %v4867, %v4983
    %v5000 = vadd.f32 %v4918, %v4984
    %v5001 = vadd.f32 %v4920, %v4985
    %v5002 = vadd.f32 %v4869, %v4986
    %v5003 = vadd.f32 %v4871, %v4987
    %v5004 = vadd.f32 %v4922, %v4988
    %v5005 = vadd.f32 %v4924, %v4989
    %v5006 = vmul.f32 %v4990, 0.7978846
    %v5007 = vmul.f32 %v4991, 0.7978846
    %v5008 = vmul.f32 %v4992, 0.7978846
    %v5009 = vmul.f32 %v4993, 0.7978846
    %v5010 = vmul.f32 %v4994, 0.7978846
    %v5011 = vmul.f32 %v4995, 0.7978846
    %v5012 = vmul.f32 %v4996, 0.7978846
    %v5013 = vmul.f32 %v4997, 0.7978846
    %v5014 = vmul.f32 %v4998, 0.7978846
    %v5015 = vmul.f32 %v4999, 0.7978846
    %v5016 = vmul.f32 %v5000, 0.7978846
    %v5017 = vmul.f32 %v5001, 0.7978846
    %v5018 = vmul.f32 %v5002, 0.7978846
    %v5019 = vmul.f32 %v5003, 0.7978846
    %v5020 = vmul.f32 %v5004, 0.7978846
    %v5021 = vmul.f32 %v5005, 0.7978846
    %v5022 = vtanh.pop %v5006
    %v5023 = vtanh.pop %v5007
    %v5024 = vtanh.pop %v5008
    %v5025 = vtanh.pop %v5009
    %v5026 = vtanh.pop %v5010
    %v5027 = vtanh.pop %v5011
    %v5028 = vtanh.pop %v5012
    %v5029 = vtanh.pop %v5013
    %v5030 = vtanh.pop %v5014
    %v5031 = vtanh.pop %v5015
    %v5032 = vtanh.pop %v5016
    %v5033 = vtanh.pop %v5017
    %v5034 = vtanh.pop %v5018
    %v5035 = vtanh.pop %v5019
    %v5036 = vtanh.pop %v5020
    %v5037 = vtanh.pop %v5021
    %v5038 = vadd.f32 %v5022, 1.0
    %v5039 = vadd.f32 %v5023, 1.0
    %v5040 = vadd.f32 %v5024, 1.0
    %v5041 = vadd.f32 %v5025, 1.0
    %v5042 = vadd.f32 %v5026, 1.0
    %v5043 = vadd.f32 %v5027, 1.0
    %v5044 = vadd.f32 %v5028, 1.0
    %v5045 = vadd.f32 %v5029, 1.0
    %v5046 = vadd.f32 %v5030, 1.0
    %v5047 = vadd.f32 %v5031, 1.0
    %v5048 = vadd.f32 %v5032, 1.0
    %v5049 = vadd.f32 %v5033, 1.0
    %v5050 = vadd.f32 %v5034, 1.0
    %v5051 = vadd.f32 %v5035, 1.0
    %v5052 = vadd.f32 %v5036, 1.0
    %v5053 = vadd.f32 %v5037, 1.0
    %v5054 = vmul.f32 %v4926, %v5038
    %v5055 = vmul.f32 %v4927, %v5039
    %v5056 = vmul.f32 %v4928, %v5040
    %v5057 = vmul.f32 %v4929, %v5041
    %v5058 = vmul.f32 %v4930, %v5042
    %v5059 = vmul.f32 %v4931, %v5043
    %v5060 = vmul.f32 %v4932, %v5044
    %v5061 = vmul.f32 %v4933, %v5045
    %v5062 = vmul.f32 %v4934, %v5046
    %v5063 = vmul.f32 %v4935, %v5047
    %v5064 = vmul.f32 %v4936, %v5048
    %v5065 = vmul.f32 %v4937, %v5049
    %v5066 = vmul.f32 %v4938, %v5050
    %v5067 = vmul.f32 %v4939, %v5051
    %v5068 = vmul.f32 %v4940, %v5052
    %v5069 = vmul.f32 %v4941, %v5053
    %s5070 = scalar_lea.vmem [#allocation7], 256
    %v5071 = vld [vmem:[%s5070] sm:$0xf]
    %v5072 = vld [vmem:[%s5070 + $0x4] sm:$0xf]
    %v5073 = vld [vmem:[%s5070 + $0x8] sm:$0xf]
    %v5074 = vld [vmem:[%s5070 + $0xc] sm:$0xf]
    %v5075 = vld [vmem:[%s5070 + $0x10] sm:$0xf]
    %v5076 = vld [vmem:[%s5070 + $0x14] sm:$0xf]
    %v5077 = vld [vmem:[%s5070 + $0x18] sm:$0xf]
    %v5078 = vld [vmem:[%s5070 + $0x1c] sm:$0xf]
    %v5079 = vld [vmem:[%s5070 + $0x20] sm:$0xf]
    %v5080 = vld [vmem:[%s5070 + $0x24] sm:$0xf]
    %v5081 = vld [vmem:[%s5070 + $0x28] sm:$0xf]
    %v5082 = vld [vmem:[%s5070 + $0x2c] sm:$0xf]
    %v5083 = vld [vmem:[%s5070 + $0x30] sm:$0xf]
    %v5084 = vld [vmem:[%s5070 + $0x34] sm:$0xf]
    %v5085 = vld [vmem:[%s5070 + $0x38] sm:$0xf]
    %v5086 = vld [vmem:[%s5070 + $0x3c] sm:$0xf]
    %v5087 = vld [vmem:[%s5070 + $0x40] sm:$0xf]
    %v5088 = vld [vmem:[%s5070 + $0x44] sm:$0xf]
    %v5089 = vld [vmem:[%s5070 + $0x48] sm:$0xf]
    %v5090 = vld [vmem:[%s5070 + $0x4c] sm:$0xf]
    %v5091 = vld [vmem:[%s5070 + $0x50] sm:$0xf]
    %v5092 = vld [vmem:[%s5070 + $0x54] sm:$0xf]
    %v5093 = vld [vmem:[%s5070 + $0x58] sm:$0xf]
    %v5094 = vld [vmem:[%s5070 + $0x5c] sm:$0xf]
    %v5095 = vld [vmem:[%s5070 + $0x60] sm:$0xf]
    %v5096 = vld [vmem:[%s5070 + $0x64] sm:$0xf]
    %v5097 = vld [vmem:[%s5070 + $0x68] sm:$0xf]
    %v5098 = vld [vmem:[%s5070 + $0x6c] sm:$0xf]
    %v5099 = vld [vmem:[%s5070 + $0x70] sm:$0xf]
    %v5100 = vld [vmem:[%s5070 + $0x74] sm:$0xf]
    %v5101 = vld [vmem:[%s5070 + $0x78] sm:$0xf]
    %v5102 = vld [vmem:[%s5070 + $0x7c] sm:$0xf]
    %v5103 = vld [vmem:[%s5070 + $0x80] sm:$0xf]
    %v5104 = vld [vmem:[%s5070 + $0x84] sm:$0xf]
    %v5105 = vld [vmem:[%s5070 + $0x88] sm:$0xf]
    %v5106 = vld [vmem:[%s5070 + $0x8c] sm:$0xf]
    %v5107 = vld [vmem:[%s5070 + $0x90] sm:$0xf]
    %v5108 = vld [vmem:[%s5070 + $0x94] sm:$0xf]
    %v5109 = vld [vmem:[%s5070 + $0x98] sm:$0xf]
    %v5110 = vld [vmem:[%s5070 + $0x9c] sm:$0xf]
    %v5111 = vld [vmem:[%s5070 + $0xa0] sm:$0xf]
    %v5112 = vld [vmem:[%s5070 + $0xa4] sm:$0xf]
    %v5113 = vld [vmem:[%s5070 + $0xa8] sm:$0xf]
    %v5114 = vld [vmem:[%s5070 + $0xac] sm:$0xf]
    %v5115 = vld [vmem:[%s5070 + $0xb0] sm:$0xf]
    %v5116 = vld [vmem:[%s5070 + $0xb4] sm:$0xf]
    %v5117 = vld [vmem:[%s5070 + $0xb8] sm:$0xf]
    %v5118 = vld [vmem:[%s5070 + $0xbc] sm:$0xf]
    %v5119 = vld [vmem:[%s5070 + $0xc0] sm:$0xf]
    %v5120 = vld [vmem:[%s5070 + $0xc4] sm:$0xf]
    %v5121 = vld [vmem:[%s5070 + $0xc8] sm:$0xf]
    %v5122 = vld [vmem:[%s5070 + $0xcc] sm:$0xf]
    %v5123 = vld [vmem:[%s5070 + $0xd0] sm:$0xf]
    %v5124 = vld [vmem:[%s5070 + $0xd4] sm:$0xf]
    %v5125 = vld [vmem:[%s5070 + $0xd8] sm:$0xf]
    %v5126 = vld [vmem:[%s5070 + $0xdc] sm:$0xf]
    %v5127 = vld [vmem:[%s5070 + $0xe0] sm:$0xf]
    %v5128 = vld [vmem:[%s5070 + $0xe4] sm:$0xf]
    %v5129 = vld [vmem:[%s5070 + $0xe8] sm:$0xf]
    %v5130 = vld [vmem:[%s5070 + $0xec] sm:$0xf]
    %v5131 = vld [vmem:[%s5070 + $0xf0] sm:$0xf]
    %v5132 = vld [vmem:[%s5070 + $0xf4] sm:$0xf]
    %v5133 = vld [vmem:[%s5070 + $0xf8] sm:$0xf]
    %v5134 = vld [vmem:[%s5070 + $0xfc] sm:$0xf]
    %v5135 = vpack.c.bf16 %v5058, %v5054
    %v5136 = vpack.c.bf16 %v5059, %v5055
    %v5137 = vpack.c.bf16 %v5060, %v5056
    %v5138 = vpack.c.bf16 %v5061, %v5057
    %v5139 = vpack.c.bf16 %v5066, %v5062
    %v5140 = vpack.c.bf16 %v5067, %v5063
    %v5141 = vpack.c.bf16 %v5068, %v5064
    %v5142 = vpack.c.bf16 %v5069, %v5065
    %v5207 = vunpack.c.l.b16 %v5071
    %v5208 = vunpack.c.l.b16 %v5072
    %v5209 = vunpack.c.l.b16 %v5073
    %v5210 = vunpack.c.l.b16 %v5074
    %v5211 = vunpack.c.l.b16 %v5075
    %v5212 = vunpack.c.l.b16 %v5076
    %v5213 = vunpack.c.l.b16 %v5077
    %v5214 = vunpack.c.l.b16 %v5078
    %v5215 = vunpack.c.l.b16 %v5079
    %v5216 = vunpack.c.l.b16 %v5080
    %v5217 = vunpack.c.l.b16 %v5081
    %v5218 = vunpack.c.l.b16 %v5082
    %v5219 = vunpack.c.l.b16 %v5083
    %v5220 = vunpack.c.l.b16 %v5084
    %v5221 = vunpack.c.l.b16 %v5085
    %v5222 = vunpack.c.l.b16 %v5086
    %v5223 = vunpack.c.l.b16 %v5087
    %v5224 = vunpack.c.l.b16 %v5088
    %v5225 = vunpack.c.l.b16 %v5089
    %v5226 = vunpack.c.l.b16 %v5090
    %v5227 = vunpack.c.l.b16 %v5091
    %v5228 = vunpack.c.l.b16 %v5092
    %v5229 = vunpack.c.l.b16 %v5093
    %v5230 = vunpack.c.l.b16 %v5094
    %v5231 = vunpack.c.l.b16 %v5095
    %v5232 = vunpack.c.l.b16 %v5096
    %v5233 = vunpack.c.l.b16 %v5097
    %v5234 = vunpack.c.l.b16 %v5098
    %v5235 = vunpack.c.l.b16 %v5099
    %v5236 = vunpack.c.l.b16 %v5100
    %v5237 = vunpack.c.l.b16 %v5101
    %v5238 = vunpack.c.l.b16 %v5102
    %v5239 = vunpack.c.l.b16 %v5103
    %v5240 = vunpack.c.l.b16 %v5104
    %v5241 = vunpack.c.l.b16 %v5105
    %v5242 = vunpack.c.l.b16 %v5106
    %v5243 = vunpack.c.l.b16 %v5107
    %v5244 = vunpack.c.l.b16 %v5108
    %v5245 = vunpack.c.l.b16 %v5109
    %v5246 = vunpack.c.l.b16 %v5110
    %v5247 = vunpack.c.l.b16 %v5111
    %v5248 = vunpack.c.l.b16 %v5112
    %v5249 = vunpack.c.l.b16 %v5113
    %v5250 = vunpack.c.l.b16 %v5114
    %v5251 = vunpack.c.l.b16 %v5115
    %v5252 = vunpack.c.l.b16 %v5116
    %v5253 = vunpack.c.l.b16 %v5117
    %v5254 = vunpack.c.l.b16 %v5118
    %v5255 = vunpack.c.l.b16 %v5119
    %v5256 = vunpack.c.l.b16 %v5120
    %v5257 = vunpack.c.l.b16 %v5121
    %v5258 = vunpack.c.l.b16 %v5122
    %v5259 = vunpack.c.l.b16 %v5123
    %v5260 = vunpack.c.l.b16 %v5124
    %v5261 = vunpack.c.l.b16 %v5125
    %v5262 = vunpack.c.l.b16 %v5126
    %v5263 = vunpack.c.l.b16 %v5127
    %v5264 = vunpack.c.l.b16 %v5128
    %v5265 = vunpack.c.l.b16 %v5129
    %v5266 = vunpack.c.l.b16 %v5130
    %v5267 = vunpack.c.l.b16 %v5131
    %v5268 = vunpack.c.l.b16 %v5132
    %v5269 = vunpack.c.l.b16 %v5133
    %v5270 = vunpack.c.l.b16 %v5134
    %v5271 = vpack.c.b16 %v5208, %v5207
    %v5272 = vpack.c.b16 %v5210, %v5209
    %v5273 = vpack.c.b16 %v5212, %v5211
    %v5274 = vpack.c.b16 %v5214, %v5213
    %v5275 = vpack.c.b16 %v5216, %v5215
    %v5276 = vpack.c.b16 %v5218, %v5217
    %v5277 = vpack.c.b16 %v5220, %v5219
    %v5278 = vpack.c.b16 %v5222, %v5221
    %v5279 = vpack.c.b16 %v5224, %v5223
    %v5280 = vpack.c.b16 %v5226, %v5225
    %v5281 = vpack.c.b16 %v5228, %v5227
    %v5282 = vpack.c.b16 %v5230, %v5229
    %v5283 = vpack.c.b16 %v5232, %v5231
    %v5284 = vpack.c.b16 %v5234, %v5233
    %v5285 = vpack.c.b16 %v5236, %v5235
    %v5286 = vpack.c.b16 %v5238, %v5237
    %v5287 = vpack.c.b16 %v5240, %v5239
    %v5288 = vpack.c.b16 %v5242, %v5241
    %v5289 = vpack.c.b16 %v5244, %v5243
    %v5290 = vpack.c.b16 %v5246, %v5245
    %v5291 = vpack.c.b16 %v5248, %v5247
    %v5292 = vpack.c.b16 %v5250, %v5249
    %v5293 = vpack.c.b16 %v5252, %v5251
    %v5294 = vpack.c.b16 %v5254, %v5253
    %v5295 = vpack.c.b16 %v5256, %v5255
    %v5296 = vpack.c.b16 %v5258, %v5257
    %v5297 = vpack.c.b16 %v5260, %v5259
    %v5298 = vpack.c.b16 %v5262, %v5261
    %v5299 = vpack.c.b16 %v5264, %v5263
    %v5300 = vpack.c.b16 %v5266, %v5265
    %v5301 = vpack.c.b16 %v5268, %v5267
    %v5302 = vpack.c.b16 %v5270, %v5269
    %5335 = vmatprep.subr.bf16.mxu0 0
    %5336 = vmatpush1.bf16.msra.mxu0 %v5278
    %5337 = vmatprep.subr.bf16.mxu0 0
    %5338 = vmatpush1.bf16.msra.mxu0 %v5277
    %5339 = vmatprep.subr.bf16.mxu0 0
    %5340 = vmatpush1.bf16.msra.mxu0 %v5276
    %5341 = vmatprep.subr.bf16.mxu0 0
    %5342 = vmatpush1.bf16.msra.mxu0 %v5275
    %5343 = vmatprep.subr.bf16.mxu0 0
    %5344 = vmatpush1.bf16.msra.mxu0 %v5274
    %5345 = vmatprep.subr.bf16.mxu0 0
    %5346 = vmatpush1.bf16.msra.mxu0 %v5273
    %5347 = vmatprep.subr.bf16.mxu0 0
    %5348 = vmatpush1.bf16.msra.mxu0 %v5272
    %5349 = vmatprep.subr.bf16.mxu0 0
    %5350 = vmatpush1.bf16.msra.mxu0 %v5271
    %5351 = vmatprep.subr.bf16.mxu0 0
    %5352 = vmatpush2.bf16.msra.mxu0 %v5286
    %5353 = vmatprep.subr.bf16.mxu0 0
    %5354 = vmatpush2.bf16.msra.mxu0 %v5285
    %5355 = vmatprep.subr.bf16.mxu0 0
    %5356 = vmatpush2.bf16.msra.mxu0 %v5284
    %5357 = vmatprep.subr.bf16.mxu0 0
    %5358 = vmatpush2.bf16.msra.mxu0 %v5283
    %5359 = vmatprep.subr.bf16.mxu0 0
    %5360 = vmatpush2.bf16.msra.mxu0 %v5282
    %5361 = vmatprep.subr.bf16.mxu0 0
    %5362 = vmatpush2.bf16.msra.mxu0 %v5281
    %5363 = vmatprep.subr.bf16.mxu0 0
    %5364 = vmatpush2.bf16.msra.mxu0 %v5280
    %5365 = vmatprep.subr.bf16.mxu0 0
    %5366 = vmatpush2.bf16.msra.mxu0 %v5279
    %5367 = vmatprep.mubr.bf16.mxu0 %v5136
    %5368 = vmatmul.mubr.bf16.gmra.mxu0 %v5135
    %v5369 = vpop.f32.mrf.mxu0
    %v5370 = vadd.f32 0.0, %v5369
    %v5371 = vpop.f32.mrf.mxu0
    %v5372 = vpop.f32.mrf.mxu0
    %v5373 = vpop.f32.mrf.mxu0
    %5374 = vmatprep.mubr.bf16.mxu0 %v5140
    %5375 = vmatmul.mubr.bf16.gmra.mxu0 %v5139
    %v5376 = vpop.f32.mrf.mxu0
    %v5377 = vadd.f32 0.0, %v5376
    %v5378 = vpop.f32.mrf.mxu0
    %v5379 = vpop.f32.mrf.mxu0
    %v5380 = vpop.f32.mrf.mxu0
    %5381 = vdwg.mxu0
    %5382 = vmatprep.subr.bf16.mxu0 0
    %5383 = vmatpush1.bf16.msra.mxu0 %v5294
    %5384 = vmatprep.subr.bf16.mxu0 0
    %5385 = vmatpush1.bf16.msra.mxu0 %v5293
    %5386 = vmatprep.subr.bf16.mxu0 0
    %5387 = vmatpush1.bf16.msra.mxu0 %v5292
    %5388 = vmatprep.subr.bf16.mxu0 0
    %5389 = vmatpush1.bf16.msra.mxu0 %v5291
    %5390 = vmatprep.subr.bf16.mxu0 0
    %5391 = vmatpush1.bf16.msra.mxu0 %v5290
    %5392 = vmatprep.subr.bf16.mxu0 0
    %5393 = vmatpush1.bf16.msra.mxu0 %v5289
    %5394 = vmatprep.subr.bf16.mxu0 0
    %5395 = vmatpush1.bf16.msra.mxu0 %v5288
    %5396 = vmatprep.subr.bf16.mxu0 0
    %5397 = vmatpush1.bf16.msra.mxu0 %v5287
    %5398 = vmatprep.subr.bf16.mxu0 0
    %5399 = vmatpush2.bf16.msra.mxu0 %v5302
    %5400 = vmatprep.subr.bf16.mxu0 0
    %5401 = vmatpush2.bf16.msra.mxu0 %v5301
    %5402 = vmatprep.subr.bf16.mxu0 0
    %5403 = vmatpush2.bf16.msra.mxu0 %v5300
    %5404 = vmatprep.subr.bf16.mxu0 0
    %5405 = vmatpush2.bf16.msra.mxu0 %v5299
    %5406 = vmatprep.subr.bf16.mxu0 0
    %5407 = vmatpush2.bf16.msra.mxu0 %v5298
    %5408 = vmatprep.subr.bf16.mxu0 0
    %5409 = vmatpush2.bf16.msra.mxu0 %v5297
    %5410 = vmatprep.subr.bf16.mxu0 0
    %5411 = vmatpush2.bf16.msra.mxu0 %v5296
    %5412 = vmatprep.subr.bf16.mxu0 0
    %5413 = vmatpush2.bf16.msra.mxu0 %v5295
    %5414 = vmatprep.mubr.bf16.mxu0 %v5138
    %5415 = vmatmul.mubr.bf16.gmra.mxu0 %v5137
    %v5416 = vpop.f32.mrf.mxu0
    %v5417 = vadd.f32 %v5370, %v5416
    %v5418 = vpop.f32.mrf.mxu0
    %v5419 = vpop.f32.mrf.mxu0
    %v5420 = vpop.f32.mrf.mxu0
    %5421 = vmatprep.mubr.bf16.mxu0 %v5142
    %5422 = vmatmul.mubr.bf16.gmra.mxu0 %v5141
    %v5423 = vpop.f32.mrf.mxu0
    %v5424 = vadd.f32 %v5377, %v5423
    %v5425 = vpop.f32.mrf.mxu0
    %v5426 = vpop.f32.mrf.mxu0
    %v5427 = vpop.f32.mrf.mxu0
    %5428 = vdwg.mxu0
    %v5429 = vadd.f32 %v4598, %v5417
    %v5430 = vadd.f32 %v4600, %v5424
    %s5431 = scalar_lea.vmem %s27, 1
    %v5432 = vld [vmem:[%s5431] sm:$0x1]
    %v5434 = vlaneseq
    %v5435 = vshrl.u32 %v5434, 7
    %v5436 = vsub.s32 0, %v5435
    %v5437 = vrot.slane %v5432, %v5436
    %v5439 = vadd.f32 %v5429, %v5437
    %v5440 = vadd.f32 %v5430, %v5437
    %s5441 = scalar_lea.vmem %s29, 1
    %v5442 = vld [vmem:[%s5441] sm:$0x1]
    %s5443 = scalar_lea.vmem %s31, 1
    %v5444 = vld [vmem:[%s5443] sm:$0x1]
    %5445 = vadd.xlane.f32.xlu0 %v5439
    %v5446 = vpop.xlane.xlu0 %5445
    %5447 = vadd.xlane.f32.xlu0 %v5440
    %v5448 = vpop.xlane.xlu0 %5447
    %v5449 = vmul.f32 %v5446, %v296
    %v5450 = vmul.f32 %v5448, %v296
    %v5451 = vsub.f32 %v5439, %v5449
    %v5452 = vsub.f32 %v5440, %v5450
    %v5453 = vmul.f32 %v5451, %v5451
    %v5454 = vmul.f32 %v5452, %v5452
    %5455 = vadd.xlane.f32.xlu0 %v5453
    %v5456 = vpop.xlane.xlu0 %5455
    %5457 = vadd.xlane.f32.xlu0 %v5454
    %v5458 = vpop.xlane.xlu0 %5457
    %v5459 = vmul.f32 %v5456, %v296
    %v5460 = vmul.f32 %v5458, %v296
    %v5461 = vadd.f32 %v5459, 1e-12
    %v5462 = vadd.f32 %v5460, 1e-12
    %v5463 = vrsqrt.pop %v5461
    %v5464 = vrsqrt.pop %v5462
    %v5465 = vmul.f32 %v5451, %v5463
    %v5466 = vmul.f32 %v5452, %v5464
    %v5468 = vlaneseq
    %v5469 = vshrl.u32 %v5468, 7
    %v5470 = vsub.s32 0, %v5469
    %v5471 = vrot.slane %v5442, %v5470
    %v5473 = vmul.f32 %v5465, %v5471
    %v5474 = vmul.f32 %v5466, %v5471
    %v5476 = vlaneseq
    %v5477 = vshrl.u32 %v5476, 7
    %v5478 = vsub.s32 0, %v5477
    %v5479 = vrot.slane %v5444, %v5478
    %v5481 = vadd.f32 %v5473, %v5479
    %v5482 = vadd.f32 %v5474, %v5479
    %v5483 = vld [vmem:[%s33] sm:$0xf]
    %v5484 = vld [vmem:[%s33 + $0x4] sm:$0xf]
    %v5485 = vld [vmem:[%s33 + $0x8] sm:$0xf]
    %v5486 = vld [vmem:[%s33 + $0xc] sm:$0xf]
    %v5487 = vld [vmem:[%s33 + $0x10] sm:$0xf]
    %v5488 = vld [vmem:[%s33 + $0x14] sm:$0xf]
    %v5489 = vld [vmem:[%s33 + $0x18] sm:$0xf]
    %v5490 = vld [vmem:[%s33 + $0x1c] sm:$0xf]
    %v5491 = vld [vmem:[%s33 + $0x20] sm:$0xf]
    %v5492 = vld [vmem:[%s33 + $0x24] sm:$0xf]
    %v5493 = vld [vmem:[%s33 + $0x28] sm:$0xf]
    %v5494 = vld [vmem:[%s33 + $0x2c] sm:$0xf]
    %v5495 = vld [vmem:[%s33 + $0x30] sm:$0xf]
    %v5496 = vld [vmem:[%s33 + $0x34] sm:$0xf]
    %v5497 = vld [vmem:[%s33 + $0x38] sm:$0xf]
    %v5498 = vld [vmem:[%s33 + $0x3c] sm:$0xf]
    %v5499 = vpack.c.bf16 %v5481, %v5481
    %v5500 = vpack.c.bf16 %v5482, %v5482
    %v5501 = vld [vmem:[%s35] sm:$0x1]
    %v5503 = vlaneseq
    %v5504 = vshrl.u32 %v5503, 7
    %v5505 = vsub.s32 0, %v5504
    %v5506 = vrot.slane %v5501, %v5505
    %v5510 = vunpack.c.l.b16 %v5499
    %v5511 = vunpack.c.l.b16 %v5500
    %v5512 = vrot.slane %v5511, 7
    %vm5513 = vcmask 1041409
    %v5514 = vsel %vm5513, %v5512, %v5510
    %v5515 = vpack.c.b16 %v5514, %v5514
    %v5533 = vunpack.c.l.b16 %v5483
    %v5534 = vunpack.c.l.b16 %v5484
    %v5535 = vunpack.c.l.b16 %v5485
    %v5536 = vunpack.c.l.b16 %v5486
    %v5537 = vunpack.c.l.b16 %v5487
    %v5538 = vunpack.c.l.b16 %v5488
    %v5539 = vunpack.c.l.b16 %v5489
    %v5540 = vunpack.c.l.b16 %v5490
    %v5541 = vunpack.c.l.b16 %v5491
    %v5542 = vunpack.c.l.b16 %v5492
    %v5543 = vunpack.c.l.b16 %v5493
    %v5544 = vunpack.c.l.b16 %v5494
    %v5545 = vunpack.c.l.b16 %v5495
    %v5546 = vunpack.c.l.b16 %v5496
    %v5547 = vunpack.c.l.b16 %v5497
    %v5548 = vunpack.c.l.b16 %v5498
    %v5549 = vpack.c.b16 %v5534, %v5533
    %v5550 = vpack.c.b16 %v5536, %v5535
    %v5551 = vpack.c.b16 %v5538, %v5537
    %v5552 = vpack.c.b16 %v5540, %v5539
    %v5553 = vpack.c.b16 %v5542, %v5541
    %v5554 = vpack.c.b16 %v5544, %v5543
    %v5555 = vpack.c.b16 %v5546, %v5545
    %v5556 = vpack.c.b16 %v5548, %v5547
    %5565 = vmatprep.subr.bf16.mxu0 0
    %5566 = vmatpush1.bf16.msra.mxu0 %v5556
    %5567 = vmatprep.subr.bf16.mxu0 0
    %5568 = vmatpush1.bf16.msra.mxu0 %v5555
    %5569 = vmatprep.subr.bf16.mxu0 0
    %5570 = vmatpush1.bf16.msra.mxu0 %v5554
    %5571 = vmatprep.subr.bf16.mxu0 0
    %5572 = vmatpush1.bf16.msra.mxu0 %v5553
    %5573 = vmatprep.subr.bf16.mxu0 0
    %5574 = vmatpush1.bf16.msra.mxu0 %v5552
    %5575 = vmatprep.subr.bf16.mxu0 0
    %5576 = vmatpush1.bf16.msra.mxu0 %v5551
    %5577 = vmatprep.subr.bf16.mxu0 0
    %5578 = vmatpush1.bf16.msra.mxu0 %v5550
    %5579 = vmatprep.subr.bf16.mxu0 0
    %5580 = vmatpush1.bf16.msra.mxu0 %v5549
    %5581 = vmatprep.subr.bf16.mxu0 0
    %5582 = vmatpush2.bf16.msra.mxu0 0
    %5583 = vmatprep.subr.bf16.mxu0 0
    %5584 = vmatpush2.bf16.msra.mxu0 0
    %5585 = vmatprep.subr.bf16.mxu0 0
    %5586 = vmatpush2.bf16.msra.mxu0 0
    %5587 = vmatprep.subr.bf16.mxu0 0
    %5588 = vmatpush2.bf16.msra.mxu0 0
    %5589 = vmatprep.subr.bf16.mxu0 0
    %5590 = vmatpush2.bf16.msra.mxu0 0
    %5591 = vmatprep.subr.bf16.mxu0 0
    %5592 = vmatpush2.bf16.msra.mxu0 0
    %5593 = vmatprep.subr.bf16.mxu0 0
    %5594 = vmatpush2.bf16.msra.mxu0 0
    %5595 = vmatprep.subr.bf16.mxu0 0
    %5596 = vmatpush2.bf16.msra.mxu0 0
    %5597 = vmatprep.mubr.bf16.mxu0 0
    %5598 = vmatmul.mubr.bf16.gmra.mxu0 %v5515
    %v5599 = vpop.f32.mrf.mxu0
    %v5600 = vadd.f32 %v5506, %v5599
    %v5601 = vpop.f32.mrf.mxu0
    %v5602 = vpop.f32.mrf.mxu0
    %v5603 = vpop.f32.mrf.mxu0
    %5604 = vdwg.mxu0
    %v5605 = vtanh.pop %v5600
    %v5606 = vld [vmem:[%s37] sm:$0xff]
    %v5607 = vld [vmem:[%s37 + $0x8] sm:$0xff]
    %v5608 = vld [vmem:[%s37 + $0x10] sm:$0xff]
    %v5609 = vld [vmem:[%s37 + $0x18] sm:$0xff]
    %v5610 = vld [vmem:[%s37 + $0x20] sm:$0xff]
    %v5611 = vld [vmem:[%s37 + $0x28] sm:$0xff]
    %v5612 = vld [vmem:[%s37 + $0x30] sm:$0xff]
    %v5613 = vld [vmem:[%s37 + $0x38] sm:$0xff]
    %v5614 = vld [vmem:[%s37 + $0x40] sm:$0xff]
    %v5615 = vld [vmem:[%s37 + $0x48] sm:$0xff]
    %v5616 = vld [vmem:[%s37 + $0x50] sm:$0xff]
    %v5617 = vld [vmem:[%s37 + $0x58] sm:$0xff]
    %v5618 = vld [vmem:[%s37 + $0x60] sm:$0xff]
    %v5619 = vld [vmem:[%s37 + $0x68] sm:$0xff]
    %v5620 = vld [vmem:[%s37 + $0x70] sm:$0xff]
    %v5621 = vld [vmem:[%s37 + $0x78] sm:$0xff]
    %v5622 = vld [vmem:[%s37 + $0x80] sm:$0xff]
    %v5623 = vld [vmem:[%s37 + $0x88] sm:$0xff]
    %v5624 = vld [vmem:[%s37 + $0x90] sm:$0xff]
    %v5625 = vld [vmem:[%s37 + $0x98] sm:$0xff]
    %v5626 = vld [vmem:[%s37 + $0xa0] sm:$0xff]
    %v5627 = vld [vmem:[%s37 + $0xa8] sm:$0xff]
    %v5628 = vld [vmem:[%s37 + $0xb0] sm:$0xff]
    %v5629 = vld [vmem:[%s37 + $0xb8] sm:$0xff]
    %v5630 = vld [vmem:[%s37 + $0xc0] sm:$0xff]
    %v5631 = vld [vmem:[%s37 + $0xc8] sm:$0xff]
    %v5632 = vld [vmem:[%s37 + $0xd0] sm:$0xff]
    %v5633 = vld [vmem:[%s37 + $0xd8] sm:$0xff]
    %v5634 = vld [vmem:[%s37 + $0xe0] sm:$0xff]
    %v5635 = vld [vmem:[%s37 + $0xe8] sm:$0xff]
    %v5636 = vld [vmem:[%s37 + $0xf0] sm:$0xff]
    %v5637 = vld [vmem:[%s37 + $0xf8] sm:$0xff]
    %v5638 = vld [vmem:[%s39] sm:$0xf]
    %v5639 = vpack.c.bf16 %v5605, %v5605
    %v5641 = vlaneseq
    %v5642 = vshrl.u32 %v5641, 7
    %v5643 = vsub.s32 0, %v5642
    %v5644 = vrot.slane %v5638, %v5643
    %v5645 = vlaneseq
    %v5646 = vshrl.u32 %v5645, 7
    %v5647 = vsub.s32 1, %v5646
    %v5648 = vrot.slane %v5638, %v5647
    %v5649 = vlaneseq
    %v5650 = vshrl.u32 %v5649, 7
    %v5651 = vsub.s32 2, %v5650
    %v5652 = vrot.slane %v5638, %v5651
    %v5653 = vlaneseq
    %v5654 = vshrl.u32 %v5653, 7
    %v5655 = vsub.s32 3, %v5654
    %v5656 = vrot.slane %v5638, %v5655
    %v5693 = vunpack.c.l.b16 %v5606
    %v5694 = vunpack.c.h.b16 %v5606
    %v5695 = vunpack.c.l.b16 %v5607
    %v5696 = vunpack.c.h.b16 %v5607
    %v5697 = vunpack.c.l.b16 %v5608
    %v5698 = vunpack.c.h.b16 %v5608
    %v5699 = vunpack.c.l.b16 %v5609
    %v5700 = vunpack.c.h.b16 %v5609
    %v5701 = vunpack.c.l.b16 %v5610
    %v5702 = vunpack.c.h.b16 %v5610
    %v5703 = vunpack.c.l.b16 %v5611
    %v5704 = vunpack.c.h.b16 %v5611
    %v5705 = vunpack.c.l.b16 %v5612
    %v5706 = vunpack.c.h.b16 %v5612
    %v5707 = vunpack.c.l.b16 %v5613
    %v5708 = vunpack.c.h.b16 %v5613
    %v5709 = vunpack.c.l.b16 %v5614
    %v5710 = vunpack.c.h.b16 %v5614
    %v5711 = vunpack.c.l.b16 %v5615
    %v5712 = vunpack.c.h.b16 %v5615
    %v5713 = vunpack.c.l.b16 %v5616
    %v5714 = vunpack.c.h.b16 %v5616
    %v5715 = vunpack.c.l.b16 %v5617
    %v5716 = vunpack.c.h.b16 %v5617
    %v5717 = vunpack.c.l.b16 %v5618
    %v5718 = vunpack.c.h.b16 %v5618
    %v5719 = vunpack.c.l.b16 %v5619
    %v5720 = vunpack.c.h.b16 %v5619
    %v5721 = vunpack.c.l.b16 %v5620
    %v5722 = vunpack.c.h.b16 %v5620
    %v5723 = vunpack.c.l.b16 %v5621
    %v5724 = vunpack.c.h.b16 %v5621
    %v5725 = vunpack.c.l.b16 %v5622
    %v5726 = vunpack.c.h.b16 %v5622
    %v5727 = vunpack.c.l.b16 %v5623
    %v5728 = vunpack.c.h.b16 %v5623
    %v5729 = vunpack.c.l.b16 %v5624
    %v5730 = vunpack.c.h.b16 %v5624
    %v5731 = vunpack.c.l.b16 %v5625
    %v5732 = vunpack.c.h.b16 %v5625
    %v5733 = vunpack.c.l.b16 %v5626
    %v5734 = vunpack.c.h.b16 %v5626
    %v5735 = vunpack.c.l.b16 %v5627
    %v5736 = vunpack.c.h.b16 %v5627
    %v5737 = vunpack.c.l.b16 %v5628
    %v5738 = vunpack.c.h.b16 %v5628
    %v5739 = vunpack.c.l.b16 %v5629
    %v5740 = vunpack.c.h.b16 %v5629
    %v5741 = vunpack.c.l.b16 %v5630
    %v5742 = vunpack.c.h.b16 %v5630
    %v5743 = vunpack.c.l.b16 %v5631
    %v5744 = vunpack.c.h.b16 %v5631
    %v5745 = vunpack.c.l.b16 %v5632
    %v5746 = vunpack.c.h.b16 %v5632
    %v5747 = vunpack.c.l.b16 %v5633
    %v5748 = vunpack.c.h.b16 %v5633
    %v5749 = vunpack.c.l.b16 %v5634
    %v5750 = vunpack.c.h.b16 %v5634
    %v5751 = vunpack.c.l.b16 %v5635
    %v5752 = vunpack.c.h.b16 %v5635
    %v5753 = vunpack.c.l.b16 %v5636
    %v5754 = vunpack.c.h.b16 %v5636
    %v5755 = vunpack.c.l.b16 %v5637
    %v5756 = vunpack.c.h.b16 %v5637
    %v5757 = vpack.c.b16 %v5697, %v5693
    %v5758 = vpack.c.b16 %v5698, %v5694
    %v5759 = vpack.c.b16 %v5699, %v5695
    %v5760 = vpack.c.b16 %v5700, %v5696
    %v5761 = vpack.c.b16 %v5705, %v5701
    %v5762 = vpack.c.b16 %v5706, %v5702
    %v5763 = vpack.c.b16 %v5707, %v5703
    %v5764 = vpack.c.b16 %v5708, %v5704
    %v5765 = vpack.c.b16 %v5713, %v5709
    %v5766 = vpack.c.b16 %v5714, %v5710
    %v5767 = vpack.c.b16 %v5715, %v5711
    %v5768 = vpack.c.b16 %v5716, %v5712
    %v5769 = vpack.c.b16 %v5721, %v5717
    %v5770 = vpack.c.b16 %v5722, %v5718
    %v5771 = vpack.c.b16 %v5723, %v5719
    %v5772 = vpack.c.b16 %v5724, %v5720
    %v5773 = vpack.c.b16 %v5729, %v5725
    %v5774 = vpack.c.b16 %v5730, %v5726
    %v5775 = vpack.c.b16 %v5731, %v5727
    %v5776 = vpack.c.b16 %v5732, %v5728
    %v5777 = vpack.c.b16 %v5737, %v5733
    %v5778 = vpack.c.b16 %v5738, %v5734
    %v5779 = vpack.c.b16 %v5739, %v5735
    %v5780 = vpack.c.b16 %v5740, %v5736
    %v5781 = vpack.c.b16 %v5745, %v5741
    %v5782 = vpack.c.b16 %v5746, %v5742
    %v5783 = vpack.c.b16 %v5747, %v5743
    %v5784 = vpack.c.b16 %v5748, %v5744
    %v5785 = vpack.c.b16 %v5753, %v5749
    %v5786 = vpack.c.b16 %v5754, %v5750
    %v5787 = vpack.c.b16 %v5755, %v5751
    %v5788 = vpack.c.b16 %v5756, %v5752
    %5821 = vmatprep.subr.bf16.mxu0 %v5786
    %5822 = vmatpush1.bf16.msra.mxu0 %v5785
    %5823 = vmatprep.subr.bf16.mxu0 %v5782
    %5824 = vmatpush1.bf16.msra.mxu0 %v5781
    %5825 = vmatprep.subr.bf16.mxu0 %v5778
    %5826 = vmatpush1.bf16.msra.mxu0 %v5777
    %5827 = vmatprep.subr.bf16.mxu0 %v5774
    %5828 = vmatpush1.bf16.msra.mxu0 %v5773
    %5829 = vmatprep.subr.bf16.mxu0 %v5770
    %5830 = vmatpush1.bf16.msra.mxu0 %v5769
    %5831 = vmatprep.subr.bf16.mxu0 %v5766
    %5832 = vmatpush1.bf16.msra.mxu0 %v5765
    %5833 = vmatprep.subr.bf16.mxu0 %v5762
    %5834 = vmatpush1.bf16.msra.mxu0 %v5761
    %5835 = vmatprep.subr.bf16.mxu0 %v5758
    %5836 = vmatpush1.bf16.msra.mxu0 %v5757
    %5837 = vmatprep.subr.bf16.mxu0 0
    %5838 = vmatpush2.bf16.msra.mxu0 0
    %5839 = vmatprep.subr.bf16.mxu0 0
    %5840 = vmatpush2.bf16.msra.mxu0 0
    %5841 = vmatprep.subr.bf16.mxu0 0
    %5842 = vmatpush2.bf16.msra.mxu0 0
    %5843 = vmatprep.subr.bf16.mxu0 0
    %5844 = vmatpush2.bf16.msra.mxu0 0
    %5845 = vmatprep.subr.bf16.mxu0 0
    %5846 = vmatpush2.bf16.msra.mxu0 0
    %5847 = vmatprep.subr.bf16.mxu0 0
    %5848 = vmatpush2.bf16.msra.mxu0 0
    %5849 = vmatprep.subr.bf16.mxu0 0
    %5850 = vmatpush2.bf16.msra.mxu0 0
    %5851 = vmatprep.subr.bf16.mxu0 0
    %5852 = vmatpush2.bf16.msra.mxu0 0
    %5853 = vmatprep.mubr.bf16.mxu0 0
    %5854 = vmatmul.mubr.bf16.gmra.mxu0 %v5639
    %v5855 = vpop.f32.mrf.mxu0
    %v5856 = vadd.f32 %v5644, %v5855
    %v5857 = vpop.f32.mrf.mxu0
    %v5858 = vadd.f32 %v5648, %v5857
    %v5859 = vpop.f32.mrf.mxu0
    %v5860 = vpop.f32.mrf.mxu0
    %5861 = vdwg.mxu0
    %5862 = vmatprep.subr.bf16.mxu0 %v5788
    %5863 = vmatpush1.bf16.msra.mxu0 %v5787
    %5864 = vmatprep.subr.bf16.mxu0 %v5784
    %5865 = vmatpush1.bf16.msra.mxu0 %v5783
    %5866 = vmatprep.subr.bf16.mxu0 %v5780
    %5867 = vmatpush1.bf16.msra.mxu0 %v5779
    %5868 = vmatprep.subr.bf16.mxu0 %v5776
    %5869 = vmatpush1.bf16.msra.mxu0 %v5775
    %5870 = vmatprep.subr.bf16.mxu0 %v5772
    %5871 = vmatpush1.bf16.msra.mxu0 %v5771
    %5872 = vmatprep.subr.bf16.mxu0 %v5768
    %5873 = vmatpush1.bf16.msra.mxu0 %v5767
    %5874 = vmatprep.subr.bf16.mxu0 %v5764
    %5875 = vmatpush1.bf16.msra.mxu0 %v5763
    %5876 = vmatprep.subr.bf16.mxu0 %v5760
    %5877 = vmatpush1.bf16.msra.mxu0 %v5759
    %5878 = vmatprep.subr.bf16.mxu0 0
    %5879 = vmatpush2.bf16.msra.mxu0 0
    %5880 = vmatprep.subr.bf16.mxu0 0
    %5881 = vmatpush2.bf16.msra.mxu0 0
    %5882 = vmatprep.subr.bf16.mxu0 0
    %5883 = vmatpush2.bf16.msra.mxu0 0
    %5884 = vmatprep.subr.bf16.mxu0 0
    %5885 = vmatpush2.bf16.msra.mxu0 0
    %5886 = vmatprep.subr.bf16.mxu0 0
    %5887 = vmatpush2.bf16.msra.mxu0 0
    %5888 = vmatprep.subr.bf16.mxu0 0
    %5889 = vmatpush2.bf16.msra.mxu0 0
    %5890 = vmatprep.subr.bf16.mxu0 0
    %5891 = vmatpush2.bf16.msra.mxu0 0
    %5892 = vmatprep.subr.bf16.mxu0 0
    %5893 = vmatpush2.bf16.msra.mxu0 0
    %5894 = vmatprep.mubr.bf16.mxu0 0
    %5895 = vmatmul.mubr.bf16.gmra.mxu0 %v5639
    %v5896 = vpop.f32.mrf.mxu0
    %v5897 = vadd.f32 %v5652, %v5896
    %v5898 = vpop.f32.mrf.mxu0
    %v5899 = vadd.f32 %v5656, %v5898
    %v5900 = vpop.f32.mrf.mxu0
    %v5901 = vpop.f32.mrf.mxu0
    %5902 = vdwg.mxu0
    %v5903 = vmax.f32 %v5856, 0.0
    %v5904 = vmax.f32 %v5858, 0.0
    %v5905 = vmax.f32 %v5897, 0.0
    %v5906 = vmax.f32 %v5899, 0.0
    %v5907 = vld [vmem:[#allocation8] sm:$0xff]
    %v5908 = vld [vmem:[#allocation8 + $0x8] sm:$0xff]
    %v5909 = vld [vmem:[#allocation8 + $0x10] sm:$0xff]
    %v5910 = vld [vmem:[#allocation8 + $0x18] sm:$0xff]
    %v5911 = vld [vmem:[#allocation8 + $0x20] sm:$0xff]
    %v5912 = vld [vmem:[#allocation8 + $0x28] sm:$0xff]
    %v5913 = vld [vmem:[#allocation8 + $0x30] sm:$0xff]
    %v5914 = vld [vmem:[#allocation8 + $0x38] sm:$0xff]
    %v5915 = vld [vmem:[#allocation8 + $0x40] sm:$0xff]
    %v5916 = vld [vmem:[#allocation8 + $0x48] sm:$0xff]
    %v5917 = vld [vmem:[#allocation8 + $0x50] sm:$0xff]
    %v5918 = vld [vmem:[#allocation8 + $0x58] sm:$0xff]
    %v5919 = vld [vmem:[#allocation8 + $0x60] sm:$0xff]
    %v5920 = vld [vmem:[#allocation8 + $0x68] sm:$0xff]
    %v5921 = vld [vmem:[#allocation8 + $0x70] sm:$0xff]
    %v5922 = vld [vmem:[#allocation8 + $0x78] sm:$0xff]
    %v5923 = vld [vmem:[#allocation8 + $0x80] sm:$0xff]
    %v5924 = vld [vmem:[#allocation8 + $0x88] sm:$0xff]
    %v5925 = vld [vmem:[#allocation8 + $0x90] sm:$0xff]
    %v5926 = vld [vmem:[#allocation8 + $0x98] sm:$0xff]
    %v5927 = vld [vmem:[#allocation8 + $0xa0] sm:$0xff]
    %v5928 = vld [vmem:[#allocation8 + $0xa8] sm:$0xff]
    %v5929 = vld [vmem:[#allocation8 + $0xb0] sm:$0xff]
    %v5930 = vld [vmem:[#allocation8 + $0xb8] sm:$0xff]
    %v5931 = vld [vmem:[#allocation8 + $0xc0] sm:$0xff]
    %v5932 = vld [vmem:[#allocation8 + $0xc8] sm:$0xff]
    %v5933 = vld [vmem:[#allocation8 + $0xd0] sm:$0xff]
    %v5934 = vld [vmem:[#allocation8 + $0xd8] sm:$0xff]
    %v5935 = vld [vmem:[#allocation8 + $0xe0] sm:$0xff]
    %v5936 = vld [vmem:[#allocation8 + $0xe8] sm:$0xff]
    %v5937 = vld [vmem:[#allocation8 + $0xf0] sm:$0xff]
    %v5938 = vld [vmem:[#allocation8 + $0xf8] sm:$0xff]
    %v5939 = vld [vmem:[#allocation8 + $0x100] sm:$0xff]
    %v5940 = vld [vmem:[#allocation8 + $0x108] sm:$0xff]
    %v5941 = vld [vmem:[#allocation8 + $0x110] sm:$0xff]
    %v5942 = vld [vmem:[#allocation8 + $0x118] sm:$0xff]
    %v5943 = vld [vmem:[#allocation8 + $0x120] sm:$0xff]
    %v5944 = vld [vmem:[#allocation8 + $0x128] sm:$0xff]
    %v5945 = vld [vmem:[#allocation8 + $0x130] sm:$0xff]
    %v5946 = vld [vmem:[#allocation8 + $0x138] sm:$0xff]
    %v5947 = vld [vmem:[#allocation8 + $0x140] sm:$0xff]
    %v5948 = vld [vmem:[#allocation8 + $0x148] sm:$0xff]
    %v5949 = vld [vmem:[#allocation8 + $0x150] sm:$0xff]
    %v5950 = vld [vmem:[#allocation8 + $0x158] sm:$0xff]
    %v5951 = vld [vmem:[#allocation8 + $0x160] sm:$0xff]
    %v5952 = vld [vmem:[#allocation8 + $0x168] sm:$0xff]
    %v5953 = vld [vmem:[#allocation8 + $0x170] sm:$0xff]
    %v5954 = vld [vmem:[#allocation8 + $0x178] sm:$0xff]
    %v5955 = vld [vmem:[#allocation8 + $0x180] sm:$0xff]
    %v5956 = vld [vmem:[#allocation8 + $0x188] sm:$0xff]
    %v5957 = vld [vmem:[#allocation8 + $0x190] sm:$0xff]
    %v5958 = vld [vmem:[#allocation8 + $0x198] sm:$0xff]
    %v5959 = vld [vmem:[#allocation8 + $0x1a0] sm:$0xff]
    %v5960 = vld [vmem:[#allocation8 + $0x1a8] sm:$0xff]
    %v5961 = vld [vmem:[#allocation8 + $0x1b0] sm:$0xff]
    %v5962 = vld [vmem:[#allocation8 + $0x1b8] sm:$0xff]
    %v5963 = vld [vmem:[#allocation8 + $0x1c0] sm:$0xff]
    %v5964 = vld [vmem:[#allocation8 + $0x1c8] sm:$0xff]
    %v5965 = vld [vmem:[#allocation8 + $0x1d0] sm:$0xff]
    %v5966 = vld [vmem:[#allocation8 + $0x1d8] sm:$0xff]
    %v5967 = vld [vmem:[#allocation8 + $0x1e0] sm:$0xff]
    %v5968 = vld [vmem:[#allocation8 + $0x1e8] sm:$0xff]
    %v5969 = vld [vmem:[#allocation8 + $0x1f0] sm:$0xff]
    %v5970 = vld [vmem:[#allocation8 + $0x1f8] sm:$0xff]
    %v5971 = vld [vmem:[%s43] sm:$0x3]
    %v5972 = vpack.c.bf16 %v5903, %v5903
    %v5973 = vpack.c.bf16 %v5904, %v5904
    %v5974 = vpack.c.bf16 %v5905, %v5905
    %v5975 = vpack.c.bf16 %v5906, %v5906
    %v5977 = vlaneseq
    %v5978 = vshrl.u32 %v5977, 7
    %v5979 = vsub.s32 0, %v5978
    %v5980 = vrot.slane %v5971, %v5979
    %v5981 = vlaneseq
    %v5982 = vshrl.u32 %v5981, 7
    %v5983 = vsub.s32 1, %v5982
    %v5984 = vrot.slane %v5971, %v5983
    %v6051 = vunpack.c.l.b16 %v5907
    %v6052 = vunpack.c.h.b16 %v5907
    %v6053 = vunpack.c.l.b16 %v5908
    %v6054 = vunpack.c.h.b16 %v5908
    %v6055 = vunpack.c.l.b16 %v5909
    %v6056 = vunpack.c.h.b16 %v5909
    %v6057 = vunpack.c.l.b16 %v5910
    %v6058 = vunpack.c.h.b16 %v5910
    %v6059 = vunpack.c.l.b16 %v5911
    %v6060 = vunpack.c.h.b16 %v5911
    %v6061 = vunpack.c.l.b16 %v5912
    %v6062 = vunpack.c.h.b16 %v5912
    %v6063 = vunpack.c.l.b16 %v5913
    %v6064 = vunpack.c.h.b16 %v5913
    %v6065 = vunpack.c.l.b16 %v5914
    %v6066 = vunpack.c.h.b16 %v5914
    %v6067 = vunpack.c.l.b16 %v5915
    %v6068 = vunpack.c.h.b16 %v5915
    %v6069 = vunpack.c.l.b16 %v5916
    %v6070 = vunpack.c.h.b16 %v5916
    %v6071 = vunpack.c.l.b16 %v5917
    %v6072 = vunpack.c.h.b16 %v5917
    %v6073 = vunpack.c.l.b16 %v5918
    %v6074 = vunpack.c.h.b16 %v5918
    %v6075 = vunpack.c.l.b16 %v5919
    %v6076 = vunpack.c.h.b16 %v5919
    %v6077 = vunpack.c.l.b16 %v5920
    %v6078 = vunpack.c.h.b16 %v5920
    %v6079 = vunpack.c.l.b16 %v5921
    %v6080 = vunpack.c.h.b16 %v5921
    %v6081 = vunpack.c.l.b16 %v5922
    %v6082 = vunpack.c.h.b16 %v5922
    %v6083 = vunpack.c.l.b16 %v5923
    %v6084 = vunpack.c.h.b16 %v5923
    %v6085 = vunpack.c.l.b16 %v5924
    %v6086 = vunpack.c.h.b16 %v5924
    %v6087 = vunpack.c.l.b16 %v5925
    %v6088 = vunpack.c.h.b16 %v5925
    %v6089 = vunpack.c.l.b16 %v5926
    %v6090 = vunpack.c.h.b16 %v5926
    %v6091 = vunpack.c.l.b16 %v5927
    %v6092 = vunpack.c.h.b16 %v5927
    %v6093 = vunpack.c.l.b16 %v5928
    %v6094 = vunpack.c.h.b16 %v5928
    %v6095 = vunpack.c.l.b16 %v5929
    %v6096 = vunpack.c.h.b16 %v5929
    %v6097 = vunpack.c.l.b16 %v5930
    %v6098 = vunpack.c.h.b16 %v5930
    %v6099 = vunpack.c.l.b16 %v5931
    %v6100 = vunpack.c.h.b16 %v5931
    %v6101 = vunpack.c.l.b16 %v5932
    %v6102 = vunpack.c.h.b16 %v5932
    %v6103 = vunpack.c.l.b16 %v5933
    %v6104 = vunpack.c.h.b16 %v5933
    %v6105 = vunpack.c.l.b16 %v5934
    %v6106 = vunpack.c.h.b16 %v5934
    %v6107 = vunpack.c.l.b16 %v5935
    %v6108 = vunpack.c.h.b16 %v5935
    %v6109 = vunpack.c.l.b16 %v5936
    %v6110 = vunpack.c.h.b16 %v5936
    %v6111 = vunpack.c.l.b16 %v5937
    %v6112 = vunpack.c.h.b16 %v5937
    %v6113 = vunpack.c.l.b16 %v5938
    %v6114 = vunpack.c.h.b16 %v5938
    %v6115 = vunpack.c.l.b16 %v5939
    %v6116 = vunpack.c.h.b16 %v5939
    %v6117 = vunpack.c.l.b16 %v5940
    %v6118 = vunpack.c.h.b16 %v5940
    %v6119 = vunpack.c.l.b16 %v5941
    %v6120 = vunpack.c.h.b16 %v5941
    %v6121 = vunpack.c.l.b16 %v5942
    %v6122 = vunpack.c.h.b16 %v5942
    %v6123 = vunpack.c.l.b16 %v5943
    %v6124 = vunpack.c.h.b16 %v5943
    %v6125 = vunpack.c.l.b16 %v5944
    %v6126 = vunpack.c.h.b16 %v5944
    %v6127 = vunpack.c.l.b16 %v5945
    %v6128 = vunpack.c.h.b16 %v5945
    %v6129 = vunpack.c.l.b16 %v5946
    %v6130 = vunpack.c.h.b16 %v5946
    %v6131 = vunpack.c.l.b16 %v5947
    %v6132 = vunpack.c.h.b16 %v5947
    %v6133 = vunpack.c.l.b16 %v5948
    %v6134 = vunpack.c.h.b16 %v5948
    %v6135 = vunpack.c.l.b16 %v5949
    %v6136 = vunpack.c.h.b16 %v5949
    %v6137 = vunpack.c.l.b16 %v5950
    %v6138 = vunpack.c.h.b16 %v5950
    %v6139 = vunpack.c.l.b16 %v5951
    %v6140 = vunpack.c.h.b16 %v5951
    %v6141 = vunpack.c.l.b16 %v5952
    %v6142 = vunpack.c.h.b16 %v5952
    %v6143 = vunpack.c.l.b16 %v5953
    %v6144 = vunpack.c.h.b16 %v5953
    %v6145 = vunpack.c.l.b16 %v5954
    %v6146 = vunpack.c.h.b16 %v5954
    %v6147 = vunpack.c.l.b16 %v5955
    %v6148 = vunpack.c.h.b16 %v5955
    %v6149 = vunpack.c.l.b16 %v5956
    %v6150 = vunpack.c.h.b16 %v5956
    %v6151 = vunpack.c.l.b16 %v5957
    %v6152 = vunpack.c.h.b16 %v5957
    %v6153 = vunpack.c.l.b16 %v5958
    %v6154 = vunpack.c.h.b16 %v5958
    %v6155 = vunpack.c.l.b16 %v5959
    %v6156 = vunpack.c.h.b16 %v5959
    %v6157 = vunpack.c.l.b16 %v5960
    %v6158 = vunpack.c.h.b16 %v5960
    %v6159 = vunpack.c.l.b16 %v5961
    %v6160 = vunpack.c.h.b16 %v5961
    %v6161 = vunpack.c.l.b16 %v5962
    %v6162 = vunpack.c.h.b16 %v5962
    %v6163 = vunpack.c.l.b16 %v5963
    %v6164 = vunpack.c.h.b16 %v5963
    %v6165 = vunpack.c.l.b16 %v5964
    %v6166 = vunpack.c.h.b16 %v5964
    %v6167 = vunpack.c.l.b16 %v5965
    %v6168 = vunpack.c.h.b16 %v5965
    %v6169 = vunpack.c.l.b16 %v5966
    %v6170 = vunpack.c.h.b16 %v5966
    %v6171 = vunpack.c.l.b16 %v5967
    %v6172 = vunpack.c.h.b16 %v5967
    %v6173 = vunpack.c.l.b16 %v5968
    %v6174 = vunpack.c.h.b16 %v5968
    %v6175 = vunpack.c.l.b16 %v5969
    %v6176 = vunpack.c.h.b16 %v5969
    %v6177 = vunpack.c.l.b16 %v5970
    %v6178 = vunpack.c.h.b16 %v5970
    %v6179 = vpack.c.b16 %v6053, %v6051
    %v6180 = vpack.c.b16 %v6054, %v6052
    %v6181 = vpack.c.b16 %v6057, %v6055
    %v6182 = vpack.c.b16 %v6058, %v6056
    %v6183 = vpack.c.b16 %v6061, %v6059
    %v6184 = vpack.c.b16 %v6062, %v6060
    %v6185 = vpack.c.b16 %v6065, %v6063
    %v6186 = vpack.c.b16 %v6066, %v6064
    %v6187 = vpack.c.b16 %v6069, %v6067
    %v6188 = vpack.c.b16 %v6070, %v6068
    %v6189 = vpack.c.b16 %v6073, %v6071
    %v6190 = vpack.c.b16 %v6074, %v6072
    %v6191 = vpack.c.b16 %v6077, %v6075
    %v6192 = vpack.c.b16 %v6078, %v6076
    %v6193 = vpack.c.b16 %v6081, %v6079
    %v6194 = vpack.c.b16 %v6082, %v6080
    %v6195 = vpack.c.b16 %v6085, %v6083
    %v6196 = vpack.c.b16 %v6086, %v6084
    %v6197 = vpack.c.b16 %v6089, %v6087
    %v6198 = vpack.c.b16 %v6090, %v6088
    %v6199 = vpack.c.b16 %v6093, %v6091
    %v6200 = vpack.c.b16 %v6094, %v6092
    %v6201 = vpack.c.b16 %v6097, %v6095
    %v6202 = vpack.c.b16 %v6098, %v6096
    %v6203 = vpack.c.b16 %v6101, %v6099
    %v6204 = vpack.c.b16 %v6102, %v6100
    %v6205 = vpack.c.b16 %v6105, %v6103
    %v6206 = vpack.c.b16 %v6106, %v6104
    %v6207 = vpack.c.b16 %v6109, %v6107
    %v6208 = vpack.c.b16 %v6110, %v6108
    %v6209 = vpack.c.b16 %v6113, %v6111
    %v6210 = vpack.c.b16 %v6114, %v6112
    %v6211 = vpack.c.b16 %v6117, %v6115
    %v6212 = vpack.c.b16 %v6118, %v6116
    %v6213 = vpack.c.b16 %v6121, %v6119
    %v6214 = vpack.c.b16 %v6122, %v6120
    %v6215 = vpack.c.b16 %v6125, %v6123
    %v6216 = vpack.c.b16 %v6126, %v6124
    %v6217 = vpack.c.b16 %v6129, %v6127
    %v6218 = vpack.c.b16 %v6130, %v6128
    %v6219 = vpack.c.b16 %v6133, %v6131
    %v6220 = vpack.c.b16 %v6134, %v6132
    %v6221 = vpack.c.b16 %v6137, %v6135
    %v6222 = vpack.c.b16 %v6138, %v6136
    %v6223 = vpack.c.b16 %v6141, %v6139
    %v6224 = vpack.c.b16 %v6142, %v6140
    %v6225 = vpack.c.b16 %v6145, %v6143
    %v6226 = vpack.c.b16 %v6146, %v6144
    %v6227 = vpack.c.b16 %v6149, %v6147
    %v6228 = vpack.c.b16 %v6150, %v6148
    %v6229 = vpack.c.b16 %v6153, %v6151
    %v6230 = vpack.c.b16 %v6154, %v6152
    %v6231 = vpack.c.b16 %v6157, %v6155
    %v6232 = vpack.c.b16 %v6158, %v6156
    %v6233 = vpack.c.b16 %v6161, %v6159
    %v6234 = vpack.c.b16 %v6162, %v6160
    %v6235 = vpack.c.b16 %v6165, %v6163
    %v6236 = vpack.c.b16 %v6166, %v6164
    %v6237 = vpack.c.b16 %v6169, %v6167
    %v6238 = vpack.c.b16 %v6170, %v6168
    %v6239 = vpack.c.b16 %v6173, %v6171
    %v6240 = vpack.c.b16 %v6174, %v6172
    %v6241 = vpack.c.b16 %v6177, %v6175
    %v6242 = vpack.c.b16 %v6178, %v6176
    %6307 = vmatprep.subr.bf16.mxu0 %v6194
    %6308 = vmatpush1.bf16.msra.mxu0 %v6193
    %6309 = vmatprep.subr.bf16.mxu0 %v6192
    %6310 = vmatpush1.bf16.msra.mxu0 %v6191
    %6311 = vmatprep.subr.bf16.mxu0 %v6190
    %6312 = vmatpush1.bf16.msra.mxu0 %v6189
    %6313 = vmatprep.subr.bf16.mxu0 %v6188
    %6314 = vmatpush1.bf16.msra.mxu0 %v6187
    %6315 = vmatprep.subr.bf16.mxu0 %v6186
    %6316 = vmatpush1.bf16.msra.mxu0 %v6185
    %6317 = vmatprep.subr.bf16.mxu0 %v6184
    %6318 = vmatpush1.bf16.msra.mxu0 %v6183
    %6319 = vmatprep.subr.bf16.mxu0 %v6182
    %6320 = vmatpush1.bf16.msra.mxu0 %v6181
    %6321 = vmatprep.subr.bf16.mxu0 %v6180
    %6322 = vmatpush1.bf16.msra.mxu0 %v6179
    %6323 = vmatprep.subr.bf16.mxu0 %v6210
    %6324 = vmatpush2.bf16.msra.mxu0 %v6209
    %6325 = vmatprep.subr.bf16.mxu0 %v6208
    %6326 = vmatpush2.bf16.msra.mxu0 %v6207
    %6327 = vmatprep.subr.bf16.mxu0 %v6206
    %6328 = vmatpush2.bf16.msra.mxu0 %v6205
    %6329 = vmatprep.subr.bf16.mxu0 %v6204
    %6330 = vmatpush2.bf16.msra.mxu0 %v6203
    %6331 = vmatprep.subr.bf16.mxu0 %v6202
    %6332 = vmatpush2.bf16.msra.mxu0 %v6201
    %6333 = vmatprep.subr.bf16.mxu0 %v6200
    %6334 = vmatpush2.bf16.msra.mxu0 %v6199
    %6335 = vmatprep.subr.bf16.mxu0 %v6198
    %6336 = vmatpush2.bf16.msra.mxu0 %v6197
    %6337 = vmatprep.subr.bf16.mxu0 %v6196
    %6338 = vmatpush2.bf16.msra.mxu0 %v6195
    %6339 = vmatprep.mubr.bf16.mxu0 %v5973
    %6340 = vmatmul.mubr.bf16.gmra.mxu0 %v5972
    %v6341 = vpop.f32.mrf.mxu0
    %v6342 = vadd.f32 %v5980, %v6341
    %v6343 = vpop.f32.mrf.mxu0
    %v6344 = vadd.f32 %v5984, %v6343
    %v6345 = vpop.f32.mrf.mxu0
    %v6346 = vpop.f32.mrf.mxu0
    %6347 = vdwg.mxu0
    %6348 = vmatprep.subr.bf16.mxu0 %v6226
    %6349 = vmatpush1.bf16.msra.mxu0 %v6225
    %6350 = vmatprep.subr.bf16.mxu0 %v6224
    %6351 = vmatpush1.bf16.msra.mxu0 %v6223
    %6352 = vmatprep.subr.bf16.mxu0 %v6222
    %6353 = vmatpush1.bf16.msra.mxu0 %v6221
    %6354 = vmatprep.subr.bf16.mxu0 %v6220
    %6355 = vmatpush1.bf16.msra.mxu0 %v6219
    %6356 = vmatprep.subr.bf16.mxu0 %v6218
    %6357 = vmatpush1.bf16.msra.mxu0 %v6217
    %6358 = vmatprep.subr.bf16.mxu0 %v6216
    %6359 = vmatpush1.bf16.msra.mxu0 %v6215
    %6360 = vmatprep.subr.bf16.mxu0 %v6214
    %6361 = vmatpush1.bf16.msra.mxu0 %v6213
    %6362 = vmatprep.subr.bf16.mxu0 %v6212
    %6363 = vmatpush1.bf16.msra.mxu0 %v6211
    %6364 = vmatprep.subr.bf16.mxu0 %v6242
    %6365 = vmatpush2.bf16.msra.mxu0 %v6241
    %6366 = vmatprep.subr.bf16.mxu0 %v6240
    %6367 = vmatpush2.bf16.msra.mxu0 %v6239
    %6368 = vmatprep.subr.bf16.mxu0 %v6238
    %6369 = vmatpush2.bf16.msra.mxu0 %v6237
    %6370 = vmatprep.subr.bf16.mxu0 %v6236
    %6371 = vmatpush2.bf16.msra.mxu0 %v6235
    %6372 = vmatprep.subr.bf16.mxu0 %v6234
    %6373 = vmatpush2.bf16.msra.mxu0 %v6233
    %6374 = vmatprep.subr.bf16.mxu0 %v6232
    %6375 = vmatpush2.bf16.msra.mxu0 %v6231
    %6376 = vmatprep.subr.bf16.mxu0 %v6230
    %6377 = vmatpush2.bf16.msra.mxu0 %v6229
    %6378 = vmatprep.subr.bf16.mxu0 %v6228
    %6379 = vmatpush2.bf16.msra.mxu0 %v6227
    %6380 = vmatprep.mubr.bf16.mxu0 %v5975
    %6381 = vmatmul.mubr.bf16.gmra.mxu0 %v5974
    %v6382 = vpop.f32.mrf.mxu0
    %v6383 = vadd.f32 %v6342, %v6382
    %v6384 = vpop.f32.mrf.mxu0
    %v6385 = vadd.f32 %v6344, %v6384
    %v6386 = vpop.f32.mrf.mxu0
    %v6387 = vpop.f32.mrf.mxu0
    %6388 = vdwg.mxu0
    %v6389 = vmax.f32 %v6383, 0.0
    %v6390 = vmax.f32 %v6385, 0.0
    %v6391 = vld [vmem:[#allocation10] sm:$0xf]
    %v6392 = vld [vmem:[#allocation10 + $0x4] sm:$0xf]
    %v6393 = vld [vmem:[#allocation10 + $0x8] sm:$0xf]
    %v6394 = vld [vmem:[#allocation10 + $0xc] sm:$0xf]
    %v6395 = vld [vmem:[#allocation10 + $0x10] sm:$0xf]
    %v6396 = vld [vmem:[#allocation10 + $0x14] sm:$0xf]
    %v6397 = vld [vmem:[#allocation10 + $0x18] sm:$0xf]
    %v6398 = vld [vmem:[#allocation10 + $0x1c] sm:$0xf]
    %v6399 = vld [vmem:[#allocation10 + $0x20] sm:$0xf]
    %v6400 = vld [vmem:[#allocation10 + $0x24] sm:$0xf]
    %v6401 = vld [vmem:[#allocation10 + $0x28] sm:$0xf]
    %v6402 = vld [vmem:[#allocation10 + $0x2c] sm:$0xf]
    %v6403 = vld [vmem:[#allocation10 + $0x30] sm:$0xf]
    %v6404 = vld [vmem:[#allocation10 + $0x34] sm:$0xf]
    %v6405 = vld [vmem:[#allocation10 + $0x38] sm:$0xf]
    %v6406 = vld [vmem:[#allocation10 + $0x3c] sm:$0xf]
    %v6407 = vld [vmem:[#allocation10 + $0x40] sm:$0xf]
    %v6408 = vld [vmem:[#allocation10 + $0x44] sm:$0xf]
    %v6409 = vld [vmem:[#allocation10 + $0x48] sm:$0xf]
    %v6410 = vld [vmem:[#allocation10 + $0x4c] sm:$0xf]
    %v6411 = vld [vmem:[#allocation10 + $0x50] sm:$0xf]
    %v6412 = vld [vmem:[#allocation10 + $0x54] sm:$0xf]
    %v6413 = vld [vmem:[#allocation10 + $0x58] sm:$0xf]
    %v6414 = vld [vmem:[#allocation10 + $0x5c] sm:$0xf]
    %v6415 = vld [vmem:[#allocation10 + $0x60] sm:$0xf]
    %v6416 = vld [vmem:[#allocation10 + $0x64] sm:$0xf]
    %v6417 = vld [vmem:[#allocation10 + $0x68] sm:$0xf]
    %v6418 = vld [vmem:[#allocation10 + $0x6c] sm:$0xf]
    %v6419 = vld [vmem:[#allocation10 + $0x70] sm:$0xf]
    %v6420 = vld [vmem:[#allocation10 + $0x74] sm:$0xf]
    %v6421 = vld [vmem:[#allocation10 + $0x78] sm:$0xf]
    %v6422 = vld [vmem:[#allocation10 + $0x7c] sm:$0xf]
    %v6423 = vld [vmem:[%s47] sm:$0x1]
    %v6424 = vpack.c.bf16 %v6389, %v6389
    %v6425 = vpack.c.bf16 %v6390, %v6390
    %v6427 = vlaneseq
    %v6428 = vshrl.u32 %v6427, 7
    %v6429 = vsub.s32 0, %v6428
    %v6430 = vrot.slane %v6423, %v6429
    %v6464 = vunpack.c.l.b16 %v6391
    %v6465 = vunpack.c.l.b16 %v6392
    %v6466 = vunpack.c.l.b16 %v6393
    %v6467 = vunpack.c.l.b16 %v6394
    %v6468 = vunpack.c.l.b16 %v6395
    %v6469 = vunpack.c.l.b16 %v6396
    %v6470 = vunpack.c.l.b16 %v6397
    %v6471 = vunpack.c.l.b16 %v6398
    %v6472 = vunpack.c.l.b16 %v6399
    %v6473 = vunpack.c.l.b16 %v6400
    %v6474 = vunpack.c.l.b16 %v6401
    %v6475 = vunpack.c.l.b16 %v6402
    %v6476 = vunpack.c.l.b16 %v6403
    %v6477 = vunpack.c.l.b16 %v6404
    %v6478 = vunpack.c.l.b16 %v6405
    %v6479 = vunpack.c.l.b16 %v6406
    %v6480 = vunpack.c.l.b16 %v6407
    %v6481 = vunpack.c.l.b16 %v6408
    %v6482 = vunpack.c.l.b16 %v6409
    %v6483 = vunpack.c.l.b16 %v6410
    %v6484 = vunpack.c.l.b16 %v6411
    %v6485 = vunpack.c.l.b16 %v6412
    %v6486 = vunpack.c.l.b16 %v6413
    %v6487 = vunpack.c.l.b16 %v6414
    %v6488 = vunpack.c.l.b16 %v6415
    %v6489 = vunpack.c.l.b16 %v6416
    %v6490 = vunpack.c.l.b16 %v6417
    %v6491 = vunpack.c.l.b16 %v6418
    %v6492 = vunpack.c.l.b16 %v6419
    %v6493 = vunpack.c.l.b16 %v6420
    %v6494 = vunpack.c.l.b16 %v6421
    %v6495 = vunpack.c.l.b16 %v6422
    %v6496 = vpack.c.b16 %v6465, %v6464
    %v6497 = vpack.c.b16 %v6467, %v6466
    %v6498 = vpack.c.b16 %v6469, %v6468
    %v6499 = vpack.c.b16 %v6471, %v6470
    %v6500 = vpack.c.b16 %v6473, %v6472
    %v6501 = vpack.c.b16 %v6475, %v6474
    %v6502 = vpack.c.b16 %v6477, %v6476
    %v6503 = vpack.c.b16 %v6479, %v6478
    %v6504 = vpack.c.b16 %v6481, %v6480
    %v6505 = vpack.c.b16 %v6483, %v6482
    %v6506 = vpack.c.b16 %v6485, %v6484
    %v6507 = vpack.c.b16 %v6487, %v6486
    %v6508 = vpack.c.b16 %v6489, %v6488
    %v6509 = vpack.c.b16 %v6491, %v6490
    %v6510 = vpack.c.b16 %v6493, %v6492
    %v6511 = vpack.c.b16 %v6495, %v6494
    %6528 = vmatprep.subr.bf16.mxu0 0
    %6529 = vmatpush1.bf16.msra.mxu0 %v6503
    %6530 = vmatprep.subr.bf16.mxu0 0
    %6531 = vmatpush1.bf16.msra.mxu0 %v6502
    %6532 = vmatprep.subr.bf16.mxu0 0
    %6533 = vmatpush1.bf16.msra.mxu0 %v6501
    %6534 = vmatprep.subr.bf16.mxu0 0
    %6535 = vmatpush1.bf16.msra.mxu0 %v6500
    %6536 = vmatprep.subr.bf16.mxu0 0
    %6537 = vmatpush1.bf16.msra.mxu0 %v6499
    %6538 = vmatprep.subr.bf16.mxu0 0
    %6539 = vmatpush1.bf16.msra.mxu0 %v6498
    %6540 = vmatprep.subr.bf16.mxu0 0
    %6541 = vmatpush1.bf16.msra.mxu0 %v6497
    %6542 = vmatprep.subr.bf16.mxu0 0
    %6543 = vmatpush1.bf16.msra.mxu0 %v6496
    %6544 = vmatprep.subr.bf16.mxu0 0
    %6545 = vmatpush2.bf16.msra.mxu0 %v6511
    %6546 = vmatprep.subr.bf16.mxu0 0
    %6547 = vmatpush2.bf16.msra.mxu0 %v6510
    %6548 = vmatprep.subr.bf16.mxu0 0
    %6549 = vmatpush2.bf16.msra.mxu0 %v6509
    %6550 = vmatprep.subr.bf16.mxu0 0
    %6551 = vmatpush2.bf16.msra.mxu0 %v6508
    %6552 = vmatprep.subr.bf16.mxu0 0
    %6553 = vmatpush2.bf16.msra.mxu0 %v6507
    %6554 = vmatprep.subr.bf16.mxu0 0
    %6555 = vmatpush2.bf16.msra.mxu0 %v6506
    %6556 = vmatprep.subr.bf16.mxu0 0
    %6557 = vmatpush2.bf16.msra.mxu0 %v6505
    %6558 = vmatprep.subr.bf16.mxu0 0
    %6559 = vmatpush2.bf16.msra.mxu0 %v6504
    %6560 = vmatprep.mubr.bf16.mxu0 %v6425
    %6561 = vmatmul.mubr.bf16.gmra.mxu0 %v6424
    %v6562 = vpop.f32.mrf.mxu0
    %v6563 = vadd.f32 %v6430, %v6562
    %v6564 = vpop.f32.mrf.mxu0
    %v6565 = vpop.f32.mrf.mxu0
    %v6566 = vpop.f32.mrf.mxu0
    %6567 = vdwg.mxu0
    %v6568 = vmax.f32 %v6563, 0.0
    %v6569 = vld [vmem:[#allocation11] sm:$0xf]
    %v6570 = vld [vmem:[#allocation11 + $0x4] sm:$0xf]
    %v6571 = vld [vmem:[#allocation11 + $0x8] sm:$0xf]
    %v6572 = vld [vmem:[#allocation11 + $0xc] sm:$0xf]
    %v6573 = vld [vmem:[#allocation11 + $0x10] sm:$0xf]
    %v6574 = vld [vmem:[#allocation11 + $0x14] sm:$0xf]
    %v6575 = vld [vmem:[#allocation11 + $0x18] sm:$0xf]
    %v6576 = vld [vmem:[#allocation11 + $0x1c] sm:$0xf]
    %v6577 = vld [vmem:[#allocation11 + $0x20] sm:$0xf]
    %v6578 = vld [vmem:[#allocation11 + $0x24] sm:$0xf]
    %v6579 = vld [vmem:[#allocation11 + $0x28] sm:$0xf]
    %v6580 = vld [vmem:[#allocation11 + $0x2c] sm:$0xf]
    %v6581 = vld [vmem:[#allocation11 + $0x30] sm:$0xf]
    %v6582 = vld [vmem:[#allocation11 + $0x34] sm:$0xf]
    %v6583 = vld [vmem:[#allocation11 + $0x38] sm:$0xf]
    %v6584 = vld [vmem:[#allocation11 + $0x3c] sm:$0xf]
    %v6585 = vld [vmem:[%s51] sm:$0x1]
    %v6586 = vpack.c.bf16 %v6568, %v6568
    %v6588 = vlaneseq
    %v6589 = vshrl.u32 %v6588, 7
    %v6590 = vsub.s32 0, %v6589
    %v6591 = vrot.slane %v6585, %v6590
    %v6609 = vunpack.c.l.b16 %v6569
    %v6610 = vunpack.c.l.b16 %v6570
    %v6611 = vunpack.c.l.b16 %v6571
    %v6612 = vunpack.c.l.b16 %v6572
    %v6613 = vunpack.c.l.b16 %v6573
    %v6614 = vunpack.c.l.b16 %v6574
    %v6615 = vunpack.c.l.b16 %v6575
    %v6616 = vunpack.c.l.b16 %v6576
    %v6617 = vunpack.c.l.b16 %v6577
    %v6618 = vunpack.c.l.b16 %v6578
    %v6619 = vunpack.c.l.b16 %v6579
    %v6620 = vunpack.c.l.b16 %v6580
    %v6621 = vunpack.c.l.b16 %v6581
    %v6622 = vunpack.c.l.b16 %v6582
    %v6623 = vunpack.c.l.b16 %v6583
    %v6624 = vunpack.c.l.b16 %v6584
    %v6625 = vpack.c.b16 %v6610, %v6609
    %v6626 = vpack.c.b16 %v6612, %v6611
    %v6627 = vpack.c.b16 %v6614, %v6613
    %v6628 = vpack.c.b16 %v6616, %v6615
    %v6629 = vpack.c.b16 %v6618, %v6617
    %v6630 = vpack.c.b16 %v6620, %v6619
    %v6631 = vpack.c.b16 %v6622, %v6621
    %v6632 = vpack.c.b16 %v6624, %v6623
    %6641 = vmatprep.subr.bf16.mxu0 0
    %6642 = vmatpush1.bf16.msra.mxu0 %v6632
    %6643 = vmatprep.subr.bf16.mxu0 0
    %6644 = vmatpush1.bf16.msra.mxu0 %v6631
    %6645 = vmatprep.subr.bf16.mxu0 0
    %6646 = vmatpush1.bf16.msra.mxu0 %v6630
    %6647 = vmatprep.subr.bf16.mxu0 0
    %6648 = vmatpush1.bf16.msra.mxu0 %v6629
    %6649 = vmatprep.subr.bf16.mxu0 0
    %6650 = vmatpush1.bf16.msra.mxu0 %v6628
    %6651 = vmatprep.subr.bf16.mxu0 0
    %6652 = vmatpush1.bf16.msra.mxu0 %v6627
    %6653 = vmatprep.subr.bf16.mxu0 0
    %6654 = vmatpush1.bf16.msra.mxu0 %v6626
    %6655 = vmatprep.subr.bf16.mxu0 0
    %6656 = vmatpush1.bf16.msra.mxu0 %v6625
    %6657 = vmatprep.subr.bf16.mxu0 0
    %6658 = vmatpush2.bf16.msra.mxu0 0
    %6659 = vmatprep.subr.bf16.mxu0 0
    %6660 = vmatpush2.bf16.msra.mxu0 0
    %6661 = vmatprep.subr.bf16.mxu0 0
    %6662 = vmatpush2.bf16.msra.mxu0 0
    %6663 = vmatprep.subr.bf16.mxu0 0
    %6664 = vmatpush2.bf16.msra.mxu0 0
    %6665 = vmatprep.subr.bf16.mxu0 0
    %6666 = vmatpush2.bf16.msra.mxu0 0
    %6667 = vmatprep.subr.bf16.mxu0 0
    %6668 = vmatpush2.bf16.msra.mxu0 0
    %6669 = vmatprep.subr.bf16.mxu0 0
    %6670 = vmatpush2.bf16.msra.mxu0 0
    %6671 = vmatprep.subr.bf16.mxu0 0
    %6672 = vmatpush2.bf16.msra.mxu0 0
    %6673 = vmatprep.mubr.bf16.mxu0 0
    %6674 = vmatmul.mubr.bf16.gmra.mxu0 %v6586
    %v6675 = vpop.f32.mrf.mxu0
    %v6676 = vadd.f32 %v6591, %v6675
    %v6677 = vpop.f32.mrf.mxu0
    %v6678 = vpop.f32.mrf.mxu0
    %v6679 = vpop.f32.mrf.mxu0
    %6680 = vdwg.mxu0
    %v6681 = vmax.f32 %v6676, 0.0
    %v6682 = vld [vmem:[#allocation13] sm:$0xf]
    %v6683 = vld [vmem:[#allocation13 + $0x4] sm:$0xf]
    %v6684 = vld [vmem:[#allocation13 + $0x8] sm:$0xf]
    %v6685 = vld [vmem:[#allocation13 + $0xc] sm:$0xf]
    %v6686 = vld [vmem:[#allocation13 + $0x10] sm:$0xf]
    %v6687 = vld [vmem:[#allocation13 + $0x14] sm:$0xf]
    %v6688 = vld [vmem:[#allocation13 + $0x18] sm:$0xf]
    %v6689 = vld [vmem:[#allocation13 + $0x1c] sm:$0xf]
    %v6690 = vld [vmem:[#allocation13 + $0x20] sm:$0xf]
    %v6691 = vld [vmem:[#allocation13 + $0x24] sm:$0xf]
    %v6692 = vld [vmem:[#allocation13 + $0x28] sm:$0xf]
    %v6693 = vld [vmem:[#allocation13 + $0x2c] sm:$0xf]
    %v6694 = vld [vmem:[#allocation13 + $0x30] sm:$0xf]
    %v6695 = vld [vmem:[#allocation13 + $0x34] sm:$0xf]
    %v6696 = vld [vmem:[#allocation13 + $0x38] sm:$0xf]
    %v6697 = vld [vmem:[#allocation13 + $0x3c] sm:$0xf]
    %v6698 = vld [vmem:[%s55] sm:$0x1]
    %v6699 = vpack.c.bf16 %v6681, %v6681
    %v6701 = vlaneseq
    %v6702 = vshrl.u32 %v6701, 7
    %v6703 = vsub.s32 0, %v6702
    %v6704 = vrot.slane %v6698, %v6703
    %v6722 = vunpack.c.l.b16 %v6682
    %v6723 = vunpack.c.l.b16 %v6683
    %v6724 = vunpack.c.l.b16 %v6684
    %v6725 = vunpack.c.l.b16 %v6685
    %v6726 = vunpack.c.l.b16 %v6686
    %v6727 = vunpack.c.l.b16 %v6687
    %v6728 = vunpack.c.l.b16 %v6688
    %v6729 = vunpack.c.l.b16 %v6689
    %v6730 = vunpack.c.l.b16 %v6690
    %v6731 = vunpack.c.l.b16 %v6691
    %v6732 = vunpack.c.l.b16 %v6692
    %v6733 = vunpack.c.l.b16 %v6693
    %v6734 = vunpack.c.l.b16 %v6694
    %v6735 = vunpack.c.l.b16 %v6695
    %v6736 = vunpack.c.l.b16 %v6696
    %v6737 = vunpack.c.l.b16 %v6697
    %v6738 = vpack.c.b16 %v6723, %v6722
    %v6739 = vpack.c.b16 %v6725, %v6724
    %v6740 = vpack.c.b16 %v6727, %v6726
    %v6741 = vpack.c.b16 %v6729, %v6728
    %v6742 = vpack.c.b16 %v6731, %v6730
    %v6743 = vpack.c.b16 %v6733, %v6732
    %v6744 = vpack.c.b16 %v6735, %v6734
    %v6745 = vpack.c.b16 %v6737, %v6736
    %6754 = vmatprep.subr.bf16.mxu0 0
    %6755 = vmatpush1.bf16.msra.mxu0 %v6745
    %6756 = vmatprep.subr.bf16.mxu0 0
    %6757 = vmatpush1.bf16.msra.mxu0 %v6744
    %6758 = vmatprep.subr.bf16.mxu0 0
    %6759 = vmatpush1.bf16.msra.mxu0 %v6743
    %6760 = vmatprep.subr.bf16.mxu0 0
    %6761 = vmatpush1.bf16.msra.mxu0 %v6742
    %6762 = vmatprep.subr.bf16.mxu0 0
    %6763 = vmatpush1.bf16.msra.mxu0 %v6741
    %6764 = vmatprep.subr.bf16.mxu0 0
    %6765 = vmatpush1.bf16.msra.mxu0 %v6740
    %6766 = vmatprep.subr.bf16.mxu0 0
    %6767 = vmatpush1.bf16.msra.mxu0 %v6739
    %6768 = vmatprep.subr.bf16.mxu0 0
    %6769 = vmatpush1.bf16.msra.mxu0 %v6738
    %6770 = vmatprep.subr.bf16.mxu0 0
    %6771 = vmatpush2.bf16.msra.mxu0 0
    %6772 = vmatprep.subr.bf16.mxu0 0
    %6773 = vmatpush2.bf16.msra.mxu0 0
    %6774 = vmatprep.subr.bf16.mxu0 0
    %6775 = vmatpush2.bf16.msra.mxu0 0
    %6776 = vmatprep.subr.bf16.mxu0 0
    %6777 = vmatpush2.bf16.msra.mxu0 0
    %6778 = vmatprep.subr.bf16.mxu0 0
    %6779 = vmatpush2.bf16.msra.mxu0 0
    %6780 = vmatprep.subr.bf16.mxu0 0
    %6781 = vmatpush2.bf16.msra.mxu0 0
    %6782 = vmatprep.subr.bf16.mxu0 0
    %6783 = vmatpush2.bf16.msra.mxu0 0
    %6784 = vmatprep.subr.bf16.mxu0 0
    %6785 = vmatpush2.bf16.msra.mxu0 0
    %6786 = vmatprep.mubr.bf16.mxu0 0
    %6787 = vmatmul.mubr.bf16.gmra.mxu0 %v6699
    %v6788 = vpop.f32.mrf.mxu0
    %v6789 = vadd.f32 %v6704, %v6788
    %v6790 = vpop.f32.mrf.mxu0
    %v6791 = vpop.f32.mrf.mxu0
    %v6792 = vpop.f32.mrf.mxu0
    %6793 = vdwg.mxu0
    %v6794 = vmax.f32 %v6789, 0.0
    %v6795 = vld [vmem:[#allocation14] sm:$0xf]
    %v6796 = vld [vmem:[#allocation14 + $0x4] sm:$0xf]
    %v6797 = vld [vmem:[#allocation14 + $0x8] sm:$0xf]
    %v6798 = vld [vmem:[#allocation14 + $0xc] sm:$0xf]
    %v6799 = vld [vmem:[#allocation14 + $0x10] sm:$0xf]
    %v6800 = vld [vmem:[#allocation14 + $0x14] sm:$0xf]
    %v6801 = vld [vmem:[#allocation14 + $0x18] sm:$0xf]
    %v6802 = vld [vmem:[#allocation14 + $0x1c] sm:$0xf]
    %v6803 = vld [vmem:[#allocation14 + $0x20] sm:$0xf]
    %v6804 = vld [vmem:[#allocation14 + $0x24] sm:$0xf]
    %v6805 = vld [vmem:[#allocation14 + $0x28] sm:$0xf]
    %v6806 = vld [vmem:[#allocation14 + $0x2c] sm:$0xf]
    %v6807 = vld [vmem:[#allocation14 + $0x30] sm:$0xf]
    %v6808 = vld [vmem:[#allocation14 + $0x34] sm:$0xf]
    %v6809 = vld [vmem:[#allocation14 + $0x38] sm:$0xf]
    %v6810 = vld [vmem:[#allocation14 + $0x3c] sm:$0xf]
    %v6811 = vld [vmem:[%s59] sm:$0x1]
    %v6812 = vpack.c.bf16 %v6794, %v6794
    %v6814 = vlaneseq
    %v6815 = vshrl.u32 %v6814, 7
    %v6816 = vsub.s32 0, %v6815
    %v6817 = vrot.slane %v6811, %v6816
    %v6835 = vunpack.c.l.b16 %v6795
    %v6836 = vunpack.c.l.b16 %v6796
    %v6837 = vunpack.c.l.b16 %v6797
    %v6838 = vunpack.c.l.b16 %v6798
    %v6839 = vunpack.c.l.b16 %v6799
    %v6840 = vunpack.c.l.b16 %v6800
    %v6841 = vunpack.c.l.b16 %v6801
    %v6842 = vunpack.c.l.b16 %v6802
    %v6843 = vunpack.c.l.b16 %v6803
    %v6844 = vunpack.c.l.b16 %v6804
    %v6845 = vunpack.c.l.b16 %v6805
    %v6846 = vunpack.c.l.b16 %v6806
    %v6847 = vunpack.c.l.b16 %v6807
    %v6848 = vunpack.c.l.b16 %v6808
    %v6849 = vunpack.c.l.b16 %v6809
    %v6850 = vunpack.c.l.b16 %v6810
    %v6851 = vpack.c.b16 %v6836, %v6835
    %v6852 = vpack.c.b16 %v6838, %v6837
    %v6853 = vpack.c.b16 %v6840, %v6839
    %v6854 = vpack.c.b16 %v6842, %v6841
    %v6855 = vpack.c.b16 %v6844, %v6843
    %v6856 = vpack.c.b16 %v6846, %v6845
    %v6857 = vpack.c.b16 %v6848, %v6847
    %v6858 = vpack.c.b16 %v6850, %v6849
    %6867 = vmatprep.subr.bf16.mxu0 0
    %6868 = vmatpush1.bf16.msra.mxu0 %v6858
    %6869 = vmatprep.subr.bf16.mxu0 0
    %6870 = vmatpush1.bf16.msra.mxu0 %v6857
    %6871 = vmatprep.subr.bf16.mxu0 0
    %6872 = vmatpush1.bf16.msra.mxu0 %v6856
    %6873 = vmatprep.subr.bf16.mxu0 0
    %6874 = vmatpush1.bf16.msra.mxu0 %v6855
    %6875 = vmatprep.subr.bf16.mxu0 0
    %6876 = vmatpush1.bf16.msra.mxu0 %v6854
    %6877 = vmatprep.subr.bf16.mxu0 0
    %6878 = vmatpush1.bf16.msra.mxu0 %v6853
    %6879 = vmatprep.subr.bf16.mxu0 0
    %6880 = vmatpush1.bf16.msra.mxu0 %v6852
    %6881 = vmatprep.subr.bf16.mxu0 0
    %6882 = vmatpush1.bf16.msra.mxu0 %v6851
    %6883 = vmatprep.subr.bf16.mxu0 0
    %6884 = vmatpush2.bf16.msra.mxu0 0
    %6885 = vmatprep.subr.bf16.mxu0 0
    %6886 = vmatpush2.bf16.msra.mxu0 0
    %6887 = vmatprep.subr.bf16.mxu0 0
    %6888 = vmatpush2.bf16.msra.mxu0 0
    %6889 = vmatprep.subr.bf16.mxu0 0
    %6890 = vmatpush2.bf16.msra.mxu0 0
    %6891 = vmatprep.subr.bf16.mxu0 0
    %6892 = vmatpush2.bf16.msra.mxu0 0
    %6893 = vmatprep.subr.bf16.mxu0 0
    %6894 = vmatpush2.bf16.msra.mxu0 0
    %6895 = vmatprep.subr.bf16.mxu0 0
    %6896 = vmatpush2.bf16.msra.mxu0 0
    %6897 = vmatprep.subr.bf16.mxu0 0
    %6898 = vmatpush2.bf16.msra.mxu0 0
    %6899 = vmatprep.mubr.bf16.mxu0 0
    %6900 = vmatmul.mubr.bf16.gmra.mxu0 %v6812
    %v6901 = vpop.f32.mrf.mxu0
    %v6902 = vadd.f32 %v6817, %v6901
    %v6903 = vpop.f32.mrf.mxu0
    %v6904 = vpop.f32.mrf.mxu0
    %v6905 = vpop.f32.mrf.mxu0
    %6906 = vdwg.mxu0
    %v6907 = vmax.f32 %v6902, 0.0
    %v6908 = vld [vmem:[#allocation16] sm:$0xf]
    %v6909 = vld [vmem:[#allocation16 + $0x4] sm:$0xf]
    %v6910 = vld [vmem:[#allocation16 + $0x8] sm:$0xf]
    %v6911 = vld [vmem:[#allocation16 + $0xc] sm:$0xf]
    %v6912 = vld [vmem:[#allocation16 + $0x10] sm:$0xf]
    %v6913 = vld [vmem:[#allocation16 + $0x14] sm:$0xf]
    %v6914 = vld [vmem:[#allocation16 + $0x18] sm:$0xf]
    %v6915 = vld [vmem:[#allocation16 + $0x1c] sm:$0xf]
    %v6916 = vld [vmem:[#allocation16 + $0x20] sm:$0xf]
    %v6917 = vld [vmem:[#allocation16 + $0x24] sm:$0xf]
    %v6918 = vld [vmem:[#allocation16 + $0x28] sm:$0xf]
    %v6919 = vld [vmem:[#allocation16 + $0x2c] sm:$0xf]
    %v6920 = vld [vmem:[#allocation16 + $0x30] sm:$0xf]
    %v6921 = vld [vmem:[#allocation16 + $0x34] sm:$0xf]
    %v6922 = vld [vmem:[#allocation16 + $0x38] sm:$0xf]
    %v6923 = vld [vmem:[#allocation16 + $0x3c] sm:$0xf]
    %v6924 = vld [vmem:[%s63] sm:$0x1]
    %v6925 = vpack.c.bf16 %v6907, %v6907
    %v6927 = vlaneseq
    %v6928 = vshrl.u32 %v6927, 7
    %v6929 = vsub.s32 0, %v6928
    %v6930 = vrot.slane %v6924, %v6929
    %v6948 = vunpack.c.l.b16 %v6908
    %v6949 = vunpack.c.l.b16 %v6909
    %v6950 = vunpack.c.l.b16 %v6910
    %v6951 = vunpack.c.l.b16 %v6911
    %v6952 = vunpack.c.l.b16 %v6912
    %v6953 = vunpack.c.l.b16 %v6913
    %v6954 = vunpack.c.l.b16 %v6914
    %v6955 = vunpack.c.l.b16 %v6915
    %v6956 = vunpack.c.l.b16 %v6916
    %v6957 = vunpack.c.l.b16 %v6917
    %v6958 = vunpack.c.l.b16 %v6918
    %v6959 = vunpack.c.l.b16 %v6919
    %v6960 = vunpack.c.l.b16 %v6920
    %v6961 = vunpack.c.l.b16 %v6921
    %v6962 = vunpack.c.l.b16 %v6922
    %v6963 = vunpack.c.l.b16 %v6923
    %v6964 = vpack.c.b16 %v6949, %v6948
    %v6965 = vpack.c.b16 %v6951, %v6950
    %v6966 = vpack.c.b16 %v6953, %v6952
    %v6967 = vpack.c.b16 %v6955, %v6954
    %v6968 = vpack.c.b16 %v6957, %v6956
    %v6969 = vpack.c.b16 %v6959, %v6958
    %v6970 = vpack.c.b16 %v6961, %v6960
    %v6971 = vpack.c.b16 %v6963, %v6962
    %6980 = vmatprep.subr.bf16.mxu0 0
    %6981 = vmatpush1.bf16.msra.mxu0 %v6971
    %6982 = vmatprep.subr.bf16.mxu0 0
    %6983 = vmatpush1.bf16.msra.mxu0 %v6970
    %6984 = vmatprep.subr.bf16.mxu0 0
    %6985 = vmatpush1.bf16.msra.mxu0 %v6969
    %6986 = vmatprep.subr.bf16.mxu0 0
    %6987 = vmatpush1.bf16.msra.mxu0 %v6968
    %6988 = vmatprep.subr.bf16.mxu0 0
    %6989 = vmatpush1.bf16.msra.mxu0 %v6967
    %6990 = vmatprep.subr.bf16.mxu0 0
    %6991 = vmatpush1.bf16.msra.mxu0 %v6966
    %6992 = vmatprep.subr.bf16.mxu0 0
    %6993 = vmatpush1.bf16.msra.mxu0 %v6965
    %6994 = vmatprep.subr.bf16.mxu0 0
    %6995 = vmatpush1.bf16.msra.mxu0 %v6964
    %6996 = vmatprep.subr.bf16.mxu0 0
    %6997 = vmatpush2.bf16.msra.mxu0 0
    %6998 = vmatprep.subr.bf16.mxu0 0
    %6999 = vmatpush2.bf16.msra.mxu0 0
    %7000 = vmatprep.subr.bf16.mxu0 0
    %7001 = vmatpush2.bf16.msra.mxu0 0
    %7002 = vmatprep.subr.bf16.mxu0 0
    %7003 = vmatpush2.bf16.msra.mxu0 0
    %7004 = vmatprep.subr.bf16.mxu0 0
    %7005 = vmatpush2.bf16.msra.mxu0 0
    %7006 = vmatprep.subr.bf16.mxu0 0
    %7007 = vmatpush2.bf16.msra.mxu0 0
    %7008 = vmatprep.subr.bf16.mxu0 0
    %7009 = vmatpush2.bf16.msra.mxu0 0
    %7010 = vmatprep.subr.bf16.mxu0 0
    %7011 = vmatpush2.bf16.msra.mxu0 0
    %7012 = vmatprep.mubr.bf16.mxu0 0
    %7013 = vmatmul.mubr.bf16.gmra.mxu0 %v6925
    %v7014 = vpop.f32.mrf.mxu0
    %v7015 = vadd.f32 %v6930, %v7014
    %v7016 = vpop.f32.mrf.mxu0
    %v7017 = vpop.f32.mrf.mxu0
    %v7018 = vpop.f32.mrf.mxu0
    %7019 = vdwg.mxu0
    %v7020 = vmax.f32 %v7015, 0.0
    %v7021 = vld [vmem:[#allocation17] sm:$0xf]
    %v7022 = vld [vmem:[#allocation17 + $0x4] sm:$0xf]
    %v7023 = vld [vmem:[#allocation17 + $0x8] sm:$0xf]
    %v7024 = vld [vmem:[#allocation17 + $0xc] sm:$0xf]
    %v7025 = vld [vmem:[#allocation17 + $0x10] sm:$0xf]
    %v7026 = vld [vmem:[#allocation17 + $0x14] sm:$0xf]
    %v7027 = vld [vmem:[#allocation17 + $0x18] sm:$0xf]
    %v7028 = vld [vmem:[#allocation17 + $0x1c] sm:$0xf]
    %v7029 = vld [vmem:[#allocation17 + $0x20] sm:$0xf]
    %v7030 = vld [vmem:[#allocation17 + $0x24] sm:$0xf]
    %v7031 = vld [vmem:[#allocation17 + $0x28] sm:$0xf]
    %v7032 = vld [vmem:[#allocation17 + $0x2c] sm:$0xf]
    %v7033 = vld [vmem:[#allocation17 + $0x30] sm:$0xf]
    %v7034 = vld [vmem:[#allocation17 + $0x34] sm:$0xf]
    %v7035 = vld [vmem:[#allocation17 + $0x38] sm:$0xf]
    %v7036 = vld [vmem:[#allocation17 + $0x3c] sm:$0xf]
    %v7037 = vld [vmem:[%s67] sm:$0x1]
    %v7038 = vpack.c.bf16 %v7020, %v7020
    %v7040 = vlaneseq
    %v7041 = vshrl.u32 %v7040, 7
    %v7042 = vsub.s32 0, %v7041
    %v7043 = vrot.slane %v7037, %v7042
    %v7061 = vunpack.c.l.b16 %v7021
    %v7062 = vunpack.c.l.b16 %v7022
    %v7063 = vunpack.c.l.b16 %v7023
    %v7064 = vunpack.c.l.b16 %v7024
    %v7065 = vunpack.c.l.b16 %v7025
    %v7066 = vunpack.c.l.b16 %v7026
    %v7067 = vunpack.c.l.b16 %v7027
    %v7068 = vunpack.c.l.b16 %v7028
    %v7069 = vunpack.c.l.b16 %v7029
    %v7070 = vunpack.c.l.b16 %v7030
    %v7071 = vunpack.c.l.b16 %v7031
    %v7072 = vunpack.c.l.b16 %v7032
    %v7073 = vunpack.c.l.b16 %v7033
    %v7074 = vunpack.c.l.b16 %v7034
    %v7075 = vunpack.c.l.b16 %v7035
    %v7076 = vunpack.c.l.b16 %v7036
    %v7077 = vpack.c.b16 %v7062, %v7061
    %v7078 = vpack.c.b16 %v7064, %v7063
    %v7079 = vpack.c.b16 %v7066, %v7065
    %v7080 = vpack.c.b16 %v7068, %v7067
    %v7081 = vpack.c.b16 %v7070, %v7069
    %v7082 = vpack.c.b16 %v7072, %v7071
    %v7083 = vpack.c.b16 %v7074, %v7073
    %v7084 = vpack.c.b16 %v7076, %v7075
    %7093 = vmatprep.subr.bf16.mxu0 0
    %7094 = vmatpush1.bf16.msra.mxu0 %v7084
    %7095 = vmatprep.subr.bf16.mxu0 0
    %7096 = vmatpush1.bf16.msra.mxu0 %v7083
    %7097 = vmatprep.subr.bf16.mxu0 0
    %7098 = vmatpush1.bf16.msra.mxu0 %v7082
    %7099 = vmatprep.subr.bf16.mxu0 0
    %7100 = vmatpush1.bf16.msra.mxu0 %v7081
    %7101 = vmatprep.subr.bf16.mxu0 0
    %7102 = vmatpush1.bf16.msra.mxu0 %v7080
    %7103 = vmatprep.subr.bf16.mxu0 0
    %7104 = vmatpush1.bf16.msra.mxu0 %v7079
    %7105 = vmatprep.subr.bf16.mxu0 0
    %7106 = vmatpush1.bf16.msra.mxu0 %v7078
    %7107 = vmatprep.subr.bf16.mxu0 0
    %7108 = vmatpush1.bf16.msra.mxu0 %v7077
    %7109 = vmatprep.subr.bf16.mxu0 0
    %7110 = vmatpush2.bf16.msra.mxu0 0
    %7111 = vmatprep.subr.bf16.mxu0 0
    %7112 = vmatpush2.bf16.msra.mxu0 0
    %7113 = vmatprep.subr.bf16.mxu0 0
    %7114 = vmatpush2.bf16.msra.mxu0 0
    %7115 = vmatprep.subr.bf16.mxu0 0
    %7116 = vmatpush2.bf16.msra.mxu0 0
    %7117 = vmatprep.subr.bf16.mxu0 0
    %7118 = vmatpush2.bf16.msra.mxu0 0
    %7119 = vmatprep.subr.bf16.mxu0 0
    %7120 = vmatpush2.bf16.msra.mxu0 0
    %7121 = vmatprep.subr.bf16.mxu0 0
    %7122 = vmatpush2.bf16.msra.mxu0 0
    %7123 = vmatprep.subr.bf16.mxu0 0
    %7124 = vmatpush2.bf16.msra.mxu0 0
    %7125 = vmatprep.mubr.bf16.mxu0 0
    %7126 = vmatmul.mubr.bf16.gmra.mxu0 %v7038
    %v7127 = vpop.f32.mrf.mxu0
    %v7128 = vadd.f32 %v7043, %v7127
    %v7129 = vpop.f32.mrf.mxu0
    %v7130 = vpop.f32.mrf.mxu0
    %v7131 = vpop.f32.mrf.mxu0
    %7132 = vdwg.mxu0
    %v7133 = vmax.f32 %v7128, 0.0
    %7134 = vst [vmem:[#allocation19] sm:$0x3] %v7133
    // Predicated region
    $region178: #{bert_model_forward.1} parent=1 // pred_check
      _
    $region179: #{bert_model_forward.1} parent=1 // pred_check_branch
      %7136 = sbr.rel (0) target = $region181
    $region180: #{bert_model_forward.1} parent=1 // pred_region
      %s7138 = ssub.s32 32, 32
      %7139 = vsyncadd [#allocation4], %s7138
      %s7141 = sshll.u32 [#allocation19], 4
      %s7142 = int_to_ptr.vmem [resolvable:$true] %s7141
      %7144 = dma.vmem_to_hbm [thread:$0]  %s7142, 32, %s69, [#allocation4]
    $region181: #{bert_model_forward.1} parent=1 // pred_fallthru
      _
    // Predicated region
    $region182: #{bert_model_forward.1} parent=1 // pred_check
      _
    $region183: #{bert_model_forward.1} parent=1 // pred_check_branch
      %7146 = sbr.rel (0) target = $region185
    $region184: #{bert_model_forward.1} parent=1 // pred_region
      %7147 = dma.done [#allocation4], 32
    $region185: #{bert_model_forward.1} parent=1 // pred_fallthru
      _
    %7148 = vsyncpa [#allocation3], 1
    %7149 = vsyncpa [#allocation6], 1
    %7150 = vsyncpa [#allocation9], 1
    %7151 = vsyncpa [#allocation12], 1
    %7152 = vsyncpa [#allocation15], 1
    %7153 = vsyncpa [#allocation18], 1
    %7154 = vsyncpa [#allocation4], 1

</llo_original>
